<compile_context>
chip_gen: v7x
topology: tpu7x:2x2x1
jax: 0.10.0
libtpu: 0.0.40
codegen_flags: <defaults>
</compile_context>

<pallas_src>
import jax
import jax.numpy as jnp
from jax import lax
from jax.experimental import pallas as pl
from jax.experimental.pallas import tpu as pltpu


# -----------------------------------------------------------------------------
# Kernel: fused bidirectional LSTM (PyTorch gate order i,f,g,o) + projection.
# Refs (time-major layout, lane dim = features):
#   x_ref   (T, BT, C)   bf16   input tile
#   wx_ref  (C, 8H)      bf16   fused input->gate weights [fwd 4H | bwd 4H]
#   bx_ref  (1, 8H)      f32    fused (b_ih + b_hh) biases [fwd 4H | bwd 4H]
#   whf_ref (H, 4H)      bf16   W_hh_fwd^T
#   whb_ref (H, 4H)      bf16   W_hh_bwd^T
#   wp_ref  (2H, C)      bf16   projection weight^T, rows [fwd H | bwd H]
#   bp_ref  (1, C)       f32
#   out_ref (T, BT, C)
#   gi_ref  (T, BT, 8H)  bf16   scratch: per-timestep input-gate pre-acts
#   hs_ref  (T, BT, 2H)  bf16   scratch: hidden states [fwd H | bwd H]
# -----------------------------------------------------------------------------
def _bilstm_proj_kernel(x_ref, wx_ref, bx_ref, whf_ref, whb_ref, wp_ref, bp_ref,
                        out_ref, gi_ref, hs_ref):
    T, BT, C = x_ref.shape
    H = whf_ref.shape[0]
    G4 = 4 * H

    # 1) ONE fused lane-dense gate-input matmul for BOTH directions:
    #    (T*BT, C) @ (C, 8H), bf16 operands, f32 accumulate, bf16 scratch.
    x2d = x_ref[...].reshape(T * BT, C)
    gi = jnp.dot(x2d, wx_ref[...], preferred_element_type=jnp.float32) + bx_ref[...]
    gi_ref[...] = gi.reshape(T, BT, 2 * G4).astype(gi_ref.dtype)

    whf = whf_ref[...]                    # (H, 4H) bf16, loaded once / hoisted
    whb = whb_ref[...]

    def lstm_gates(g, c):                 # g: (BT, 4H) f32, PyTorch order i,f,g,o
        i = jax.nn.sigmoid(g[:, 0 * H:1 * H])
        f = jax.nn.sigmoid(g[:, 1 * H:2 * H])
        u = jnp.tanh(g[:, 2 * H:3 * H])
        o = jax.nn.sigmoid(g[:, 3 * H:4 * H])
        c_new = f * c + i * u
        h_new = o * jnp.tanh(c_new)
        return h_new, c_new

    # 2) fused fwd/bwd recurrence: step s advances fwd time s and bwd time
    #    T-1-s; two independent bf16 K=H matmuls per step (serial chain = T).
    def step(s, carry):
        hf, hb, cf, cb = carry            # hf/hb bf16 (BT,H), cf/cb f32 (BT,H)
        tb = T - 1 - s
        gf = (gi_ref[s, :, pl.ds(0, G4)].astype(jnp.float32)
              + jnp.dot(hf, whf, preferred_element_type=jnp.float32))
        gb = (gi_ref[tb, :, pl.ds(G4, G4)].astype(jnp.float32)
              + jnp.dot(hb, whb, preferred_element_type=jnp.float32))
        hf_new, cf_new = lstm_gates(gf, cf)
        hb_new, cb_new = lstm_gates(gb, cb)
        hf_bf = hf_new.astype(jnp.bfloat16)
        hb_bf = hb_new.astype(jnp.bfloat16)
        hs_ref[s, :, pl.ds(0, H)] = hf_bf
        hs_ref[tb, :, pl.ds(H, H)] = hb_bf
        return hf_bf, hb_bf, cf_new, cb_new

    h0 = jnp.zeros((BT, H), jnp.bfloat16)
    c0 = jnp.zeros((BT, H), jnp.float32)
    lax.fori_loop(0, T, step, (h0, h0, c0, c0),
                  unroll=True if T <= 32 else 4)

    # 3) projection for all timesteps in one matmul + one lane-dense store.
    hs2d = hs_ref[...].reshape(T * BT, 2 * H)
    y = jnp.dot(hs2d, wp_ref[...], preferred_element_type=jnp.float32) + bp_ref[...]
    out_ref[...] = y.reshape(T, BT, C).astype(out_ref.dtype)


# -----------------------------------------------------------------------------
# Batch tile selection: largest fitting divisor (sublane-aligned when possible).
# Only demote to an even block count (v7x megacore) if the tile stays >= 128.
# -----------------------------------------------------------------------------
def _choose_batch_tile(batch, per_sample_bytes, budget_bytes):
    divs = [d for d in range(1, batch + 1) if batch % d == 0]
    aligned = [d for d in divs if d % 8 == 0] or divs
    fits = [d for d in aligned if d * per_sample_bytes <= budget_bytes] or aligned[:1]
    bt = fits[-1]
    if (batch // bt) % 2 == 1:
        even = [d for d in fits if (batch // d) % 2 == 0 and d >= 128]
        if even:
            bt = even[-1]
    return bt


# -----------------------------------------------------------------------------
# Wrapper: SingleRNN.forward  (B, T, C) -> (B, T, C)
# Layout plumbing (time-major transpose + bf16 cast) lives in XLA.
# -----------------------------------------------------------------------------
def single_rnn_forward(x, fp):
    B, T, C = x.shape
    H = fp["whf"].shape[0]
    G8 = 8 * H
    out_itemsize = jnp.dtype(x.dtype).itemsize

    # Per-sample VMEM bytes: pipelined x/out tiles, bf16 scratch, and the f32
    # matmul intermediates that exist before the casts.
    per_sample = (2 * T * C * 2                 # x tile (bf16) double-buffered
                  + 2 * T * C * out_itemsize    # out tile, double-buffered
                  + T * G8 * 2                  # gi scratch (bf16)
                  + T * 2 * H * 2               # hs scratch (bf16)
                  + T * G8 * 4                  # f32 gate-input intermediate
                  + T * C * 4                   # f32 projection intermediate
                  + T * C * 2)                  # possible x reshape copy

    weight_bytes = 2 * sum(int(fp[k].size) * jnp.dtype(fp[k].dtype).itemsize
                           for k in ("wx", "bx", "whf", "whb", "wp", "bp"))

    # Generation-aware VMEM budget (128 MiB on v5e/v6e, 64 MiB on v7x).
    try:
        vmem_cap = int(pltpu.get_tpu_info().vmem_capacity_bytes)
    except Exception:
        vmem_cap = 64 << 20
    vmem_cap_limit = min(vmem_cap * 3 // 4, 100 << 20)
    tile_budget = max(vmem_cap_limit - weight_bytes - (4 << 20), 2 << 20)

    BT = _choose_batch_tile(B, per_sample, tile_budget)
    grid = (B // BT,)

    needed = BT * per_sample + weight_bytes + (2 << 20)
    vmem_limit = int(min(max(needed * 3 // 2, 32 << 20), vmem_cap_limit))

    xt = jnp.transpose(x, (1, 0, 2)).astype(jnp.bfloat16)   # (T, B, C) bf16

    yt = pl.pallas_call(
        _bilstm_proj_kernel,
        out_shape=jax.ShapeDtypeStruct((T, B, C), x.dtype),
        grid_spec=pltpu.PrefetchScalarGridSpec(
            num_scalar_prefetch=0,
            grid=grid,
            in_specs=[
                pl.BlockSpec((T, BT, C), lambda i: (0, i, 0)),
                pl.BlockSpec(fp["wx"].shape, lambda i: (0, 0)),
                pl.BlockSpec(fp["bx"].shape, lambda i: (0, 0)),
                pl.BlockSpec(fp["whf"].shape, lambda i: (0, 0)),
                pl.BlockSpec(fp["whb"].shape, lambda i: (0, 0)),
                pl.BlockSpec(fp["wp"].shape, lambda i: (0, 0)),
                pl.BlockSpec(fp["bp"].shape, lambda i: (0, 0)),
            ],
            out_specs=pl.BlockSpec((T, BT, C), lambda i: (0, i, 0)),
            scratch_shapes=[
                pltpu.VMEM((T, BT, G8), jnp.bfloat16),
                pltpu.VMEM((T, BT, 2 * H), jnp.bfloat16),
            ],
        ),
        compiler_params=pltpu.CompilerParams(
            dimension_semantics=("parallel",),
            vmem_limit_bytes=vmem_limit,
        ),
    )(xt, fp["wx"], fp["bx"], fp["whf"], fp["whb"], fp["wp"], fp["bp"])

    return jnp.transpose(yt, (1, 0, 2))


# -----------------------------------------------------------------------------
# Parameters: raw (PyTorch nn.LSTM / nn.Linear layout) + host-side fusion.
# -----------------------------------------------------------------------------
def init_singlernn_params(key, input_size, hidden_size):
    C, H = input_size, hidden_size
    ks = jax.random.split(key, 10)
    s = 0.1
    n = lambda k, shp: s * jax.random.normal(k, shp, jnp.float32)
    return dict(
        wih_f=n(ks[0], (4 * H, C)), whh_f=n(ks[1], (4 * H, H)),
        b_ih_f=n(ks[2], (4 * H,)),  b_hh_f=n(ks[3], (4 * H,)),
        wih_b=n(ks[4], (4 * H, C)), whh_b=n(ks[5], (4 * H, H)),
        b_ih_b=n(ks[6], (4 * H,)),  b_hh_b=n(ks[7], (4 * H,)),
        wp=n(ks[8], (C, 2 * H)),    bp=n(ks[9], (C,)),
    )


def fuse_params(p, w_dtype=jnp.bfloat16):
    """Host-side pre-transpose / fusion of the PyTorch-layout weights."""
    C = p["wih_f"].shape[1]
    H = p["whh_f"].shape[1]
    wx = jnp.concatenate([p["wih_f"].T, p["wih_b"].T], axis=1).astype(w_dtype)
    bx = jnp.concatenate([p["b_ih_f"] + p["b_hh_f"],
                          p["b_ih_b"] + p["b_hh_b"]]).reshape(1, 8 * H)
    whf = p["whh_f"].T.astype(w_dtype)                # (H, 4H)
    whb = p["whh_b"].T.astype(w_dtype)                # (H, 4H)
    wp = p["wp"].T.astype(w_dtype)                    # (2H, C)
    bp = p["bp"].reshape(1, C).astype(jnp.float32)
    return dict(wx=wx, bx=bx.astype(jnp.float32), whf=whf, whb=whb, wp=wp, bp=bp)


# -----------------------------------------------------------------------------
# Pure-JAX reference (f32) for correctness checking.
# -----------------------------------------------------------------------------
def single_rnn_reference(x, raw):
    B, T, C = x.shape
    H = raw["whh_f"].shape[1]

    def run(reverse, wih, whh, bih, bhh):
        def step(carry, xt):
            h, c = carry
            g = xt @ wih.T + bih + h @ whh.T + bhh
            i = jax.nn.sigmoid(g[:, 0 * H:1 * H])
            f = jax.nn.sigmoid(g[:, 1 * H:2 * H])
            u = jnp.tanh(g[:, 2 * H:3 * H])
            o = jax.nn.sigmoid(g[:, 3 * H:4 * H])
            c = f * c + i * u
            h = o * jnp.tanh(c)
            return (h, c), h
        xs = jnp.transpose(x, (1, 0, 2))
        init = (jnp.zeros((B, H), jnp.float32), jnp.zeros((B, H), jnp.float32))
        _, hs = lax.scan(step, init, xs, reverse=reverse)
        return jnp.transpose(hs, (1, 0, 2))

    hf = run(False, raw["wih_f"], raw["whh_f"], raw["b_ih_f"], raw["b_hh_f"])
    hb = run(True,  raw["wih_b"], raw["whh_b"], raw["b_ih_b"], raw["b_hh_b"])
    rnn_out = jnp.concatenate([hf, hb], axis=-1)      # (B, T, 2H), fwd first
    return rnn_out @ raw["wp"].T + raw["bp"]


if __name__ == "__main__":
    key = jax.random.PRNGKey(0)
    B, T = 16, 16                       # batch, seq_len
    input_size, hidden_size = 128, 128  # lane-aligned small shapes

    kx, kp = jax.random.split(key)
    x = jax.random.normal(kx, (B, T, input_size), jnp.float32)
    raw = init_singlernn_params(kp, input_size, hidden_size)
    fused = fuse_params(raw)

    out = jax.jit(single_rnn_forward)(x, fused)
    jax.block_until_ready(out)

    assert out.shape == (B, T, input_size) and out.dtype == jnp.float32
    assert bool(jnp.all(jnp.isfinite(out)))

    ref = single_rnn_reference(x, raw)
    max_err = float(jnp.max(jnp.abs(out - ref)))
    assert max_err < 5e-2, f"mismatch vs reference: max abs err {max_err}"
    print("KERNEL_OK")
</pallas_src>

<mosaic_0001>
module attributes {stable_mosaic.version = 11 : i64} {
  func.func @_bilstm_proj_kernel(%arg0: i32, %arg1: memref<16x16x128xbf16, #tpu.memory_space<vmem>>, %arg2: memref<128x1024xbf16, #tpu.memory_space<vmem>>, %arg3: memref<1x1024xf32, #tpu.memory_space<vmem>>, %arg4: memref<128x512xbf16, #tpu.memory_space<vmem>>, %arg5: memref<128x512xbf16, #tpu.memory_space<vmem>>, %arg6: memref<256x128xbf16, #tpu.memory_space<vmem>>, %arg7: memref<1x128xf32, #tpu.memory_space<vmem>>, %arg8: memref<16x16x128xf32, #tpu.memory_space<vmem>>, %arg9: memref<16x16x1024xbf16, #tpu.memory_space<vmem>>, %arg10: memref<16x16x256xbf16, #tpu.memory_space<vmem>>) attributes {dimension_semantics = [#tpu.dimension_semantics<parallel>], iteration_bounds = array<i64: 1>, scalar_prefetch = 0 : i64, scratch_operands = 2 : i64, tpu.core_type = #tpu.core_type<tc>, window_params = [{transform_indices = @transform_0, window_bounds = array<i64: 16, 16, 128>}, {pipeline_mode = #tpu.pipeline_mode<synchronous>, transform_indices = @transform_1, window_bounds = array<i64: 128, 1024>}, {pipeline_mode = #tpu.pipeline_mode<synchronous>, transform_indices = @transform_2, window_bounds = array<i64: 1, 1024>}, {pipeline_mode = #tpu.pipeline_mode<synchronous>, transform_indices = @transform_3, window_bounds = array<i64: 128, 512>}, {pipeline_mode = #tpu.pipeline_mode<synchronous>, transform_indices = @transform_4, window_bounds = array<i64: 128, 512>}, {pipeline_mode = #tpu.pipeline_mode<synchronous>, transform_indices = @transform_5, window_bounds = array<i64: 256, 128>}, {pipeline_mode = #tpu.pipeline_mode<synchronous>, transform_indices = @transform_6, window_bounds = array<i64: 1, 128>}, {transform_indices = @transform_7, window_bounds = array<i64: 16, 16, 128>}]} {
    %c0 = arith.constant 0 : index
    %c0_0 = arith.constant 0 : index
    %c0_1 = arith.constant 0 : index
    %0 = vector.load %arg1[%c0, %c0_0, %c0_1] : memref<16x16x128xbf16, #tpu.memory_space<vmem>>, vector<16x16x128xbf16>
    %1 = vector.shape_cast %0 : vector<16x16x128xbf16> to vector<256x128xbf16>
    %c0_2 = arith.constant 0 : index
    %c0_3 = arith.constant 0 : index
    %2 = vector.load %arg2[%c0_2, %c0_3] : memref<128x1024xbf16, #tpu.memory_space<vmem>>, vector<128x1024xbf16>
    %cst = arith.constant dense<0.000000e+00> : vector<256x1024xf32>
    %3 = tpu.matmul %1, %2, %cst {dimension_numbers = #tpu.dot_dimension_numbers<[1], [0], [0], [1], [0, 0, 1, 1], [], []>} : vector<256x128xbf16>, vector<128x1024xbf16>, vector<256x1024xf32> -> vector<256x1024xf32>
    %c0_4 = arith.constant 0 : index
    %c0_5 = arith.constant 0 : index
    %4 = vector.load %arg3[%c0_4, %c0_5] : memref<1x1024xf32, #tpu.memory_space<vmem>>, vector<1x1024xf32>
    %5 = vector.broadcast %4 : vector<1x1024xf32> to vector<256x1024xf32>
    %6 = arith.addf %3, %5 : vector<256x1024xf32>
    %7 = vector.shape_cast %6 : vector<256x1024xf32> to vector<16x16x1024xf32>
    %8 = arith.truncf %7 : vector<16x16x1024xf32> to vector<16x16x1024xbf16>
    %c0_6 = arith.constant 0 : index
    %c0_7 = arith.constant 0 : index
    %c0_8 = arith.constant 0 : index
    %9 = vector.load %arg9[%c0_6, %c0_7, %c0_8] : memref<16x16x1024xbf16, #tpu.memory_space<vmem>>, vector<16x16x1024xbf16>
    tpu.vector_store %arg9[%c0_6, %c0_7, %c0_8], %8 {strides = array<i32>} : memref<16x16x1024xbf16, #tpu.memory_space<vmem>>, vector<16x16x1024xbf16>,
    %c0_9 = arith.constant 0 : index
    %c0_10 = arith.constant 0 : index
    %10 = vector.load %arg4[%c0_9, %c0_10] : memref<128x512xbf16, #tpu.memory_space<vmem>>, vector<128x512xbf16>
    %c0_11 = arith.constant 0 : index
    %c0_12 = arith.constant 0 : index
    %11 = vector.load %arg5[%c0_11, %c0_12] : memref<128x512xbf16, #tpu.memory_space<vmem>>, vector<128x512xbf16>
    %cst_13 = arith.constant 0.000000e+00 : bf16
    %12 = vector.broadcast %cst_13 : bf16 to vector<16x128xbf16>
    %cst_14 = arith.constant 0.000000e+00 : f32
    %13 = vector.broadcast %cst_14 : f32 to vector<16x128xf32>
    %c0_i32 = arith.constant 0 : i32
    %c15_i32 = arith.constant 15 : i32
    %14 = arith.subi %c15_i32, %c0_i32 : i32
    %15 = arith.index_cast %c0_i32 : i32 to index
    %c0_15 = arith.constant 0 : index
    %c0_16 = arith.constant 0 : index
    %16 = vector.load %arg9[%15, %c0_15, %c0_16] : memref<16x16x1024xbf16, #tpu.memory_space<vmem>>, vector<1x16x512xbf16>
    %17 = vector.shape_cast %16 : vector<1x16x512xbf16> to vector<16x512xbf16>
    %18 = arith.extf %17 : vector<16x512xbf16> to vector<16x512xf32>
    %cst_17 = arith.constant dense<0.000000e+00> : vector<16x512xf32>
    %19 = tpu.matmul %12, %10, %cst_17 {dimension_numbers = #tpu.dot_dimension_numbers<[1], [0], [0], [1], [0, 0, 1, 1], [], []>} : vector<16x128xbf16>, vector<128x512xbf16>, vector<16x512xf32> -> vector<16x512xf32>
    %20 = arith.addf %18, %19 : vector<16x512xf32>
    %21 = arith.index_cast %14 : i32 to index
    %c0_18 = arith.constant 0 : index
    %c512 = arith.constant 512 : index
    %22 = vector.load %arg9[%21, %c0_18, %c512] : memref<16x16x1024xbf16, #tpu.memory_space<vmem>>, vector<1x16x512xbf16>
    %23 = vector.shape_cast %22 : vector<1x16x512xbf16> to vector<16x512xbf16>
    %24 = arith.extf %23 : vector<16x512xbf16> to vector<16x512xf32>
    %cst_19 = arith.constant dense<0.000000e+00> : vector<16x512xf32>
    %25 = tpu.matmul %12, %11, %cst_19 {dimension_numbers = #tpu.dot_dimension_numbers<[1], [0], [0], [1], [0, 0, 1, 1], [], []>} : vector<16x128xbf16>, vector<128x512xbf16>, vector<16x512xf32> -> vector<16x512xf32>
    %26 = arith.addf %24, %25 : vector<16x512xf32>
    %27 = vector.extract_strided_slice %20 {offsets = [0, 0], sizes = [16, 128], strides = [1, 1]} : vector<16x512xf32> to vector<16x128xf32>
    %28 = arith.negf %27 : vector<16x128xf32>
    %29 = math.exp %28 : vector<16x128xf32>
    %cst_20 = arith.constant 1.000000e+00 : f32
    %30 = vector.broadcast %cst_20 : f32 to vector<16x128xf32>
    %31 = arith.addf %30, %29 : vector<16x128xf32>
    %32 = arith.divf %30, %31 : vector<16x128xf32>
    %33 = vector.extract_strided_slice %20 {offsets = [0, 128], sizes = [16, 128], strides = [1, 1]} : vector<16x512xf32> to vector<16x128xf32>
    %34 = arith.negf %33 : vector<16x128xf32>
    %35 = math.exp %34 : vector<16x128xf32>
    %cst_21 = arith.constant 1.000000e+00 : f32
    %36 = vector.broadcast %cst_21 : f32 to vector<16x128xf32>
    %37 = arith.addf %36, %35 : vector<16x128xf32>
    %38 = arith.divf %36, %37 : vector<16x128xf32>
    %39 = vector.extract_strided_slice %20 {offsets = [0, 256], sizes = [16, 128], strides = [1, 1]} : vector<16x512xf32> to vector<16x128xf32>
    %40 = math.tanh %39 : vector<16x128xf32>
    %41 = vector.extract_strided_slice %20 {offsets = [0, 384], sizes = [16, 128], strides = [1, 1]} : vector<16x512xf32> to vector<16x128xf32>
    %42 = arith.negf %41 : vector<16x128xf32>
    %43 = math.exp %42 : vector<16x128xf32>
    %cst_22 = arith.constant 1.000000e+00 : f32
    %44 = vector.broadcast %cst_22 : f32 to vector<16x128xf32>
    %45 = arith.addf %44, %43 : vector<16x128xf32>
    %46 = arith.divf %44, %45 : vector<16x128xf32>
    %47 = arith.mulf %38, %13 : vector<16x128xf32>
    %48 = arith.mulf %32, %40 : vector<16x128xf32>
    %49 = arith.addf %47, %48 : vector<16x128xf32>
    %50 = math.tanh %49 : vector<16x128xf32>
    %51 = arith.mulf %46, %50 : vector<16x128xf32>
    %52 = vector.extract_strided_slice %26 {offsets = [0, 0], sizes = [16, 128], strides = [1, 1]} : vector<16x512xf32> to vector<16x128xf32>
    %53 = arith.negf %52 : vector<16x128xf32>
    %54 = math.exp %53 : vector<16x128xf32>
    %cst_23 = arith.constant 1.000000e+00 : f32
    %55 = vector.broadcast %cst_23 : f32 to vector<16x128xf32>
    %56 = arith.addf %55, %54 : vector<16x128xf32>
    %57 = arith.divf %55, %56 : vector<16x128xf32>
    %58 = vector.extract_strided_slice %26 {offsets = [0, 128], sizes = [16, 128], strides = [1, 1]} : vector<16x512xf32> to vector<16x128xf32>
    %59 = arith.negf %58 : vector<16x128xf32>
    %60 = math.exp %59 : vector<16x128xf32>
    %cst_24 = arith.constant 1.000000e+00 : f32
    %61 = vector.broadcast %cst_24 : f32 to vector<16x128xf32>
    %62 = arith.addf %61, %60 : vector<16x128xf32>
    %63 = arith.divf %61, %62 : vector<16x128xf32>
    %64 = vector.extract_strided_slice %26 {offsets = [0, 256], sizes = [16, 128], strides = [1, 1]} : vector<16x512xf32> to vector<16x128xf32>
    %65 = math.tanh %64 : vector<16x128xf32>
    %66 = vector.extract_strided_slice %26 {offsets = [0, 384], sizes = [16, 128], strides = [1, 1]} : vector<16x512xf32> to vector<16x128xf32>
    %67 = arith.negf %66 : vector<16x128xf32>
    %68 = math.exp %67 : vector<16x128xf32>
    %cst_25 = arith.constant 1.000000e+00 : f32
    %69 = vector.broadcast %cst_25 : f32 to vector<16x128xf32>
    %70 = arith.addf %69, %68 : vector<16x128xf32>
    %71 = arith.divf %69, %70 : vector<16x128xf32>
    %72 = arith.mulf %63, %13 : vector<16x128xf32>
    %73 = arith.mulf %57, %65 : vector<16x128xf32>
    %74 = arith.addf %72, %73 : vector<16x128xf32>
    %75 = math.tanh %74 : vector<16x128xf32>
    %76 = arith.mulf %71, %75 : vector<16x128xf32>
    %77 = arith.truncf %51 : vector<16x128xf32> to vector<16x128xbf16>
    %78 = arith.truncf %76 : vector<16x128xf32> to vector<16x128xbf16>
    %79 = arith.index_cast %c0_i32 : i32 to index
    %c0_26 = arith.constant 0 : index
    %c0_27 = arith.constant 0 : index
    %80 = vector.load %arg10[%79, %c0_26, %c0_27] : memref<16x16x256xbf16, #tpu.memory_space<vmem>>, vector<1x16x128xbf16>
    %81 = vector.shape_cast %80 : vector<1x16x128xbf16> to vector<16x128xbf16>
    %82 = vector.shape_cast %77 : vector<16x128xbf16> to vector<1x16x128xbf16>
    tpu.vector_store %arg10[%79, %c0_26, %c0_27], %82 {strides = array<i32>} : memref<16x16x256xbf16, #tpu.memory_space<vmem>>, vector<1x16x128xbf16>,
    %83 = arith.index_cast %14 : i32 to index
    %c0_28 = arith.constant 0 : index
    %c128 = arith.constant 128 : index
    %84 = vector.load %arg10[%83, %c0_28, %c128] : memref<16x16x256xbf16, #tpu.memory_space<vmem>>, vector<1x16x128xbf16>
    %85 = vector.shape_cast %84 : vector<1x16x128xbf16> to vector<16x128xbf16>
    %86 = vector.shape_cast %78 : vector<16x128xbf16> to vector<1x16x128xbf16>
    tpu.vector_store %arg10[%83, %c0_28, %c128], %86 {strides = array<i32>} : memref<16x16x256xbf16, #tpu.memory_space<vmem>>, vector<1x16x128xbf16>,
    %c1_i32 = arith.constant 1 : i32
    %c15_i32_29 = arith.constant 15 : i32
    %87 = arith.subi %c15_i32_29, %c1_i32 : i32
    %88 = arith.index_cast %c1_i32 : i32 to index
    %c0_30 = arith.constant 0 : index
    %c0_31 = arith.constant 0 : index
    %89 = vector.load %arg9[%88, %c0_30, %c0_31] : memref<16x16x1024xbf16, #tpu.memory_space<vmem>>, vector<1x16x512xbf16>
    %90 = vector.shape_cast %89 : vector<1x16x512xbf16> to vector<16x512xbf16>
    %91 = arith.extf %90 : vector<16x512xbf16> to vector<16x512xf32>
    %cst_32 = arith.constant dense<0.000000e+00> : vector<16x512xf32>
    %92 = tpu.matmul %77, %10, %cst_32 {dimension_numbers = #tpu.dot_dimension_numbers<[1], [0], [0], [1], [0, 0, 1, 1], [], []>} : vector<16x128xbf16>, vector<128x512xbf16>, vector<16x512xf32> -> vector<16x512xf32>
    %93 = arith.addf %91, %92 : vector<16x512xf32>
    %94 = arith.index_cast %87 : i32 to index
    %c0_33 = arith.constant 0 : index
    %c512_34 = arith.constant 512 : index
    %95 = vector.load %arg9[%94, %c0_33, %c512_34] : memref<16x16x1024xbf16, #tpu.memory_space<vmem>>, vector<1x16x512xbf16>
    %96 = vector.shape_cast %95 : vector<1x16x512xbf16> to vector<16x512xbf16>
    %97 = arith.extf %96 : vector<16x512xbf16> to vector<16x512xf32>
    %cst_35 = arith.constant dense<0.000000e+00> : vector<16x512xf32>
    %98 = tpu.matmul %78, %11, %cst_35 {dimension_numbers = #tpu.dot_dimension_numbers<[1], [0], [0], [1], [0, 0, 1, 1], [], []>} : vector<16x128xbf16>, vector<128x512xbf16>, vector<16x512xf32> -> vector<16x512xf32>
    %99 = arith.addf %97, %98 : vector<16x512xf32>
    %100 = vector.extract_strided_slice %93 {offsets = [0, 0], sizes = [16, 128], strides = [1, 1]} : vector<16x512xf32> to vector<16x128xf32>
    %101 = arith.negf %100 : vector<16x128xf32>
    %102 = math.exp %101 : vector<16x128xf32>
    %cst_36 = arith.constant 1.000000e+00 : f32
    %103 = vector.broadcast %cst_36 : f32 to vector<16x128xf32>
    %104 = arith.addf %103, %102 : vector<16x128xf32>
    %105 = arith.divf %103, %104 : vector<16x128xf32>
    %106 = vector.extract_strided_slice %93 {offsets = [0, 128], sizes = [16, 128], strides = [1, 1]} : vector<16x512xf32> to vector<16x128xf32>
    %107 = arith.negf %106 : vector<16x128xf32>
    %108 = math.exp %107 : vector<16x128xf32>
    %cst_37 = arith.constant 1.000000e+00 : f32
    %109 = vector.broadcast %cst_37 : f32 to vector<16x128xf32>
    %110 = arith.addf %109, %108 : vector<16x128xf32>
    %111 = arith.divf %109, %110 : vector<16x128xf32>
    %112 = vector.extract_strided_slice %93 {offsets = [0, 256], sizes = [16, 128], strides = [1, 1]} : vector<16x512xf32> to vector<16x128xf32>
    %113 = math.tanh %112 : vector<16x128xf32>
    %114 = vector.extract_strided_slice %93 {offsets = [0, 384], sizes = [16, 128], strides = [1, 1]} : vector<16x512xf32> to vector<16x128xf32>
    %115 = arith.negf %114 : vector<16x128xf32>
    %116 = math.exp %115 : vector<16x128xf32>
    %cst_38 = arith.constant 1.000000e+00 : f32
    %117 = vector.broadcast %cst_38 : f32 to vector<16x128xf32>
    %118 = arith.addf %117, %116 : vector<16x128xf32>
    %119 = arith.divf %117, %118 : vector<16x128xf32>
    %120 = arith.mulf %111, %49 : vector<16x128xf32>
    %121 = arith.mulf %105, %113 : vector<16x128xf32>
    %122 = arith.addf %120, %121 : vector<16x128xf32>
    %123 = math.tanh %122 : vector<16x128xf32>
    %124 = arith.mulf %119, %123 : vector<16x128xf32>
    %125 = vector.extract_strided_slice %99 {offsets = [0, 0], sizes = [16, 128], strides = [1, 1]} : vector<16x512xf32> to vector<16x128xf32>
    %126 = arith.negf %125 : vector<16x128xf32>
    %127 = math.exp %126 : vector<16x128xf32>
    %cst_39 = arith.constant 1.000000e+00 : f32
    %128 = vector.broadcast %cst_39 : f32 to vector<16x128xf32>
    %129 = arith.addf %128, %127 : vector<16x128xf32>
    %130 = arith.divf %128, %129 : vector<16x128xf32>
    %131 = vector.extract_strided_slice %99 {offsets = [0, 128], sizes = [16, 128], strides = [1, 1]} : vector<16x512xf32> to vector<16x128xf32>
    %132 = arith.negf %131 : vector<16x128xf32>
    %133 = math.exp %132 : vector<16x128xf32>
    %cst_40 = arith.constant 1.000000e+00 : f32
    %134 = vector.broadcast %cst_40 : f32 to vector<16x128xf32>
    %135 = arith.addf %134, %133 : vector<16x128xf32>
    %136 = arith.divf %134, %135 : vector<16x128xf32>
    %137 = vector.extract_strided_slice %99 {offsets = [0, 256], sizes = [16, 128], strides = [1, 1]} : vector<16x512xf32> to vector<16x128xf32>
    %138 = math.tanh %137 : vector<16x128xf32>
    %139 = vector.extract_strided_slice %99 {offsets = [0, 384], sizes = [16, 128], strides = [1, 1]} : vector<16x512xf32> to vector<16x128xf32>
    %140 = arith.negf %139 : vector<16x128xf32>
    %141 = math.exp %140 : vector<16x128xf32>
    %cst_41 = arith.constant 1.000000e+00 : f32
    %142 = vector.broadcast %cst_41 : f32 to vector<16x128xf32>
    %143 = arith.addf %142, %141 : vector<16x128xf32>
    %144 = arith.divf %142, %143 : vector<16x128xf32>
    %145 = arith.mulf %136, %74 : vector<16x128xf32>
    %146 = arith.mulf %130, %138 : vector<16x128xf32>
    %147 = arith.addf %145, %146 : vector<16x128xf32>
    %148 = math.tanh %147 : vector<16x128xf32>
    %149 = arith.mulf %144, %148 : vector<16x128xf32>
    %150 = arith.truncf %124 : vector<16x128xf32> to vector<16x128xbf16>
    %151 = arith.truncf %149 : vector<16x128xf32> to vector<16x128xbf16>
    %152 = arith.index_cast %c1_i32 : i32 to index
    %c0_42 = arith.constant 0 : index
    %c0_43 = arith.constant 0 : index
    %153 = vector.load %arg10[%152, %c0_42, %c0_43] : memref<16x16x256xbf16, #tpu.memory_space<vmem>>, vector<1x16x128xbf16>
    %154 = vector.shape_cast %153 : vector<1x16x128xbf16> to vector<16x128xbf16>
    %155 = vector.shape_cast %150 : vector<16x128xbf16> to vector<1x16x128xbf16>
    tpu.vector_store %arg10[%152, %c0_42, %c0_43], %155 {strides = array<i32>} : memref<16x16x256xbf16, #tpu.memory_space<vmem>>, vector<1x16x128xbf16>,
    %156 = arith.index_cast %87 : i32 to index
    %c0_44 = arith.constant 0 : index
    %c128_45 = arith.constant 128 : index
    %157 = vector.load %arg10[%156, %c0_44, %c128_45] : memref<16x16x256xbf16, #tpu.memory_space<vmem>>, vector<1x16x128xbf16>
    %158 = vector.shape_cast %157 : vector<1x16x128xbf16> to vector<16x128xbf16>
    %159 = vector.shape_cast %151 : vector<16x128xbf16> to vector<1x16x128xbf16>
    tpu.vector_store %arg10[%156, %c0_44, %c128_45], %159 {strides = array<i32>} : memref<16x16x256xbf16, #tpu.memory_space<vmem>>, vector<1x16x128xbf16>,
    %c2_i32 = arith.constant 2 : i32
    %c15_i32_46 = arith.constant 15 : i32
    %160 = arith.subi %c15_i32_46, %c2_i32 : i32
    %161 = arith.index_cast %c2_i32 : i32 to index
    %c0_47 = arith.constant 0 : index
    %c0_48 = arith.constant 0 : index
    %162 = vector.load %arg9[%161, %c0_47, %c0_48] : memref<16x16x1024xbf16, #tpu.memory_space<vmem>>, vector<1x16x512xbf16>
    %163 = vector.shape_cast %162 : vector<1x16x512xbf16> to vector<16x512xbf16>
    %164 = arith.extf %163 : vector<16x512xbf16> to vector<16x512xf32>
    %cst_49 = arith.constant dense<0.000000e+00> : vector<16x512xf32>
    %165 = tpu.matmul %150, %10, %cst_49 {dimension_numbers = #tpu.dot_dimension_numbers<[1], [0], [0], [1], [0, 0, 1, 1], [], []>} : vector<16x128xbf16>, vector<128x512xbf16>, vector<16x512xf32> -> vector<16x512xf32>
    %166 = arith.addf %164, %165 : vector<16x512xf32>
    %167 = arith.index_cast %160 : i32 to index
    %c0_50 = arith.constant 0 : index
    %c512_51 = arith.constant 512 : index
    %168 = vector.load %arg9[%167, %c0_50, %c512_51] : memref<16x16x1024xbf16, #tpu.memory_space<vmem>>, vector<1x16x512xbf16>
    %169 = vector.shape_cast %168 : vector<1x16x512xbf16> to vector<16x512xbf16>
    %170 = arith.extf %169 : vector<16x512xbf16> to vector<16x512xf32>
    %cst_52 = arith.constant dense<0.000000e+00> : vector<16x512xf32>
    %171 = tpu.matmul %151, %11, %cst_52 {dimension_numbers = #tpu.dot_dimension_numbers<[1], [0], [0], [1], [0, 0, 1, 1], [], []>} : vector<16x128xbf16>, vector<128x512xbf16>, vector<16x512xf32> -> vector<16x512xf32>
    %172 = arith.addf %170, %171 : vector<16x512xf32>
    %173 = vector.extract_strided_slice %166 {offsets = [0, 0], sizes = [16, 128], strides = [1, 1]} : vector<16x512xf32> to vector<16x128xf32>
    %174 = arith.negf %173 : vector<16x128xf32>
    %175 = math.exp %174 : vector<16x128xf32>
    %cst_53 = arith.constant 1.000000e+00 : f32
    %176 = vector.broadcast %cst_53 : f32 to vector<16x128xf32>
    %177 = arith.addf %176, %175 : vector<16x128xf32>
    %178 = arith.divf %176, %177 : vector<16x128xf32>
    %179 = vector.extract_strided_slice %166 {offsets = [0, 128], sizes = [16, 128], strides = [1, 1]} : vector<16x512xf32> to vector<16x128xf32>
    %180 = arith.negf %179 : vector<16x128xf32>
    %181 = math.exp %180 : vector<16x128xf32>
    %cst_54 = arith.constant 1.000000e+00 : f32
    %182 = vector.broadcast %cst_54 : f32 to vector<16x128xf32>
    %183 = arith.addf %182, %181 : vector<16x128xf32>
    %184 = arith.divf %182, %183 : vector<16x128xf32>
    %185 = vector.extract_strided_slice %166 {offsets = [0, 256], sizes = [16, 128], strides = [1, 1]} : vector<16x512xf32> to vector<16x128xf32>
    %186 = math.tanh %185 : vector<16x128xf32>
    %187 = vector.extract_strided_slice %166 {offsets = [0, 384], sizes = [16, 128], strides = [1, 1]} : vector<16x512xf32> to vector<16x128xf32>
    %188 = arith.negf %187 : vector<16x128xf32>
    %189 = math.exp %188 : vector<16x128xf32>
    %cst_55 = arith.constant 1.000000e+00 : f32
    %190 = vector.broadcast %cst_55 : f32 to vector<16x128xf32>
    %191 = arith.addf %190, %189 : vector<16x128xf32>
    %192 = arith.divf %190, %191 : vector<16x128xf32>
    %193 = arith.mulf %184, %122 : vector<16x128xf32>
    %194 = arith.mulf %178, %186 : vector<16x128xf32>
    %195 = arith.addf %193, %194 : vector<16x128xf32>
    %196 = math.tanh %195 : vector<16x128xf32>
    %197 = arith.mulf %192, %196 : vector<16x128xf32>
    %198 = vector.extract_strided_slice %172 {offsets = [0, 0], sizes = [16, 128], strides = [1, 1]} : vector<16x512xf32> to vector<16x128xf32>
    %199 = arith.negf %198 : vector<16x128xf32>
    %200 = math.exp %199 : vector<16x128xf32>
    %cst_56 = arith.constant 1.000000e+00 : f32
    %201 = vector.broadcast %cst_56 : f32 to vector<16x128xf32>
    %202 = arith.addf %201, %200 : vector<16x128xf32>
    %203 = arith.divf %201, %202 : vector<16x128xf32>
    %204 = vector.extract_strided_slice %172 {offsets = [0, 128], sizes = [16, 128], strides = [1, 1]} : vector<16x512xf32> to vector<16x128xf32>
    %205 = arith.negf %204 : vector<16x128xf32>
    %206 = math.exp %205 : vector<16x128xf32>
    %cst_57 = arith.constant 1.000000e+00 : f32
    %207 = vector.broadcast %cst_57 : f32 to vector<16x128xf32>
    %208 = arith.addf %207, %206 : vector<16x128xf32>
    %209 = arith.divf %207, %208 : vector<16x128xf32>
    %210 = vector.extract_strided_slice %172 {offsets = [0, 256], sizes = [16, 128], strides = [1, 1]} : vector<16x512xf32> to vector<16x128xf32>
    %211 = math.tanh %210 : vector<16x128xf32>
    %212 = vector.extract_strided_slice %172 {offsets = [0, 384], sizes = [16, 128], strides = [1, 1]} : vector<16x512xf32> to vector<16x128xf32>
    %213 = arith.negf %212 : vector<16x128xf32>
    %214 = math.exp %213 : vector<16x128xf32>
    %cst_58 = arith.constant 1.000000e+00 : f32
    %215 = vector.broadcast %cst_58 : f32 to vector<16x128xf32>
    %216 = arith.addf %215, %214 : vector<16x128xf32>
    %217 = arith.divf %215, %216 : vector<16x128xf32>
    %218 = arith.mulf %209, %147 : vector<16x128xf32>
    %219 = arith.mulf %203, %211 : vector<16x128xf32>
    %220 = arith.addf %218, %219 : vector<16x128xf32>
    %221 = math.tanh %220 : vector<16x128xf32>
    %222 = arith.mulf %217, %221 : vector<16x128xf32>
    %223 = arith.truncf %197 : vector<16x128xf32> to vector<16x128xbf16>
    %224 = arith.truncf %222 : vector<16x128xf32> to vector<16x128xbf16>
    %225 = arith.index_cast %c2_i32 : i32 to index
    %c0_59 = arith.constant 0 : index
    %c0_60 = arith.constant 0 : index
    %226 = vector.load %arg10[%225, %c0_59, %c0_60] : memref<16x16x256xbf16, #tpu.memory_space<vmem>>, vector<1x16x128xbf16>
    %227 = vector.shape_cast %226 : vector<1x16x128xbf16> to vector<16x128xbf16>
    %228 = vector.shape_cast %223 : vector<16x128xbf16> to vector<1x16x128xbf16>
    tpu.vector_store %arg10[%225, %c0_59, %c0_60], %228 {strides = array<i32>} : memref<16x16x256xbf16, #tpu.memory_space<vmem>>, vector<1x16x128xbf16>,
    %229 = arith.index_cast %160 : i32 to index
    %c0_61 = arith.constant 0 : index
    %c128_62 = arith.constant 128 : index
    %230 = vector.load %arg10[%229, %c0_61, %c128_62] : memref<16x16x256xbf16, #tpu.memory_space<vmem>>, vector<1x16x128xbf16>
    %231 = vector.shape_cast %230 : vector<1x16x128xbf16> to vector<16x128xbf16>
    %232 = vector.shape_cast %224 : vector<16x128xbf16> to vector<1x16x128xbf16>
    tpu.vector_store %arg10[%229, %c0_61, %c128_62], %232 {strides = array<i32>} : memref<16x16x256xbf16, #tpu.memory_space<vmem>>, vector<1x16x128xbf16>,
    %c3_i32 = arith.constant 3 : i32
    %c15_i32_63 = arith.constant 15 : i32
    %233 = arith.subi %c15_i32_63, %c3_i32 : i32
    %234 = arith.index_cast %c3_i32 : i32 to index
    %c0_64 = arith.constant 0 : index
    %c0_65 = arith.constant 0 : index
    %235 = vector.load %arg9[%234, %c0_64, %c0_65] : memref<16x16x1024xbf16, #tpu.memory_space<vmem>>, vector<1x16x512xbf16>
    %236 = vector.shape_cast %235 : vector<1x16x512xbf16> to vector<16x512xbf16>
    %237 = arith.extf %236 : vector<16x512xbf16> to vector<16x512xf32>
    %cst_66 = arith.constant dense<0.000000e+00> : vector<16x512xf32>
    %238 = tpu.matmul %223, %10, %cst_66 {dimension_numbers = #tpu.dot_dimension_numbers<[1], [0], [0], [1], [0, 0, 1, 1], [], []>} : vector<16x128xbf16>, vector<128x512xbf16>, vector<16x512xf32> -> vector<16x512xf32>
    %239 = arith.addf %237, %238 : vector<16x512xf32>
    %240 = arith.index_cast %233 : i32 to index
    %c0_67 = arith.constant 0 : index
    %c512_68 = arith.constant 512 : index
    %241 = vector.load %arg9[%240, %c0_67, %c512_68] : memref<16x16x1024xbf16, #tpu.memory_space<vmem>>, vector<1x16x512xbf16>
    %242 = vector.shape_cast %241 : vector<1x16x512xbf16> to vector<16x512xbf16>
    %243 = arith.extf %242 : vector<16x512xbf16> to vector<16x512xf32>
    %cst_69 = arith.constant dense<0.000000e+00> : vector<16x512xf32>
    %244 = tpu.matmul %224, %11, %cst_69 {dimension_numbers = #tpu.dot_dimension_numbers<[1], [0], [0], [1], [0, 0, 1, 1], [], []>} : vector<16x128xbf16>, vector<128x512xbf16>, vector<16x512xf32> -> vector<16x512xf32>
    %245 = arith.addf %243, %244 : vector<16x512xf32>
    %246 = vector.extract_strided_slice %239 {offsets = [0, 0], sizes = [16, 128], strides = [1, 1]} : vector<16x512xf32> to vector<16x128xf32>
    %247 = arith.negf %246 : vector<16x128xf32>
    %248 = math.exp %247 : vector<16x128xf32>
    %cst_70 = arith.constant 1.000000e+00 : f32
    %249 = vector.broadcast %cst_70 : f32 to vector<16x128xf32>
    %250 = arith.addf %249, %248 : vector<16x128xf32>
    %251 = arith.divf %249, %250 : vector<16x128xf32>
    %252 = vector.extract_strided_slice %239 {offsets = [0, 128], sizes = [16, 128], strides = [1, 1]} : vector<16x512xf32> to vector<16x128xf32>
    %253 = arith.negf %252 : vector<16x128xf32>
    %254 = math.exp %253 : vector<16x128xf32>
    %cst_71 = arith.constant 1.000000e+00 : f32
    %255 = vector.broadcast %cst_71 : f32 to vector<16x128xf32>
    %256 = arith.addf %255, %254 : vector<16x128xf32>
    %257 = arith.divf %255, %256 : vector<16x128xf32>
    %258 = vector.extract_strided_slice %239 {offsets = [0, 256], sizes = [16, 128], strides = [1, 1]} : vector<16x512xf32> to vector<16x128xf32>
    %259 = math.tanh %258 : vector<16x128xf32>
    %260 = vector.extract_strided_slice %239 {offsets = [0, 384], sizes = [16, 128], strides = [1, 1]} : vector<16x512xf32> to vector<16x128xf32>
    %261 = arith.negf %260 : vector<16x128xf32>
    %262 = math.exp %261 : vector<16x128xf32>
    %cst_72 = arith.constant 1.000000e+00 : f32
    %263 = vector.broadcast %cst_72 : f32 to vector<16x128xf32>
    %264 = arith.addf %263, %262 : vector<16x128xf32>
    %265 = arith.divf %263, %264 : vector<16x128xf32>
    %266 = arith.mulf %257, %195 : vector<16x128xf32>
    %267 = arith.mulf %251, %259 : vector<16x128xf32>
    %268 = arith.addf %266, %267 : vector<16x128xf32>
    %269 = math.tanh %268 : vector<16x128xf32>
    %270 = arith.mulf %265, %269 : vector<16x128xf32>
    %271 = vector.extract_strided_slice %245 {offsets = [0, 0], sizes = [16, 128], strides = [1, 1]} : vector<16x512xf32> to vector<16x128xf32>
    %272 = arith.negf %271 : vector<16x128xf32>
    %273 = math.exp %272 : vector<16x128xf32>
    %cst_73 = arith.constant 1.000000e+00 : f32
    %274 = vector.broadcast %cst_73 : f32 to vector<16x128xf32>
    %275 = arith.addf %274, %273 : vector<16x128xf32>
    %276 = arith.divf %274, %275 : vector<16x128xf32>
    %277 = vector.extract_strided_slice %245 {offsets = [0, 128], sizes = [16, 128], strides = [1, 1]} : vector<16x512xf32> to vector<16x128xf32>
    %278 = arith.negf %277 : vector<16x128xf32>
    %279 = math.exp %278 : vector<16x128xf32>
    %cst_74 = arith.constant 1.000000e+00 : f32
    %280 = vector.broadcast %cst_74 : f32 to vector<16x128xf32>
    %281 = arith.addf %280, %279 : vector<16x128xf32>
    %282 = arith.divf %280, %281 : vector<16x128xf32>
    %283 = vector.extract_strided_slice %245 {offsets = [0, 256], sizes = [16, 128], strides = [1, 1]} : vector<16x512xf32> to vector<16x128xf32>
    %284 = math.tanh %283 : vector<16x128xf32>
    %285 = vector.extract_strided_slice %245 {offsets = [0, 384], sizes = [16, 128], strides = [1, 1]} : vector<16x512xf32> to vector<16x128xf32>
    %286 = arith.negf %285 : vector<16x128xf32>
    %287 = math.exp %286 : vector<16x128xf32>
    %cst_75 = arith.constant 1.000000e+00 : f32
    %288 = vector.broadcast %cst_75 : f32 to vector<16x128xf32>
    %289 = arith.addf %288, %287 : vector<16x128xf32>
    %290 = arith.divf %288, %289 : vector<16x128xf32>
    %291 = arith.mulf %282, %220 : vector<16x128xf32>
    %292 = arith.mulf %276, %284 : vector<16x128xf32>
    %293 = arith.addf %291, %292 : vector<16x128xf32>
    %294 = math.tanh %293 : vector<16x128xf32>
    %295 = arith.mulf %290, %294 : vector<16x128xf32>
    %296 = arith.truncf %270 : vector<16x128xf32> to vector<16x128xbf16>
    %297 = arith.truncf %295 : vector<16x128xf32> to vector<16x128xbf16>
    %298 = arith.index_cast %c3_i32 : i32 to index
    %c0_76 = arith.constant 0 : index
    %c0_77 = arith.constant 0 : index
    %299 = vector.load %arg10[%298, %c0_76, %c0_77] : memref<16x16x256xbf16, #tpu.memory_space<vmem>>, vector<1x16x128xbf16>
    %300 = vector.shape_cast %299 : vector<1x16x128xbf16> to vector<16x128xbf16>
    %301 = vector.shape_cast %296 : vector<16x128xbf16> to vector<1x16x128xbf16>
    tpu.vector_store %arg10[%298, %c0_76, %c0_77], %301 {strides = array<i32>} : memref<16x16x256xbf16, #tpu.memory_space<vmem>>, vector<1x16x128xbf16>,
    %302 = arith.index_cast %233 : i32 to index
    %c0_78 = arith.constant 0 : index
    %c128_79 = arith.constant 128 : index
    %303 = vector.load %arg10[%302, %c0_78, %c128_79] : memref<16x16x256xbf16, #tpu.memory_space<vmem>>, vector<1x16x128xbf16>
    %304 = vector.shape_cast %303 : vector<1x16x128xbf16> to vector<16x128xbf16>
    %305 = vector.shape_cast %297 : vector<16x128xbf16> to vector<1x16x128xbf16>
    tpu.vector_store %arg10[%302, %c0_78, %c128_79], %305 {strides = array<i32>} : memref<16x16x256xbf16, #tpu.memory_space<vmem>>, vector<1x16x128xbf16>,
    %c4_i32 = arith.constant 4 : i32
    %c15_i32_80 = arith.constant 15 : i32
    %306 = arith.subi %c15_i32_80, %c4_i32 : i32
    %307 = arith.index_cast %c4_i32 : i32 to index
    %c0_81 = arith.constant 0 : index
    %c0_82 = arith.constant 0 : index
    %308 = vector.load %arg9[%307, %c0_81, %c0_82] : memref<16x16x1024xbf16, #tpu.memory_space<vmem>>, vector<1x16x512xbf16>
    %309 = vector.shape_cast %308 : vector<1x16x512xbf16> to vector<16x512xbf16>
    %310 = arith.extf %309 : vector<16x512xbf16> to vector<16x512xf32>
    %cst_83 = arith.constant dense<0.000000e+00> : vector<16x512xf32>
    %311 = tpu.matmul %296, %10, %cst_83 {dimension_numbers = #tpu.dot_dimension_numbers<[1], [0], [0], [1], [0, 0, 1, 1], [], []>} : vector<16x128xbf16>, vector<128x512xbf16>, vector<16x512xf32> -> vector<16x512xf32>
    %312 = arith.addf %310, %311 : vector<16x512xf32>
    %313 = arith.index_cast %306 : i32 to index
    %c0_84 = arith.constant 0 : index
    %c512_85 = arith.constant 512 : index
    %314 = vector.load %arg9[%313, %c0_84, %c512_85] : memref<16x16x1024xbf16, #tpu.memory_space<vmem>>, vector<1x16x512xbf16>
    %315 = vector.shape_cast %314 : vector<1x16x512xbf16> to vector<16x512xbf16>
    %316 = arith.extf %315 : vector<16x512xbf16> to vector<16x512xf32>
    %cst_86 = arith.constant dense<0.000000e+00> : vector<16x512xf32>
    %317 = tpu.matmul %297, %11, %cst_86 {dimension_numbers = #tpu.dot_dimension_numbers<[1], [0], [0], [1], [0, 0, 1, 1], [], []>} : vector<16x128xbf16>, vector<128x512xbf16>, vector<16x512xf32> -> vector<16x512xf32>
    %318 = arith.addf %316, %317 : vector<16x512xf32>
    %319 = vector.extract_strided_slice %312 {offsets = [0, 0], sizes = [16, 128], strides = [1, 1]} : vector<16x512xf32> to vector<16x128xf32>
    %320 = arith.negf %319 : vector<16x128xf32>
    %321 = math.exp %320 : vector<16x128xf32>
    %cst_87 = arith.constant 1.000000e+00 : f32
    %322 = vector.broadcast %cst_87 : f32 to vector<16x128xf32>
    %323 = arith.addf %322, %321 : vector<16x128xf32>
    %324 = arith.divf %322, %323 : vector<16x128xf32>
    %325 = vector.extract_strided_slice %312 {offsets = [0, 128], sizes = [16, 128], strides = [1, 1]} : vector<16x512xf32> to vector<16x128xf32>
    %326 = arith.negf %325 : vector<16x128xf32>
    %327 = math.exp %326 : vector<16x128xf32>
    %cst_88 = arith.constant 1.000000e+00 : f32
    %328 = vector.broadcast %cst_88 : f32 to vector<16x128xf32>
    %329 = arith.addf %328, %327 : vector<16x128xf32>
    %330 = arith.divf %328, %329 : vector<16x128xf32>
    %331 = vector.extract_strided_slice %312 {offsets = [0, 256], sizes = [16, 128], strides = [1, 1]} : vector<16x512xf32> to vector<16x128xf32>
    %332 = math.tanh %331 : vector<16x128xf32>
    %333 = vector.extract_strided_slice %312 {offsets = [0, 384], sizes = [16, 128], strides = [1, 1]} : vector<16x512xf32> to vector<16x128xf32>
    %334 = arith.negf %333 : vector<16x128xf32>
    %335 = math.exp %334 : vector<16x128xf32>
    %cst_89 = arith.constant 1.000000e+00 : f32
    %336 = vector.broadcast %cst_89 : f32 to vector<16x128xf32>
    %337 = arith.addf %336, %335 : vector<16x128xf32>
    %338 = arith.divf %336, %337 : vector<16x128xf32>
    %339 = arith.mulf %330, %268 : vector<16x128xf32>
    %340 = arith.mulf %324, %332 : vector<16x128xf32>
    %341 = arith.addf %339, %340 : vector<16x128xf32>
    %342 = math.tanh %341 : vector<16x128xf32>
    %343 = arith.mulf %338, %342 : vector<16x128xf32>
    %344 = vector.extract_strided_slice %318 {offsets = [0, 0], sizes = [16, 128], strides = [1, 1]} : vector<16x512xf32> to vector<16x128xf32>
    %345 = arith.negf %344 : vector<16x128xf32>
    %346 = math.exp %345 : vector<16x128xf32>
    %cst_90 = arith.constant 1.000000e+00 : f32
    %347 = vector.broadcast %cst_90 : f32 to vector<16x128xf32>
    %348 = arith.addf %347, %346 : vector<16x128xf32>
    %349 = arith.divf %347, %348 : vector<16x128xf32>
    %350 = vector.extract_strided_slice %318 {offsets = [0, 128], sizes = [16, 128], strides = [1, 1]} : vector<16x512xf32> to vector<16x128xf32>
    %351 = arith.negf %350 : vector<16x128xf32>
    %352 = math.exp %351 : vector<16x128xf32>
    %cst_91 = arith.constant 1.000000e+00 : f32
    %353 = vector.broadcast %cst_91 : f32 to vector<16x128xf32>
    %354 = arith.addf %353, %352 : vector<16x128xf32>
    %355 = arith.divf %353, %354 : vector<16x128xf32>
    %356 = vector.extract_strided_slice %318 {offsets = [0, 256], sizes = [16, 128], strides = [1, 1]} : vector<16x512xf32> to vector<16x128xf32>
    %357 = math.tanh %356 : vector<16x128xf32>
    %358 = vector.extract_strided_slice %318 {offsets = [0, 384], sizes = [16, 128], strides = [1, 1]} : vector<16x512xf32> to vector<16x128xf32>
    %359 = arith.negf %358 : vector<16x128xf32>
    %360 = math.exp %359 : vector<16x128xf32>
    %cst_92 = arith.constant 1.000000e+00 : f32
    %361 = vector.broadcast %cst_92 : f32 to vector<16x128xf32>
    %362 = arith.addf %361, %360 : vector<16x128xf32>
    %363 = arith.divf %361, %362 : vector<16x128xf32>
    %364 = arith.mulf %355, %293 : vector<16x128xf32>
    %365 = arith.mulf %349, %357 : vector<16x128xf32>
    %366 = arith.addf %364, %365 : vector<16x128xf32>
    %367 = math.tanh %366 : vector<16x128xf32>
    %368 = arith.mulf %363, %367 : vector<16x128xf32>
    %369 = arith.truncf %343 : vector<16x128xf32> to vector<16x128xbf16>
    %370 = arith.truncf %368 : vector<16x128xf32> to vector<16x128xbf16>
    %371 = arith.index_cast %c4_i32 : i32 to index
    %c0_93 = arith.constant 0 : index
    %c0_94 = arith.constant 0 : index
    %372 = vector.load %arg10[%371, %c0_93, %c0_94] : memref<16x16x256xbf16, #tpu.memory_space<vmem>>, vector<1x16x128xbf16>
    %373 = vector.shape_cast %372 : vector<1x16x128xbf16> to vector<16x128xbf16>
    %374 = vector.shape_cast %369 : vector<16x128xbf16> to vector<1x16x128xbf16>
    tpu.vector_store %arg10[%371, %c0_93, %c0_94], %374 {strides = array<i32>} : memref<16x16x256xbf16, #tpu.memory_space<vmem>>, vector<1x16x128xbf16>,
    %375 = arith.index_cast %306 : i32 to index
    %c0_95 = arith.constant 0 : index
    %c128_96 = arith.constant 128 : index
    %376 = vector.load %arg10[%375, %c0_95, %c128_96] : memref<16x16x256xbf16, #tpu.memory_space<vmem>>, vector<1x16x128xbf16>
    %377 = vector.shape_cast %376 : vector<1x16x128xbf16> to vector<16x128xbf16>
    %378 = vector.shape_cast %370 : vector<16x128xbf16> to vector<1x16x128xbf16>
    tpu.vector_store %arg10[%375, %c0_95, %c128_96], %378 {strides = array<i32>} : memref<16x16x256xbf16, #tpu.memory_space<vmem>>, vector<1x16x128xbf16>,
    %c5_i32 = arith.constant 5 : i32
    %c15_i32_97 = arith.constant 15 : i32
    %379 = arith.subi %c15_i32_97, %c5_i32 : i32
    %380 = arith.index_cast %c5_i32 : i32 to index
    %c0_98 = arith.constant 0 : index
    %c0_99 = arith.constant 0 : index
    %381 = vector.load %arg9[%380, %c0_98, %c0_99] : memref<16x16x1024xbf16, #tpu.memory_space<vmem>>, vector<1x16x512xbf16>
    %382 = vector.shape_cast %381 : vector<1x16x512xbf16> to vector<16x512xbf16>
    %383 = arith.extf %382 : vector<16x512xbf16> to vector<16x512xf32>
    %cst_100 = arith.constant dense<0.000000e+00> : vector<16x512xf32>
    %384 = tpu.matmul %369, %10, %cst_100 {dimension_numbers = #tpu.dot_dimension_numbers<[1], [0], [0], [1], [0, 0, 1, 1], [], []>} : vector<16x128xbf16>, vector<128x512xbf16>, vector<16x512xf32> -> vector<16x512xf32>
    %385 = arith.addf %383, %384 : vector<16x512xf32>
    %386 = arith.index_cast %379 : i32 to index
    %c0_101 = arith.constant 0 : index
    %c512_102 = arith.constant 512 : index
    %387 = vector.load %arg9[%386, %c0_101, %c512_102] : memref<16x16x1024xbf16, #tpu.memory_space<vmem>>, vector<1x16x512xbf16>
    %388 = vector.shape_cast %387 : vector<1x16x512xbf16> to vector<16x512xbf16>
    %389 = arith.extf %388 : vector<16x512xbf16> to vector<16x512xf32>
    %cst_103 = arith.constant dense<0.000000e+00> : vector<16x512xf32>
    %390 = tpu.matmul %370, %11, %cst_103 {dimension_numbers = #tpu.dot_dimension_numbers<[1], [0], [0], [1], [0, 0, 1, 1], [], []>} : vector<16x128xbf16>, vector<128x512xbf16>, vector<16x512xf32> -> vector<16x512xf32>
    %391 = arith.addf %389, %390 : vector<16x512xf32>
    %392 = vector.extract_strided_slice %385 {offsets = [0, 0], sizes = [16, 128], strides = [1, 1]} : vector<16x512xf32> to vector<16x128xf32>
    %393 = arith.negf %392 : vector<16x128xf32>
    %394 = math.exp %393 : vector<16x128xf32>
    %cst_104 = arith.constant 1.000000e+00 : f32
    %395 = vector.broadcast %cst_104 : f32 to vector<16x128xf32>
    %396 = arith.addf %395, %394 : vector<16x128xf32>
    %397 = arith.divf %395, %396 : vector<16x128xf32>
    %398 = vector.extract_strided_slice %385 {offsets = [0, 128], sizes = [16, 128], strides = [1, 1]} : vector<16x512xf32> to vector<16x128xf32>
    %399 = arith.negf %398 : vector<16x128xf32>
    %400 = math.exp %399 : vector<16x128xf32>
    %cst_105 = arith.constant 1.000000e+00 : f32
    %401 = vector.broadcast %cst_105 : f32 to vector<16x128xf32>
    %402 = arith.addf %401, %400 : vector<16x128xf32>
    %403 = arith.divf %401, %402 : vector<16x128xf32>
    %404 = vector.extract_strided_slice %385 {offsets = [0, 256], sizes = [16, 128], strides = [1, 1]} : vector<16x512xf32> to vector<16x128xf32>
    %405 = math.tanh %404 : vector<16x128xf32>
    %406 = vector.extract_strided_slice %385 {offsets = [0, 384], sizes = [16, 128], strides = [1, 1]} : vector<16x512xf32> to vector<16x128xf32>
    %407 = arith.negf %406 : vector<16x128xf32>
    %408 = math.exp %407 : vector<16x128xf32>
    %cst_106 = arith.constant 1.000000e+00 : f32
    %409 = vector.broadcast %cst_106 : f32 to vector<16x128xf32>
    %410 = arith.addf %409, %408 : vector<16x128xf32>
    %411 = arith.divf %409, %410 : vector<16x128xf32>
    %412 = arith.mulf %403, %341 : vector<16x128xf32>
    %413 = arith.mulf %397, %405 : vector<16x128xf32>
    %414 = arith.addf %412, %413 : vector<16x128xf32>
    %415 = math.tanh %414 : vector<16x128xf32>
    %416 = arith.mulf %411, %415 : vector<16x128xf32>
    %417 = vector.extract_strided_slice %391 {offsets = [0, 0], sizes = [16, 128], strides = [1, 1]} : vector<16x512xf32> to vector<16x128xf32>
    %418 = arith.negf %417 : vector<16x128xf32>
    %419 = math.exp %418 : vector<16x128xf32>
    %cst_107 = arith.constant 1.000000e+00 : f32
    %420 = vector.broadcast %cst_107 : f32 to vector<16x128xf32>
    %421 = arith.addf %420, %419 : vector<16x128xf32>
    %422 = arith.divf %420, %421 : vector<16x128xf32>
    %423 = vector.extract_strided_slice %391 {offsets = [0, 128], sizes = [16, 128], strides = [1, 1]} : vector<16x512xf32> to vector<16x128xf32>
    %424 = arith.negf %423 : vector<16x128xf32>
    %425 = math.exp %424 : vector<16x128xf32>
    %cst_108 = arith.constant 1.000000e+00 : f32
    %426 = vector.broadcast %cst_108 : f32 to vector<16x128xf32>
    %427 = arith.addf %426, %425 : vector<16x128xf32>
    %428 = arith.divf %426, %427 : vector<16x128xf32>
    %429 = vector.extract_strided_slice %391 {offsets = [0, 256], sizes = [16, 128], strides = [1, 1]} : vector<16x512xf32> to vector<16x128xf32>
    %430 = math.tanh %429 : vector<16x128xf32>
    %431 = vector.extract_strided_slice %391 {offsets = [0, 384], sizes = [16, 128], strides = [1, 1]} : vector<16x512xf32> to vector<16x128xf32>
    %432 = arith.negf %431 : vector<16x128xf32>
    %433 = math.exp %432 : vector<16x128xf32>
    %cst_109 = arith.constant 1.000000e+00 : f32
    %434 = vector.broadcast %cst_109 : f32 to vector<16x128xf32>
    %435 = arith.addf %434, %433 : vector<16x128xf32>
    %436 = arith.divf %434, %435 : vector<16x128xf32>
    %437 = arith.mulf %428, %366 : vector<16x128xf32>
    %438 = arith.mulf %422, %430 : vector<16x128xf32>
    %439 = arith.addf %437, %438 : vector<16x128xf32>
    %440 = math.tanh %439 : vector<16x128xf32>
    %441 = arith.mulf %436, %440 : vector<16x128xf32>
    %442 = arith.truncf %416 : vector<16x128xf32> to vector<16x128xbf16>
    %443 = arith.truncf %441 : vector<16x128xf32> to vector<16x128xbf16>
    %444 = arith.index_cast %c5_i32 : i32 to index
    %c0_110 = arith.constant 0 : index
    %c0_111 = arith.constant 0 : index
    %445 = vector.load %arg10[%444, %c0_110, %c0_111] : memref<16x16x256xbf16, #tpu.memory_space<vmem>>, vector<1x16x128xbf16>
    %446 = vector.shape_cast %445 : vector<1x16x128xbf16> to vector<16x128xbf16>
    %447 = vector.shape_cast %442 : vector<16x128xbf16> to vector<1x16x128xbf16>
    tpu.vector_store %arg10[%444, %c0_110, %c0_111], %447 {strides = array<i32>} : memref<16x16x256xbf16, #tpu.memory_space<vmem>>, vector<1x16x128xbf16>,
    %448 = arith.index_cast %379 : i32 to index
    %c0_112 = arith.constant 0 : index
    %c128_113 = arith.constant 128 : index
    %449 = vector.load %arg10[%448, %c0_112, %c128_113] : memref<16x16x256xbf16, #tpu.memory_space<vmem>>, vector<1x16x128xbf16>
    %450 = vector.shape_cast %449 : vector<1x16x128xbf16> to vector<16x128xbf16>
    %451 = vector.shape_cast %443 : vector<16x128xbf16> to vector<1x16x128xbf16>
    tpu.vector_store %arg10[%448, %c0_112, %c128_113], %451 {strides = array<i32>} : memref<16x16x256xbf16, #tpu.memory_space<vmem>>, vector<1x16x128xbf16>,
    %c6_i32 = arith.constant 6 : i32
    %c15_i32_114 = arith.constant 15 : i32
    %452 = arith.subi %c15_i32_114, %c6_i32 : i32
    %453 = arith.index_cast %c6_i32 : i32 to index
    %c0_115 = arith.constant 0 : index
    %c0_116 = arith.constant 0 : index
    %454 = vector.load %arg9[%453, %c0_115, %c0_116] : memref<16x16x1024xbf16, #tpu.memory_space<vmem>>, vector<1x16x512xbf16>
    %455 = vector.shape_cast %454 : vector<1x16x512xbf16> to vector<16x512xbf16>
    %456 = arith.extf %455 : vector<16x512xbf16> to vector<16x512xf32>
    %cst_117 = arith.constant dense<0.000000e+00> : vector<16x512xf32>
    %457 = tpu.matmul %442, %10, %cst_117 {dimension_numbers = #tpu.dot_dimension_numbers<[1], [0], [0], [1], [0, 0, 1, 1], [], []>} : vector<16x128xbf16>, vector<128x512xbf16>, vector<16x512xf32> -> vector<16x512xf32>
    %458 = arith.addf %456, %457 : vector<16x512xf32>
    %459 = arith.index_cast %452 : i32 to index
    %c0_118 = arith.constant 0 : index
    %c512_119 = arith.constant 512 : index
    %460 = vector.load %arg9[%459, %c0_118, %c512_119] : memref<16x16x1024xbf16, #tpu.memory_space<vmem>>, vector<1x16x512xbf16>
    %461 = vector.shape_cast %460 : vector<1x16x512xbf16> to vector<16x512xbf16>
    %462 = arith.extf %461 : vector<16x512xbf16> to vector<16x512xf32>
    %cst_120 = arith.constant dense<0.000000e+00> : vector<16x512xf32>
    %463 = tpu.matmul %443, %11, %cst_120 {dimension_numbers = #tpu.dot_dimension_numbers<[1], [0], [0], [1], [0, 0, 1, 1], [], []>} : vector<16x128xbf16>, vector<128x512xbf16>, vector<16x512xf32> -> vector<16x512xf32>
    %464 = arith.addf %462, %463 : vector<16x512xf32>
    %465 = vector.extract_strided_slice %458 {offsets = [0, 0], sizes = [16, 128], strides = [1, 1]} : vector<16x512xf32> to vector<16x128xf32>
    %466 = arith.negf %465 : vector<16x128xf32>
    %467 = math.exp %466 : vector<16x128xf32>
    %cst_121 = arith.constant 1.000000e+00 : f32
    %468 = vector.broadcast %cst_121 : f32 to vector<16x128xf32>
    %469 = arith.addf %468, %467 : vector<16x128xf32>
    %470 = arith.divf %468, %469 : vector<16x128xf32>
    %471 = vector.extract_strided_slice %458 {offsets = [0, 128], sizes = [16, 128], strides = [1, 1]} : vector<16x512xf32> to vector<16x128xf32>
    %472 = arith.negf %471 : vector<16x128xf32>
    %473 = math.exp %472 : vector<16x128xf32>
    %cst_122 = arith.constant 1.000000e+00 : f32
    %474 = vector.broadcast %cst_122 : f32 to vector<16x128xf32>
    %475 = arith.addf %474, %473 : vector<16x128xf32>
    %476 = arith.divf %474, %475 : vector<16x128xf32>
    %477 = vector.extract_strided_slice %458 {offsets = [0, 256], sizes = [16, 128], strides = [1, 1]} : vector<16x512xf32> to vector<16x128xf32>
    %478 = math.tanh %477 : vector<16x128xf32>
    %479 = vector.extract_strided_slice %458 {offsets = [0, 384], sizes = [16, 128], strides = [1, 1]} : vector<16x512xf32> to vector<16x128xf32>
    %480 = arith.negf %479 : vector<16x128xf32>
    %481 = math.exp %480 : vector<16x128xf32>
    %cst_123 = arith.constant 1.000000e+00 : f32
    %482 = vector.broadcast %cst_123 : f32 to vector<16x128xf32>
    %483 = arith.addf %482, %481 : vector<16x128xf32>
    %484 = arith.divf %482, %483 : vector<16x128xf32>
    %485 = arith.mulf %476, %414 : vector<16x128xf32>
    %486 = arith.mulf %470, %478 : vector<16x128xf32>
    %487 = arith.addf %485, %486 : vector<16x128xf32>
    %488 = math.tanh %487 : vector<16x128xf32>
    %489 = arith.mulf %484, %488 : vector<16x128xf32>
    %490 = vector.extract_strided_slice %464 {offsets = [0, 0], sizes = [16, 128], strides = [1, 1]} : vector<16x512xf32> to vector<16x128xf32>
    %491 = arith.negf %490 : vector<16x128xf32>
    %492 = math.exp %491 : vector<16x128xf32>
    %cst_124 = arith.constant 1.000000e+00 : f32
    %493 = vector.broadcast %cst_124 : f32 to vector<16x128xf32>
    %494 = arith.addf %493, %492 : vector<16x128xf32>
    %495 = arith.divf %493, %494 : vector<16x128xf32>
    %496 = vector.extract_strided_slice %464 {offsets = [0, 128], sizes = [16, 128], strides = [1, 1]} : vector<16x512xf32> to vector<16x128xf32>
    %497 = arith.negf %496 : vector<16x128xf32>
    %498 = math.exp %497 : vector<16x128xf32>
    %cst_125 = arith.constant 1.000000e+00 : f32
    %499 = vector.broadcast %cst_125 : f32 to vector<16x128xf32>
    %500 = arith.addf %499, %498 : vector<16x128xf32>
    %501 = arith.divf %499, %500 : vector<16x128xf32>
    %502 = vector.extract_strided_slice %464 {offsets = [0, 256], sizes = [16, 128], strides = [1, 1]} : vector<16x512xf32> to vector<16x128xf32>
    %503 = math.tanh %502 : vector<16x128xf32>
    %504 = vector.extract_strided_slice %464 {offsets = [0, 384], sizes = [16, 128], strides = [1, 1]} : vector<16x512xf32> to vector<16x128xf32>
    %505 = arith.negf %504 : vector<16x128xf32>
    %506 = math.exp %505 : vector<16x128xf32>
    %cst_126 = arith.constant 1.000000e+00 : f32
    %507 = vector.broadcast %cst_126 : f32 to vector<16x128xf32>
    %508 = arith.addf %507, %506 : vector<16x128xf32>
    %509 = arith.divf %507, %508 : vector<16x128xf32>
    %510 = arith.mulf %501, %439 : vector<16x128xf32>
    %511 = arith.mulf %495, %503 : vector<16x128xf32>
    %512 = arith.addf %510, %511 : vector<16x128xf32>
    %513 = math.tanh %512 : vector<16x128xf32>
    %514 = arith.mulf %509, %513 : vector<16x128xf32>
    %515 = arith.truncf %489 : vector<16x128xf32> to vector<16x128xbf16>
    %516 = arith.truncf %514 : vector<16x128xf32> to vector<16x128xbf16>
    %517 = arith.index_cast %c6_i32 : i32 to index
    %c0_127 = arith.constant 0 : index
    %c0_128 = arith.constant 0 : index
    %518 = vector.load %arg10[%517, %c0_127, %c0_128] : memref<16x16x256xbf16, #tpu.memory_space<vmem>>, vector<1x16x128xbf16>
    %519 = vector.shape_cast %518 : vector<1x16x128xbf16> to vector<16x128xbf16>
    %520 = vector.shape_cast %515 : vector<16x128xbf16> to vector<1x16x128xbf16>
    tpu.vector_store %arg10[%517, %c0_127, %c0_128], %520 {strides = array<i32>} : memref<16x16x256xbf16, #tpu.memory_space<vmem>>, vector<1x16x128xbf16>,
    %521 = arith.index_cast %452 : i32 to index
    %c0_129 = arith.constant 0 : index
    %c128_130 = arith.constant 128 : index
    %522 = vector.load %arg10[%521, %c0_129, %c128_130] : memref<16x16x256xbf16, #tpu.memory_space<vmem>>, vector<1x16x128xbf16>
    %523 = vector.shape_cast %522 : vector<1x16x128xbf16> to vector<16x128xbf16>
    %524 = vector.shape_cast %516 : vector<16x128xbf16> to vector<1x16x128xbf16>
    tpu.vector_store %arg10[%521, %c0_129, %c128_130], %524 {strides = array<i32>} : memref<16x16x256xbf16, #tpu.memory_space<vmem>>, vector<1x16x128xbf16>,
    %c7_i32 = arith.constant 7 : i32
    %c15_i32_131 = arith.constant 15 : i32
    %525 = arith.subi %c15_i32_131, %c7_i32 : i32
    %526 = arith.index_cast %c7_i32 : i32 to index
    %c0_132 = arith.constant 0 : index
    %c0_133 = arith.constant 0 : index
    %527 = vector.load %arg9[%526, %c0_132, %c0_133] : memref<16x16x1024xbf16, #tpu.memory_space<vmem>>, vector<1x16x512xbf16>
    %528 = vector.shape_cast %527 : vector<1x16x512xbf16> to vector<16x512xbf16>
    %529 = arith.extf %528 : vector<16x512xbf16> to vector<16x512xf32>
    %cst_134 = arith.constant dense<0.000000e+00> : vector<16x512xf32>
    %530 = tpu.matmul %515, %10, %cst_134 {dimension_numbers = #tpu.dot_dimension_numbers<[1], [0], [0], [1], [0, 0, 1, 1], [], []>} : vector<16x128xbf16>, vector<128x512xbf16>, vector<16x512xf32> -> vector<16x512xf32>
    %531 = arith.addf %529, %530 : vector<16x512xf32>
    %532 = arith.index_cast %525 : i32 to index
    %c0_135 = arith.constant 0 : index
    %c512_136 = arith.constant 512 : index
    %533 = vector.load %arg9[%532, %c0_135, %c512_136] : memref<16x16x1024xbf16, #tpu.memory_space<vmem>>, vector<1x16x512xbf16>
    %534 = vector.shape_cast %533 : vector<1x16x512xbf16> to vector<16x512xbf16>
    %535 = arith.extf %534 : vector<16x512xbf16> to vector<16x512xf32>
    %cst_137 = arith.constant dense<0.000000e+00> : vector<16x512xf32>
    %536 = tpu.matmul %516, %11, %cst_137 {dimension_numbers = #tpu.dot_dimension_numbers<[1], [0], [0], [1], [0, 0, 1, 1], [], []>} : vector<16x128xbf16>, vector<128x512xbf16>, vector<16x512xf32> -> vector<16x512xf32>
    %537 = arith.addf %535, %536 : vector<16x512xf32>
    %538 = vector.extract_strided_slice %531 {offsets = [0, 0], sizes = [16, 128], strides = [1, 1]} : vector<16x512xf32> to vector<16x128xf32>
    %539 = arith.negf %538 : vector<16x128xf32>
    %540 = math.exp %539 : vector<16x128xf32>
    %cst_138 = arith.constant 1.000000e+00 : f32
    %541 = vector.broadcast %cst_138 : f32 to vector<16x128xf32>
    %542 = arith.addf %541, %540 : vector<16x128xf32>
    %543 = arith.divf %541, %542 : vector<16x128xf32>
    %544 = vector.extract_strided_slice %531 {offsets = [0, 128], sizes = [16, 128], strides = [1, 1]} : vector<16x512xf32> to vector<16x128xf32>
    %545 = arith.negf %544 : vector<16x128xf32>
    %546 = math.exp %545 : vector<16x128xf32>
    %cst_139 = arith.constant 1.000000e+00 : f32
    %547 = vector.broadcast %cst_139 : f32 to vector<16x128xf32>
    %548 = arith.addf %547, %546 : vector<16x128xf32>
    %549 = arith.divf %547, %548 : vector<16x128xf32>
    %550 = vector.extract_strided_slice %531 {offsets = [0, 256], sizes = [16, 128], strides = [1, 1]} : vector<16x512xf32> to vector<16x128xf32>
    %551 = math.tanh %550 : vector<16x128xf32>
    %552 = vector.extract_strided_slice %531 {offsets = [0, 384], sizes = [16, 128], strides = [1, 1]} : vector<16x512xf32> to vector<16x128xf32>
    %553 = arith.negf %552 : vector<16x128xf32>
    %554 = math.exp %553 : vector<16x128xf32>
    %cst_140 = arith.constant 1.000000e+00 : f32
    %555 = vector.broadcast %cst_140 : f32 to vector<16x128xf32>
    %556 = arith.addf %555, %554 : vector<16x128xf32>
    %557 = arith.divf %555, %556 : vector<16x128xf32>
    %558 = arith.mulf %549, %487 : vector<16x128xf32>
    %559 = arith.mulf %543, %551 : vector<16x128xf32>
    %560 = arith.addf %558, %559 : vector<16x128xf32>
    %561 = math.tanh %560 : vector<16x128xf32>
    %562 = arith.mulf %557, %561 : vector<16x128xf32>
    %563 = vector.extract_strided_slice %537 {offsets = [0, 0], sizes = [16, 128], strides = [1, 1]} : vector<16x512xf32> to vector<16x128xf32>
    %564 = arith.negf %563 : vector<16x128xf32>
    %565 = math.exp %564 : vector<16x128xf32>
    %cst_141 = arith.constant 1.000000e+00 : f32
    %566 = vector.broadcast %cst_141 : f32 to vector<16x128xf32>
    %567 = arith.addf %566, %565 : vector<16x128xf32>
    %568 = arith.divf %566, %567 : vector<16x128xf32>
    %569 = vector.extract_strided_slice %537 {offsets = [0, 128], sizes = [16, 128], strides = [1, 1]} : vector<16x512xf32> to vector<16x128xf32>
    %570 = arith.negf %569 : vector<16x128xf32>
    %571 = math.exp %570 : vector<16x128xf32>
    %cst_142 = arith.constant 1.000000e+00 : f32
    %572 = vector.broadcast %cst_142 : f32 to vector<16x128xf32>
    %573 = arith.addf %572, %571 : vector<16x128xf32>
    %574 = arith.divf %572, %573 : vector<16x128xf32>
    %575 = vector.extract_strided_slice %537 {offsets = [0, 256], sizes = [16, 128], strides = [1, 1]} : vector<16x512xf32> to vector<16x128xf32>
    %576 = math.tanh %575 : vector<16x128xf32>
    %577 = vector.extract_strided_slice %537 {offsets = [0, 384], sizes = [16, 128], strides = [1, 1]} : vector<16x512xf32> to vector<16x128xf32>
    %578 = arith.negf %577 : vector<16x128xf32>
    %579 = math.exp %578 : vector<16x128xf32>
    %cst_143 = arith.constant 1.000000e+00 : f32
    %580 = vector.broadcast %cst_143 : f32 to vector<16x128xf32>
    %581 = arith.addf %580, %579 : vector<16x128xf32>
    %582 = arith.divf %580, %581 : vector<16x128xf32>
    %583 = arith.mulf %574, %512 : vector<16x128xf32>
    %584 = arith.mulf %568, %576 : vector<16x128xf32>
    %585 = arith.addf %583, %584 : vector<16x128xf32>
    %586 = math.tanh %585 : vector<16x128xf32>
    %587 = arith.mulf %582, %586 : vector<16x128xf32>
    %588 = arith.truncf %562 : vector<16x128xf32> to vector<16x128xbf16>
    %589 = arith.truncf %587 : vector<16x128xf32> to vector<16x128xbf16>
    %590 = arith.index_cast %c7_i32 : i32 to index
    %c0_144 = arith.constant 0 : index
    %c0_145 = arith.constant 0 : index
    %591 = vector.load %arg10[%590, %c0_144, %c0_145] : memref<16x16x256xbf16, #tpu.memory_space<vmem>>, vector<1x16x128xbf16>
    %592 = vector.shape_cast %591 : vector<1x16x128xbf16> to vector<16x128xbf16>
    %593 = vector.shape_cast %588 : vector<16x128xbf16> to vector<1x16x128xbf16>
    tpu.vector_store %arg10[%590, %c0_144, %c0_145], %593 {strides = array<i32>} : memref<16x16x256xbf16, #tpu.memory_space<vmem>>, vector<1x16x128xbf16>,
    %594 = arith.index_cast %525 : i32 to index
    %c0_146 = arith.constant 0 : index
    %c128_147 = arith.constant 128 : index
    %595 = vector.load %arg10[%594, %c0_146, %c128_147] : memref<16x16x256xbf16, #tpu.memory_space<vmem>>, vector<1x16x128xbf16>
    %596 = vector.shape_cast %595 : vector<1x16x128xbf16> to vector<16x128xbf16>
    %597 = vector.shape_cast %589 : vector<16x128xbf16> to vector<1x16x128xbf16>
    tpu.vector_store %arg10[%594, %c0_146, %c128_147], %597 {strides = array<i32>} : memref<16x16x256xbf16, #tpu.memory_space<vmem>>, vector<1x16x128xbf16>,
    %c8_i32 = arith.constant 8 : i32
    %c15_i32_148 = arith.constant 15 : i32
    %598 = arith.subi %c15_i32_148, %c8_i32 : i32
    %599 = arith.index_cast %c8_i32 : i32 to index
    %c0_149 = arith.constant 0 : index
    %c0_150 = arith.constant 0 : index
    %600 = vector.load %arg9[%599, %c0_149, %c0_150] : memref<16x16x1024xbf16, #tpu.memory_space<vmem>>, vector<1x16x512xbf16>
    %601 = vector.shape_cast %600 : vector<1x16x512xbf16> to vector<16x512xbf16>
    %602 = arith.extf %601 : vector<16x512xbf16> to vector<16x512xf32>
    %cst_151 = arith.constant dense<0.000000e+00> : vector<16x512xf32>
    %603 = tpu.matmul %588, %10, %cst_151 {dimension_numbers = #tpu.dot_dimension_numbers<[1], [0], [0], [1], [0, 0, 1, 1], [], []>} : vector<16x128xbf16>, vector<128x512xbf16>, vector<16x512xf32> -> vector<16x512xf32>
    %604 = arith.addf %602, %603 : vector<16x512xf32>
    %605 = arith.index_cast %598 : i32 to index
    %c0_152 = arith.constant 0 : index
    %c512_153 = arith.constant 512 : index
    %606 = vector.load %arg9[%605, %c0_152, %c512_153] : memref<16x16x1024xbf16, #tpu.memory_space<vmem>>, vector<1x16x512xbf16>
    %607 = vector.shape_cast %606 : vector<1x16x512xbf16> to vector<16x512xbf16>
    %608 = arith.extf %607 : vector<16x512xbf16> to vector<16x512xf32>
    %cst_154 = arith.constant dense<0.000000e+00> : vector<16x512xf32>
    %609 = tpu.matmul %589, %11, %cst_154 {dimension_numbers = #tpu.dot_dimension_numbers<[1], [0], [0], [1], [0, 0, 1, 1], [], []>} : vector<16x128xbf16>, vector<128x512xbf16>, vector<16x512xf32> -> vector<16x512xf32>
    %610 = arith.addf %608, %609 : vector<16x512xf32>
    %611 = vector.extract_strided_slice %604 {offsets = [0, 0], sizes = [16, 128], strides = [1, 1]} : vector<16x512xf32> to vector<16x128xf32>
    %612 = arith.negf %611 : vector<16x128xf32>
    %613 = math.exp %612 : vector<16x128xf32>
    %cst_155 = arith.constant 1.000000e+00 : f32
    %614 = vector.broadcast %cst_155 : f32 to vector<16x128xf32>
    %615 = arith.addf %614, %613 : vector<16x128xf32>
    %616 = arith.divf %614, %615 : vector<16x128xf32>
    %617 = vector.extract_strided_slice %604 {offsets = [0, 128], sizes = [16, 128], strides = [1, 1]} : vector<16x512xf32> to vector<16x128xf32>
    %618 = arith.negf %617 : vector<16x128xf32>
    %619 = math.exp %618 : vector<16x128xf32>
    %cst_156 = arith.constant 1.000000e+00 : f32
    %620 = vector.broadcast %cst_156 : f32 to vector<16x128xf32>
    %621 = arith.addf %620, %619 : vector<16x128xf32>
    %622 = arith.divf %620, %621 : vector<16x128xf32>
    %623 = vector.extract_strided_slice %604 {offsets = [0, 256], sizes = [16, 128], strides = [1, 1]} : vector<16x512xf32> to vector<16x128xf32>
    %624 = math.tanh %623 : vector<16x128xf32>
    %625 = vector.extract_strided_slice %604 {offsets = [0, 384], sizes = [16, 128], strides = [1, 1]} : vector<16x512xf32> to vector<16x128xf32>
    %626 = arith.negf %625 : vector<16x128xf32>
    %627 = math.exp %626 : vector<16x128xf32>
    %cst_157 = arith.constant 1.000000e+00 : f32
    %628 = vector.broadcast %cst_157 : f32 to vector<16x128xf32>
    %629 = arith.addf %628, %627 : vector<16x128xf32>
    %630 = arith.divf %628, %629 : vector<16x128xf32>
    %631 = arith.mulf %622, %560 : vector<16x128xf32>
    %632 = arith.mulf %616, %624 : vector<16x128xf32>
    %633 = arith.addf %631, %632 : vector<16x128xf32>
    %634 = math.tanh %633 : vector<16x128xf32>
    %635 = arith.mulf %630, %634 : vector<16x128xf32>
    %636 = vector.extract_strided_slice %610 {offsets = [0, 0], sizes = [16, 128], strides = [1, 1]} : vector<16x512xf32> to vector<16x128xf32>
    %637 = arith.negf %636 : vector<16x128xf32>
    %638 = math.exp %637 : vector<16x128xf32>
    %cst_158 = arith.constant 1.000000e+00 : f32
    %639 = vector.broadcast %cst_158 : f32 to vector<16x128xf32>
    %640 = arith.addf %639, %638 : vector<16x128xf32>
    %641 = arith.divf %639, %640 : vector<16x128xf32>
    %642 = vector.extract_strided_slice %610 {offsets = [0, 128], sizes = [16, 128], strides = [1, 1]} : vector<16x512xf32> to vector<16x128xf32>
    %643 = arith.negf %642 : vector<16x128xf32>
    %644 = math.exp %643 : vector<16x128xf32>
    %cst_159 = arith.constant 1.000000e+00 : f32
    %645 = vector.broadcast %cst_159 : f32 to vector<16x128xf32>
    %646 = arith.addf %645, %644 : vector<16x128xf32>
    %647 = arith.divf %645, %646 : vector<16x128xf32>
    %648 = vector.extract_strided_slice %610 {offsets = [0, 256], sizes = [16, 128], strides = [1, 1]} : vector<16x512xf32> to vector<16x128xf32>
    %649 = math.tanh %648 : vector<16x128xf32>
    %650 = vector.extract_strided_slice %610 {offsets = [0, 384], sizes = [16, 128], strides = [1, 1]} : vector<16x512xf32> to vector<16x128xf32>
    %651 = arith.negf %650 : vector<16x128xf32>
    %652 = math.exp %651 : vector<16x128xf32>
    %cst_160 = arith.constant 1.000000e+00 : f32
    %653 = vector.broadcast %cst_160 : f32 to vector<16x128xf32>
    %654 = arith.addf %653, %652 : vector<16x128xf32>
    %655 = arith.divf %653, %654 : vector<16x128xf32>
    %656 = arith.mulf %647, %585 : vector<16x128xf32>
    %657 = arith.mulf %641, %649 : vector<16x128xf32>
    %658 = arith.addf %656, %657 : vector<16x128xf32>
    %659 = math.tanh %658 : vector<16x128xf32>
    %660 = arith.mulf %655, %659 : vector<16x128xf32>
    %661 = arith.truncf %635 : vector<16x128xf32> to vector<16x128xbf16>
    %662 = arith.truncf %660 : vector<16x128xf32> to vector<16x128xbf16>
    %663 = arith.index_cast %c8_i32 : i32 to index
    %c0_161 = arith.constant 0 : index
    %c0_162 = arith.constant 0 : index
    %664 = vector.load %arg10[%663, %c0_161, %c0_162] : memref<16x16x256xbf16, #tpu.memory_space<vmem>>, vector<1x16x128xbf16>
    %665 = vector.shape_cast %664 : vector<1x16x128xbf16> to vector<16x128xbf16>
    %666 = vector.shape_cast %661 : vector<16x128xbf16> to vector<1x16x128xbf16>
    tpu.vector_store %arg10[%663, %c0_161, %c0_162], %666 {strides = array<i32>} : memref<16x16x256xbf16, #tpu.memory_space<vmem>>, vector<1x16x128xbf16>,
    %667 = arith.index_cast %598 : i32 to index
    %c0_163 = arith.constant 0 : index
    %c128_164 = arith.constant 128 : index
    %668 = vector.load %arg10[%667, %c0_163, %c128_164] : memref<16x16x256xbf16, #tpu.memory_space<vmem>>, vector<1x16x128xbf16>
    %669 = vector.shape_cast %668 : vector<1x16x128xbf16> to vector<16x128xbf16>
    %670 = vector.shape_cast %662 : vector<16x128xbf16> to vector<1x16x128xbf16>
    tpu.vector_store %arg10[%667, %c0_163, %c128_164], %670 {strides = array<i32>} : memref<16x16x256xbf16, #tpu.memory_space<vmem>>, vector<1x16x128xbf16>,
    %c9_i32 = arith.constant 9 : i32
    %c15_i32_165 = arith.constant 15 : i32
    %671 = arith.subi %c15_i32_165, %c9_i32 : i32
    %672 = arith.index_cast %c9_i32 : i32 to index
    %c0_166 = arith.constant 0 : index
    %c0_167 = arith.constant 0 : index
    %673 = vector.load %arg9[%672, %c0_166, %c0_167] : memref<16x16x1024xbf16, #tpu.memory_space<vmem>>, vector<1x16x512xbf16>
    %674 = vector.shape_cast %673 : vector<1x16x512xbf16> to vector<16x512xbf16>
    %675 = arith.extf %674 : vector<16x512xbf16> to vector<16x512xf32>
    %cst_168 = arith.constant dense<0.000000e+00> : vector<16x512xf32>
    %676 = tpu.matmul %661, %10, %cst_168 {dimension_numbers = #tpu.dot_dimension_numbers<[1], [0], [0], [1], [0, 0, 1, 1], [], []>} : vector<16x128xbf16>, vector<128x512xbf16>, vector<16x512xf32> -> vector<16x512xf32>
    %677 = arith.addf %675, %676 : vector<16x512xf32>
    %678 = arith.index_cast %671 : i32 to index
    %c0_169 = arith.constant 0 : index
    %c512_170 = arith.constant 512 : index
    %679 = vector.load %arg9[%678, %c0_169, %c512_170] : memref<16x16x1024xbf16, #tpu.memory_space<vmem>>, vector<1x16x512xbf16>
    %680 = vector.shape_cast %679 : vector<1x16x512xbf16> to vector<16x512xbf16>
    %681 = arith.extf %680 : vector<16x512xbf16> to vector<16x512xf32>
    %cst_171 = arith.constant dense<0.000000e+00> : vector<16x512xf32>
    %682 = tpu.matmul %662, %11, %cst_171 {dimension_numbers = #tpu.dot_dimension_numbers<[1], [0], [0], [1], [0, 0, 1, 1], [], []>} : vector<16x128xbf16>, vector<128x512xbf16>, vector<16x512xf32> -> vector<16x512xf32>
    %683 = arith.addf %681, %682 : vector<16x512xf32>
    %684 = vector.extract_strided_slice %677 {offsets = [0, 0], sizes = [16, 128], strides = [1, 1]} : vector<16x512xf32> to vector<16x128xf32>
    %685 = arith.negf %684 : vector<16x128xf32>
    %686 = math.exp %685 : vector<16x128xf32>
    %cst_172 = arith.constant 1.000000e+00 : f32
    %687 = vector.broadcast %cst_172 : f32 to vector<16x128xf32>
    %688 = arith.addf %687, %686 : vector<16x128xf32>
    %689 = arith.divf %687, %688 : vector<16x128xf32>
    %690 = vector.extract_strided_slice %677 {offsets = [0, 128], sizes = [16, 128], strides = [1, 1]} : vector<16x512xf32> to vector<16x128xf32>
    %691 = arith.negf %690 : vector<16x128xf32>
    %692 = math.exp %691 : vector<16x128xf32>
    %cst_173 = arith.constant 1.000000e+00 : f32
    %693 = vector.broadcast %cst_173 : f32 to vector<16x128xf32>
    %694 = arith.addf %693, %692 : vector<16x128xf32>
    %695 = arith.divf %693, %694 : vector<16x128xf32>
    %696 = vector.extract_strided_slice %677 {offsets = [0, 256], sizes = [16, 128], strides = [1, 1]} : vector<16x512xf32> to vector<16x128xf32>
    %697 = math.tanh %696 : vector<16x128xf32>
    %698 = vector.extract_strided_slice %677 {offsets = [0, 384], sizes = [16, 128], strides = [1, 1]} : vector<16x512xf32> to vector<16x128xf32>
    %699 = arith.negf %698 : vector<16x128xf32>
    %700 = math.exp %699 : vector<16x128xf32>
    %cst_174 = arith.constant 1.000000e+00 : f32
    %701 = vector.broadcast %cst_174 : f32 to vector<16x128xf32>
    %702 = arith.addf %701, %700 : vector<16x128xf32>
    %703 = arith.divf %701, %702 : vector<16x128xf32>
    %704 = arith.mulf %695, %633 : vector<16x128xf32>
    %705 = arith.mulf %689, %697 : vector<16x128xf32>
    %706 = arith.addf %704, %705 : vector<16x128xf32>
    %707 = math.tanh %706 : vector<16x128xf32>
    %708 = arith.mulf %703, %707 : vector<16x128xf32>
    %709 = vector.extract_strided_slice %683 {offsets = [0, 0], sizes = [16, 128], strides = [1, 1]} : vector<16x512xf32> to vector<16x128xf32>
    %710 = arith.negf %709 : vector<16x128xf32>
    %711 = math.exp %710 : vector<16x128xf32>
    %cst_175 = arith.constant 1.000000e+00 : f32
    %712 = vector.broadcast %cst_175 : f32 to vector<16x128xf32>
    %713 = arith.addf %712, %711 : vector<16x128xf32>
    %714 = arith.divf %712, %713 : vector<16x128xf32>
    %715 = vector.extract_strided_slice %683 {offsets = [0, 128], sizes = [16, 128], strides = [1, 1]} : vector<16x512xf32> to vector<16x128xf32>
    %716 = arith.negf %715 : vector<16x128xf32>
    %717 = math.exp %716 : vector<16x128xf32>
    %cst_176 = arith.constant 1.000000e+00 : f32
    %718 = vector.broadcast %cst_176 : f32 to vector<16x128xf32>
    %719 = arith.addf %718, %717 : vector<16x128xf32>
    %720 = arith.divf %718, %719 : vector<16x128xf32>
    %721 = vector.extract_strided_slice %683 {offsets = [0, 256], sizes = [16, 128], strides = [1, 1]} : vector<16x512xf32> to vector<16x128xf32>
    %722 = math.tanh %721 : vector<16x128xf32>
    %723 = vector.extract_strided_slice %683 {offsets = [0, 384], sizes = [16, 128], strides = [1, 1]} : vector<16x512xf32> to vector<16x128xf32>
    %724 = arith.negf %723 : vector<16x128xf32>
    %725 = math.exp %724 : vector<16x128xf32>
    %cst_177 = arith.constant 1.000000e+00 : f32
    %726 = vector.broadcast %cst_177 : f32 to vector<16x128xf32>
    %727 = arith.addf %726, %725 : vector<16x128xf32>
    %728 = arith.divf %726, %727 : vector<16x128xf32>
    %729 = arith.mulf %720, %658 : vector<16x128xf32>
    %730 = arith.mulf %714, %722 : vector<16x128xf32>
    %731 = arith.addf %729, %730 : vector<16x128xf32>
    %732 = math.tanh %731 : vector<16x128xf32>
    %733 = arith.mulf %728, %732 : vector<16x128xf32>
    %734 = arith.truncf %708 : vector<16x128xf32> to vector<16x128xbf16>
    %735 = arith.truncf %733 : vector<16x128xf32> to vector<16x128xbf16>
    %736 = arith.index_cast %c9_i32 : i32 to index
    %c0_178 = arith.constant 0 : index
    %c0_179 = arith.constant 0 : index
    %737 = vector.load %arg10[%736, %c0_178, %c0_179] : memref<16x16x256xbf16, #tpu.memory_space<vmem>>, vector<1x16x128xbf16>
    %738 = vector.shape_cast %737 : vector<1x16x128xbf16> to vector<16x128xbf16>
    %739 = vector.shape_cast %734 : vector<16x128xbf16> to vector<1x16x128xbf16>
    tpu.vector_store %arg10[%736, %c0_178, %c0_179], %739 {strides = array<i32>} : memref<16x16x256xbf16, #tpu.memory_space<vmem>>, vector<1x16x128xbf16>,
    %740 = arith.index_cast %671 : i32 to index
    %c0_180 = arith.constant 0 : index
    %c128_181 = arith.constant 128 : index
    %741 = vector.load %arg10[%740, %c0_180, %c128_181] : memref<16x16x256xbf16, #tpu.memory_space<vmem>>, vector<1x16x128xbf16>
    %742 = vector.shape_cast %741 : vector<1x16x128xbf16> to vector<16x128xbf16>
    %743 = vector.shape_cast %735 : vector<16x128xbf16> to vector<1x16x128xbf16>
    tpu.vector_store %arg10[%740, %c0_180, %c128_181], %743 {strides = array<i32>} : memref<16x16x256xbf16, #tpu.memory_space<vmem>>, vector<1x16x128xbf16>,
    %c10_i32 = arith.constant 10 : i32
    %c15_i32_182 = arith.constant 15 : i32
    %744 = arith.subi %c15_i32_182, %c10_i32 : i32
    %745 = arith.index_cast %c10_i32 : i32 to index
    %c0_183 = arith.constant 0 : index
    %c0_184 = arith.constant 0 : index
    %746 = vector.load %arg9[%745, %c0_183, %c0_184] : memref<16x16x1024xbf16, #tpu.memory_space<vmem>>, vector<1x16x512xbf16>
    %747 = vector.shape_cast %746 : vector<1x16x512xbf16> to vector<16x512xbf16>
    %748 = arith.extf %747 : vector<16x512xbf16> to vector<16x512xf32>
    %cst_185 = arith.constant dense<0.000000e+00> : vector<16x512xf32>
    %749 = tpu.matmul %734, %10, %cst_185 {dimension_numbers = #tpu.dot_dimension_numbers<[1], [0], [0], [1], [0, 0, 1, 1], [], []>} : vector<16x128xbf16>, vector<128x512xbf16>, vector<16x512xf32> -> vector<16x512xf32>
    %750 = arith.addf %748, %749 : vector<16x512xf32>
    %751 = arith.index_cast %744 : i32 to index
    %c0_186 = arith.constant 0 : index
    %c512_187 = arith.constant 512 : index
    %752 = vector.load %arg9[%751, %c0_186, %c512_187] : memref<16x16x1024xbf16, #tpu.memory_space<vmem>>, vector<1x16x512xbf16>
    %753 = vector.shape_cast %752 : vector<1x16x512xbf16> to vector<16x512xbf16>
    %754 = arith.extf %753 : vector<16x512xbf16> to vector<16x512xf32>
    %cst_188 = arith.constant dense<0.000000e+00> : vector<16x512xf32>
    %755 = tpu.matmul %735, %11, %cst_188 {dimension_numbers = #tpu.dot_dimension_numbers<[1], [0], [0], [1], [0, 0, 1, 1], [], []>} : vector<16x128xbf16>, vector<128x512xbf16>, vector<16x512xf32> -> vector<16x512xf32>
    %756 = arith.addf %754, %755 : vector<16x512xf32>
    %757 = vector.extract_strided_slice %750 {offsets = [0, 0], sizes = [16, 128], strides = [1, 1]} : vector<16x512xf32> to vector<16x128xf32>
    %758 = arith.negf %757 : vector<16x128xf32>
    %759 = math.exp %758 : vector<16x128xf32>
    %cst_189 = arith.constant 1.000000e+00 : f32
    %760 = vector.broadcast %cst_189 : f32 to vector<16x128xf32>
    %761 = arith.addf %760, %759 : vector<16x128xf32>
    %762 = arith.divf %760, %761 : vector<16x128xf32>
    %763 = vector.extract_strided_slice %750 {offsets = [0, 128], sizes = [16, 128], strides = [1, 1]} : vector<16x512xf32> to vector<16x128xf32>
    %764 = arith.negf %763 : vector<16x128xf32>
    %765 = math.exp %764 : vector<16x128xf32>
    %cst_190 = arith.constant 1.000000e+00 : f32
    %766 = vector.broadcast %cst_190 : f32 to vector<16x128xf32>
    %767 = arith.addf %766, %765 : vector<16x128xf32>
    %768 = arith.divf %766, %767 : vector<16x128xf32>
    %769 = vector.extract_strided_slice %750 {offsets = [0, 256], sizes = [16, 128], strides = [1, 1]} : vector<16x512xf32> to vector<16x128xf32>
    %770 = math.tanh %769 : vector<16x128xf32>
    %771 = vector.extract_strided_slice %750 {offsets = [0, 384], sizes = [16, 128], strides = [1, 1]} : vector<16x512xf32> to vector<16x128xf32>
    %772 = arith.negf %771 : vector<16x128xf32>
    %773 = math.exp %772 : vector<16x128xf32>
    %cst_191 = arith.constant 1.000000e+00 : f32
    %774 = vector.broadcast %cst_191 : f32 to vector<16x128xf32>
    %775 = arith.addf %774, %773 : vector<16x128xf32>
    %776 = arith.divf %774, %775 : vector<16x128xf32>
    %777 = arith.mulf %768, %706 : vector<16x128xf32>
    %778 = arith.mulf %762, %770 : vector<16x128xf32>
    %779 = arith.addf %777, %778 : vector<16x128xf32>
    %780 = math.tanh %779 : vector<16x128xf32>
    %781 = arith.mulf %776, %780 : vector<16x128xf32>
    %782 = vector.extract_strided_slice %756 {offsets = [0, 0], sizes = [16, 128], strides = [1, 1]} : vector<16x512xf32> to vector<16x128xf32>
    %783 = arith.negf %782 : vector<16x128xf32>
    %784 = math.exp %783 : vector<16x128xf32>
    %cst_192 = arith.constant 1.000000e+00 : f32
    %785 = vector.broadcast %cst_192 : f32 to vector<16x128xf32>
    %786 = arith.addf %785, %784 : vector<16x128xf32>
    %787 = arith.divf %785, %786 : vector<16x128xf32>
    %788 = vector.extract_strided_slice %756 {offsets = [0, 128], sizes = [16, 128], strides = [1, 1]} : vector<16x512xf32> to vector<16x128xf32>
    %789 = arith.negf %788 : vector<16x128xf32>
    %790 = math.exp %789 : vector<16x128xf32>
    %cst_193 = arith.constant 1.000000e+00 : f32
    %791 = vector.broadcast %cst_193 : f32 to vector<16x128xf32>
    %792 = arith.addf %791, %790 : vector<16x128xf32>
    %793 = arith.divf %791, %792 : vector<16x128xf32>
    %794 = vector.extract_strided_slice %756 {offsets = [0, 256], sizes = [16, 128], strides = [1, 1]} : vector<16x512xf32> to vector<16x128xf32>
    %795 = math.tanh %794 : vector<16x128xf32>
    %796 = vector.extract_strided_slice %756 {offsets = [0, 384], sizes = [16, 128], strides = [1, 1]} : vector<16x512xf32> to vector<16x128xf32>
    %797 = arith.negf %796 : vector<16x128xf32>
    %798 = math.exp %797 : vector<16x128xf32>
    %cst_194 = arith.constant 1.000000e+00 : f32
    %799 = vector.broadcast %cst_194 : f32 to vector<16x128xf32>
    %800 = arith.addf %799, %798 : vector<16x128xf32>
    %801 = arith.divf %799, %800 : vector<16x128xf32>
    %802 = arith.mulf %793, %731 : vector<16x128xf32>
    %803 = arith.mulf %787, %795 : vector<16x128xf32>
    %804 = arith.addf %802, %803 : vector<16x128xf32>
    %805 = math.tanh %804 : vector<16x128xf32>
    %806 = arith.mulf %801, %805 : vector<16x128xf32>
    %807 = arith.truncf %781 : vector<16x128xf32> to vector<16x128xbf16>
    %808 = arith.truncf %806 : vector<16x128xf32> to vector<16x128xbf16>
    %809 = arith.index_cast %c10_i32 : i32 to index
    %c0_195 = arith.constant 0 : index
    %c0_196 = arith.constant 0 : index
    %810 = vector.load %arg10[%809, %c0_195, %c0_196] : memref<16x16x256xbf16, #tpu.memory_space<vmem>>, vector<1x16x128xbf16>
    %811 = vector.shape_cast %810 : vector<1x16x128xbf16> to vector<16x128xbf16>
    %812 = vector.shape_cast %807 : vector<16x128xbf16> to vector<1x16x128xbf16>
    tpu.vector_store %arg10[%809, %c0_195, %c0_196], %812 {strides = array<i32>} : memref<16x16x256xbf16, #tpu.memory_space<vmem>>, vector<1x16x128xbf16>,
    %813 = arith.index_cast %744 : i32 to index
    %c0_197 = arith.constant 0 : index
    %c128_198 = arith.constant 128 : index
    %814 = vector.load %arg10[%813, %c0_197, %c128_198] : memref<16x16x256xbf16, #tpu.memory_space<vmem>>, vector<1x16x128xbf16>
    %815 = vector.shape_cast %814 : vector<1x16x128xbf16> to vector<16x128xbf16>
    %816 = vector.shape_cast %808 : vector<16x128xbf16> to vector<1x16x128xbf16>
    tpu.vector_store %arg10[%813, %c0_197, %c128_198], %816 {strides = array<i32>} : memref<16x16x256xbf16, #tpu.memory_space<vmem>>, vector<1x16x128xbf16>,
    %c11_i32 = arith.constant 11 : i32
    %c15_i32_199 = arith.constant 15 : i32
    %817 = arith.subi %c15_i32_199, %c11_i32 : i32
    %818 = arith.index_cast %c11_i32 : i32 to index
    %c0_200 = arith.constant 0 : index
    %c0_201 = arith.constant 0 : index
    %819 = vector.load %arg9[%818, %c0_200, %c0_201] : memref<16x16x1024xbf16, #tpu.memory_space<vmem>>, vector<1x16x512xbf16>
    %820 = vector.shape_cast %819 : vector<1x16x512xbf16> to vector<16x512xbf16>
    %821 = arith.extf %820 : vector<16x512xbf16> to vector<16x512xf32>
    %cst_202 = arith.constant dense<0.000000e+00> : vector<16x512xf32>
    %822 = tpu.matmul %807, %10, %cst_202 {dimension_numbers = #tpu.dot_dimension_numbers<[1], [0], [0], [1], [0, 0, 1, 1], [], []>} : vector<16x128xbf16>, vector<128x512xbf16>, vector<16x512xf32> -> vector<16x512xf32>
    %823 = arith.addf %821, %822 : vector<16x512xf32>
    %824 = arith.index_cast %817 : i32 to index
    %c0_203 = arith.constant 0 : index
    %c512_204 = arith.constant 512 : index
    %825 = vector.load %arg9[%824, %c0_203, %c512_204] : memref<16x16x1024xbf16, #tpu.memory_space<vmem>>, vector<1x16x512xbf16>
    %826 = vector.shape_cast %825 : vector<1x16x512xbf16> to vector<16x512xbf16>
    %827 = arith.extf %826 : vector<16x512xbf16> to vector<16x512xf32>
    %cst_205 = arith.constant dense<0.000000e+00> : vector<16x512xf32>
    %828 = tpu.matmul %808, %11, %cst_205 {dimension_numbers = #tpu.dot_dimension_numbers<[1], [0], [0], [1], [0, 0, 1, 1], [], []>} : vector<16x128xbf16>, vector<128x512xbf16>, vector<16x512xf32> -> vector<16x512xf32>
    %829 = arith.addf %827, %828 : vector<16x512xf32>
    %830 = vector.extract_strided_slice %823 {offsets = [0, 0], sizes = [16, 128], strides = [1, 1]} : vector<16x512xf32> to vector<16x128xf32>
    %831 = arith.negf %830 : vector<16x128xf32>
    %832 = math.exp %831 : vector<16x128xf32>
    %cst_206 = arith.constant 1.000000e+00 : f32
    %833 = vector.broadcast %cst_206 : f32 to vector<16x128xf32>
    %834 = arith.addf %833, %832 : vector<16x128xf32>
    %835 = arith.divf %833, %834 : vector<16x128xf32>
    %836 = vector.extract_strided_slice %823 {offsets = [0, 128], sizes = [16, 128], strides = [1, 1]} : vector<16x512xf32> to vector<16x128xf32>
    %837 = arith.negf %836 : vector<16x128xf32>
    %838 = math.exp %837 : vector<16x128xf32>
    %cst_207 = arith.constant 1.000000e+00 : f32
    %839 = vector.broadcast %cst_207 : f32 to vector<16x128xf32>
    %840 = arith.addf %839, %838 : vector<16x128xf32>
    %841 = arith.divf %839, %840 : vector<16x128xf32>
    %842 = vector.extract_strided_slice %823 {offsets = [0, 256], sizes = [16, 128], strides = [1, 1]} : vector<16x512xf32> to vector<16x128xf32>
    %843 = math.tanh %842 : vector<16x128xf32>
    %844 = vector.extract_strided_slice %823 {offsets = [0, 384], sizes = [16, 128], strides = [1, 1]} : vector<16x512xf32> to vector<16x128xf32>
    %845 = arith.negf %844 : vector<16x128xf32>
    %846 = math.exp %845 : vector<16x128xf32>
    %cst_208 = arith.constant 1.000000e+00 : f32
    %847 = vector.broadcast %cst_208 : f32 to vector<16x128xf32>
    %848 = arith.addf %847, %846 : vector<16x128xf32>
    %849 = arith.divf %847, %848 : vector<16x128xf32>
    %850 = arith.mulf %841, %779 : vector<16x128xf32>
    %851 = arith.mulf %835, %843 : vector<16x128xf32>
    %852 = arith.addf %850, %851 : vector<16x128xf32>
    %853 = math.tanh %852 : vector<16x128xf32>
    %854 = arith.mulf %849, %853 : vector<16x128xf32>
    %855 = vector.extract_strided_slice %829 {offsets = [0, 0], sizes = [16, 128], strides = [1, 1]} : vector<16x512xf32> to vector<16x128xf32>
    %856 = arith.negf %855 : vector<16x128xf32>
    %857 = math.exp %856 : vector<16x128xf32>
    %cst_209 = arith.constant 1.000000e+00 : f32
    %858 = vector.broadcast %cst_209 : f32 to vector<16x128xf32>
    %859 = arith.addf %858, %857 : vector<16x128xf32>
    %860 = arith.divf %858, %859 : vector<16x128xf32>
    %861 = vector.extract_strided_slice %829 {offsets = [0, 128], sizes = [16, 128], strides = [1, 1]} : vector<16x512xf32> to vector<16x128xf32>
    %862 = arith.negf %861 : vector<16x128xf32>
    %863 = math.exp %862 : vector<16x128xf32>
    %cst_210 = arith.constant 1.000000e+00 : f32
    %864 = vector.broadcast %cst_210 : f32 to vector<16x128xf32>
    %865 = arith.addf %864, %863 : vector<16x128xf32>
    %866 = arith.divf %864, %865 : vector<16x128xf32>
    %867 = vector.extract_strided_slice %829 {offsets = [0, 256], sizes = [16, 128], strides = [1, 1]} : vector<16x512xf32> to vector<16x128xf32>
    %868 = math.tanh %867 : vector<16x128xf32>
    %869 = vector.extract_strided_slice %829 {offsets = [0, 384], sizes = [16, 128], strides = [1, 1]} : vector<16x512xf32> to vector<16x128xf32>
    %870 = arith.negf %869 : vector<16x128xf32>
    %871 = math.exp %870 : vector<16x128xf32>
    %cst_211 = arith.constant 1.000000e+00 : f32
    %872 = vector.broadcast %cst_211 : f32 to vector<16x128xf32>
    %873 = arith.addf %872, %871 : vector<16x128xf32>
    %874 = arith.divf %872, %873 : vector<16x128xf32>
    %875 = arith.mulf %866, %804 : vector<16x128xf32>
    %876 = arith.mulf %860, %868 : vector<16x128xf32>
    %877 = arith.addf %875, %876 : vector<16x128xf32>
    %878 = math.tanh %877 : vector<16x128xf32>
    %879 = arith.mulf %874, %878 : vector<16x128xf32>
    %880 = arith.truncf %854 : vector<16x128xf32> to vector<16x128xbf16>
    %881 = arith.truncf %879 : vector<16x128xf32> to vector<16x128xbf16>
    %882 = arith.index_cast %c11_i32 : i32 to index
    %c0_212 = arith.constant 0 : index
    %c0_213 = arith.constant 0 : index
    %883 = vector.load %arg10[%882, %c0_212, %c0_213] : memref<16x16x256xbf16, #tpu.memory_space<vmem>>, vector<1x16x128xbf16>
    %884 = vector.shape_cast %883 : vector<1x16x128xbf16> to vector<16x128xbf16>
    %885 = vector.shape_cast %880 : vector<16x128xbf16> to vector<1x16x128xbf16>
    tpu.vector_store %arg10[%882, %c0_212, %c0_213], %885 {strides = array<i32>} : memref<16x16x256xbf16, #tpu.memory_space<vmem>>, vector<1x16x128xbf16>,
    %886 = arith.index_cast %817 : i32 to index
    %c0_214 = arith.constant 0 : index
    %c128_215 = arith.constant 128 : index
    %887 = vector.load %arg10[%886, %c0_214, %c128_215] : memref<16x16x256xbf16, #tpu.memory_space<vmem>>, vector<1x16x128xbf16>
    %888 = vector.shape_cast %887 : vector<1x16x128xbf16> to vector<16x128xbf16>
    %889 = vector.shape_cast %881 : vector<16x128xbf16> to vector<1x16x128xbf16>
    tpu.vector_store %arg10[%886, %c0_214, %c128_215], %889 {strides = array<i32>} : memref<16x16x256xbf16, #tpu.memory_space<vmem>>, vector<1x16x128xbf16>,
    %c12_i32 = arith.constant 12 : i32
    %c15_i32_216 = arith.constant 15 : i32
    %890 = arith.subi %c15_i32_216, %c12_i32 : i32
    %891 = arith.index_cast %c12_i32 : i32 to index
    %c0_217 = arith.constant 0 : index
    %c0_218 = arith.constant 0 : index
    %892 = vector.load %arg9[%891, %c0_217, %c0_218] : memref<16x16x1024xbf16, #tpu.memory_space<vmem>>, vector<1x16x512xbf16>
    %893 = vector.shape_cast %892 : vector<1x16x512xbf16> to vector<16x512xbf16>
    %894 = arith.extf %893 : vector<16x512xbf16> to vector<16x512xf32>
    %cst_219 = arith.constant dense<0.000000e+00> : vector<16x512xf32>
    %895 = tpu.matmul %880, %10, %cst_219 {dimension_numbers = #tpu.dot_dimension_numbers<[1], [0], [0], [1], [0, 0, 1, 1], [], []>} : vector<16x128xbf16>, vector<128x512xbf16>, vector<16x512xf32> -> vector<16x512xf32>
    %896 = arith.addf %894, %895 : vector<16x512xf32>
    %897 = arith.index_cast %890 : i32 to index
    %c0_220 = arith.constant 0 : index
    %c512_221 = arith.constant 512 : index
    %898 = vector.load %arg9[%897, %c0_220, %c512_221] : memref<16x16x1024xbf16, #tpu.memory_space<vmem>>, vector<1x16x512xbf16>
    %899 = vector.shape_cast %898 : vector<1x16x512xbf16> to vector<16x512xbf16>
    %900 = arith.extf %899 : vector<16x512xbf16> to vector<16x512xf32>
    %cst_222 = arith.constant dense<0.000000e+00> : vector<16x512xf32>
    %901 = tpu.matmul %881, %11, %cst_222 {dimension_numbers = #tpu.dot_dimension_numbers<[1], [0], [0], [1], [0, 0, 1, 1], [], []>} : vector<16x128xbf16>, vector<128x512xbf16>, vector<16x512xf32> -> vector<16x512xf32>
    %902 = arith.addf %900, %901 : vector<16x512xf32>
    %903 = vector.extract_strided_slice %896 {offsets = [0, 0], sizes = [16, 128], strides = [1, 1]} : vector<16x512xf32> to vector<16x128xf32>
    %904 = arith.negf %903 : vector<16x128xf32>
    %905 = math.exp %904 : vector<16x128xf32>
    %cst_223 = arith.constant 1.000000e+00 : f32
    %906 = vector.broadcast %cst_223 : f32 to vector<16x128xf32>
    %907 = arith.addf %906, %905 : vector<16x128xf32>
    %908 = arith.divf %906, %907 : vector<16x128xf32>
    %909 = vector.extract_strided_slice %896 {offsets = [0, 128], sizes = [16, 128], strides = [1, 1]} : vector<16x512xf32> to vector<16x128xf32>
    %910 = arith.negf %909 : vector<16x128xf32>
    %911 = math.exp %910 : vector<16x128xf32>
    %cst_224 = arith.constant 1.000000e+00 : f32
    %912 = vector.broadcast %cst_224 : f32 to vector<16x128xf32>
    %913 = arith.addf %912, %911 : vector<16x128xf32>
    %914 = arith.divf %912, %913 : vector<16x128xf32>
    %915 = vector.extract_strided_slice %896 {offsets = [0, 256], sizes = [16, 128], strides = [1, 1]} : vector<16x512xf32> to vector<16x128xf32>
    %916 = math.tanh %915 : vector<16x128xf32>
    %917 = vector.extract_strided_slice %896 {offsets = [0, 384], sizes = [16, 128], strides = [1, 1]} : vector<16x512xf32> to vector<16x128xf32>
    %918 = arith.negf %917 : vector<16x128xf32>
    %919 = math.exp %918 : vector<16x128xf32>
    %cst_225 = arith.constant 1.000000e+00 : f32
    %920 = vector.broadcast %cst_225 : f32 to vector<16x128xf32>
    %921 = arith.addf %920, %919 : vector<16x128xf32>
    %922 = arith.divf %920, %921 : vector<16x128xf32>
    %923 = arith.mulf %914, %852 : vector<16x128xf32>
    %924 = arith.mulf %908, %916 : vector<16x128xf32>
    %925 = arith.addf %923, %924 : vector<16x128xf32>
    %926 = math.tanh %925 : vector<16x128xf32>
    %927 = arith.mulf %922, %926 : vector<16x128xf32>
    %928 = vector.extract_strided_slice %902 {offsets = [0, 0], sizes = [16, 128], strides = [1, 1]} : vector<16x512xf32> to vector<16x128xf32>
    %929 = arith.negf %928 : vector<16x128xf32>
    %930 = math.exp %929 : vector<16x128xf32>
    %cst_226 = arith.constant 1.000000e+00 : f32
    %931 = vector.broadcast %cst_226 : f32 to vector<16x128xf32>
    %932 = arith.addf %931, %930 : vector<16x128xf32>
    %933 = arith.divf %931, %932 : vector<16x128xf32>
    %934 = vector.extract_strided_slice %902 {offsets = [0, 128], sizes = [16, 128], strides = [1, 1]} : vector<16x512xf32> to vector<16x128xf32>
    %935 = arith.negf %934 : vector<16x128xf32>
    %936 = math.exp %935 : vector<16x128xf32>
    %cst_227 = arith.constant 1.000000e+00 : f32
    %937 = vector.broadcast %cst_227 : f32 to vector<16x128xf32>
    %938 = arith.addf %937, %936 : vector<16x128xf32>
    %939 = arith.divf %937, %938 : vector<16x128xf32>
    %940 = vector.extract_strided_slice %902 {offsets = [0, 256], sizes = [16, 128], strides = [1, 1]} : vector<16x512xf32> to vector<16x128xf32>
    %941 = math.tanh %940 : vector<16x128xf32>
    %942 = vector.extract_strided_slice %902 {offsets = [0, 384], sizes = [16, 128], strides = [1, 1]} : vector<16x512xf32> to vector<16x128xf32>
    %943 = arith.negf %942 : vector<16x128xf32>
    %944 = math.exp %943 : vector<16x128xf32>
    %cst_228 = arith.constant 1.000000e+00 : f32
    %945 = vector.broadcast %cst_228 : f32 to vector<16x128xf32>
    %946 = arith.addf %945, %944 : vector<16x128xf32>
    %947 = arith.divf %945, %946 : vector<16x128xf32>
    %948 = arith.mulf %939, %877 : vector<16x128xf32>
    %949 = arith.mulf %933, %941 : vector<16x128xf32>
    %950 = arith.addf %948, %949 : vector<16x128xf32>
    %951 = math.tanh %950 : vector<16x128xf32>
    %952 = arith.mulf %947, %951 : vector<16x128xf32>
    %953 = arith.truncf %927 : vector<16x128xf32> to vector<16x128xbf16>
    %954 = arith.truncf %952 : vector<16x128xf32> to vector<16x128xbf16>
    %955 = arith.index_cast %c12_i32 : i32 to index
    %c0_229 = arith.constant 0 : index
    %c0_230 = arith.constant 0 : index
    %956 = vector.load %arg10[%955, %c0_229, %c0_230] : memref<16x16x256xbf16, #tpu.memory_space<vmem>>, vector<1x16x128xbf16>
    %957 = vector.shape_cast %956 : vector<1x16x128xbf16> to vector<16x128xbf16>
    %958 = vector.shape_cast %953 : vector<16x128xbf16> to vector<1x16x128xbf16>
    tpu.vector_store %arg10[%955, %c0_229, %c0_230], %958 {strides = array<i32>} : memref<16x16x256xbf16, #tpu.memory_space<vmem>>, vector<1x16x128xbf16>,
    %959 = arith.index_cast %890 : i32 to index
    %c0_231 = arith.constant 0 : index
    %c128_232 = arith.constant 128 : index
    %960 = vector.load %arg10[%959, %c0_231, %c128_232] : memref<16x16x256xbf16, #tpu.memory_space<vmem>>, vector<1x16x128xbf16>
    %961 = vector.shape_cast %960 : vector<1x16x128xbf16> to vector<16x128xbf16>
    %962 = vector.shape_cast %954 : vector<16x128xbf16> to vector<1x16x128xbf16>
    tpu.vector_store %arg10[%959, %c0_231, %c128_232], %962 {strides = array<i32>} : memref<16x16x256xbf16, #tpu.memory_space<vmem>>, vector<1x16x128xbf16>,
    %c13_i32 = arith.constant 13 : i32
    %c15_i32_233 = arith.constant 15 : i32
    %963 = arith.subi %c15_i32_233, %c13_i32 : i32
    %964 = arith.index_cast %c13_i32 : i32 to index
    %c0_234 = arith.constant 0 : index
    %c0_235 = arith.constant 0 : index
    %965 = vector.load %arg9[%964, %c0_234, %c0_235] : memref<16x16x1024xbf16, #tpu.memory_space<vmem>>, vector<1x16x512xbf16>
    %966 = vector.shape_cast %965 : vector<1x16x512xbf16> to vector<16x512xbf16>
    %967 = arith.extf %966 : vector<16x512xbf16> to vector<16x512xf32>
    %cst_236 = arith.constant dense<0.000000e+00> : vector<16x512xf32>
    %968 = tpu.matmul %953, %10, %cst_236 {dimension_numbers = #tpu.dot_dimension_numbers<[1], [0], [0], [1], [0, 0, 1, 1], [], []>} : vector<16x128xbf16>, vector<128x512xbf16>, vector<16x512xf32> -> vector<16x512xf32>
    %969 = arith.addf %967, %968 : vector<16x512xf32>
    %970 = arith.index_cast %963 : i32 to index
    %c0_237 = arith.constant 0 : index
    %c512_238 = arith.constant 512 : index
    %971 = vector.load %arg9[%970, %c0_237, %c512_238] : memref<16x16x1024xbf16, #tpu.memory_space<vmem>>, vector<1x16x512xbf16>
    %972 = vector.shape_cast %971 : vector<1x16x512xbf16> to vector<16x512xbf16>
    %973 = arith.extf %972 : vector<16x512xbf16> to vector<16x512xf32>
    %cst_239 = arith.constant dense<0.000000e+00> : vector<16x512xf32>
    %974 = tpu.matmul %954, %11, %cst_239 {dimension_numbers = #tpu.dot_dimension_numbers<[1], [0], [0], [1], [0, 0, 1, 1], [], []>} : vector<16x128xbf16>, vector<128x512xbf16>, vector<16x512xf32> -> vector<16x512xf32>
    %975 = arith.addf %973, %974 : vector<16x512xf32>
    %976 = vector.extract_strided_slice %969 {offsets = [0, 0], sizes = [16, 128], strides = [1, 1]} : vector<16x512xf32> to vector<16x128xf32>
    %977 = arith.negf %976 : vector<16x128xf32>
    %978 = math.exp %977 : vector<16x128xf32>
    %cst_240 = arith.constant 1.000000e+00 : f32
    %979 = vector.broadcast %cst_240 : f32 to vector<16x128xf32>
    %980 = arith.addf %979, %978 : vector<16x128xf32>
    %981 = arith.divf %979, %980 : vector<16x128xf32>
    %982 = vector.extract_strided_slice %969 {offsets = [0, 128], sizes = [16, 128], strides = [1, 1]} : vector<16x512xf32> to vector<16x128xf32>
    %983 = arith.negf %982 : vector<16x128xf32>
    %984 = math.exp %983 : vector<16x128xf32>
    %cst_241 = arith.constant 1.000000e+00 : f32
    %985 = vector.broadcast %cst_241 : f32 to vector<16x128xf32>
    %986 = arith.addf %985, %984 : vector<16x128xf32>
    %987 = arith.divf %985, %986 : vector<16x128xf32>
    %988 = vector.extract_strided_slice %969 {offsets = [0, 256], sizes = [16, 128], strides = [1, 1]} : vector<16x512xf32> to vector<16x128xf32>
    %989 = math.tanh %988 : vector<16x128xf32>
    %990 = vector.extract_strided_slice %969 {offsets = [0, 384], sizes = [16, 128], strides = [1, 1]} : vector<16x512xf32> to vector<16x128xf32>
    %991 = arith.negf %990 : vector<16x128xf32>
    %992 = math.exp %991 : vector<16x128xf32>
    %cst_242 = arith.constant 1.000000e+00 : f32
    %993 = vector.broadcast %cst_242 : f32 to vector<16x128xf32>
    %994 = arith.addf %993, %992 : vector<16x128xf32>
    %995 = arith.divf %993, %994 : vector<16x128xf32>
    %996 = arith.mulf %987, %925 : vector<16x128xf32>
    %997 = arith.mulf %981, %989 : vector<16x128xf32>
    %998 = arith.addf %996, %997 : vector<16x128xf32>
    %999 = math.tanh %998 : vector<16x128xf32>
    %1000 = arith.mulf %995, %999 : vector<16x128xf32>
    %1001 = vector.extract_strided_slice %975 {offsets = [0, 0], sizes = [16, 128], strides = [1, 1]} : vector<16x512xf32> to vector<16x128xf32>
    %1002 = arith.negf %1001 : vector<16x128xf32>
    %1003 = math.exp %1002 : vector<16x128xf32>
    %cst_243 = arith.constant 1.000000e+00 : f32
    %1004 = vector.broadcast %cst_243 : f32 to vector<16x128xf32>
    %1005 = arith.addf %1004, %1003 : vector<16x128xf32>
    %1006 = arith.divf %1004, %1005 : vector<16x128xf32>
    %1007 = vector.extract_strided_slice %975 {offsets = [0, 128], sizes = [16, 128], strides = [1, 1]} : vector<16x512xf32> to vector<16x128xf32>
    %1008 = arith.negf %1007 : vector<16x128xf32>
    %1009 = math.exp %1008 : vector<16x128xf32>
    %cst_244 = arith.constant 1.000000e+00 : f32
    %1010 = vector.broadcast %cst_244 : f32 to vector<16x128xf32>
    %1011 = arith.addf %1010, %1009 : vector<16x128xf32>
    %1012 = arith.divf %1010, %1011 : vector<16x128xf32>
    %1013 = vector.extract_strided_slice %975 {offsets = [0, 256], sizes = [16, 128], strides = [1, 1]} : vector<16x512xf32> to vector<16x128xf32>
    %1014 = math.tanh %1013 : vector<16x128xf32>
    %1015 = vector.extract_strided_slice %975 {offsets = [0, 384], sizes = [16, 128], strides = [1, 1]} : vector<16x512xf32> to vector<16x128xf32>
    %1016 = arith.negf %1015 : vector<16x128xf32>
    %1017 = math.exp %1016 : vector<16x128xf32>
    %cst_245 = arith.constant 1.000000e+00 : f32
    %1018 = vector.broadcast %cst_245 : f32 to vector<16x128xf32>
    %1019 = arith.addf %1018, %1017 : vector<16x128xf32>
    %1020 = arith.divf %1018, %1019 : vector<16x128xf32>
    %1021 = arith.mulf %1012, %950 : vector<16x128xf32>
    %1022 = arith.mulf %1006, %1014 : vector<16x128xf32>
    %1023 = arith.addf %1021, %1022 : vector<16x128xf32>
    %1024 = math.tanh %1023 : vector<16x128xf32>
    %1025 = arith.mulf %1020, %1024 : vector<16x128xf32>
    %1026 = arith.truncf %1000 : vector<16x128xf32> to vector<16x128xbf16>
    %1027 = arith.truncf %1025 : vector<16x128xf32> to vector<16x128xbf16>
    %1028 = arith.index_cast %c13_i32 : i32 to index
    %c0_246 = arith.constant 0 : index
    %c0_247 = arith.constant 0 : index
    %1029 = vector.load %arg10[%1028, %c0_246, %c0_247] : memref<16x16x256xbf16, #tpu.memory_space<vmem>>, vector<1x16x128xbf16>
    %1030 = vector.shape_cast %1029 : vector<1x16x128xbf16> to vector<16x128xbf16>
    %1031 = vector.shape_cast %1026 : vector<16x128xbf16> to vector<1x16x128xbf16>
    tpu.vector_store %arg10[%1028, %c0_246, %c0_247], %1031 {strides = array<i32>} : memref<16x16x256xbf16, #tpu.memory_space<vmem>>, vector<1x16x128xbf16>,
    %1032 = arith.index_cast %963 : i32 to index
    %c0_248 = arith.constant 0 : index
    %c128_249 = arith.constant 128 : index
    %1033 = vector.load %arg10[%1032, %c0_248, %c128_249] : memref<16x16x256xbf16, #tpu.memory_space<vmem>>, vector<1x16x128xbf16>
    %1034 = vector.shape_cast %1033 : vector<1x16x128xbf16> to vector<16x128xbf16>
    %1035 = vector.shape_cast %1027 : vector<16x128xbf16> to vector<1x16x128xbf16>
    tpu.vector_store %arg10[%1032, %c0_248, %c128_249], %1035 {strides = array<i32>} : memref<16x16x256xbf16, #tpu.memory_space<vmem>>, vector<1x16x128xbf16>,
    %c14_i32 = arith.constant 14 : i32
    %c15_i32_250 = arith.constant 15 : i32
    %1036 = arith.subi %c15_i32_250, %c14_i32 : i32
    %1037 = arith.index_cast %c14_i32 : i32 to index
    %c0_251 = arith.constant 0 : index
    %c0_252 = arith.constant 0 : index
    %1038 = vector.load %arg9[%1037, %c0_251, %c0_252] : memref<16x16x1024xbf16, #tpu.memory_space<vmem>>, vector<1x16x512xbf16>
    %1039 = vector.shape_cast %1038 : vector<1x16x512xbf16> to vector<16x512xbf16>
    %1040 = arith.extf %1039 : vector<16x512xbf16> to vector<16x512xf32>
    %cst_253 = arith.constant dense<0.000000e+00> : vector<16x512xf32>
    %1041 = tpu.matmul %1026, %10, %cst_253 {dimension_numbers = #tpu.dot_dimension_numbers<[1], [0], [0], [1], [0, 0, 1, 1], [], []>} : vector<16x128xbf16>, vector<128x512xbf16>, vector<16x512xf32> -> vector<16x512xf32>
    %1042 = arith.addf %1040, %1041 : vector<16x512xf32>
    %1043 = arith.index_cast %1036 : i32 to index
    %c0_254 = arith.constant 0 : index
    %c512_255 = arith.constant 512 : index
    %1044 = vector.load %arg9[%1043, %c0_254, %c512_255] : memref<16x16x1024xbf16, #tpu.memory_space<vmem>>, vector<1x16x512xbf16>
    %1045 = vector.shape_cast %1044 : vector<1x16x512xbf16> to vector<16x512xbf16>
    %1046 = arith.extf %1045 : vector<16x512xbf16> to vector<16x512xf32>
    %cst_256 = arith.constant dense<0.000000e+00> : vector<16x512xf32>
    %1047 = tpu.matmul %1027, %11, %cst_256 {dimension_numbers = #tpu.dot_dimension_numbers<[1], [0], [0], [1], [0, 0, 1, 1], [], []>} : vector<16x128xbf16>, vector<128x512xbf16>, vector<16x512xf32> -> vector<16x512xf32>
    %1048 = arith.addf %1046, %1047 : vector<16x512xf32>
    %1049 = vector.extract_strided_slice %1042 {offsets = [0, 0], sizes = [16, 128], strides = [1, 1]} : vector<16x512xf32> to vector<16x128xf32>
    %1050 = arith.negf %1049 : vector<16x128xf32>
    %1051 = math.exp %1050 : vector<16x128xf32>
    %cst_257 = arith.constant 1.000000e+00 : f32
    %1052 = vector.broadcast %cst_257 : f32 to vector<16x128xf32>
    %1053 = arith.addf %1052, %1051 : vector<16x128xf32>
    %1054 = arith.divf %1052, %1053 : vector<16x128xf32>
    %1055 = vector.extract_strided_slice %1042 {offsets = [0, 128], sizes = [16, 128], strides = [1, 1]} : vector<16x512xf32> to vector<16x128xf32>
    %1056 = arith.negf %1055 : vector<16x128xf32>
    %1057 = math.exp %1056 : vector<16x128xf32>
    %cst_258 = arith.constant 1.000000e+00 : f32
    %1058 = vector.broadcast %cst_258 : f32 to vector<16x128xf32>
    %1059 = arith.addf %1058, %1057 : vector<16x128xf32>
    %1060 = arith.divf %1058, %1059 : vector<16x128xf32>
    %1061 = vector.extract_strided_slice %1042 {offsets = [0, 256], sizes = [16, 128], strides = [1, 1]} : vector<16x512xf32> to vector<16x128xf32>
    %1062 = math.tanh %1061 : vector<16x128xf32>
    %1063 = vector.extract_strided_slice %1042 {offsets = [0, 384], sizes = [16, 128], strides = [1, 1]} : vector<16x512xf32> to vector<16x128xf32>
    %1064 = arith.negf %1063 : vector<16x128xf32>
    %1065 = math.exp %1064 : vector<16x128xf32>
    %cst_259 = arith.constant 1.000000e+00 : f32
    %1066 = vector.broadcast %cst_259 : f32 to vector<16x128xf32>
    %1067 = arith.addf %1066, %1065 : vector<16x128xf32>
    %1068 = arith.divf %1066, %1067 : vector<16x128xf32>
    %1069 = arith.mulf %1060, %998 : vector<16x128xf32>
    %1070 = arith.mulf %1054, %1062 : vector<16x128xf32>
    %1071 = arith.addf %1069, %1070 : vector<16x128xf32>
    %1072 = math.tanh %1071 : vector<16x128xf32>
    %1073 = arith.mulf %1068, %1072 : vector<16x128xf32>
    %1074 = vector.extract_strided_slice %1048 {offsets = [0, 0], sizes = [16, 128], strides = [1, 1]} : vector<16x512xf32> to vector<16x128xf32>
    %1075 = arith.negf %1074 : vector<16x128xf32>
    %1076 = math.exp %1075 : vector<16x128xf32>
    %cst_260 = arith.constant 1.000000e+00 : f32
    %1077 = vector.broadcast %cst_260 : f32 to vector<16x128xf32>
    %1078 = arith.addf %1077, %1076 : vector<16x128xf32>
    %1079 = arith.divf %1077, %1078 : vector<16x128xf32>
    %1080 = vector.extract_strided_slice %1048 {offsets = [0, 128], sizes = [16, 128], strides = [1, 1]} : vector<16x512xf32> to vector<16x128xf32>
    %1081 = arith.negf %1080 : vector<16x128xf32>
    %1082 = math.exp %1081 : vector<16x128xf32>
    %cst_261 = arith.constant 1.000000e+00 : f32
    %1083 = vector.broadcast %cst_261 : f32 to vector<16x128xf32>
    %1084 = arith.addf %1083, %1082 : vector<16x128xf32>
    %1085 = arith.divf %1083, %1084 : vector<16x128xf32>
    %1086 = vector.extract_strided_slice %1048 {offsets = [0, 256], sizes = [16, 128], strides = [1, 1]} : vector<16x512xf32> to vector<16x128xf32>
    %1087 = math.tanh %1086 : vector<16x128xf32>
    %1088 = vector.extract_strided_slice %1048 {offsets = [0, 384], sizes = [16, 128], strides = [1, 1]} : vector<16x512xf32> to vector<16x128xf32>
    %1089 = arith.negf %1088 : vector<16x128xf32>
    %1090 = math.exp %1089 : vector<16x128xf32>
    %cst_262 = arith.constant 1.000000e+00 : f32
    %1091 = vector.broadcast %cst_262 : f32 to vector<16x128xf32>
    %1092 = arith.addf %1091, %1090 : vector<16x128xf32>
    %1093 = arith.divf %1091, %1092 : vector<16x128xf32>
    %1094 = arith.mulf %1085, %1023 : vector<16x128xf32>
    %1095 = arith.mulf %1079, %1087 : vector<16x128xf32>
    %1096 = arith.addf %1094, %1095 : vector<16x128xf32>
    %1097 = math.tanh %1096 : vector<16x128xf32>
    %1098 = arith.mulf %1093, %1097 : vector<16x128xf32>
    %1099 = arith.truncf %1073 : vector<16x128xf32> to vector<16x128xbf16>
    %1100 = arith.truncf %1098 : vector<16x128xf32> to vector<16x128xbf16>
    %1101 = arith.index_cast %c14_i32 : i32 to index
    %c0_263 = arith.constant 0 : index
    %c0_264 = arith.constant 0 : index
    %1102 = vector.load %arg10[%1101, %c0_263, %c0_264] : memref<16x16x256xbf16, #tpu.memory_space<vmem>>, vector<1x16x128xbf16>
    %1103 = vector.shape_cast %1102 : vector<1x16x128xbf16> to vector<16x128xbf16>
    %1104 = vector.shape_cast %1099 : vector<16x128xbf16> to vector<1x16x128xbf16>
    tpu.vector_store %arg10[%1101, %c0_263, %c0_264], %1104 {strides = array<i32>} : memref<16x16x256xbf16, #tpu.memory_space<vmem>>, vector<1x16x128xbf16>,
    %1105 = arith.index_cast %1036 : i32 to index
    %c0_265 = arith.constant 0 : index
    %c128_266 = arith.constant 128 : index
    %1106 = vector.load %arg10[%1105, %c0_265, %c128_266] : memref<16x16x256xbf16, #tpu.memory_space<vmem>>, vector<1x16x128xbf16>
    %1107 = vector.shape_cast %1106 : vector<1x16x128xbf16> to vector<16x128xbf16>
    %1108 = vector.shape_cast %1100 : vector<16x128xbf16> to vector<1x16x128xbf16>
    tpu.vector_store %arg10[%1105, %c0_265, %c128_266], %1108 {strides = array<i32>} : memref<16x16x256xbf16, #tpu.memory_space<vmem>>, vector<1x16x128xbf16>,
    %c15_i32_267 = arith.constant 15 : i32
    %c15_i32_268 = arith.constant 15 : i32
    %1109 = arith.subi %c15_i32_268, %c15_i32_267 : i32
    %1110 = arith.index_cast %c15_i32_267 : i32 to index
    %c0_269 = arith.constant 0 : index
    %c0_270 = arith.constant 0 : index
    %1111 = vector.load %arg9[%1110, %c0_269, %c0_270] : memref<16x16x1024xbf16, #tpu.memory_space<vmem>>, vector<1x16x512xbf16>
    %1112 = vector.shape_cast %1111 : vector<1x16x512xbf16> to vector<16x512xbf16>
    %1113 = arith.extf %1112 : vector<16x512xbf16> to vector<16x512xf32>
    %cst_271 = arith.constant dense<0.000000e+00> : vector<16x512xf32>
    %1114 = tpu.matmul %1099, %10, %cst_271 {dimension_numbers = #tpu.dot_dimension_numbers<[1], [0], [0], [1], [0, 0, 1, 1], [], []>} : vector<16x128xbf16>, vector<128x512xbf16>, vector<16x512xf32> -> vector<16x512xf32>
    %1115 = arith.addf %1113, %1114 : vector<16x512xf32>
    %1116 = arith.index_cast %1109 : i32 to index
    %c0_272 = arith.constant 0 : index
    %c512_273 = arith.constant 512 : index
    %1117 = vector.load %arg9[%1116, %c0_272, %c512_273] : memref<16x16x1024xbf16, #tpu.memory_space<vmem>>, vector<1x16x512xbf16>
    %1118 = vector.shape_cast %1117 : vector<1x16x512xbf16> to vector<16x512xbf16>
    %1119 = arith.extf %1118 : vector<16x512xbf16> to vector<16x512xf32>
    %cst_274 = arith.constant dense<0.000000e+00> : vector<16x512xf32>
    %1120 = tpu.matmul %1100, %11, %cst_274 {dimension_numbers = #tpu.dot_dimension_numbers<[1], [0], [0], [1], [0, 0, 1, 1], [], []>} : vector<16x128xbf16>, vector<128x512xbf16>, vector<16x512xf32> -> vector<16x512xf32>
    %1121 = arith.addf %1119, %1120 : vector<16x512xf32>
    %1122 = vector.extract_strided_slice %1115 {offsets = [0, 0], sizes = [16, 128], strides = [1, 1]} : vector<16x512xf32> to vector<16x128xf32>
    %1123 = arith.negf %1122 : vector<16x128xf32>
    %1124 = math.exp %1123 : vector<16x128xf32>
    %cst_275 = arith.constant 1.000000e+00 : f32
    %1125 = vector.broadcast %cst_275 : f32 to vector<16x128xf32>
    %1126 = arith.addf %1125, %1124 : vector<16x128xf32>
    %1127 = arith.divf %1125, %1126 : vector<16x128xf32>
    %1128 = vector.extract_strided_slice %1115 {offsets = [0, 128], sizes = [16, 128], strides = [1, 1]} : vector<16x512xf32> to vector<16x128xf32>
    %1129 = arith.negf %1128 : vector<16x128xf32>
    %1130 = math.exp %1129 : vector<16x128xf32>
    %cst_276 = arith.constant 1.000000e+00 : f32
    %1131 = vector.broadcast %cst_276 : f32 to vector<16x128xf32>
    %1132 = arith.addf %1131, %1130 : vector<16x128xf32>
    %1133 = arith.divf %1131, %1132 : vector<16x128xf32>
    %1134 = vector.extract_strided_slice %1115 {offsets = [0, 256], sizes = [16, 128], strides = [1, 1]} : vector<16x512xf32> to vector<16x128xf32>
    %1135 = math.tanh %1134 : vector<16x128xf32>
    %1136 = vector.extract_strided_slice %1115 {offsets = [0, 384], sizes = [16, 128], strides = [1, 1]} : vector<16x512xf32> to vector<16x128xf32>
    %1137 = arith.negf %1136 : vector<16x128xf32>
    %1138 = math.exp %1137 : vector<16x128xf32>
    %cst_277 = arith.constant 1.000000e+00 : f32
    %1139 = vector.broadcast %cst_277 : f32 to vector<16x128xf32>
    %1140 = arith.addf %1139, %1138 : vector<16x128xf32>
    %1141 = arith.divf %1139, %1140 : vector<16x128xf32>
    %1142 = arith.mulf %1133, %1071 : vector<16x128xf32>
    %1143 = arith.mulf %1127, %1135 : vector<16x128xf32>
    %1144 = arith.addf %1142, %1143 : vector<16x128xf32>
    %1145 = math.tanh %1144 : vector<16x128xf32>
    %1146 = arith.mulf %1141, %1145 : vector<16x128xf32>
    %1147 = vector.extract_strided_slice %1121 {offsets = [0, 0], sizes = [16, 128], strides = [1, 1]} : vector<16x512xf32> to vector<16x128xf32>
    %1148 = arith.negf %1147 : vector<16x128xf32>
    %1149 = math.exp %1148 : vector<16x128xf32>
    %cst_278 = arith.constant 1.000000e+00 : f32
    %1150 = vector.broadcast %cst_278 : f32 to vector<16x128xf32>
    %1151 = arith.addf %1150, %1149 : vector<16x128xf32>
    %1152 = arith.divf %1150, %1151 : vector<16x128xf32>
    %1153 = vector.extract_strided_slice %1121 {offsets = [0, 128], sizes = [16, 128], strides = [1, 1]} : vector<16x512xf32> to vector<16x128xf32>
    %1154 = arith.negf %1153 : vector<16x128xf32>
    %1155 = math.exp %1154 : vector<16x128xf32>
    %cst_279 = arith.constant 1.000000e+00 : f32
    %1156 = vector.broadcast %cst_279 : f32 to vector<16x128xf32>
    %1157 = arith.addf %1156, %1155 : vector<16x128xf32>
    %1158 = arith.divf %1156, %1157 : vector<16x128xf32>
    %1159 = vector.extract_strided_slice %1121 {offsets = [0, 256], sizes = [16, 128], strides = [1, 1]} : vector<16x512xf32> to vector<16x128xf32>
    %1160 = math.tanh %1159 : vector<16x128xf32>
    %1161 = vector.extract_strided_slice %1121 {offsets = [0, 384], sizes = [16, 128], strides = [1, 1]} : vector<16x512xf32> to vector<16x128xf32>
    %1162 = arith.negf %1161 : vector<16x128xf32>
    %1163 = math.exp %1162 : vector<16x128xf32>
    %cst_280 = arith.constant 1.000000e+00 : f32
    %1164 = vector.broadcast %cst_280 : f32 to vector<16x128xf32>
    %1165 = arith.addf %1164, %1163 : vector<16x128xf32>
    %1166 = arith.divf %1164, %1165 : vector<16x128xf32>
    %1167 = arith.mulf %1158, %1096 : vector<16x128xf32>
    %1168 = arith.mulf %1152, %1160 : vector<16x128xf32>
    %1169 = arith.addf %1167, %1168 : vector<16x128xf32>
    %1170 = math.tanh %1169 : vector<16x128xf32>
    %1171 = arith.mulf %1166, %1170 : vector<16x128xf32>
    %1172 = arith.truncf %1146 : vector<16x128xf32> to vector<16x128xbf16>
    %1173 = arith.truncf %1171 : vector<16x128xf32> to vector<16x128xbf16>
    %1174 = arith.index_cast %c15_i32_267 : i32 to index
    %c0_281 = arith.constant 0 : index
    %c0_282 = arith.constant 0 : index
    %1175 = vector.load %arg10[%1174, %c0_281, %c0_282] : memref<16x16x256xbf16, #tpu.memory_space<vmem>>, vector<1x16x128xbf16>
    %1176 = vector.shape_cast %1175 : vector<1x16x128xbf16> to vector<16x128xbf16>
    %1177 = vector.shape_cast %1172 : vector<16x128xbf16> to vector<1x16x128xbf16>
    tpu.vector_store %arg10[%1174, %c0_281, %c0_282], %1177 {strides = array<i32>} : memref<16x16x256xbf16, #tpu.memory_space<vmem>>, vector<1x16x128xbf16>,
    %1178 = arith.index_cast %1109 : i32 to index
    %c0_283 = arith.constant 0 : index
    %c128_284 = arith.constant 128 : index
    %1179 = vector.load %arg10[%1178, %c0_283, %c128_284] : memref<16x16x256xbf16, #tpu.memory_space<vmem>>, vector<1x16x128xbf16>
    %1180 = vector.shape_cast %1179 : vector<1x16x128xbf16> to vector<16x128xbf16>
    %1181 = vector.shape_cast %1173 : vector<16x128xbf16> to vector<1x16x128xbf16>
    tpu.vector_store %arg10[%1178, %c0_283, %c128_284], %1181 {strides = array<i32>} : memref<16x16x256xbf16, #tpu.memory_space<vmem>>, vector<1x16x128xbf16>,
    %c16_i32 = arith.constant 16 : i32
    %c0_285 = arith.constant 0 : index
    %c0_286 = arith.constant 0 : index
    %c0_287 = arith.constant 0 : index
    %1182 = vector.load %arg10[%c0_285, %c0_286, %c0_287] : memref<16x16x256xbf16, #tpu.memory_space<vmem>>, vector<16x16x256xbf16>
    %1183 = vector.shape_cast %1182 : vector<16x16x256xbf16> to vector<256x256xbf16>
    %c0_288 = arith.constant 0 : index
    %c0_289 = arith.constant 0 : index
    %1184 = vector.load %arg6[%c0_288, %c0_289] : memref<256x128xbf16, #tpu.memory_space<vmem>>, vector<256x128xbf16>
    %cst_290 = arith.constant dense<0.000000e+00> : vector<256x128xf32>
    %1185 = tpu.matmul %1183, %1184, %cst_290 {dimension_numbers = #tpu.dot_dimension_numbers<[1], [0], [0], [1], [0, 0, 1, 1], [], []>} : vector<256x256xbf16>, vector<256x128xbf16>, vector<256x128xf32> -> vector<256x128xf32>
    %c0_291 = arith.constant 0 : index
    %c0_292 = arith.constant 0 : index
    %1186 = vector.load %arg7[%c0_291, %c0_292] : memref<1x128xf32, #tpu.memory_space<vmem>>, vector<1x128xf32>
    %1187 = vector.broadcast %1186 : vector<1x128xf32> to vector<256x128xf32>
    %1188 = arith.addf %1185, %1187 : vector<256x128xf32>
    %1189 = vector.shape_cast %1188 : vector<256x128xf32> to vector<16x16x128xf32>
    %c0_293 = arith.constant 0 : index
    %c0_294 = arith.constant 0 : index
    %c0_295 = arith.constant 0 : index
    %1190 = vector.load %arg8[%c0_293, %c0_294, %c0_295] : memref<16x16x128xf32, #tpu.memory_space<vmem>>, vector<16x16x128xf32>
    tpu.vector_store %arg8[%c0_293, %c0_294, %c0_295], %1189 {strides = array<i32>} : memref<16x16x128xf32, #tpu.memory_space<vmem>>, vector<16x16x128xf32>,
    return
  }
  func.func @transform_0(%arg0: i32) -> (i32, i32, i32) {
    %c0_i32 = arith.constant 0 : i32
    %c0_i32_0 = arith.constant 0 : i32
    %c0_i32_1 = arith.constant 0 : i32
    return %c0_i32, %arg0, %c0_i32_0 : i32, i32, i32
  }
  func.func @transform_1(%arg0: i32) -> (i32, i32) {
    %c0_i32 = arith.constant 0 : i32
    %c0_i32_0 = arith.constant 0 : i32
    %c0_i32_1 = arith.constant 0 : i32
    return %c0_i32, %c0_i32_0 : i32, i32
  }
  func.func @transform_2(%arg0: i32) -> (i32, i32) {
    %c0_i32 = arith.constant 0 : i32
    %c0_i32_0 = arith.constant 0 : i32
    %c0_i32_1 = arith.constant 0 : i32
    return %c0_i32, %c0_i32_0 : i32, i32
  }
  func.func @transform_3(%arg0: i32) -> (i32, i32) {
    %c0_i32 = arith.constant 0 : i32
    %c0_i32_0 = arith.constant 0 : i32
    %c0_i32_1 = arith.constant 0 : i32
    return %c0_i32, %c0_i32_0 : i32, i32
  }
  func.func @transform_4(%arg0: i32) -> (i32, i32) {
    %c0_i32 = arith.constant 0 : i32
    %c0_i32_0 = arith.constant 0 : i32
    %c0_i32_1 = arith.constant 0 : i32
    return %c0_i32, %c0_i32_0 : i32, i32
  }
  func.func @transform_5(%arg0: i32) -> (i32, i32) {
    %c0_i32 = arith.constant 0 : i32
    %c0_i32_0 = arith.constant 0 : i32
    %c0_i32_1 = arith.constant 0 : i32
    return %c0_i32, %c0_i32_0 : i32, i32
  }
  func.func @transform_6(%arg0: i32) -> (i32, i32) {
    %c0_i32 = arith.constant 0 : i32
    %c0_i32_0 = arith.constant 0 : i32
    %c0_i32_1 = arith.constant 0 : i32
    return %c0_i32, %c0_i32_0 : i32, i32
  }
  func.func @transform_7(%arg0: i32) -> (i32, i32, i32) {
    %c0_i32 = arith.constant 0 : i32
    %c0_i32_0 = arith.constant 0 : i32
    %c0_i32_1 = arith.constant 0 : i32
    return %c0_i32, %arg0, %c0_i32_0 : i32, i32, i32
  }
}

</mosaic_0001>

<llo_original>
// kernel: single_rnn_forward.1
$region0: #{single_rnn_forward.1}
  #allocation0 [shape = 'u32[]', space=smem, size = 0x4, offset = 0x4, fixed_abs, tag = 'smem constant byte address 0x4 - core index']
  #allocation1 [shape = 'u32[144,128]{1,0:T(1,128)}', space=vmem, size = 0x12000, scoped, tag = 'internal scratch']
  #allocation2 [shape = 'bf16[16,16,1024]{2,1,0:T(16,128)(2,1)}', space=vmem, size = 0x80000, scoped, tag = 'scratch operand']
  #allocation3 [shape = 'bf16[16,16,256]{2,1,0:T(16,128)(2,1)}', space=vmem, size = 0x20000, scoped, tag = 'scratch operand']
  %s0 = inlined_call_operand.vmem [shape: bf16[16,16,128], index: 0, kind: input, shape index: {}]
  %s1 = inlined_call_operand.hbm [shape: bf16[128,1024], index: 1, kind: input, shape index: {}]
  %s2 = inlined_call_operand.vmem [shape: f32[1,1024], index: 2, kind: input, shape index: {}]
  %s3 = inlined_call_operand.vmem [shape: bf16[128,512], index: 3, kind: input, shape index: {}]
  %s4 = inlined_call_operand.hbm [shape: bf16[128,512], index: 4, kind: input, shape index: {}]
  %s5 = inlined_call_operand.vmem [shape: bf16[256,128], index: 5, kind: input, shape index: {}]
  %s6 = inlined_call_operand.vmem [shape: f32[1,128], index: 6, kind: input, shape index: {}]
  %s7 = inlined_call_operand.vmem [shape: f32[16,16,128], index: 7, kind: output, shape index: {}]
  %s8 = sld [smem:[#allocation0]]
  $region46: #{single_rnn_forward.1} parent=0
    _
  %s10 = ssub.s32 1, %s8
  %s11 = scalar_select 0, %s10, %s8
  $region1: #{single_rnn_forward.1} parent=0
    #allocation4 [shape = 'u8[262144]{0}', space=vmem, size = 0x40000, scoped, tag = 'input window, operand 1, single buffered']
    #allocation5 [shape = 's32[1]{0}', space=sflag, size = 0x4, scoped, tag = 'scoped memory for single_rnn_forward.1']
    #allocation6 [shape = 'u8[131072]{0}', space=vmem, size = 0x20000, scoped, tag = 'input window, operand 4, single buffered']
    #allocation7 [shape = 's32[1]{0}', space=sflag, size = 0x4, scoped, tag = 'scoped memory for single_rnn_forward.1']
    %12 = vsyncpa [#allocation5], 0
    %13 = vsyncpa [#allocation7], 0
    // Predicated region
    $region2: #{single_rnn_forward.1} parent=1 // pred_check
      _
    $region3: #{single_rnn_forward.1} parent=1 // pred_check_branch
      %15 = sbr.rel (0) target = $region5
    $region4: #{single_rnn_forward.1} parent=1 // pred_region
      _
    $region5: #{single_rnn_forward.1} parent=1 // pred_fallthru
      _
    // Predicated region
    $region6: #{single_rnn_forward.1} parent=1 // pred_check
      _
    $region7: #{single_rnn_forward.1} parent=1 // pred_check_branch
      %17 = sbr.rel (0) target = $region9
    $region8: #{single_rnn_forward.1} parent=1 // pred_region
      %s19 = ssub.s32 8192, 8192
      %20 = vsyncadd [#allocation5], %s19
      %s21 = sshll.u32 [#allocation4], 4
      %s22 = int_to_ptr.vmem [resolvable:$true] %s21
      %27 = dma.hbm_to_vmem [thread:$0]  %s1, 8192, %s22, [#allocation5], 512, 512, 32
    $region9: #{single_rnn_forward.1} parent=1 // pred_fallthru
      _
    // Predicated region
    $region10: #{single_rnn_forward.1} parent=1 // pred_check
      _
    $region11: #{single_rnn_forward.1} parent=1 // pred_check_branch
      %29 = sbr.rel (0) target = $region13
    $region12: #{single_rnn_forward.1} parent=1 // pred_region
      _
    $region13: #{single_rnn_forward.1} parent=1 // pred_fallthru
      _
    // Predicated region
    $region14: #{single_rnn_forward.1} parent=1 // pred_check
      _
    $region15: #{single_rnn_forward.1} parent=1 // pred_check_branch
      %31 = sbr.rel (0) target = $region17
    $region16: #{single_rnn_forward.1} parent=1 // pred_region
      _
    $region17: #{single_rnn_forward.1} parent=1 // pred_fallthru
      _
    // Predicated region
    $region18: #{single_rnn_forward.1} parent=1 // pred_check
      _
    $region19: #{single_rnn_forward.1} parent=1 // pred_check_branch
      %33 = sbr.rel (0) target = $region21
    $region20: #{single_rnn_forward.1} parent=1 // pred_region
      %s35 = ssub.s32 4096, 4096
      %36 = vsyncadd [#allocation7], %s35
      %s37 = sshll.u32 [#allocation6], 4
      %s38 = int_to_ptr.vmem [resolvable:$true] %s37
      %43 = dma.hbm_to_vmem [thread:$0]  %s4, 4096, %s38, [#allocation7], 256, 256, 16
    $region21: #{single_rnn_forward.1} parent=1 // pred_fallthru
      _
    // Predicated region
    $region22: #{single_rnn_forward.1} parent=1 // pred_check
      _
    $region23: #{single_rnn_forward.1} parent=1 // pred_check_branch
      %45 = sbr.rel (0) target = $region25
    $region24: #{single_rnn_forward.1} parent=1 // pred_region
      _
    $region25: #{single_rnn_forward.1} parent=1 // pred_fallthru
      _
    // Predicated region
    $region26: #{single_rnn_forward.1} parent=1 // pred_check
      _
    $region27: #{single_rnn_forward.1} parent=1 // pred_check_branch
      %47 = sbr.rel (0) target = $region29
    $region28: #{single_rnn_forward.1} parent=1 // pred_region
      _
    $region29: #{single_rnn_forward.1} parent=1 // pred_fallthru
      _
    // Predicated region
    $region30: #{single_rnn_forward.1} parent=1 // pred_check
      _
    $region31: #{single_rnn_forward.1} parent=1 // pred_check_branch
      %49 = sbr.rel (0) target = $region33
    $region32: #{single_rnn_forward.1} parent=1 // pred_region
      %50 = dma.done [#allocation5], 8192
    $region33: #{single_rnn_forward.1} parent=1 // pred_fallthru
      _
    // Predicated region
    $region34: #{single_rnn_forward.1} parent=1 // pred_check
      _
    $region35: #{single_rnn_forward.1} parent=1 // pred_check_branch
      %52 = sbr.rel (0) target = $region37
    $region36: #{single_rnn_forward.1} parent=1 // pred_region
      %53 = dma.done [#allocation7], 4096
    $region37: #{single_rnn_forward.1} parent=1 // pred_fallthru
      _
    %v55 = vld [vmem:[%s0] sm:$0xf]
    %v56 = vld [vmem:[%s0 + $0x4] sm:$0xf]
    %v57 = vld [vmem:[%s0 + $0x8] sm:$0xf]
    %v58 = vld [vmem:[%s0 + $0xc] sm:$0xf]
    %v59 = vld [vmem:[%s0 + $0x10] sm:$0xf]
    %v60 = vld [vmem:[%s0 + $0x14] sm:$0xf]
    %v61 = vld [vmem:[%s0 + $0x18] sm:$0xf]
    %v62 = vld [vmem:[%s0 + $0x1c] sm:$0xf]
    %v63 = vld [vmem:[%s0 + $0x20] sm:$0xf]
    %v64 = vld [vmem:[%s0 + $0x24] sm:$0xf]
    %v65 = vld [vmem:[%s0 + $0x28] sm:$0xf]
    %v66 = vld [vmem:[%s0 + $0x2c] sm:$0xf]
    %v67 = vld [vmem:[%s0 + $0x30] sm:$0xf]
    %v68 = vld [vmem:[%s0 + $0x34] sm:$0xf]
    %v69 = vld [vmem:[%s0 + $0x38] sm:$0xf]
    %v70 = vld [vmem:[%s0 + $0x3c] sm:$0xf]
    %v71 = vld [vmem:[%s0 + $0x40] sm:$0xf]
    %v72 = vld [vmem:[%s0 + $0x44] sm:$0xf]
    %v73 = vld [vmem:[%s0 + $0x48] sm:$0xf]
    %v74 = vld [vmem:[%s0 + $0x4c] sm:$0xf]
    %v75 = vld [vmem:[%s0 + $0x50] sm:$0xf]
    %v76 = vld [vmem:[%s0 + $0x54] sm:$0xf]
    %v77 = vld [vmem:[%s0 + $0x58] sm:$0xf]
    %v78 = vld [vmem:[%s0 + $0x5c] sm:$0xf]
    %v79 = vld [vmem:[%s0 + $0x60] sm:$0xf]
    %v80 = vld [vmem:[%s0 + $0x64] sm:$0xf]
    %v81 = vld [vmem:[%s0 + $0x68] sm:$0xf]
    %v82 = vld [vmem:[%s0 + $0x6c] sm:$0xf]
    %v83 = vld [vmem:[%s0 + $0x70] sm:$0xf]
    %v84 = vld [vmem:[%s0 + $0x74] sm:$0xf]
    %v85 = vld [vmem:[%s0 + $0x78] sm:$0xf]
    %v86 = vld [vmem:[%s0 + $0x7c] sm:$0xf]
    %v87 = vld [vmem:[#allocation4] sm:$0xff]
    %v88 = vld [vmem:[#allocation4 + $0x8] sm:$0xff]
    %v89 = vld [vmem:[#allocation4 + $0x10] sm:$0xff]
    %v90 = vld [vmem:[#allocation4 + $0x18] sm:$0xff]
    %v91 = vld [vmem:[#allocation4 + $0x20] sm:$0xff]
    %v92 = vld [vmem:[#allocation4 + $0x28] sm:$0xff]
    %v93 = vld [vmem:[#allocation4 + $0x30] sm:$0xff]
    %v94 = vld [vmem:[#allocation4 + $0x38] sm:$0xff]
    %v95 = vld [vmem:[#allocation4 + $0x40] sm:$0xff]
    %v96 = vld [vmem:[#allocation4 + $0x48] sm:$0xff]
    %v97 = vld [vmem:[#allocation4 + $0x50] sm:$0xff]
    %v98 = vld [vmem:[#allocation4 + $0x58] sm:$0xff]
    %v99 = vld [vmem:[#allocation4 + $0x60] sm:$0xff]
    %v100 = vld [vmem:[#allocation4 + $0x68] sm:$0xff]
    %v101 = vld [vmem:[#allocation4 + $0x70] sm:$0xff]
    %v102 = vld [vmem:[#allocation4 + $0x78] sm:$0xff]
    %v103 = vld [vmem:[#allocation4 + $0x80] sm:$0xff]
    %v104 = vld [vmem:[#allocation4 + $0x88] sm:$0xff]
    %v105 = vld [vmem:[#allocation4 + $0x90] sm:$0xff]
    %v106 = vld [vmem:[#allocation4 + $0x98] sm:$0xff]
    %v107 = vld [vmem:[#allocation4 + $0xa0] sm:$0xff]
    %v108 = vld [vmem:[#allocation4 + $0xa8] sm:$0xff]
    %v109 = vld [vmem:[#allocation4 + $0xb0] sm:$0xff]
    %v110 = vld [vmem:[#allocation4 + $0xb8] sm:$0xff]
    %v111 = vld [vmem:[#allocation4 + $0xc0] sm:$0xff]
    %v112 = vld [vmem:[#allocation4 + $0xc8] sm:$0xff]
    %v113 = vld [vmem:[#allocation4 + $0xd0] sm:$0xff]
    %v114 = vld [vmem:[#allocation4 + $0xd8] sm:$0xff]
    %v115 = vld [vmem:[#allocation4 + $0xe0] sm:$0xff]
    %v116 = vld [vmem:[#allocation4 + $0xe8] sm:$0xff]
    %v117 = vld [vmem:[#allocation4 + $0xf0] sm:$0xff]
    %v118 = vld [vmem:[#allocation4 + $0xf8] sm:$0xff]
    %v119 = vld [vmem:[#allocation4 + $0x100] sm:$0xff]
    %v120 = vld [vmem:[#allocation4 + $0x108] sm:$0xff]
    %v121 = vld [vmem:[#allocation4 + $0x110] sm:$0xff]
    %v122 = vld [vmem:[#allocation4 + $0x118] sm:$0xff]
    %v123 = vld [vmem:[#allocation4 + $0x120] sm:$0xff]
    %v124 = vld [vmem:[#allocation4 + $0x128] sm:$0xff]
    %v125 = vld [vmem:[#allocation4 + $0x130] sm:$0xff]
    %v126 = vld [vmem:[#allocation4 + $0x138] sm:$0xff]
    %v127 = vld [vmem:[#allocation4 + $0x140] sm:$0xff]
    %v128 = vld [vmem:[#allocation4 + $0x148] sm:$0xff]
    %v129 = vld [vmem:[#allocation4 + $0x150] sm:$0xff]
    %v130 = vld [vmem:[#allocation4 + $0x158] sm:$0xff]
    %v131 = vld [vmem:[#allocation4 + $0x160] sm:$0xff]
    %v132 = vld [vmem:[#allocation4 + $0x168] sm:$0xff]
    %v133 = vld [vmem:[#allocation4 + $0x170] sm:$0xff]
    %v134 = vld [vmem:[#allocation4 + $0x178] sm:$0xff]
    %v135 = vld [vmem:[#allocation4 + $0x180] sm:$0xff]
    %v136 = vld [vmem:[#allocation4 + $0x188] sm:$0xff]
    %v137 = vld [vmem:[#allocation4 + $0x190] sm:$0xff]
    %v138 = vld [vmem:[#allocation4 + $0x198] sm:$0xff]
    %v139 = vld [vmem:[#allocation4 + $0x1a0] sm:$0xff]
    %v140 = vld [vmem:[#allocation4 + $0x1a8] sm:$0xff]
    %v141 = vld [vmem:[#allocation4 + $0x1b0] sm:$0xff]
    %v142 = vld [vmem:[#allocation4 + $0x1b8] sm:$0xff]
    %v143 = vld [vmem:[#allocation4 + $0x1c0] sm:$0xff]
    %v144 = vld [vmem:[#allocation4 + $0x1c8] sm:$0xff]
    %v145 = vld [vmem:[#allocation4 + $0x1d0] sm:$0xff]
    %v146 = vld [vmem:[#allocation4 + $0x1d8] sm:$0xff]
    %v147 = vld [vmem:[#allocation4 + $0x1e0] sm:$0xff]
    %v148 = vld [vmem:[#allocation4 + $0x1e8] sm:$0xff]
    %v149 = vld [vmem:[#allocation4 + $0x1f0] sm:$0xff]
    %v150 = vld [vmem:[#allocation4 + $0x1f8] sm:$0xff]
    %v151 = vld [vmem:[%s2] sm:$0xff]
    %v153 = vlaneseq
    %v154 = vshrl.u32 %v153, 7
    %v155 = vsub.s32 0, %v154
    %v156 = vrot.slane %v151, %v155
    %v157 = vlaneseq
    %v158 = vshrl.u32 %v157, 7
    %v159 = vsub.s32 1, %v158
    %v160 = vrot.slane %v151, %v159
    %v161 = vlaneseq
    %v162 = vshrl.u32 %v161, 7
    %v163 = vsub.s32 2, %v162
    %v164 = vrot.slane %v151, %v163
    %v165 = vlaneseq
    %v166 = vshrl.u32 %v165, 7
    %v167 = vsub.s32 3, %v166
    %v168 = vrot.slane %v151, %v167
    %v169 = vlaneseq
    %v170 = vshrl.u32 %v169, 7
    %v171 = vsub.s32 4, %v170
    %v172 = vrot.slane %v151, %v171
    %v173 = vlaneseq
    %v174 = vshrl.u32 %v173, 7
    %v175 = vsub.s32 5, %v174
    %v176 = vrot.slane %v151, %v175
    %v177 = vlaneseq
    %v178 = vshrl.u32 %v177, 7
    %v179 = vsub.s32 6, %v178
    %v180 = vrot.slane %v151, %v179
    %v181 = vlaneseq
    %v182 = vshrl.u32 %v181, 7
    %v183 = vsub.s32 7, %v182
    %v184 = vrot.slane %v151, %v183
    %v225 = vunpack.c.l.b16 %v55
    %v226 = vunpack.c.l.b16 %v56
    %v227 = vunpack.c.l.b16 %v57
    %v228 = vunpack.c.l.b16 %v58
    %v229 = vunpack.c.l.b16 %v59
    %v230 = vunpack.c.l.b16 %v60
    %v231 = vunpack.c.l.b16 %v61
    %v232 = vunpack.c.l.b16 %v62
    %v233 = vunpack.c.l.b16 %v63
    %v234 = vunpack.c.l.b16 %v64
    %v235 = vunpack.c.l.b16 %v65
    %v236 = vunpack.c.l.b16 %v66
    %v237 = vunpack.c.l.b16 %v67
    %v238 = vunpack.c.l.b16 %v68
    %v239 = vunpack.c.l.b16 %v69
    %v240 = vunpack.c.l.b16 %v70
    %v241 = vunpack.c.l.b16 %v71
    %v242 = vunpack.c.l.b16 %v72
    %v243 = vunpack.c.l.b16 %v73
    %v244 = vunpack.c.l.b16 %v74
    %v245 = vunpack.c.l.b16 %v75
    %v246 = vunpack.c.l.b16 %v76
    %v247 = vunpack.c.l.b16 %v77
    %v248 = vunpack.c.l.b16 %v78
    %v249 = vunpack.c.l.b16 %v79
    %v250 = vunpack.c.l.b16 %v80
    %v251 = vunpack.c.l.b16 %v81
    %v252 = vunpack.c.l.b16 %v82
    %v253 = vunpack.c.l.b16 %v83
    %v254 = vunpack.c.l.b16 %v84
    %v255 = vunpack.c.l.b16 %v85
    %v256 = vunpack.c.l.b16 %v86
    %v257 = vpack.c.b16 %v226, %v225
    %v258 = vpack.c.b16 %v228, %v227
    %v259 = vpack.c.b16 %v230, %v229
    %v260 = vpack.c.b16 %v232, %v231
    %v261 = vpack.c.b16 %v234, %v233
    %v262 = vpack.c.b16 %v236, %v235
    %v263 = vpack.c.b16 %v238, %v237
    %v264 = vpack.c.b16 %v240, %v239
    %v265 = vpack.c.b16 %v242, %v241
    %v266 = vpack.c.b16 %v244, %v243
    %v267 = vpack.c.b16 %v246, %v245
    %v268 = vpack.c.b16 %v248, %v247
    %v269 = vpack.c.b16 %v250, %v249
    %v270 = vpack.c.b16 %v252, %v251
    %v271 = vpack.c.b16 %v254, %v253
    %v272 = vpack.c.b16 %v256, %v255
    %v353 = vunpack.c.l.b16 %v87
    %v354 = vunpack.c.h.b16 %v87
    %v355 = vunpack.c.l.b16 %v88
    %v356 = vunpack.c.h.b16 %v88
    %v357 = vunpack.c.l.b16 %v89
    %v358 = vunpack.c.h.b16 %v89
    %v359 = vunpack.c.l.b16 %v90
    %v360 = vunpack.c.h.b16 %v90
    %v361 = vunpack.c.l.b16 %v91
    %v362 = vunpack.c.h.b16 %v91
    %v363 = vunpack.c.l.b16 %v92
    %v364 = vunpack.c.h.b16 %v92
    %v365 = vunpack.c.l.b16 %v93
    %v366 = vunpack.c.h.b16 %v93
    %v367 = vunpack.c.l.b16 %v94
    %v368 = vunpack.c.h.b16 %v94
    %v369 = vunpack.c.l.b16 %v95
    %v370 = vunpack.c.h.b16 %v95
    %v371 = vunpack.c.l.b16 %v96
    %v372 = vunpack.c.h.b16 %v96
    %v373 = vunpack.c.l.b16 %v97
    %v374 = vunpack.c.h.b16 %v97
    %v375 = vunpack.c.l.b16 %v98
    %v376 = vunpack.c.h.b16 %v98
    %v377 = vunpack.c.l.b16 %v99
    %v378 = vunpack.c.h.b16 %v99
    %v379 = vunpack.c.l.b16 %v100
    %v380 = vunpack.c.h.b16 %v100
    %v381 = vunpack.c.l.b16 %v101
    %v382 = vunpack.c.h.b16 %v101
    %v383 = vunpack.c.l.b16 %v102
    %v384 = vunpack.c.h.b16 %v102
    %v385 = vunpack.c.l.b16 %v103
    %v386 = vunpack.c.h.b16 %v103
    %v387 = vunpack.c.l.b16 %v104
    %v388 = vunpack.c.h.b16 %v104
    %v389 = vunpack.c.l.b16 %v105
    %v390 = vunpack.c.h.b16 %v105
    %v391 = vunpack.c.l.b16 %v106
    %v392 = vunpack.c.h.b16 %v106
    %v393 = vunpack.c.l.b16 %v107
    %v394 = vunpack.c.h.b16 %v107
    %v395 = vunpack.c.l.b16 %v108
    %v396 = vunpack.c.h.b16 %v108
    %v397 = vunpack.c.l.b16 %v109
    %v398 = vunpack.c.h.b16 %v109
    %v399 = vunpack.c.l.b16 %v110
    %v400 = vunpack.c.h.b16 %v110
    %v401 = vunpack.c.l.b16 %v111
    %v402 = vunpack.c.h.b16 %v111
    %v403 = vunpack.c.l.b16 %v112
    %v404 = vunpack.c.h.b16 %v112
    %v405 = vunpack.c.l.b16 %v113
    %v406 = vunpack.c.h.b16 %v113
    %v407 = vunpack.c.l.b16 %v114
    %v408 = vunpack.c.h.b16 %v114
    %v409 = vunpack.c.l.b16 %v115
    %v410 = vunpack.c.h.b16 %v115
    %v411 = vunpack.c.l.b16 %v116
    %v412 = vunpack.c.h.b16 %v116
    %v413 = vunpack.c.l.b16 %v117
    %v414 = vunpack.c.h.b16 %v117
    %v415 = vunpack.c.l.b16 %v118
    %v416 = vunpack.c.h.b16 %v118
    %v417 = vunpack.c.l.b16 %v119
    %v418 = vunpack.c.h.b16 %v119
    %v419 = vunpack.c.l.b16 %v120
    %v420 = vunpack.c.h.b16 %v120
    %v421 = vunpack.c.l.b16 %v121
    %v422 = vunpack.c.h.b16 %v121
    %v423 = vunpack.c.l.b16 %v122
    %v424 = vunpack.c.h.b16 %v122
    %v425 = vunpack.c.l.b16 %v123
    %v426 = vunpack.c.h.b16 %v123
    %v427 = vunpack.c.l.b16 %v124
    %v428 = vunpack.c.h.b16 %v124
    %v429 = vunpack.c.l.b16 %v125
    %v430 = vunpack.c.h.b16 %v125
    %v431 = vunpack.c.l.b16 %v126
    %v432 = vunpack.c.h.b16 %v126
    %v433 = vunpack.c.l.b16 %v127
    %v434 = vunpack.c.h.b16 %v127
    %v435 = vunpack.c.l.b16 %v128
    %v436 = vunpack.c.h.b16 %v128
    %v437 = vunpack.c.l.b16 %v129
    %v438 = vunpack.c.h.b16 %v129
    %v439 = vunpack.c.l.b16 %v130
    %v440 = vunpack.c.h.b16 %v130
    %v441 = vunpack.c.l.b16 %v131
    %v442 = vunpack.c.h.b16 %v131
    %v443 = vunpack.c.l.b16 %v132
    %v444 = vunpack.c.h.b16 %v132
    %v445 = vunpack.c.l.b16 %v133
    %v446 = vunpack.c.h.b16 %v133
    %v447 = vunpack.c.l.b16 %v134
    %v448 = vunpack.c.h.b16 %v134
    %v449 = vunpack.c.l.b16 %v135
    %v450 = vunpack.c.h.b16 %v135
    %v451 = vunpack.c.l.b16 %v136
    %v452 = vunpack.c.h.b16 %v136
    %v453 = vunpack.c.l.b16 %v137
    %v454 = vunpack.c.h.b16 %v137
    %v455 = vunpack.c.l.b16 %v138
    %v456 = vunpack.c.h.b16 %v138
    %v457 = vunpack.c.l.b16 %v139
    %v458 = vunpack.c.h.b16 %v139
    %v459 = vunpack.c.l.b16 %v140
    %v460 = vunpack.c.h.b16 %v140
    %v461 = vunpack.c.l.b16 %v141
    %v462 = vunpack.c.h.b16 %v141
    %v463 = vunpack.c.l.b16 %v142
    %v464 = vunpack.c.h.b16 %v142
    %v465 = vunpack.c.l.b16 %v143
    %v466 = vunpack.c.h.b16 %v143
    %v467 = vunpack.c.l.b16 %v144
    %v468 = vunpack.c.h.b16 %v144
    %v469 = vunpack.c.l.b16 %v145
    %v470 = vunpack.c.h.b16 %v145
    %v471 = vunpack.c.l.b16 %v146
    %v472 = vunpack.c.h.b16 %v146
    %v473 = vunpack.c.l.b16 %v147
    %v474 = vunpack.c.h.b16 %v147
    %v475 = vunpack.c.l.b16 %v148
    %v476 = vunpack.c.h.b16 %v148
    %v477 = vunpack.c.l.b16 %v149
    %v478 = vunpack.c.h.b16 %v149
    %v479 = vunpack.c.l.b16 %v150
    %v480 = vunpack.c.h.b16 %v150
    %v481 = vpack.c.b16 %v361, %v353
    %v482 = vpack.c.b16 %v362, %v354
    %v483 = vpack.c.b16 %v363, %v355
    %v484 = vpack.c.b16 %v364, %v356
    %v485 = vpack.c.b16 %v365, %v357
    %v486 = vpack.c.b16 %v366, %v358
    %v487 = vpack.c.b16 %v367, %v359
    %v488 = vpack.c.b16 %v368, %v360
    %v489 = vpack.c.b16 %v377, %v369
    %v490 = vpack.c.b16 %v378, %v370
    %v491 = vpack.c.b16 %v379, %v371
    %v492 = vpack.c.b16 %v380, %v372
    %v493 = vpack.c.b16 %v381, %v373
    %v494 = vpack.c.b16 %v382, %v374
    %v495 = vpack.c.b16 %v383, %v375
    %v496 = vpack.c.b16 %v384, %v376
    %v497 = vpack.c.b16 %v393, %v385
    %v498 = vpack.c.b16 %v394, %v386
    %v499 = vpack.c.b16 %v395, %v387
    %v500 = vpack.c.b16 %v396, %v388
    %v501 = vpack.c.b16 %v397, %v389
    %v502 = vpack.c.b16 %v398, %v390
    %v503 = vpack.c.b16 %v399, %v391
    %v504 = vpack.c.b16 %v400, %v392
    %v505 = vpack.c.b16 %v409, %v401
    %v506 = vpack.c.b16 %v410, %v402
    %v507 = vpack.c.b16 %v411, %v403
    %v508 = vpack.c.b16 %v412, %v404
    %v509 = vpack.c.b16 %v413, %v405
    %v510 = vpack.c.b16 %v414, %v406
    %v511 = vpack.c.b16 %v415, %v407
    %v512 = vpack.c.b16 %v416, %v408
    %v513 = vpack.c.b16 %v425, %v417
    %v514 = vpack.c.b16 %v426, %v418
    %v515 = vpack.c.b16 %v427, %v419
    %v516 = vpack.c.b16 %v428, %v420
    %v517 = vpack.c.b16 %v429, %v421
    %v518 = vpack.c.b16 %v430, %v422
    %v519 = vpack.c.b16 %v431, %v423
    %v520 = vpack.c.b16 %v432, %v424
    %v521 = vpack.c.b16 %v441, %v433
    %v522 = vpack.c.b16 %v442, %v434
    %v523 = vpack.c.b16 %v443, %v435
    %v524 = vpack.c.b16 %v444, %v436
    %v525 = vpack.c.b16 %v445, %v437
    %v526 = vpack.c.b16 %v446, %v438
    %v527 = vpack.c.b16 %v447, %v439
    %v528 = vpack.c.b16 %v448, %v440
    %v529 = vpack.c.b16 %v457, %v449
    %v530 = vpack.c.b16 %v458, %v450
    %v531 = vpack.c.b16 %v459, %v451
    %v532 = vpack.c.b16 %v460, %v452
    %v533 = vpack.c.b16 %v461, %v453
    %v534 = vpack.c.b16 %v462, %v454
    %v535 = vpack.c.b16 %v463, %v455
    %v536 = vpack.c.b16 %v464, %v456
    %v537 = vpack.c.b16 %v473, %v465
    %v538 = vpack.c.b16 %v474, %v466
    %v539 = vpack.c.b16 %v475, %v467
    %v540 = vpack.c.b16 %v476, %v468
    %v541 = vpack.c.b16 %v477, %v469
    %v542 = vpack.c.b16 %v478, %v470
    %v543 = vpack.c.b16 %v479, %v471
    %v544 = vpack.c.b16 %v480, %v472
    %609 = vmatprep.subr.bf16.mxu0 %v482
    %610 = vmatpush1.bf16.msra.mxu0 %v481
    %611 = vmatprep.subr.bf16.mxu0 %v490
    %612 = vmatpush1.bf16.msra.mxu0 %v489
    %613 = vmatprep.subr.bf16.mxu0 %v498
    %614 = vmatpush1.bf16.msra.mxu0 %v497
    %615 = vmatprep.subr.bf16.mxu0 %v506
    %616 = vmatpush1.bf16.msra.mxu0 %v505
    %617 = vmatprep.subr.bf16.mxu0 %v514
    %618 = vmatpush1.bf16.msra.mxu0 %v513
    %619 = vmatprep.subr.bf16.mxu0 %v522
    %620 = vmatpush1.bf16.msra.mxu0 %v521
    %621 = vmatprep.subr.bf16.mxu0 %v530
    %622 = vmatpush1.bf16.msra.mxu0 %v529
    %623 = vmatprep.subr.bf16.mxu0 %v538
    %624 = vmatpush1.bf16.msra.mxu0 %v537
    %625 = vmatprep.subr.bf16.mxu0 0
    %626 = vmatpush1.bf16.msra.mxu0 0
    %627 = vmatprep.subr.bf16.mxu0 0
    %628 = vmatpush1.bf16.msra.mxu0 0
    %629 = vmatprep.subr.bf16.mxu0 0
    %630 = vmatpush1.bf16.msra.mxu0 0
    %631 = vmatprep.subr.bf16.mxu0 0
    %632 = vmatpush1.bf16.msra.mxu0 0
    %633 = vmatprep.subr.bf16.mxu0 0
    %634 = vmatpush1.bf16.msra.mxu0 0
    %635 = vmatprep.subr.bf16.mxu0 0
    %636 = vmatpush1.bf16.msra.mxu0 0
    %637 = vmatprep.subr.bf16.mxu0 0
    %638 = vmatpush1.bf16.msra.mxu0 0
    %639 = vmatprep.subr.bf16.mxu0 0
    %640 = vmatpush1.bf16.msra.mxu0 0
    %641 = vmatprep.mubr.bf16.mxu0 0
    %642 = vmatmul.mubr.bf16.gmra.mrb[0].mxu0 %v257
    %v643 = vpop.f32.mrb[0].mxu0
    %v644 = vadd.f32 %v156, %v643
    %v645 = vpop.f32.mrb[0].mxu0
    %v646 = vadd.f32 %v160, %v645
    %v647 = vpop.f32.mrb[0].mxu0
    %v648 = vadd.f32 %v156, %v647
    %v649 = vpop.f32.mrb[0].mxu0
    %v650 = vadd.f32 %v160, %v649
    %651 = vmatprep.mubr.bf16.mxu0 0
    %652 = vmatmul.mubr.bf16.gmra.mrb[0].mxu0 %v258
    %v653 = vpop.f32.mrb[0].mxu0
    %v654 = vadd.f32 %v156, %v653
    %v655 = vpop.f32.mrb[0].mxu0
    %v656 = vadd.f32 %v160, %v655
    %v657 = vpop.f32.mrb[0].mxu0
    %v658 = vadd.f32 %v156, %v657
    %v659 = vpop.f32.mrb[0].mxu0
    %v660 = vadd.f32 %v160, %v659
    %661 = vmatprep.mubr.bf16.mxu0 0
    %662 = vmatmul.mubr.bf16.gmra.mrb[0].mxu0 %v259
    %v663 = vpop.f32.mrb[0].mxu0
    %v664 = vadd.f32 %v156, %v663
    %v665 = vpop.f32.mrb[0].mxu0
    %v666 = vadd.f32 %v160, %v665
    %v667 = vpop.f32.mrb[0].mxu0
    %v668 = vadd.f32 %v156, %v667
    %v669 = vpop.f32.mrb[0].mxu0
    %v670 = vadd.f32 %v160, %v669
    %671 = vmatprep.mubr.bf16.mxu0 0
    %672 = vmatmul.mubr.bf16.gmra.mrb[0].mxu0 %v260
    %v673 = vpop.f32.mrb[0].mxu0
    %v674 = vadd.f32 %v156, %v673
    %v675 = vpop.f32.mrb[0].mxu0
    %v676 = vadd.f32 %v160, %v675
    %v677 = vpop.f32.mrb[0].mxu0
    %v678 = vadd.f32 %v156, %v677
    %v679 = vpop.f32.mrb[0].mxu0
    %v680 = vadd.f32 %v160, %v679
    %681 = vmatprep.mubr.bf16.mxu0 0
    %682 = vmatmul.mubr.bf16.gmra.mrb[0].mxu0 %v261
    %v683 = vpop.f32.mrb[0].mxu0
    %v684 = vadd.f32 %v156, %v683
    %v685 = vpop.f32.mrb[0].mxu0
    %v686 = vadd.f32 %v160, %v685
    %v687 = vpop.f32.mrb[0].mxu0
    %v688 = vadd.f32 %v156, %v687
    %v689 = vpop.f32.mrb[0].mxu0
    %v690 = vadd.f32 %v160, %v689
    %691 = vmatprep.mubr.bf16.mxu0 0
    %692 = vmatmul.mubr.bf16.gmra.mrb[0].mxu0 %v262
    %v693 = vpop.f32.mrb[0].mxu0
    %v694 = vadd.f32 %v156, %v693
    %v695 = vpop.f32.mrb[0].mxu0
    %v696 = vadd.f32 %v160, %v695
    %v697 = vpop.f32.mrb[0].mxu0
    %v698 = vadd.f32 %v156, %v697
    %v699 = vpop.f32.mrb[0].mxu0
    %v700 = vadd.f32 %v160, %v699
    %701 = vmatprep.mubr.bf16.mxu0 0
    %702 = vmatmul.mubr.bf16.gmra.mrb[0].mxu0 %v263
    %v703 = vpop.f32.mrb[0].mxu0
    %v704 = vadd.f32 %v156, %v703
    %v705 = vpop.f32.mrb[0].mxu0
    %v706 = vadd.f32 %v160, %v705
    %v707 = vpop.f32.mrb[0].mxu0
    %v708 = vadd.f32 %v156, %v707
    %v709 = vpop.f32.mrb[0].mxu0
    %v710 = vadd.f32 %v160, %v709
    %711 = vmatprep.mubr.bf16.mxu0 0
    %712 = vmatmul.mubr.bf16.gmra.mrb[0].mxu0 %v264
    %v713 = vpop.f32.mrb[0].mxu0
    %v714 = vadd.f32 %v156, %v713
    %v715 = vpop.f32.mrb[0].mxu0
    %v716 = vadd.f32 %v160, %v715
    %v717 = vpop.f32.mrb[0].mxu0
    %v718 = vadd.f32 %v156, %v717
    %v719 = vpop.f32.mrb[0].mxu0
    %v720 = vadd.f32 %v160, %v719
    %721 = vmatprep.mubr.bf16.mxu0 0
    %722 = vmatmul.mubr.bf16.gmra.mrb[0].mxu0 %v265
    %v723 = vpop.f32.mrb[0].mxu0
    %v724 = vadd.f32 %v156, %v723
    %v725 = vpop.f32.mrb[0].mxu0
    %v726 = vadd.f32 %v160, %v725
    %v727 = vpop.f32.mrb[0].mxu0
    %v728 = vadd.f32 %v156, %v727
    %v729 = vpop.f32.mrb[0].mxu0
    %v730 = vadd.f32 %v160, %v729
    %731 = vmatprep.mubr.bf16.mxu0 0
    %732 = vmatmul.mubr.bf16.gmra.mrb[0].mxu0 %v266
    %v733 = vpop.f32.mrb[0].mxu0
    %v734 = vadd.f32 %v156, %v733
    %v735 = vpop.f32.mrb[0].mxu0
    %v736 = vadd.f32 %v160, %v735
    %v737 = vpop.f32.mrb[0].mxu0
    %v738 = vadd.f32 %v156, %v737
    %v739 = vpop.f32.mrb[0].mxu0
    %v740 = vadd.f32 %v160, %v739
    %741 = vmatprep.mubr.bf16.mxu0 0
    %742 = vmatmul.mubr.bf16.gmra.mrb[0].mxu0 %v267
    %v743 = vpop.f32.mrb[0].mxu0
    %v744 = vadd.f32 %v156, %v743
    %v745 = vpop.f32.mrb[0].mxu0
    %v746 = vadd.f32 %v160, %v745
    %v747 = vpop.f32.mrb[0].mxu0
    %v748 = vadd.f32 %v156, %v747
    %v749 = vpop.f32.mrb[0].mxu0
    %v750 = vadd.f32 %v160, %v749
    %751 = vmatprep.mubr.bf16.mxu0 0
    %752 = vmatmul.mubr.bf16.gmra.mrb[0].mxu0 %v268
    %v753 = vpop.f32.mrb[0].mxu0
    %v754 = vadd.f32 %v156, %v753
    %v755 = vpop.f32.mrb[0].mxu0
    %v756 = vadd.f32 %v160, %v755
    %v757 = vpop.f32.mrb[0].mxu0
    %v758 = vadd.f32 %v156, %v757
    %v759 = vpop.f32.mrb[0].mxu0
    %v760 = vadd.f32 %v160, %v759
    %761 = vmatprep.mubr.bf16.mxu0 0
    %762 = vmatmul.mubr.bf16.gmra.mrb[0].mxu0 %v269
    %v763 = vpop.f32.mrb[0].mxu0
    %v764 = vadd.f32 %v156, %v763
    %v765 = vpop.f32.mrb[0].mxu0
    %v766 = vadd.f32 %v160, %v765
    %v767 = vpop.f32.mrb[0].mxu0
    %v768 = vadd.f32 %v156, %v767
    %v769 = vpop.f32.mrb[0].mxu0
    %v770 = vadd.f32 %v160, %v769
    %771 = vmatprep.mubr.bf16.mxu0 0
    %772 = vmatmul.mubr.bf16.gmra.mrb[0].mxu0 %v270
    %v773 = vpop.f32.mrb[0].mxu0
    %v774 = vadd.f32 %v156, %v773
    %v775 = vpop.f32.mrb[0].mxu0
    %v776 = vadd.f32 %v160, %v775
    %v777 = vpop.f32.mrb[0].mxu0
    %v778 = vadd.f32 %v156, %v777
    %v779 = vpop.f32.mrb[0].mxu0
    %v780 = vadd.f32 %v160, %v779
    %781 = vmatprep.mubr.bf16.mxu0 0
    %782 = vmatmul.mubr.bf16.gmra.mrb[0].mxu0 %v271
    %v783 = vpop.f32.mrb[0].mxu0
    %v784 = vadd.f32 %v156, %v783
    %v785 = vpop.f32.mrb[0].mxu0
    %v786 = vadd.f32 %v160, %v785
    %v787 = vpop.f32.mrb[0].mxu0
    %v788 = vadd.f32 %v156, %v787
    %v789 = vpop.f32.mrb[0].mxu0
    %v790 = vadd.f32 %v160, %v789
    %791 = vmatprep.mubr.bf16.mxu0 0
    %792 = vmatmul.mubr.bf16.gmra.mrb[0].mxu0 %v272
    %v793 = vpop.f32.mrb[0].mxu0
    %v794 = vadd.f32 %v156, %v793
    %v795 = vpop.f32.mrb[0].mxu0
    %v796 = vadd.f32 %v160, %v795
    %v797 = vpop.f32.mrb[0].mxu0
    %v798 = vadd.f32 %v156, %v797
    %v799 = vpop.f32.mrb[0].mxu0
    %v800 = vadd.f32 %v160, %v799
    %801 = vdwg.mxu0
    %802 = vmatprep.subr.bf16.mxu0 %v484
    %803 = vmatpush1.bf16.msra.mxu0 %v483
    %804 = vmatprep.subr.bf16.mxu0 %v492
    %805 = vmatpush1.bf16.msra.mxu0 %v491
    %806 = vmatprep.subr.bf16.mxu0 %v500
    %807 = vmatpush1.bf16.msra.mxu0 %v499
    %808 = vmatprep.subr.bf16.mxu0 %v508
    %809 = vmatpush1.bf16.msra.mxu0 %v507
    %810 = vmatprep.subr.bf16.mxu0 %v516
    %811 = vmatpush1.bf16.msra.mxu0 %v515
    %812 = vmatprep.subr.bf16.mxu0 %v524
    %813 = vmatpush1.bf16.msra.mxu0 %v523
    %814 = vmatprep.subr.bf16.mxu0 %v532
    %815 = vmatpush1.bf16.msra.mxu0 %v531
    %816 = vmatprep.subr.bf16.mxu0 %v540
    %817 = vmatpush1.bf16.msra.mxu0 %v539
    %818 = vmatprep.subr.bf16.mxu0 0
    %819 = vmatpush1.bf16.msra.mxu0 0
    %820 = vmatprep.subr.bf16.mxu0 0
    %821 = vmatpush1.bf16.msra.mxu0 0
    %822 = vmatprep.subr.bf16.mxu0 0
    %823 = vmatpush1.bf16.msra.mxu0 0
    %824 = vmatprep.subr.bf16.mxu0 0
    %825 = vmatpush1.bf16.msra.mxu0 0
    %826 = vmatprep.subr.bf16.mxu0 0
    %827 = vmatpush1.bf16.msra.mxu0 0
    %828 = vmatprep.subr.bf16.mxu0 0
    %829 = vmatpush1.bf16.msra.mxu0 0
    %830 = vmatprep.subr.bf16.mxu0 0
    %831 = vmatpush1.bf16.msra.mxu0 0
    %832 = vmatprep.subr.bf16.mxu0 0
    %833 = vmatpush1.bf16.msra.mxu0 0
    %834 = vmatprep.mubr.bf16.mxu0 0
    %835 = vmatmul.mubr.bf16.gmra.mrb[0].mxu0 %v257
    %v836 = vpop.f32.mrb[0].mxu0
    %v837 = vadd.f32 %v164, %v836
    %v838 = vpop.f32.mrb[0].mxu0
    %v839 = vadd.f32 %v168, %v838
    %v840 = vpop.f32.mrb[0].mxu0
    %v841 = vadd.f32 %v164, %v840
    %v842 = vpop.f32.mrb[0].mxu0
    %v843 = vadd.f32 %v168, %v842
    %844 = vmatprep.mubr.bf16.mxu0 0
    %845 = vmatmul.mubr.bf16.gmra.mrb[0].mxu0 %v258
    %v846 = vpop.f32.mrb[0].mxu0
    %v847 = vadd.f32 %v164, %v846
    %v848 = vpop.f32.mrb[0].mxu0
    %v849 = vadd.f32 %v168, %v848
    %v850 = vpop.f32.mrb[0].mxu0
    %v851 = vadd.f32 %v164, %v850
    %v852 = vpop.f32.mrb[0].mxu0
    %v853 = vadd.f32 %v168, %v852
    %854 = vmatprep.mubr.bf16.mxu0 0
    %855 = vmatmul.mubr.bf16.gmra.mrb[0].mxu0 %v259
    %v856 = vpop.f32.mrb[0].mxu0
    %v857 = vadd.f32 %v164, %v856
    %v858 = vpop.f32.mrb[0].mxu0
    %v859 = vadd.f32 %v168, %v858
    %v860 = vpop.f32.mrb[0].mxu0
    %v861 = vadd.f32 %v164, %v860
    %v862 = vpop.f32.mrb[0].mxu0
    %v863 = vadd.f32 %v168, %v862
    %864 = vmatprep.mubr.bf16.mxu0 0
    %865 = vmatmul.mubr.bf16.gmra.mrb[0].mxu0 %v260
    %v866 = vpop.f32.mrb[0].mxu0
    %v867 = vadd.f32 %v164, %v866
    %v868 = vpop.f32.mrb[0].mxu0
    %v869 = vadd.f32 %v168, %v868
    %v870 = vpop.f32.mrb[0].mxu0
    %v871 = vadd.f32 %v164, %v870
    %v872 = vpop.f32.mrb[0].mxu0
    %v873 = vadd.f32 %v168, %v872
    %874 = vmatprep.mubr.bf16.mxu0 0
    %875 = vmatmul.mubr.bf16.gmra.mrb[0].mxu0 %v261
    %v876 = vpop.f32.mrb[0].mxu0
    %v877 = vadd.f32 %v164, %v876
    %v878 = vpop.f32.mrb[0].mxu0
    %v879 = vadd.f32 %v168, %v878
    %v880 = vpop.f32.mrb[0].mxu0
    %v881 = vadd.f32 %v164, %v880
    %v882 = vpop.f32.mrb[0].mxu0
    %v883 = vadd.f32 %v168, %v882
    %884 = vmatprep.mubr.bf16.mxu0 0
    %885 = vmatmul.mubr.bf16.gmra.mrb[0].mxu0 %v262
    %v886 = vpop.f32.mrb[0].mxu0
    %v887 = vadd.f32 %v164, %v886
    %v888 = vpop.f32.mrb[0].mxu0
    %v889 = vadd.f32 %v168, %v888
    %v890 = vpop.f32.mrb[0].mxu0
    %v891 = vadd.f32 %v164, %v890
    %v892 = vpop.f32.mrb[0].mxu0
    %v893 = vadd.f32 %v168, %v892
    %894 = vmatprep.mubr.bf16.mxu0 0
    %895 = vmatmul.mubr.bf16.gmra.mrb[0].mxu0 %v263
    %v896 = vpop.f32.mrb[0].mxu0
    %v897 = vadd.f32 %v164, %v896
    %v898 = vpop.f32.mrb[0].mxu0
    %v899 = vadd.f32 %v168, %v898
    %v900 = vpop.f32.mrb[0].mxu0
    %v901 = vadd.f32 %v164, %v900
    %v902 = vpop.f32.mrb[0].mxu0
    %v903 = vadd.f32 %v168, %v902
    %904 = vmatprep.mubr.bf16.mxu0 0
    %905 = vmatmul.mubr.bf16.gmra.mrb[0].mxu0 %v264
    %v906 = vpop.f32.mrb[0].mxu0
    %v907 = vadd.f32 %v164, %v906
    %v908 = vpop.f32.mrb[0].mxu0
    %v909 = vadd.f32 %v168, %v908
    %v910 = vpop.f32.mrb[0].mxu0
    %v911 = vadd.f32 %v164, %v910
    %v912 = vpop.f32.mrb[0].mxu0
    %v913 = vadd.f32 %v168, %v912
    %914 = vmatprep.mubr.bf16.mxu0 0
    %915 = vmatmul.mubr.bf16.gmra.mrb[0].mxu0 %v265
    %v916 = vpop.f32.mrb[0].mxu0
    %v917 = vadd.f32 %v164, %v916
    %v918 = vpop.f32.mrb[0].mxu0
    %v919 = vadd.f32 %v168, %v918
    %v920 = vpop.f32.mrb[0].mxu0
    %v921 = vadd.f32 %v164, %v920
    %v922 = vpop.f32.mrb[0].mxu0
    %v923 = vadd.f32 %v168, %v922
    %924 = vmatprep.mubr.bf16.mxu0 0
    %925 = vmatmul.mubr.bf16.gmra.mrb[0].mxu0 %v266
    %v926 = vpop.f32.mrb[0].mxu0
    %v927 = vadd.f32 %v164, %v926
    %v928 = vpop.f32.mrb[0].mxu0
    %v929 = vadd.f32 %v168, %v928
    %v930 = vpop.f32.mrb[0].mxu0
    %v931 = vadd.f32 %v164, %v930
    %v932 = vpop.f32.mrb[0].mxu0
    %v933 = vadd.f32 %v168, %v932
    %934 = vmatprep.mubr.bf16.mxu0 0
    %935 = vmatmul.mubr.bf16.gmra.mrb[0].mxu0 %v267
    %v936 = vpop.f32.mrb[0].mxu0
    %v937 = vadd.f32 %v164, %v936
    %v938 = vpop.f32.mrb[0].mxu0
    %v939 = vadd.f32 %v168, %v938
    %v940 = vpop.f32.mrb[0].mxu0
    %v941 = vadd.f32 %v164, %v940
    %v942 = vpop.f32.mrb[0].mxu0
    %v943 = vadd.f32 %v168, %v942
    %944 = vmatprep.mubr.bf16.mxu0 0
    %945 = vmatmul.mubr.bf16.gmra.mrb[0].mxu0 %v268
    %v946 = vpop.f32.mrb[0].mxu0
    %v947 = vadd.f32 %v164, %v946
    %v948 = vpop.f32.mrb[0].mxu0
    %v949 = vadd.f32 %v168, %v948
    %v950 = vpop.f32.mrb[0].mxu0
    %v951 = vadd.f32 %v164, %v950
    %v952 = vpop.f32.mrb[0].mxu0
    %v953 = vadd.f32 %v168, %v952
    %954 = vmatprep.mubr.bf16.mxu0 0
    %955 = vmatmul.mubr.bf16.gmra.mrb[0].mxu0 %v269
    %v956 = vpop.f32.mrb[0].mxu0
    %v957 = vadd.f32 %v164, %v956
    %v958 = vpop.f32.mrb[0].mxu0
    %v959 = vadd.f32 %v168, %v958
    %v960 = vpop.f32.mrb[0].mxu0
    %v961 = vadd.f32 %v164, %v960
    %v962 = vpop.f32.mrb[0].mxu0
    %v963 = vadd.f32 %v168, %v962
    %964 = vmatprep.mubr.bf16.mxu0 0
    %965 = vmatmul.mubr.bf16.gmra.mrb[0].mxu0 %v270
    %v966 = vpop.f32.mrb[0].mxu0
    %v967 = vadd.f32 %v164, %v966
    %v968 = vpop.f32.mrb[0].mxu0
    %v969 = vadd.f32 %v168, %v968
    %v970 = vpop.f32.mrb[0].mxu0
    %v971 = vadd.f32 %v164, %v970
    %v972 = vpop.f32.mrb[0].mxu0
    %v973 = vadd.f32 %v168, %v972
    %974 = vmatprep.mubr.bf16.mxu0 0
    %975 = vmatmul.mubr.bf16.gmra.mrb[0].mxu0 %v271
    %v976 = vpop.f32.mrb[0].mxu0
    %v977 = vadd.f32 %v164, %v976
    %v978 = vpop.f32.mrb[0].mxu0
    %v979 = vadd.f32 %v168, %v978
    %v980 = vpop.f32.mrb[0].mxu0
    %v981 = vadd.f32 %v164, %v980
    %v982 = vpop.f32.mrb[0].mxu0
    %v983 = vadd.f32 %v168, %v982
    %984 = vmatprep.mubr.bf16.mxu0 0
    %985 = vmatmul.mubr.bf16.gmra.mrb[0].mxu0 %v272
    %v986 = vpop.f32.mrb[0].mxu0
    %v987 = vadd.f32 %v164, %v986
    %v988 = vpop.f32.mrb[0].mxu0
    %v989 = vadd.f32 %v168, %v988
    %v990 = vpop.f32.mrb[0].mxu0
    %v991 = vadd.f32 %v164, %v990
    %v992 = vpop.f32.mrb[0].mxu0
    %v993 = vadd.f32 %v168, %v992
    %994 = vdwg.mxu0
    %995 = vmatprep.subr.bf16.mxu0 %v486
    %996 = vmatpush1.bf16.msra.mxu0 %v485
    %997 = vmatprep.subr.bf16.mxu0 %v494
    %998 = vmatpush1.bf16.msra.mxu0 %v493
    %999 = vmatprep.subr.bf16.mxu0 %v502
    %1000 = vmatpush1.bf16.msra.mxu0 %v501
    %1001 = vmatprep.subr.bf16.mxu0 %v510
    %1002 = vmatpush1.bf16.msra.mxu0 %v509
    %1003 = vmatprep.subr.bf16.mxu0 %v518
    %1004 = vmatpush1.bf16.msra.mxu0 %v517
    %1005 = vmatprep.subr.bf16.mxu0 %v526
    %1006 = vmatpush1.bf16.msra.mxu0 %v525
    %1007 = vmatprep.subr.bf16.mxu0 %v534
    %1008 = vmatpush1.bf16.msra.mxu0 %v533
    %1009 = vmatprep.subr.bf16.mxu0 %v542
    %1010 = vmatpush1.bf16.msra.mxu0 %v541
    %1011 = vmatprep.subr.bf16.mxu0 0
    %1012 = vmatpush1.bf16.msra.mxu0 0
    %1013 = vmatprep.subr.bf16.mxu0 0
    %1014 = vmatpush1.bf16.msra.mxu0 0
    %1015 = vmatprep.subr.bf16.mxu0 0
    %1016 = vmatpush1.bf16.msra.mxu0 0
    %1017 = vmatprep.subr.bf16.mxu0 0
    %1018 = vmatpush1.bf16.msra.mxu0 0
    %1019 = vmatprep.subr.bf16.mxu0 0
    %1020 = vmatpush1.bf16.msra.mxu0 0
    %1021 = vmatprep.subr.bf16.mxu0 0
    %1022 = vmatpush1.bf16.msra.mxu0 0
    %1023 = vmatprep.subr.bf16.mxu0 0
    %1024 = vmatpush1.bf16.msra.mxu0 0
    %1025 = vmatprep.subr.bf16.mxu0 0
    %1026 = vmatpush1.bf16.msra.mxu0 0
    %1027 = vmatprep.mubr.bf16.mxu0 0
    %1028 = vmatmul.mubr.bf16.gmra.mrb[0].mxu0 %v257
    %v1029 = vpop.f32.mrb[0].mxu0
    %v1030 = vadd.f32 %v172, %v1029
    %v1031 = vpop.f32.mrb[0].mxu0
    %v1032 = vadd.f32 %v176, %v1031
    %v1033 = vpop.f32.mrb[0].mxu0
    %v1034 = vadd.f32 %v172, %v1033
    %v1035 = vpop.f32.mrb[0].mxu0
    %v1036 = vadd.f32 %v176, %v1035
    %1037 = vmatprep.mubr.bf16.mxu0 0
    %1038 = vmatmul.mubr.bf16.gmra.mrb[0].mxu0 %v258
    %v1039 = vpop.f32.mrb[0].mxu0
    %v1040 = vadd.f32 %v172, %v1039
    %v1041 = vpop.f32.mrb[0].mxu0
    %v1042 = vadd.f32 %v176, %v1041
    %v1043 = vpop.f32.mrb[0].mxu0
    %v1044 = vadd.f32 %v172, %v1043
    %v1045 = vpop.f32.mrb[0].mxu0
    %v1046 = vadd.f32 %v176, %v1045
    %1047 = vmatprep.mubr.bf16.mxu0 0
    %1048 = vmatmul.mubr.bf16.gmra.mrb[0].mxu0 %v259
    %v1049 = vpop.f32.mrb[0].mxu0
    %v1050 = vadd.f32 %v172, %v1049
    %v1051 = vpop.f32.mrb[0].mxu0
    %v1052 = vadd.f32 %v176, %v1051
    %v1053 = vpop.f32.mrb[0].mxu0
    %v1054 = vadd.f32 %v172, %v1053
    %v1055 = vpop.f32.mrb[0].mxu0
    %v1056 = vadd.f32 %v176, %v1055
    %1057 = vmatprep.mubr.bf16.mxu0 0
    %1058 = vmatmul.mubr.bf16.gmra.mrb[0].mxu0 %v260
    %v1059 = vpop.f32.mrb[0].mxu0
    %v1060 = vadd.f32 %v172, %v1059
    %v1061 = vpop.f32.mrb[0].mxu0
    %v1062 = vadd.f32 %v176, %v1061
    %v1063 = vpop.f32.mrb[0].mxu0
    %v1064 = vadd.f32 %v172, %v1063
    %v1065 = vpop.f32.mrb[0].mxu0
    %v1066 = vadd.f32 %v176, %v1065
    %1067 = vmatprep.mubr.bf16.mxu0 0
    %1068 = vmatmul.mubr.bf16.gmra.mrb[0].mxu0 %v261
    %v1069 = vpop.f32.mrb[0].mxu0
    %v1070 = vadd.f32 %v172, %v1069
    %v1071 = vpop.f32.mrb[0].mxu0
    %v1072 = vadd.f32 %v176, %v1071
    %v1073 = vpop.f32.mrb[0].mxu0
    %v1074 = vadd.f32 %v172, %v1073
    %v1075 = vpop.f32.mrb[0].mxu0
    %v1076 = vadd.f32 %v176, %v1075
    %1077 = vmatprep.mubr.bf16.mxu0 0
    %1078 = vmatmul.mubr.bf16.gmra.mrb[0].mxu0 %v262
    %v1079 = vpop.f32.mrb[0].mxu0
    %v1080 = vadd.f32 %v172, %v1079
    %v1081 = vpop.f32.mrb[0].mxu0
    %v1082 = vadd.f32 %v176, %v1081
    %v1083 = vpop.f32.mrb[0].mxu0
    %v1084 = vadd.f32 %v172, %v1083
    %v1085 = vpop.f32.mrb[0].mxu0
    %v1086 = vadd.f32 %v176, %v1085
    %1087 = vmatprep.mubr.bf16.mxu0 0
    %1088 = vmatmul.mubr.bf16.gmra.mrb[0].mxu0 %v263
    %v1089 = vpop.f32.mrb[0].mxu0
    %v1090 = vadd.f32 %v172, %v1089
    %v1091 = vpop.f32.mrb[0].mxu0
    %v1092 = vadd.f32 %v176, %v1091
    %v1093 = vpop.f32.mrb[0].mxu0
    %v1094 = vadd.f32 %v172, %v1093
    %v1095 = vpop.f32.mrb[0].mxu0
    %v1096 = vadd.f32 %v176, %v1095
    %1097 = vmatprep.mubr.bf16.mxu0 0
    %1098 = vmatmul.mubr.bf16.gmra.mrb[0].mxu0 %v264
    %v1099 = vpop.f32.mrb[0].mxu0
    %v1100 = vadd.f32 %v172, %v1099
    %v1101 = vpop.f32.mrb[0].mxu0
    %v1102 = vadd.f32 %v176, %v1101
    %v1103 = vpop.f32.mrb[0].mxu0
    %v1104 = vadd.f32 %v172, %v1103
    %v1105 = vpop.f32.mrb[0].mxu0
    %v1106 = vadd.f32 %v176, %v1105
    %1107 = vmatprep.mubr.bf16.mxu0 0
    %1108 = vmatmul.mubr.bf16.gmra.mrb[0].mxu0 %v265
    %v1109 = vpop.f32.mrb[0].mxu0
    %v1110 = vadd.f32 %v172, %v1109
    %v1111 = vpop.f32.mrb[0].mxu0
    %v1112 = vadd.f32 %v176, %v1111
    %v1113 = vpop.f32.mrb[0].mxu0
    %v1114 = vadd.f32 %v172, %v1113
    %v1115 = vpop.f32.mrb[0].mxu0
    %v1116 = vadd.f32 %v176, %v1115
    %1117 = vmatprep.mubr.bf16.mxu0 0
    %1118 = vmatmul.mubr.bf16.gmra.mrb[0].mxu0 %v266
    %v1119 = vpop.f32.mrb[0].mxu0
    %v1120 = vadd.f32 %v172, %v1119
    %v1121 = vpop.f32.mrb[0].mxu0
    %v1122 = vadd.f32 %v176, %v1121
    %v1123 = vpop.f32.mrb[0].mxu0
    %v1124 = vadd.f32 %v172, %v1123
    %v1125 = vpop.f32.mrb[0].mxu0
    %v1126 = vadd.f32 %v176, %v1125
    %1127 = vmatprep.mubr.bf16.mxu0 0
    %1128 = vmatmul.mubr.bf16.gmra.mrb[0].mxu0 %v267
    %v1129 = vpop.f32.mrb[0].mxu0
    %v1130 = vadd.f32 %v172, %v1129
    %v1131 = vpop.f32.mrb[0].mxu0
    %v1132 = vadd.f32 %v176, %v1131
    %v1133 = vpop.f32.mrb[0].mxu0
    %v1134 = vadd.f32 %v172, %v1133
    %v1135 = vpop.f32.mrb[0].mxu0
    %v1136 = vadd.f32 %v176, %v1135
    %1137 = vmatprep.mubr.bf16.mxu0 0
    %1138 = vmatmul.mubr.bf16.gmra.mrb[0].mxu0 %v268
    %v1139 = vpop.f32.mrb[0].mxu0
    %v1140 = vadd.f32 %v172, %v1139
    %v1141 = vpop.f32.mrb[0].mxu0
    %v1142 = vadd.f32 %v176, %v1141
    %v1143 = vpop.f32.mrb[0].mxu0
    %v1144 = vadd.f32 %v172, %v1143
    %v1145 = vpop.f32.mrb[0].mxu0
    %v1146 = vadd.f32 %v176, %v1145
    %1147 = vmatprep.mubr.bf16.mxu0 0
    %1148 = vmatmul.mubr.bf16.gmra.mrb[0].mxu0 %v269
    %v1149 = vpop.f32.mrb[0].mxu0
    %v1150 = vadd.f32 %v172, %v1149
    %v1151 = vpop.f32.mrb[0].mxu0
    %v1152 = vadd.f32 %v176, %v1151
    %v1153 = vpop.f32.mrb[0].mxu0
    %v1154 = vadd.f32 %v172, %v1153
    %v1155 = vpop.f32.mrb[0].mxu0
    %v1156 = vadd.f32 %v176, %v1155
    %1157 = vmatprep.mubr.bf16.mxu0 0
    %1158 = vmatmul.mubr.bf16.gmra.mrb[0].mxu0 %v270
    %v1159 = vpop.f32.mrb[0].mxu0
    %v1160 = vadd.f32 %v172, %v1159
    %v1161 = vpop.f32.mrb[0].mxu0
    %v1162 = vadd.f32 %v176, %v1161
    %v1163 = vpop.f32.mrb[0].mxu0
    %v1164 = vadd.f32 %v172, %v1163
    %v1165 = vpop.f32.mrb[0].mxu0
    %v1166 = vadd.f32 %v176, %v1165
    %1167 = vmatprep.mubr.bf16.mxu0 0
    %1168 = vmatmul.mubr.bf16.gmra.mrb[0].mxu0 %v271
    %v1169 = vpop.f32.mrb[0].mxu0
    %v1170 = vadd.f32 %v172, %v1169
    %v1171 = vpop.f32.mrb[0].mxu0
    %v1172 = vadd.f32 %v176, %v1171
    %v1173 = vpop.f32.mrb[0].mxu0
    %v1174 = vadd.f32 %v172, %v1173
    %v1175 = vpop.f32.mrb[0].mxu0
    %v1176 = vadd.f32 %v176, %v1175
    %1177 = vmatprep.mubr.bf16.mxu0 0
    %1178 = vmatmul.mubr.bf16.gmra.mrb[0].mxu0 %v272
    %v1179 = vpop.f32.mrb[0].mxu0
    %v1180 = vadd.f32 %v172, %v1179
    %v1181 = vpop.f32.mrb[0].mxu0
    %v1182 = vadd.f32 %v176, %v1181
    %v1183 = vpop.f32.mrb[0].mxu0
    %v1184 = vadd.f32 %v172, %v1183
    %v1185 = vpop.f32.mrb[0].mxu0
    %v1186 = vadd.f32 %v176, %v1185
    %1187 = vdwg.mxu0
    %1188 = vmatprep.subr.bf16.mxu0 %v488
    %1189 = vmatpush1.bf16.msra.mxu0 %v487
    %1190 = vmatprep.subr.bf16.mxu0 %v496
    %1191 = vmatpush1.bf16.msra.mxu0 %v495
    %1192 = vmatprep.subr.bf16.mxu0 %v504
    %1193 = vmatpush1.bf16.msra.mxu0 %v503
    %1194 = vmatprep.subr.bf16.mxu0 %v512
    %1195 = vmatpush1.bf16.msra.mxu0 %v511
    %1196 = vmatprep.subr.bf16.mxu0 %v520
    %1197 = vmatpush1.bf16.msra.mxu0 %v519
    %1198 = vmatprep.subr.bf16.mxu0 %v528
    %1199 = vmatpush1.bf16.msra.mxu0 %v527
    %1200 = vmatprep.subr.bf16.mxu0 %v536
    %1201 = vmatpush1.bf16.msra.mxu0 %v535
    %1202 = vmatprep.subr.bf16.mxu0 %v544
    %1203 = vmatpush1.bf16.msra.mxu0 %v543
    %1204 = vmatprep.subr.bf16.mxu0 0
    %1205 = vmatpush1.bf16.msra.mxu0 0
    %1206 = vmatprep.subr.bf16.mxu0 0
    %1207 = vmatpush1.bf16.msra.mxu0 0
    %1208 = vmatprep.subr.bf16.mxu0 0
    %1209 = vmatpush1.bf16.msra.mxu0 0
    %1210 = vmatprep.subr.bf16.mxu0 0
    %1211 = vmatpush1.bf16.msra.mxu0 0
    %1212 = vmatprep.subr.bf16.mxu0 0
    %1213 = vmatpush1.bf16.msra.mxu0 0
    %1214 = vmatprep.subr.bf16.mxu0 0
    %1215 = vmatpush1.bf16.msra.mxu0 0
    %1216 = vmatprep.subr.bf16.mxu0 0
    %1217 = vmatpush1.bf16.msra.mxu0 0
    %1218 = vmatprep.subr.bf16.mxu0 0
    %1219 = vmatpush1.bf16.msra.mxu0 0
    %1220 = vmatprep.mubr.bf16.mxu0 0
    %1221 = vmatmul.mubr.bf16.gmra.mrb[0].mxu0 %v257
    %v1222 = vpop.f32.mrb[0].mxu0
    %v1223 = vadd.f32 %v180, %v1222
    %v1224 = vpop.f32.mrb[0].mxu0
    %v1225 = vadd.f32 %v184, %v1224
    %v1226 = vpop.f32.mrb[0].mxu0
    %v1227 = vadd.f32 %v180, %v1226
    %v1228 = vpop.f32.mrb[0].mxu0
    %v1229 = vadd.f32 %v184, %v1228
    %1230 = vmatprep.mubr.bf16.mxu0 0
    %1231 = vmatmul.mubr.bf16.gmra.mrb[0].mxu0 %v258
    %v1232 = vpop.f32.mrb[0].mxu0
    %v1233 = vadd.f32 %v180, %v1232
    %v1234 = vpop.f32.mrb[0].mxu0
    %v1235 = vadd.f32 %v184, %v1234
    %v1236 = vpop.f32.mrb[0].mxu0
    %v1237 = vadd.f32 %v180, %v1236
    %v1238 = vpop.f32.mrb[0].mxu0
    %v1239 = vadd.f32 %v184, %v1238
    %1240 = vmatprep.mubr.bf16.mxu0 0
    %1241 = vmatmul.mubr.bf16.gmra.mrb[0].mxu0 %v259
    %v1242 = vpop.f32.mrb[0].mxu0
    %v1243 = vadd.f32 %v180, %v1242
    %v1244 = vpop.f32.mrb[0].mxu0
    %v1245 = vadd.f32 %v184, %v1244
    %v1246 = vpop.f32.mrb[0].mxu0
    %v1247 = vadd.f32 %v180, %v1246
    %v1248 = vpop.f32.mrb[0].mxu0
    %v1249 = vadd.f32 %v184, %v1248
    %1250 = vmatprep.mubr.bf16.mxu0 0
    %1251 = vmatmul.mubr.bf16.gmra.mrb[0].mxu0 %v260
    %v1252 = vpop.f32.mrb[0].mxu0
    %v1253 = vadd.f32 %v180, %v1252
    %v1254 = vpop.f32.mrb[0].mxu0
    %v1255 = vadd.f32 %v184, %v1254
    %v1256 = vpop.f32.mrb[0].mxu0
    %v1257 = vadd.f32 %v180, %v1256
    %v1258 = vpop.f32.mrb[0].mxu0
    %v1259 = vadd.f32 %v184, %v1258
    %1260 = vmatprep.mubr.bf16.mxu0 0
    %1261 = vmatmul.mubr.bf16.gmra.mrb[0].mxu0 %v261
    %v1262 = vpop.f32.mrb[0].mxu0
    %v1263 = vadd.f32 %v180, %v1262
    %v1264 = vpop.f32.mrb[0].mxu0
    %v1265 = vadd.f32 %v184, %v1264
    %v1266 = vpop.f32.mrb[0].mxu0
    %v1267 = vadd.f32 %v180, %v1266
    %v1268 = vpop.f32.mrb[0].mxu0
    %v1269 = vadd.f32 %v184, %v1268
    %1270 = vmatprep.mubr.bf16.mxu0 0
    %1271 = vmatmul.mubr.bf16.gmra.mrb[0].mxu0 %v262
    %v1272 = vpop.f32.mrb[0].mxu0
    %v1273 = vadd.f32 %v180, %v1272
    %v1274 = vpop.f32.mrb[0].mxu0
    %v1275 = vadd.f32 %v184, %v1274
    %v1276 = vpop.f32.mrb[0].mxu0
    %v1277 = vadd.f32 %v180, %v1276
    %v1278 = vpop.f32.mrb[0].mxu0
    %v1279 = vadd.f32 %v184, %v1278
    %1280 = vmatprep.mubr.bf16.mxu0 0
    %1281 = vmatmul.mubr.bf16.gmra.mrb[0].mxu0 %v263
    %v1282 = vpop.f32.mrb[0].mxu0
    %v1283 = vadd.f32 %v180, %v1282
    %v1284 = vpop.f32.mrb[0].mxu0
    %v1285 = vadd.f32 %v184, %v1284
    %v1286 = vpop.f32.mrb[0].mxu0
    %v1287 = vadd.f32 %v180, %v1286
    %v1288 = vpop.f32.mrb[0].mxu0
    %v1289 = vadd.f32 %v184, %v1288
    %1290 = vmatprep.mubr.bf16.mxu0 0
    %1291 = vmatmul.mubr.bf16.gmra.mrb[0].mxu0 %v264
    %v1292 = vpop.f32.mrb[0].mxu0
    %v1293 = vadd.f32 %v180, %v1292
    %v1294 = vpop.f32.mrb[0].mxu0
    %v1295 = vadd.f32 %v184, %v1294
    %v1296 = vpop.f32.mrb[0].mxu0
    %v1297 = vadd.f32 %v180, %v1296
    %v1298 = vpop.f32.mrb[0].mxu0
    %v1299 = vadd.f32 %v184, %v1298
    %1300 = vmatprep.mubr.bf16.mxu0 0
    %1301 = vmatmul.mubr.bf16.gmra.mrb[0].mxu0 %v265
    %v1302 = vpop.f32.mrb[0].mxu0
    %v1303 = vadd.f32 %v180, %v1302
    %v1304 = vpop.f32.mrb[0].mxu0
    %v1305 = vadd.f32 %v184, %v1304
    %v1306 = vpop.f32.mrb[0].mxu0
    %v1307 = vadd.f32 %v180, %v1306
    %v1308 = vpop.f32.mrb[0].mxu0
    %v1309 = vadd.f32 %v184, %v1308
    %1310 = vmatprep.mubr.bf16.mxu0 0
    %1311 = vmatmul.mubr.bf16.gmra.mrb[0].mxu0 %v266
    %v1312 = vpop.f32.mrb[0].mxu0
    %v1313 = vadd.f32 %v180, %v1312
    %v1314 = vpop.f32.mrb[0].mxu0
    %v1315 = vadd.f32 %v184, %v1314
    %v1316 = vpop.f32.mrb[0].mxu0
    %v1317 = vadd.f32 %v180, %v1316
    %v1318 = vpop.f32.mrb[0].mxu0
    %v1319 = vadd.f32 %v184, %v1318
    %1320 = vmatprep.mubr.bf16.mxu0 0
    %1321 = vmatmul.mubr.bf16.gmra.mrb[0].mxu0 %v267
    %v1322 = vpop.f32.mrb[0].mxu0
    %v1323 = vadd.f32 %v180, %v1322
    %v1324 = vpop.f32.mrb[0].mxu0
    %v1325 = vadd.f32 %v184, %v1324
    %v1326 = vpop.f32.mrb[0].mxu0
    %v1327 = vadd.f32 %v180, %v1326
    %v1328 = vpop.f32.mrb[0].mxu0
    %v1329 = vadd.f32 %v184, %v1328
    %1330 = vmatprep.mubr.bf16.mxu0 0
    %1331 = vmatmul.mubr.bf16.gmra.mrb[0].mxu0 %v268
    %v1332 = vpop.f32.mrb[0].mxu0
    %v1333 = vadd.f32 %v180, %v1332
    %v1334 = vpop.f32.mrb[0].mxu0
    %v1335 = vadd.f32 %v184, %v1334
    %v1336 = vpop.f32.mrb[0].mxu0
    %v1337 = vadd.f32 %v180, %v1336
    %v1338 = vpop.f32.mrb[0].mxu0
    %v1339 = vadd.f32 %v184, %v1338
    %1340 = vmatprep.mubr.bf16.mxu0 0
    %1341 = vmatmul.mubr.bf16.gmra.mrb[0].mxu0 %v269
    %v1342 = vpop.f32.mrb[0].mxu0
    %v1343 = vadd.f32 %v180, %v1342
    %v1344 = vpop.f32.mrb[0].mxu0
    %v1345 = vadd.f32 %v184, %v1344
    %v1346 = vpop.f32.mrb[0].mxu0
    %v1347 = vadd.f32 %v180, %v1346
    %v1348 = vpop.f32.mrb[0].mxu0
    %v1349 = vadd.f32 %v184, %v1348
    %1350 = vmatprep.mubr.bf16.mxu0 0
    %1351 = vmatmul.mubr.bf16.gmra.mrb[0].mxu0 %v270
    %v1352 = vpop.f32.mrb[0].mxu0
    %v1353 = vadd.f32 %v180, %v1352
    %v1354 = vpop.f32.mrb[0].mxu0
    %v1355 = vadd.f32 %v184, %v1354
    %v1356 = vpop.f32.mrb[0].mxu0
    %v1357 = vadd.f32 %v180, %v1356
    %v1358 = vpop.f32.mrb[0].mxu0
    %v1359 = vadd.f32 %v184, %v1358
    %1360 = vmatprep.mubr.bf16.mxu0 0
    %1361 = vmatmul.mubr.bf16.gmra.mrb[0].mxu0 %v271
    %v1362 = vpop.f32.mrb[0].mxu0
    %v1363 = vadd.f32 %v180, %v1362
    %v1364 = vpop.f32.mrb[0].mxu0
    %v1365 = vadd.f32 %v184, %v1364
    %v1366 = vpop.f32.mrb[0].mxu0
    %v1367 = vadd.f32 %v180, %v1366
    %v1368 = vpop.f32.mrb[0].mxu0
    %v1369 = vadd.f32 %v184, %v1368
    %1370 = vmatprep.mubr.bf16.mxu0 0
    %1371 = vmatmul.mubr.bf16.gmra.mrb[0].mxu0 %v272
    %v1372 = vpop.f32.mrb[0].mxu0
    %v1373 = vadd.f32 %v180, %v1372
    %v1374 = vpop.f32.mrb[0].mxu0
    %v1375 = vadd.f32 %v184, %v1374
    %v1376 = vpop.f32.mrb[0].mxu0
    %v1377 = vadd.f32 %v180, %v1376
    %v1378 = vpop.f32.mrb[0].mxu0
    %v1379 = vadd.f32 %v184, %v1378
    %1380 = vdwg.mxu0
    %v1381 = vpack.c.bf16 %v648, %v644
    %v1382 = vpack.c.bf16 %v650, %v646
    %v1383 = vpack.c.bf16 %v841, %v837
    %v1384 = vpack.c.bf16 %v843, %v839
    %v1385 = vpack.c.bf16 %v1034, %v1030
    %v1386 = vpack.c.bf16 %v1036, %v1032
    %v1387 = vpack.c.bf16 %v1227, %v1223
    %v1388 = vpack.c.bf16 %v1229, %v1225
    %v1389 = vpack.c.bf16 %v658, %v654
    %v1390 = vpack.c.bf16 %v660, %v656
    %v1391 = vpack.c.bf16 %v851, %v847
    %v1392 = vpack.c.bf16 %v853, %v849
    %v1393 = vpack.c.bf16 %v1044, %v1040
    %v1394 = vpack.c.bf16 %v1046, %v1042
    %v1395 = vpack.c.bf16 %v1237, %v1233
    %v1396 = vpack.c.bf16 %v1239, %v1235
    %v1397 = vpack.c.bf16 %v668, %v664
    %v1398 = vpack.c.bf16 %v670, %v666
    %v1399 = vpack.c.bf16 %v861, %v857
    %v1400 = vpack.c.bf16 %v863, %v859
    %v1401 = vpack.c.bf16 %v1054, %v1050
    %v1402 = vpack.c.bf16 %v1056, %v1052
    %v1403 = vpack.c.bf16 %v1247, %v1243
    %v1404 = vpack.c.bf16 %v1249, %v1245
    %v1405 = vpack.c.bf16 %v678, %v674
    %v1406 = vpack.c.bf16 %v680, %v676
    %v1407 = vpack.c.bf16 %v871, %v867
    %v1408 = vpack.c.bf16 %v873, %v869
    %v1409 = vpack.c.bf16 %v1064, %v1060
    %v1410 = vpack.c.bf16 %v1066, %v1062
    %v1411 = vpack.c.bf16 %v1257, %v1253
    %v1412 = vpack.c.bf16 %v1259, %v1255
    %v1413 = vpack.c.bf16 %v688, %v684
    %v1414 = vpack.c.bf16 %v690, %v686
    %v1415 = vpack.c.bf16 %v881, %v877
    %v1416 = vpack.c.bf16 %v883, %v879
    %v1417 = vpack.c.bf16 %v1074, %v1070
    %v1418 = vpack.c.bf16 %v1076, %v1072
    %v1419 = vpack.c.bf16 %v1267, %v1263
    %v1420 = vpack.c.bf16 %v1269, %v1265
    %v1421 = vpack.c.bf16 %v698, %v694
    %v1422 = vpack.c.bf16 %v700, %v696
    %v1423 = vpack.c.bf16 %v891, %v887
    %v1424 = vpack.c.bf16 %v893, %v889
    %v1425 = vpack.c.bf16 %v1084, %v1080
    %v1426 = vpack.c.bf16 %v1086, %v1082
    %v1427 = vpack.c.bf16 %v1277, %v1273
    %v1428 = vpack.c.bf16 %v1279, %v1275
    %v1429 = vpack.c.bf16 %v708, %v704
    %v1430 = vpack.c.bf16 %v710, %v706
    %v1431 = vpack.c.bf16 %v901, %v897
    %v1432 = vpack.c.bf16 %v903, %v899
    %v1433 = vpack.c.bf16 %v1094, %v1090
    %v1434 = vpack.c.bf16 %v1096, %v1092
    %v1435 = vpack.c.bf16 %v1287, %v1283
    %v1436 = vpack.c.bf16 %v1289, %v1285
    %v1437 = vpack.c.bf16 %v718, %v714
    %v1438 = vpack.c.bf16 %v720, %v716
    %v1439 = vpack.c.bf16 %v911, %v907
    %v1440 = vpack.c.bf16 %v913, %v909
    %v1441 = vpack.c.bf16 %v1104, %v1100
    %v1442 = vpack.c.bf16 %v1106, %v1102
    %v1443 = vpack.c.bf16 %v1297, %v1293
    %v1444 = vpack.c.bf16 %v1299, %v1295
    %v1445 = vpack.c.bf16 %v728, %v724
    %v1446 = vpack.c.bf16 %v730, %v726
    %v1447 = vpack.c.bf16 %v921, %v917
    %v1448 = vpack.c.bf16 %v923, %v919
    %v1449 = vpack.c.bf16 %v1114, %v1110
    %v1450 = vpack.c.bf16 %v1116, %v1112
    %v1451 = vpack.c.bf16 %v1307, %v1303
    %v1452 = vpack.c.bf16 %v1309, %v1305
    %v1453 = vpack.c.bf16 %v738, %v734
    %v1454 = vpack.c.bf16 %v740, %v736
    %v1455 = vpack.c.bf16 %v931, %v927
    %v1456 = vpack.c.bf16 %v933, %v929
    %v1457 = vpack.c.bf16 %v1124, %v1120
    %v1458 = vpack.c.bf16 %v1126, %v1122
    %v1459 = vpack.c.bf16 %v1317, %v1313
    %v1460 = vpack.c.bf16 %v1319, %v1315
    %v1461 = vpack.c.bf16 %v748, %v744
    %v1462 = vpack.c.bf16 %v750, %v746
    %v1463 = vpack.c.bf16 %v941, %v937
    %v1464 = vpack.c.bf16 %v943, %v939
    %v1465 = vpack.c.bf16 %v1134, %v1130
    %v1466 = vpack.c.bf16 %v1136, %v1132
    %v1467 = vpack.c.bf16 %v1327, %v1323
    %v1468 = vpack.c.bf16 %v1329, %v1325
    %v1469 = vpack.c.bf16 %v758, %v754
    %v1470 = vpack.c.bf16 %v760, %v756
    %v1471 = vpack.c.bf16 %v951, %v947
    %v1472 = vpack.c.bf16 %v953, %v949
    %v1473 = vpack.c.bf16 %v1144, %v1140
    %v1474 = vpack.c.bf16 %v1146, %v1142
    %v1475 = vpack.c.bf16 %v1337, %v1333
    %v1476 = vpack.c.bf16 %v1339, %v1335
    %v1477 = vpack.c.bf16 %v768, %v764
    %v1478 = vpack.c.bf16 %v770, %v766
    %v1479 = vpack.c.bf16 %v961, %v957
    %v1480 = vpack.c.bf16 %v963, %v959
    %v1481 = vpack.c.bf16 %v1154, %v1150
    %v1482 = vpack.c.bf16 %v1156, %v1152
    %v1483 = vpack.c.bf16 %v1347, %v1343
    %v1484 = vpack.c.bf16 %v1349, %v1345
    %v1485 = vpack.c.bf16 %v778, %v774
    %v1486 = vpack.c.bf16 %v780, %v776
    %v1487 = vpack.c.bf16 %v971, %v967
    %v1488 = vpack.c.bf16 %v973, %v969
    %v1489 = vpack.c.bf16 %v1164, %v1160
    %v1490 = vpack.c.bf16 %v1166, %v1162
    %v1491 = vpack.c.bf16 %v1357, %v1353
    %v1492 = vpack.c.bf16 %v1359, %v1355
    %v1493 = vpack.c.bf16 %v788, %v784
    %v1494 = vpack.c.bf16 %v790, %v786
    %v1495 = vpack.c.bf16 %v981, %v977
    %v1496 = vpack.c.bf16 %v983, %v979
    %v1497 = vpack.c.bf16 %v1174, %v1170
    %v1498 = vpack.c.bf16 %v1176, %v1172
    %v1499 = vpack.c.bf16 %v1367, %v1363
    %v1500 = vpack.c.bf16 %v1369, %v1365
    %v1501 = vpack.c.bf16 %v798, %v794
    %v1502 = vpack.c.bf16 %v800, %v796
    %v1503 = vpack.c.bf16 %v991, %v987
    %v1504 = vpack.c.bf16 %v993, %v989
    %v1505 = vpack.c.bf16 %v1184, %v1180
    %v1506 = vpack.c.bf16 %v1186, %v1182
    %v1507 = vpack.c.bf16 %v1377, %v1373
    %v1508 = vpack.c.bf16 %v1379, %v1375
    %1509 = vst [vmem:[#allocation2] sm:$0xff] %v1381
    %1510 = vst [vmem:[#allocation2 + $0x8] sm:$0xff] %v1382
    %1511 = vst [vmem:[#allocation2 + $0x10] sm:$0xff] %v1383
    %1512 = vst [vmem:[#allocation2 + $0x18] sm:$0xff] %v1384
    %1513 = vst [vmem:[#allocation2 + $0x20] sm:$0xff] %v1385
    %1514 = vst [vmem:[#allocation2 + $0x28] sm:$0xff] %v1386
    %1515 = vst [vmem:[#allocation2 + $0x30] sm:$0xff] %v1387
    %1516 = vst [vmem:[#allocation2 + $0x38] sm:$0xff] %v1388
    %1517 = vst [vmem:[#allocation2 + $0x40] sm:$0xff] %v1389
    %1518 = vst [vmem:[#allocation2 + $0x48] sm:$0xff] %v1390
    %1519 = vst [vmem:[#allocation2 + $0x50] sm:$0xff] %v1391
    %1520 = vst [vmem:[#allocation2 + $0x58] sm:$0xff] %v1392
    %1521 = vst [vmem:[#allocation2 + $0x60] sm:$0xff] %v1393
    %1522 = vst [vmem:[#allocation2 + $0x68] sm:$0xff] %v1394
    %1523 = vst [vmem:[#allocation2 + $0x70] sm:$0xff] %v1395
    %1524 = vst [vmem:[#allocation2 + $0x78] sm:$0xff] %v1396
    %1525 = vst [vmem:[#allocation2 + $0x80] sm:$0xff] %v1397
    %1526 = vst [vmem:[#allocation2 + $0x88] sm:$0xff] %v1398
    %1527 = vst [vmem:[#allocation2 + $0x90] sm:$0xff] %v1399
    %1528 = vst [vmem:[#allocation2 + $0x98] sm:$0xff] %v1400
    %1529 = vst [vmem:[#allocation2 + $0xa0] sm:$0xff] %v1401
    %1530 = vst [vmem:[#allocation2 + $0xa8] sm:$0xff] %v1402
    %1531 = vst [vmem:[#allocation2 + $0xb0] sm:$0xff] %v1403
    %1532 = vst [vmem:[#allocation2 + $0xb8] sm:$0xff] %v1404
    %1533 = vst [vmem:[#allocation2 + $0xc0] sm:$0xff] %v1405
    %1534 = vst [vmem:[#allocation2 + $0xc8] sm:$0xff] %v1406
    %1535 = vst [vmem:[#allocation2 + $0xd0] sm:$0xff] %v1407
    %1536 = vst [vmem:[#allocation2 + $0xd8] sm:$0xff] %v1408
    %1537 = vst [vmem:[#allocation2 + $0xe0] sm:$0xff] %v1409
    %1538 = vst [vmem:[#allocation2 + $0xe8] sm:$0xff] %v1410
    %1539 = vst [vmem:[#allocation2 + $0xf0] sm:$0xff] %v1411
    %1540 = vst [vmem:[#allocation2 + $0xf8] sm:$0xff] %v1412
    %1541 = vst [vmem:[#allocation2 + $0x100] sm:$0xff] %v1413
    %1542 = vst [vmem:[#allocation2 + $0x108] sm:$0xff] %v1414
    %1543 = vst [vmem:[#allocation2 + $0x110] sm:$0xff] %v1415
    %1544 = vst [vmem:[#allocation2 + $0x118] sm:$0xff] %v1416
    %1545 = vst [vmem:[#allocation2 + $0x120] sm:$0xff] %v1417
    %1546 = vst [vmem:[#allocation2 + $0x128] sm:$0xff] %v1418
    %1547 = vst [vmem:[#allocation2 + $0x130] sm:$0xff] %v1419
    %1548 = vst [vmem:[#allocation2 + $0x138] sm:$0xff] %v1420
    %1549 = vst [vmem:[#allocation2 + $0x140] sm:$0xff] %v1421
    %1550 = vst [vmem:[#allocation2 + $0x148] sm:$0xff] %v1422
    %1551 = vst [vmem:[#allocation2 + $0x150] sm:$0xff] %v1423
    %1552 = vst [vmem:[#allocation2 + $0x158] sm:$0xff] %v1424
    %1553 = vst [vmem:[#allocation2 + $0x160] sm:$0xff] %v1425
    %1554 = vst [vmem:[#allocation2 + $0x168] sm:$0xff] %v1426
    %1555 = vst [vmem:[#allocation2 + $0x170] sm:$0xff] %v1427
    %1556 = vst [vmem:[#allocation2 + $0x178] sm:$0xff] %v1428
    %1557 = vst [vmem:[#allocation2 + $0x180] sm:$0xff] %v1429
    %1558 = vst [vmem:[#allocation2 + $0x188] sm:$0xff] %v1430
    %1559 = vst [vmem:[#allocation2 + $0x190] sm:$0xff] %v1431
    %1560 = vst [vmem:[#allocation2 + $0x198] sm:$0xff] %v1432
    %1561 = vst [vmem:[#allocation2 + $0x1a0] sm:$0xff] %v1433
    %1562 = vst [vmem:[#allocation2 + $0x1a8] sm:$0xff] %v1434
    %1563 = vst [vmem:[#allocation2 + $0x1b0] sm:$0xff] %v1435
    %1564 = vst [vmem:[#allocation2 + $0x1b8] sm:$0xff] %v1436
    %1565 = vst [vmem:[#allocation2 + $0x1c0] sm:$0xff] %v1437
    %1566 = vst [vmem:[#allocation2 + $0x1c8] sm:$0xff] %v1438
    %1567 = vst [vmem:[#allocation2 + $0x1d0] sm:$0xff] %v1439
    %1568 = vst [vmem:[#allocation2 + $0x1d8] sm:$0xff] %v1440
    %1569 = vst [vmem:[#allocation2 + $0x1e0] sm:$0xff] %v1441
    %1570 = vst [vmem:[#allocation2 + $0x1e8] sm:$0xff] %v1442
    %1571 = vst [vmem:[#allocation2 + $0x1f0] sm:$0xff] %v1443
    %1572 = vst [vmem:[#allocation2 + $0x1f8] sm:$0xff] %v1444
    %1573 = vst [vmem:[#allocation2 + $0x200] sm:$0xff] %v1445
    %1574 = vst [vmem:[#allocation2 + $0x208] sm:$0xff] %v1446
    %1575 = vst [vmem:[#allocation2 + $0x210] sm:$0xff] %v1447
    %1576 = vst [vmem:[#allocation2 + $0x218] sm:$0xff] %v1448
    %1577 = vst [vmem:[#allocation2 + $0x220] sm:$0xff] %v1449
    %1578 = vst [vmem:[#allocation2 + $0x228] sm:$0xff] %v1450
    %1579 = vst [vmem:[#allocation2 + $0x230] sm:$0xff] %v1451
    %1580 = vst [vmem:[#allocation2 + $0x238] sm:$0xff] %v1452
    %1581 = vst [vmem:[#allocation2 + $0x240] sm:$0xff] %v1453
    %1582 = vst [vmem:[#allocation2 + $0x248] sm:$0xff] %v1454
    %1583 = vst [vmem:[#allocation2 + $0x250] sm:$0xff] %v1455
    %1584 = vst [vmem:[#allocation2 + $0x258] sm:$0xff] %v1456
    %1585 = vst [vmem:[#allocation2 + $0x260] sm:$0xff] %v1457
    %1586 = vst [vmem:[#allocation2 + $0x268] sm:$0xff] %v1458
    %1587 = vst [vmem:[#allocation2 + $0x270] sm:$0xff] %v1459
    %1588 = vst [vmem:[#allocation2 + $0x278] sm:$0xff] %v1460
    %1589 = vst [vmem:[#allocation2 + $0x280] sm:$0xff] %v1461
    %1590 = vst [vmem:[#allocation2 + $0x288] sm:$0xff] %v1462
    %1591 = vst [vmem:[#allocation2 + $0x290] sm:$0xff] %v1463
    %1592 = vst [vmem:[#allocation2 + $0x298] sm:$0xff] %v1464
    %1593 = vst [vmem:[#allocation2 + $0x2a0] sm:$0xff] %v1465
    %1594 = vst [vmem:[#allocation2 + $0x2a8] sm:$0xff] %v1466
    %1595 = vst [vmem:[#allocation2 + $0x2b0] sm:$0xff] %v1467
    %1596 = vst [vmem:[#allocation2 + $0x2b8] sm:$0xff] %v1468
    %1597 = vst [vmem:[#allocation2 + $0x2c0] sm:$0xff] %v1469
    %1598 = vst [vmem:[#allocation2 + $0x2c8] sm:$0xff] %v1470
    %1599 = vst [vmem:[#allocation2 + $0x2d0] sm:$0xff] %v1471
    %1600 = vst [vmem:[#allocation2 + $0x2d8] sm:$0xff] %v1472
    %1601 = vst [vmem:[#allocation2 + $0x2e0] sm:$0xff] %v1473
    %1602 = vst [vmem:[#allocation2 + $0x2e8] sm:$0xff] %v1474
    %1603 = vst [vmem:[#allocation2 + $0x2f0] sm:$0xff] %v1475
    %1604 = vst [vmem:[#allocation2 + $0x2f8] sm:$0xff] %v1476
    %1605 = vst [vmem:[#allocation2 + $0x300] sm:$0xff] %v1477
    %1606 = vst [vmem:[#allocation2 + $0x308] sm:$0xff] %v1478
    %1607 = vst [vmem:[#allocation2 + $0x310] sm:$0xff] %v1479
    %1608 = vst [vmem:[#allocation2 + $0x318] sm:$0xff] %v1480
    %1609 = vst [vmem:[#allocation2 + $0x320] sm:$0xff] %v1481
    %1610 = vst [vmem:[#allocation2 + $0x328] sm:$0xff] %v1482
    %1611 = vst [vmem:[#allocation2 + $0x330] sm:$0xff] %v1483
    %1612 = vst [vmem:[#allocation2 + $0x338] sm:$0xff] %v1484
    %1613 = vst [vmem:[#allocation2 + $0x340] sm:$0xff] %v1485
    %1614 = vst [vmem:[#allocation2 + $0x348] sm:$0xff] %v1486
    %1615 = vst [vmem:[#allocation2 + $0x350] sm:$0xff] %v1487
    %1616 = vst [vmem:[#allocation2 + $0x358] sm:$0xff] %v1488
    %1617 = vst [vmem:[#allocation2 + $0x360] sm:$0xff] %v1489
    %1618 = vst [vmem:[#allocation2 + $0x368] sm:$0xff] %v1490
    %1619 = vst [vmem:[#allocation2 + $0x370] sm:$0xff] %v1491
    %1620 = vst [vmem:[#allocation2 + $0x378] sm:$0xff] %v1492
    %1621 = vst [vmem:[#allocation2 + $0x380] sm:$0xff] %v1493
    %1622 = vst [vmem:[#allocation2 + $0x388] sm:$0xff] %v1494
    %1623 = vst [vmem:[#allocation2 + $0x390] sm:$0xff] %v1495
    %1624 = vst [vmem:[#allocation2 + $0x398] sm:$0xff] %v1496
    %1625 = vst [vmem:[#allocation2 + $0x3a0] sm:$0xff] %v1497
    %1626 = vst [vmem:[#allocation2 + $0x3a8] sm:$0xff] %v1498
    %1627 = vst [vmem:[#allocation2 + $0x3b0] sm:$0xff] %v1499
    %1628 = vst [vmem:[#allocation2 + $0x3b8] sm:$0xff] %v1500
    %1629 = vst [vmem:[#allocation2 + $0x3c0] sm:$0xff] %v1501
    %1630 = vst [vmem:[#allocation2 + $0x3c8] sm:$0xff] %v1502
    %1631 = vst [vmem:[#allocation2 + $0x3d0] sm:$0xff] %v1503
    %1632 = vst [vmem:[#allocation2 + $0x3d8] sm:$0xff] %v1504
    %1633 = vst [vmem:[#allocation2 + $0x3e0] sm:$0xff] %v1505
    %1634 = vst [vmem:[#allocation2 + $0x3e8] sm:$0xff] %v1506
    %1635 = vst [vmem:[#allocation2 + $0x3f0] sm:$0xff] %v1507
    %1636 = vst [vmem:[#allocation2 + $0x3f8] sm:$0xff] %v1508
    %v1637 = vld [vmem:[%s3] sm:$0xff]
    %v1638 = vld [vmem:[%s3 + $0x8] sm:$0xff]
    %v1639 = vld [vmem:[%s3 + $0x10] sm:$0xff]
    %v1640 = vld [vmem:[%s3 + $0x18] sm:$0xff]
    %v1641 = vld [vmem:[%s3 + $0x20] sm:$0xff]
    %v1642 = vld [vmem:[%s3 + $0x28] sm:$0xff]
    %v1643 = vld [vmem:[%s3 + $0x30] sm:$0xff]
    %v1644 = vld [vmem:[%s3 + $0x38] sm:$0xff]
    %v1645 = vld [vmem:[%s3 + $0x40] sm:$0xff]
    %v1646 = vld [vmem:[%s3 + $0x48] sm:$0xff]
    %v1647 = vld [vmem:[%s3 + $0x50] sm:$0xff]
    %v1648 = vld [vmem:[%s3 + $0x58] sm:$0xff]
    %v1649 = vld [vmem:[%s3 + $0x60] sm:$0xff]
    %v1650 = vld [vmem:[%s3 + $0x68] sm:$0xff]
    %v1651 = vld [vmem:[%s3 + $0x70] sm:$0xff]
    %v1652 = vld [vmem:[%s3 + $0x78] sm:$0xff]
    %v1653 = vld [vmem:[%s3 + $0x80] sm:$0xff]
    %v1654 = vld [vmem:[%s3 + $0x88] sm:$0xff]
    %v1655 = vld [vmem:[%s3 + $0x90] sm:$0xff]
    %v1656 = vld [vmem:[%s3 + $0x98] sm:$0xff]
    %v1657 = vld [vmem:[%s3 + $0xa0] sm:$0xff]
    %v1658 = vld [vmem:[%s3 + $0xa8] sm:$0xff]
    %v1659 = vld [vmem:[%s3 + $0xb0] sm:$0xff]
    %v1660 = vld [vmem:[%s3 + $0xb8] sm:$0xff]
    %v1661 = vld [vmem:[%s3 + $0xc0] sm:$0xff]
    %v1662 = vld [vmem:[%s3 + $0xc8] sm:$0xff]
    %v1663 = vld [vmem:[%s3 + $0xd0] sm:$0xff]
    %v1664 = vld [vmem:[%s3 + $0xd8] sm:$0xff]
    %v1665 = vld [vmem:[%s3 + $0xe0] sm:$0xff]
    %v1666 = vld [vmem:[%s3 + $0xe8] sm:$0xff]
    %v1667 = vld [vmem:[%s3 + $0xf0] sm:$0xff]
    %v1668 = vld [vmem:[%s3 + $0xf8] sm:$0xff]
    %v1669 = vld [vmem:[#allocation6] sm:$0xff]
    %v1670 = vld [vmem:[#allocation6 + $0x8] sm:$0xff]
    %v1671 = vld [vmem:[#allocation6 + $0x10] sm:$0xff]
    %v1672 = vld [vmem:[#allocation6 + $0x18] sm:$0xff]
    %v1673 = vld [vmem:[#allocation6 + $0x20] sm:$0xff]
    %v1674 = vld [vmem:[#allocation6 + $0x28] sm:$0xff]
    %v1675 = vld [vmem:[#allocation6 + $0x30] sm:$0xff]
    %v1676 = vld [vmem:[#allocation6 + $0x38] sm:$0xff]
    %v1677 = vld [vmem:[#allocation6 + $0x40] sm:$0xff]
    %v1678 = vld [vmem:[#allocation6 + $0x48] sm:$0xff]
    %v1679 = vld [vmem:[#allocation6 + $0x50] sm:$0xff]
    %v1680 = vld [vmem:[#allocation6 + $0x58] sm:$0xff]
    %v1681 = vld [vmem:[#allocation6 + $0x60] sm:$0xff]
    %v1682 = vld [vmem:[#allocation6 + $0x68] sm:$0xff]
    %v1683 = vld [vmem:[#allocation6 + $0x70] sm:$0xff]
    %v1684 = vld [vmem:[#allocation6 + $0x78] sm:$0xff]
    %v1685 = vld [vmem:[#allocation6 + $0x80] sm:$0xff]
    %v1686 = vld [vmem:[#allocation6 + $0x88] sm:$0xff]
    %v1687 = vld [vmem:[#allocation6 + $0x90] sm:$0xff]
    %v1688 = vld [vmem:[#allocation6 + $0x98] sm:$0xff]
    %v1689 = vld [vmem:[#allocation6 + $0xa0] sm:$0xff]
    %v1690 = vld [vmem:[#allocation6 + $0xa8] sm:$0xff]
    %v1691 = vld [vmem:[#allocation6 + $0xb0] sm:$0xff]
    %v1692 = vld [vmem:[#allocation6 + $0xb8] sm:$0xff]
    %v1693 = vld [vmem:[#allocation6 + $0xc0] sm:$0xff]
    %v1694 = vld [vmem:[#allocation6 + $0xc8] sm:$0xff]
    %v1695 = vld [vmem:[#allocation6 + $0xd0] sm:$0xff]
    %v1696 = vld [vmem:[#allocation6 + $0xd8] sm:$0xff]
    %v1697 = vld [vmem:[#allocation6 + $0xe0] sm:$0xff]
    %v1698 = vld [vmem:[#allocation6 + $0xe8] sm:$0xff]
    %v1699 = vld [vmem:[#allocation6 + $0xf0] sm:$0xff]
    %v1700 = vld [vmem:[#allocation6 + $0xf8] sm:$0xff]
    %v1701 = vld [vmem:[#allocation2] sm:$0xff]
    %v1702 = vld [vmem:[#allocation2 + $0x8] sm:$0xff]
    %v1703 = vld [vmem:[#allocation2 + $0x10] sm:$0xff]
    %v1704 = vld [vmem:[#allocation2 + $0x18] sm:$0xff]
    %v1705 = vunpack.c.l.bf16 %v1701
    %v1706 = vunpack.c.l.bf16 %v1702
    %v1707 = vunpack.c.l.bf16 %v1703
    %v1708 = vunpack.c.l.bf16 %v1704
    %v1709 = vunpack.c.h.bf16 %v1701
    %v1710 = vunpack.c.h.bf16 %v1702
    %v1711 = vunpack.c.h.bf16 %v1703
    %v1712 = vunpack.c.h.bf16 %v1704
    %v1745 = vunpack.c.l.b16 %v1637
    %v1746 = vunpack.c.h.b16 %v1637
    %v1747 = vunpack.c.l.b16 %v1638
    %v1748 = vunpack.c.h.b16 %v1638
    %v1749 = vunpack.c.l.b16 %v1639
    %v1750 = vunpack.c.h.b16 %v1639
    %v1751 = vunpack.c.l.b16 %v1640
    %v1752 = vunpack.c.h.b16 %v1640
    %v1753 = vunpack.c.l.b16 %v1641
    %v1754 = vunpack.c.h.b16 %v1641
    %v1755 = vunpack.c.l.b16 %v1642
    %v1756 = vunpack.c.h.b16 %v1642
    %v1757 = vunpack.c.l.b16 %v1643
    %v1758 = vunpack.c.h.b16 %v1643
    %v1759 = vunpack.c.l.b16 %v1644
    %v1760 = vunpack.c.h.b16 %v1644
    %v1761 = vunpack.c.l.b16 %v1645
    %v1762 = vunpack.c.h.b16 %v1645
    %v1763 = vunpack.c.l.b16 %v1646
    %v1764 = vunpack.c.h.b16 %v1646
    %v1765 = vunpack.c.l.b16 %v1647
    %v1766 = vunpack.c.h.b16 %v1647
    %v1767 = vunpack.c.l.b16 %v1648
    %v1768 = vunpack.c.h.b16 %v1648
    %v1769 = vunpack.c.l.b16 %v1649
    %v1770 = vunpack.c.h.b16 %v1649
    %v1771 = vunpack.c.l.b16 %v1650
    %v1772 = vunpack.c.h.b16 %v1650
    %v1773 = vunpack.c.l.b16 %v1651
    %v1774 = vunpack.c.h.b16 %v1651
    %v1775 = vunpack.c.l.b16 %v1652
    %v1776 = vunpack.c.h.b16 %v1652
    %v1777 = vunpack.c.l.b16 %v1653
    %v1778 = vunpack.c.h.b16 %v1653
    %v1779 = vunpack.c.l.b16 %v1654
    %v1780 = vunpack.c.h.b16 %v1654
    %v1781 = vunpack.c.l.b16 %v1655
    %v1782 = vunpack.c.h.b16 %v1655
    %v1783 = vunpack.c.l.b16 %v1656
    %v1784 = vunpack.c.h.b16 %v1656
    %v1785 = vunpack.c.l.b16 %v1657
    %v1786 = vunpack.c.h.b16 %v1657
    %v1787 = vunpack.c.l.b16 %v1658
    %v1788 = vunpack.c.h.b16 %v1658
    %v1789 = vunpack.c.l.b16 %v1659
    %v1790 = vunpack.c.h.b16 %v1659
    %v1791 = vunpack.c.l.b16 %v1660
    %v1792 = vunpack.c.h.b16 %v1660
    %v1793 = vunpack.c.l.b16 %v1661
    %v1794 = vunpack.c.h.b16 %v1661
    %v1795 = vunpack.c.l.b16 %v1662
    %v1796 = vunpack.c.h.b16 %v1662
    %v1797 = vunpack.c.l.b16 %v1663
    %v1798 = vunpack.c.h.b16 %v1663
    %v1799 = vunpack.c.l.b16 %v1664
    %v1800 = vunpack.c.h.b16 %v1664
    %v1801 = vunpack.c.l.b16 %v1665
    %v1802 = vunpack.c.h.b16 %v1665
    %v1803 = vunpack.c.l.b16 %v1666
    %v1804 = vunpack.c.h.b16 %v1666
    %v1805 = vunpack.c.l.b16 %v1667
    %v1806 = vunpack.c.h.b16 %v1667
    %v1807 = vunpack.c.l.b16 %v1668
    %v1808 = vunpack.c.h.b16 %v1668
    %v1809 = vpack.c.b16 %v1749, %v1745
    %v1810 = vpack.c.b16 %v1750, %v1746
    %v1811 = vpack.c.b16 %v1751, %v1747
    %v1812 = vpack.c.b16 %v1752, %v1748
    %v1813 = vpack.c.b16 %v1757, %v1753
    %v1814 = vpack.c.b16 %v1758, %v1754
    %v1815 = vpack.c.b16 %v1759, %v1755
    %v1816 = vpack.c.b16 %v1760, %v1756
    %v1817 = vpack.c.b16 %v1765, %v1761
    %v1818 = vpack.c.b16 %v1766, %v1762
    %v1819 = vpack.c.b16 %v1767, %v1763
    %v1820 = vpack.c.b16 %v1768, %v1764
    %v1821 = vpack.c.b16 %v1773, %v1769
    %v1822 = vpack.c.b16 %v1774, %v1770
    %v1823 = vpack.c.b16 %v1775, %v1771
    %v1824 = vpack.c.b16 %v1776, %v1772
    %v1825 = vpack.c.b16 %v1781, %v1777
    %v1826 = vpack.c.b16 %v1782, %v1778
    %v1827 = vpack.c.b16 %v1783, %v1779
    %v1828 = vpack.c.b16 %v1784, %v1780
    %v1829 = vpack.c.b16 %v1789, %v1785
    %v1830 = vpack.c.b16 %v1790, %v1786
    %v1831 = vpack.c.b16 %v1791, %v1787
    %v1832 = vpack.c.b16 %v1792, %v1788
    %v1833 = vpack.c.b16 %v1797, %v1793
    %v1834 = vpack.c.b16 %v1798, %v1794
    %v1835 = vpack.c.b16 %v1799, %v1795
    %v1836 = vpack.c.b16 %v1800, %v1796
    %v1837 = vpack.c.b16 %v1805, %v1801
    %v1838 = vpack.c.b16 %v1806, %v1802
    %v1839 = vpack.c.b16 %v1807, %v1803
    %v1840 = vpack.c.b16 %v1808, %v1804
    %1873 = vmatprep.subr.bf16.mxu0 %v1810
    %1874 = vmatpush1.bf16.msra.mxu0 %v1809
    %1875 = vmatprep.subr.bf16.mxu0 %v1814
    %1876 = vmatpush1.bf16.msra.mxu0 %v1813
    %1877 = vmatprep.subr.bf16.mxu0 %v1818
    %1878 = vmatpush1.bf16.msra.mxu0 %v1817
    %1879 = vmatprep.subr.bf16.mxu0 %v1822
    %1880 = vmatpush1.bf16.msra.mxu0 %v1821
    %1881 = vmatprep.subr.bf16.mxu0 %v1826
    %1882 = vmatpush1.bf16.msra.mxu0 %v1825
    %1883 = vmatprep.subr.bf16.mxu0 %v1830
    %1884 = vmatpush1.bf16.msra.mxu0 %v1829
    %1885 = vmatprep.subr.bf16.mxu0 %v1834
    %1886 = vmatpush1.bf16.msra.mxu0 %v1833
    %1887 = vmatprep.subr.bf16.mxu0 %v1838
    %1888 = vmatpush1.bf16.msra.mxu0 %v1837
    %1889 = vmatprep.subr.bf16.mxu0 0
    %1890 = vmatpush1.bf16.msra.mxu0 0
    %1891 = vmatprep.subr.bf16.mxu0 0
    %1892 = vmatpush1.bf16.msra.mxu0 0
    %1893 = vmatprep.subr.bf16.mxu0 0
    %1894 = vmatpush1.bf16.msra.mxu0 0
    %1895 = vmatprep.subr.bf16.mxu0 0
    %1896 = vmatpush1.bf16.msra.mxu0 0
    %1897 = vmatprep.subr.bf16.mxu0 0
    %1898 = vmatpush1.bf16.msra.mxu0 0
    %1899 = vmatprep.subr.bf16.mxu0 0
    %1900 = vmatpush1.bf16.msra.mxu0 0
    %1901 = vmatprep.subr.bf16.mxu0 0
    %1902 = vmatpush1.bf16.msra.mxu0 0
    %1903 = vmatprep.subr.bf16.mxu0 0
    %1904 = vmatpush1.bf16.msra.mxu0 0
    %1905 = vmatprep.mubr.bf16.mxu0 0
    %1906 = vmatmul.mubr.bf16.gmra.mrb[0].mxu0 0
    %v1907 = vpop.f32.mrb[0].mxu0
    %v1908 = vadd.f32 0.0, %v1907
    %v1909 = vpop.f32.mrb[0].mxu0
    %v1910 = vadd.f32 0.0, %v1909
    %v1911 = vpop.f32.mrb[0].mxu0
    %v1912 = vadd.f32 0.0, %v1911
    %v1913 = vpop.f32.mrb[0].mxu0
    %v1914 = vadd.f32 0.0, %v1913
    %1915 = vdwg.mxu0
    %1916 = vmatprep.subr.bf16.mxu0 %v1812
    %1917 = vmatpush1.bf16.msra.mxu0 %v1811
    %1918 = vmatprep.subr.bf16.mxu0 %v1816
    %1919 = vmatpush1.bf16.msra.mxu0 %v1815
    %1920 = vmatprep.subr.bf16.mxu0 %v1820
    %1921 = vmatpush1.bf16.msra.mxu0 %v1819
    %1922 = vmatprep.subr.bf16.mxu0 %v1824
    %1923 = vmatpush1.bf16.msra.mxu0 %v1823
    %1924 = vmatprep.subr.bf16.mxu0 %v1828
    %1925 = vmatpush1.bf16.msra.mxu0 %v1827
    %1926 = vmatprep.subr.bf16.mxu0 %v1832
    %1927 = vmatpush1.bf16.msra.mxu0 %v1831
    %1928 = vmatprep.subr.bf16.mxu0 %v1836
    %1929 = vmatpush1.bf16.msra.mxu0 %v1835
    %1930 = vmatprep.subr.bf16.mxu0 %v1840
    %1931 = vmatpush1.bf16.msra.mxu0 %v1839
    %1932 = vmatprep.subr.bf16.mxu0 0
    %1933 = vmatpush1.bf16.msra.mxu0 0
    %1934 = vmatprep.subr.bf16.mxu0 0
    %1935 = vmatpush1.bf16.msra.mxu0 0
    %1936 = vmatprep.subr.bf16.mxu0 0
    %1937 = vmatpush1.bf16.msra.mxu0 0
    %1938 = vmatprep.subr.bf16.mxu0 0
    %1939 = vmatpush1.bf16.msra.mxu0 0
    %1940 = vmatprep.subr.bf16.mxu0 0
    %1941 = vmatpush1.bf16.msra.mxu0 0
    %1942 = vmatprep.subr.bf16.mxu0 0
    %1943 = vmatpush1.bf16.msra.mxu0 0
    %1944 = vmatprep.subr.bf16.mxu0 0
    %1945 = vmatpush1.bf16.msra.mxu0 0
    %1946 = vmatprep.subr.bf16.mxu0 0
    %1947 = vmatpush1.bf16.msra.mxu0 0
    %1948 = vmatprep.mubr.bf16.mxu0 0
    %1949 = vmatmul.mubr.bf16.gmra.mrb[0].mxu0 0
    %v1950 = vpop.f32.mrb[0].mxu0
    %v1951 = vadd.f32 0.0, %v1950
    %v1952 = vpop.f32.mrb[0].mxu0
    %v1953 = vadd.f32 0.0, %v1952
    %v1954 = vpop.f32.mrb[0].mxu0
    %v1955 = vadd.f32 0.0, %v1954
    %v1956 = vpop.f32.mrb[0].mxu0
    %v1957 = vadd.f32 0.0, %v1956
    %1958 = vdwg.mxu0
    %v1959 = vadd.f32 %v1705, %v1908
    %v1960 = vadd.f32 %v1706, %v1910
    %v1961 = vadd.f32 %v1707, %v1951
    %v1962 = vadd.f32 %v1708, %v1953
    %v1963 = vadd.f32 %v1709, %v1912
    %v1964 = vadd.f32 %v1710, %v1914
    %v1965 = vadd.f32 %v1711, %v1955
    %v1966 = vadd.f32 %v1712, %v1957
    %s1967 = scalar_lea.vmem [#allocation2], 960
    %v1968 = vld [vmem:[%s1967 + $0x20] sm:$0xff]
    %v1969 = vld [vmem:[%s1967 + $0x28] sm:$0xff]
    %v1970 = vld [vmem:[%s1967 + $0x30] sm:$0xff]
    %v1971 = vld [vmem:[%s1967 + $0x38] sm:$0xff]
    %v1972 = vunpack.c.l.bf16 %v1968
    %v1973 = vunpack.c.l.bf16 %v1969
    %v1974 = vunpack.c.l.bf16 %v1970
    %v1975 = vunpack.c.l.bf16 %v1971
    %v1976 = vunpack.c.h.bf16 %v1968
    %v1977 = vunpack.c.h.bf16 %v1969
    %v1978 = vunpack.c.h.bf16 %v1970
    %v1979 = vunpack.c.h.bf16 %v1971
    %v2012 = vunpack.c.l.b16 %v1669
    %v2013 = vunpack.c.h.b16 %v1669
    %v2014 = vunpack.c.l.b16 %v1670
    %v2015 = vunpack.c.h.b16 %v1670
    %v2016 = vunpack.c.l.b16 %v1671
    %v2017 = vunpack.c.h.b16 %v1671
    %v2018 = vunpack.c.l.b16 %v1672
    %v2019 = vunpack.c.h.b16 %v1672
    %v2020 = vunpack.c.l.b16 %v1673
    %v2021 = vunpack.c.h.b16 %v1673
    %v2022 = vunpack.c.l.b16 %v1674
    %v2023 = vunpack.c.h.b16 %v1674
    %v2024 = vunpack.c.l.b16 %v1675
    %v2025 = vunpack.c.h.b16 %v1675
    %v2026 = vunpack.c.l.b16 %v1676
    %v2027 = vunpack.c.h.b16 %v1676
    %v2028 = vunpack.c.l.b16 %v1677
    %v2029 = vunpack.c.h.b16 %v1677
    %v2030 = vunpack.c.l.b16 %v1678
    %v2031 = vunpack.c.h.b16 %v1678
    %v2032 = vunpack.c.l.b16 %v1679
    %v2033 = vunpack.c.h.b16 %v1679
    %v2034 = vunpack.c.l.b16 %v1680
    %v2035 = vunpack.c.h.b16 %v1680
    %v2036 = vunpack.c.l.b16 %v1681
    %v2037 = vunpack.c.h.b16 %v1681
    %v2038 = vunpack.c.l.b16 %v1682
    %v2039 = vunpack.c.h.b16 %v1682
    %v2040 = vunpack.c.l.b16 %v1683
    %v2041 = vunpack.c.h.b16 %v1683
    %v2042 = vunpack.c.l.b16 %v1684
    %v2043 = vunpack.c.h.b16 %v1684
    %v2044 = vunpack.c.l.b16 %v1685
    %v2045 = vunpack.c.h.b16 %v1685
    %v2046 = vunpack.c.l.b16 %v1686
    %v2047 = vunpack.c.h.b16 %v1686
    %v2048 = vunpack.c.l.b16 %v1687
    %v2049 = vunpack.c.h.b16 %v1687
    %v2050 = vunpack.c.l.b16 %v1688
    %v2051 = vunpack.c.h.b16 %v1688
    %v2052 = vunpack.c.l.b16 %v1689
    %v2053 = vunpack.c.h.b16 %v1689
    %v2054 = vunpack.c.l.b16 %v1690
    %v2055 = vunpack.c.h.b16 %v1690
    %v2056 = vunpack.c.l.b16 %v1691
    %v2057 = vunpack.c.h.b16 %v1691
    %v2058 = vunpack.c.l.b16 %v1692
    %v2059 = vunpack.c.h.b16 %v1692
    %v2060 = vunpack.c.l.b16 %v1693
    %v2061 = vunpack.c.h.b16 %v1693
    %v2062 = vunpack.c.l.b16 %v1694
    %v2063 = vunpack.c.h.b16 %v1694
    %v2064 = vunpack.c.l.b16 %v1695
    %v2065 = vunpack.c.h.b16 %v1695
    %v2066 = vunpack.c.l.b16 %v1696
    %v2067 = vunpack.c.h.b16 %v1696
    %v2068 = vunpack.c.l.b16 %v1697
    %v2069 = vunpack.c.h.b16 %v1697
    %v2070 = vunpack.c.l.b16 %v1698
    %v2071 = vunpack.c.h.b16 %v1698
    %v2072 = vunpack.c.l.b16 %v1699
    %v2073 = vunpack.c.h.b16 %v1699
    %v2074 = vunpack.c.l.b16 %v1700
    %v2075 = vunpack.c.h.b16 %v1700
    %v2076 = vpack.c.b16 %v2016, %v2012
    %v2077 = vpack.c.b16 %v2017, %v2013
    %v2078 = vpack.c.b16 %v2018, %v2014
    %v2079 = vpack.c.b16 %v2019, %v2015
    %v2080 = vpack.c.b16 %v2024, %v2020
    %v2081 = vpack.c.b16 %v2025, %v2021
    %v2082 = vpack.c.b16 %v2026, %v2022
    %v2083 = vpack.c.b16 %v2027, %v2023
    %v2084 = vpack.c.b16 %v2032, %v2028
    %v2085 = vpack.c.b16 %v2033, %v2029
    %v2086 = vpack.c.b16 %v2034, %v2030
    %v2087 = vpack.c.b16 %v2035, %v2031
    %v2088 = vpack.c.b16 %v2040, %v2036
    %v2089 = vpack.c.b16 %v2041, %v2037
    %v2090 = vpack.c.b16 %v2042, %v2038
    %v2091 = vpack.c.b16 %v2043, %v2039
    %v2092 = vpack.c.b16 %v2048, %v2044
    %v2093 = vpack.c.b16 %v2049, %v2045
    %v2094 = vpack.c.b16 %v2050, %v2046
    %v2095 = vpack.c.b16 %v2051, %v2047
    %v2096 = vpack.c.b16 %v2056, %v2052
    %v2097 = vpack.c.b16 %v2057, %v2053
    %v2098 = vpack.c.b16 %v2058, %v2054
    %v2099 = vpack.c.b16 %v2059, %v2055
    %v2100 = vpack.c.b16 %v2064, %v2060
    %v2101 = vpack.c.b16 %v2065, %v2061
    %v2102 = vpack.c.b16 %v2066, %v2062
    %v2103 = vpack.c.b16 %v2067, %v2063
    %v2104 = vpack.c.b16 %v2072, %v2068
    %v2105 = vpack.c.b16 %v2073, %v2069
    %v2106 = vpack.c.b16 %v2074, %v2070
    %v2107 = vpack.c.b16 %v2075, %v2071
    %2140 = vmatprep.subr.bf16.mxu0 %v2077
    %2141 = vmatpush1.bf16.msra.mxu0 %v2076
    %2142 = vmatprep.subr.bf16.mxu0 %v2081
    %2143 = vmatpush1.bf16.msra.mxu0 %v2080
    %2144 = vmatprep.subr.bf16.mxu0 %v2085
    %2145 = vmatpush1.bf16.msra.mxu0 %v2084
    %2146 = vmatprep.subr.bf16.mxu0 %v2089
    %2147 = vmatpush1.bf16.msra.mxu0 %v2088
    %2148 = vmatprep.subr.bf16.mxu0 %v2093
    %2149 = vmatpush1.bf16.msra.mxu0 %v2092
    %2150 = vmatprep.subr.bf16.mxu0 %v2097
    %2151 = vmatpush1.bf16.msra.mxu0 %v2096
    %2152 = vmatprep.subr.bf16.mxu0 %v2101
    %2153 = vmatpush1.bf16.msra.mxu0 %v2100
    %2154 = vmatprep.subr.bf16.mxu0 %v2105
    %2155 = vmatpush1.bf16.msra.mxu0 %v2104
    %2156 = vmatprep.subr.bf16.mxu0 0
    %2157 = vmatpush1.bf16.msra.mxu0 0
    %2158 = vmatprep.subr.bf16.mxu0 0
    %2159 = vmatpush1.bf16.msra.mxu0 0
    %2160 = vmatprep.subr.bf16.mxu0 0
    %2161 = vmatpush1.bf16.msra.mxu0 0
    %2162 = vmatprep.subr.bf16.mxu0 0
    %2163 = vmatpush1.bf16.msra.mxu0 0
    %2164 = vmatprep.subr.bf16.mxu0 0
    %2165 = vmatpush1.bf16.msra.mxu0 0
    %2166 = vmatprep.subr.bf16.mxu0 0
    %2167 = vmatpush1.bf16.msra.mxu0 0
    %2168 = vmatprep.subr.bf16.mxu0 0
    %2169 = vmatpush1.bf16.msra.mxu0 0
    %2170 = vmatprep.subr.bf16.mxu0 0
    %2171 = vmatpush1.bf16.msra.mxu0 0
    %2172 = vmatprep.mubr.bf16.mxu0 0
    %2173 = vmatmul.mubr.bf16.gmra.mrb[0].mxu0 0
    %v2174 = vpop.f32.mrb[0].mxu0
    %v2175 = vadd.f32 0.0, %v2174
    %v2176 = vpop.f32.mrb[0].mxu0
    %v2177 = vadd.f32 0.0, %v2176
    %v2178 = vpop.f32.mrb[0].mxu0
    %v2179 = vadd.f32 0.0, %v2178
    %v2180 = vpop.f32.mrb[0].mxu0
    %v2181 = vadd.f32 0.0, %v2180
    %2182 = vdwg.mxu0
    %2183 = vmatprep.subr.bf16.mxu0 %v2079
    %2184 = vmatpush1.bf16.msra.mxu0 %v2078
    %2185 = vmatprep.subr.bf16.mxu0 %v2083
    %2186 = vmatpush1.bf16.msra.mxu0 %v2082
    %2187 = vmatprep.subr.bf16.mxu0 %v2087
    %2188 = vmatpush1.bf16.msra.mxu0 %v2086
    %2189 = vmatprep.subr.bf16.mxu0 %v2091
    %2190 = vmatpush1.bf16.msra.mxu0 %v2090
    %2191 = vmatprep.subr.bf16.mxu0 %v2095
    %2192 = vmatpush1.bf16.msra.mxu0 %v2094
    %2193 = vmatprep.subr.bf16.mxu0 %v2099
    %2194 = vmatpush1.bf16.msra.mxu0 %v2098
    %2195 = vmatprep.subr.bf16.mxu0 %v2103
    %2196 = vmatpush1.bf16.msra.mxu0 %v2102
    %2197 = vmatprep.subr.bf16.mxu0 %v2107
    %2198 = vmatpush1.bf16.msra.mxu0 %v2106
    %2199 = vmatprep.subr.bf16.mxu0 0
    %2200 = vmatpush1.bf16.msra.mxu0 0
    %2201 = vmatprep.subr.bf16.mxu0 0
    %2202 = vmatpush1.bf16.msra.mxu0 0
    %2203 = vmatprep.subr.bf16.mxu0 0
    %2204 = vmatpush1.bf16.msra.mxu0 0
    %2205 = vmatprep.subr.bf16.mxu0 0
    %2206 = vmatpush1.bf16.msra.mxu0 0
    %2207 = vmatprep.subr.bf16.mxu0 0
    %2208 = vmatpush1.bf16.msra.mxu0 0
    %2209 = vmatprep.subr.bf16.mxu0 0
    %2210 = vmatpush1.bf16.msra.mxu0 0
    %2211 = vmatprep.subr.bf16.mxu0 0
    %2212 = vmatpush1.bf16.msra.mxu0 0
    %2213 = vmatprep.subr.bf16.mxu0 0
    %2214 = vmatpush1.bf16.msra.mxu0 0
    %2215 = vmatprep.mubr.bf16.mxu0 0
    %2216 = vmatmul.mubr.bf16.gmra.mrb[0].mxu0 0
    %v2217 = vpop.f32.mrb[0].mxu0
    %v2218 = vadd.f32 0.0, %v2217
    %v2219 = vpop.f32.mrb[0].mxu0
    %v2220 = vadd.f32 0.0, %v2219
    %v2221 = vpop.f32.mrb[0].mxu0
    %v2222 = vadd.f32 0.0, %v2221
    %v2223 = vpop.f32.mrb[0].mxu0
    %v2224 = vadd.f32 0.0, %v2223
    %2225 = vdwg.mxu0
    %v2226 = vadd.f32 %v1972, %v2175
    %v2227 = vadd.f32 %v1973, %v2177
    %v2228 = vadd.f32 %v1974, %v2218
    %v2229 = vadd.f32 %v1975, %v2220
    %v2230 = vadd.f32 %v1976, %v2179
    %v2231 = vadd.f32 %v1977, %v2181
    %v2232 = vadd.f32 %v1978, %v2222
    %v2233 = vadd.f32 %v1979, %v2224
    %v2234 = vxor.u32 %v1959, 2147483648
    %v2235 = vxor.u32 %v1963, 2147483648
    %v2236 = vmul.f32 %v2234, 1.442695
    %v2237 = vpow.pop %v2236
    %v2238 = vmul.f32 %v2235, 1.442695
    %v2239 = vpow.pop %v2238
    %v2240 = vadd.f32 %v2237, 1.0
    %v2241 = vadd.f32 %v2239, 1.0
    %v2242 = vrcp.pop %v2240
    %v2243 = vmul.f32 1.0, %v2242
    %v2244 = vrcp.pop %v2241
    %v2245 = vmul.f32 1.0, %v2244
    %v2246 = vxor.u32 %v1960, 2147483648
    %v2247 = vxor.u32 %v1964, 2147483648
    %v2248 = vmul.f32 %v2246, 1.442695
    %v2249 = vpow.pop %v2248
    %v2250 = vmul.f32 %v2247, 1.442695
    %v2251 = vpow.pop %v2250
    %v2252 = vadd.f32 %v2249, 1.0
    %v2253 = vadd.f32 %v2251, 1.0
    %v2254 = vrcp.pop %v2252
    %v2255 = vmul.f32 1.0, %v2254
    %v2256 = vrcp.pop %v2253
    %v2257 = vmul.f32 1.0, %v2256
    %v2258 = vtanh.pop %v1961
    %v2259 = vtanh.pop %v1965
    %v2260 = vxor.u32 %v1962, 2147483648
    %v2261 = vxor.u32 %v1966, 2147483648
    %v2262 = vmul.f32 %v2260, 1.442695
    %v2263 = vpow.pop %v2262
    %v2264 = vmul.f32 %v2261, 1.442695
    %v2265 = vpow.pop %v2264
    %v2266 = vadd.f32 %v2263, 1.0
    %v2267 = vadd.f32 %v2265, 1.0
    %v2268 = vrcp.pop %v2266
    %v2269 = vmul.f32 1.0, %v2268
    %v2270 = vrcp.pop %v2267
    %v2271 = vmul.f32 1.0, %v2270
    %v2272 = vmul.f32 %v2255, 0.0
    %v2273 = vmul.f32 %v2257, 0.0
    %v2274 = vmul.f32 %v2243, %v2258
    %v2275 = vmul.f32 %v2245, %v2259
    %v2276 = vadd.f32 %v2272, %v2274
    %v2277 = vadd.f32 %v2273, %v2275
    %v2278 = vtanh.pop %v2276
    %v2279 = vtanh.pop %v2277
    %v2280 = vmul.f32 %v2269, %v2278
    %v2281 = vmul.f32 %v2271, %v2279
    %v2282 = vxor.u32 %v2226, 2147483648
    %v2283 = vxor.u32 %v2230, 2147483648
    %v2284 = vmul.f32 %v2282, 1.442695
    %v2285 = vpow.pop %v2284
    %v2286 = vmul.f32 %v2283, 1.442695
    %v2287 = vpow.pop %v2286
    %v2288 = vadd.f32 %v2285, 1.0
    %v2289 = vadd.f32 %v2287, 1.0
    %v2290 = vrcp.pop %v2288
    %v2291 = vmul.f32 1.0, %v2290
    %v2292 = vrcp.pop %v2289
    %v2293 = vmul.f32 1.0, %v2292
    %v2294 = vxor.u32 %v2227, 2147483648
    %v2295 = vxor.u32 %v2231, 2147483648
    %v2296 = vmul.f32 %v2294, 1.442695
    %v2297 = vpow.pop %v2296
    %v2298 = vmul.f32 %v2295, 1.442695
    %v2299 = vpow.pop %v2298
    %v2300 = vadd.f32 %v2297, 1.0
    %v2301 = vadd.f32 %v2299, 1.0
    %v2302 = vrcp.pop %v2300
    %v2303 = vmul.f32 1.0, %v2302
    %v2304 = vrcp.pop %v2301
    %v2305 = vmul.f32 1.0, %v2304
    %v2306 = vtanh.pop %v2228
    %v2307 = vtanh.pop %v2232
    %v2308 = vxor.u32 %v2229, 2147483648
    %v2309 = vxor.u32 %v2233, 2147483648
    %v2310 = vmul.f32 %v2308, 1.442695
    %v2311 = vpow.pop %v2310
    %v2312 = vmul.f32 %v2309, 1.442695
    %v2313 = vpow.pop %v2312
    %v2314 = vadd.f32 %v2311, 1.0
    %v2315 = vadd.f32 %v2313, 1.0
    %v2316 = vrcp.pop %v2314
    %v2317 = vmul.f32 1.0, %v2316
    %v2318 = vrcp.pop %v2315
    %v2319 = vmul.f32 1.0, %v2318
    %v2320 = vmul.f32 %v2303, 0.0
    %v2321 = vmul.f32 %v2305, 0.0
    %v2322 = vmul.f32 %v2291, %v2306
    %v2323 = vmul.f32 %v2293, %v2307
    %v2324 = vadd.f32 %v2320, %v2322
    %v2325 = vadd.f32 %v2321, %v2323
    %v2326 = vtanh.pop %v2324
    %v2327 = vtanh.pop %v2325
    %v2328 = vmul.f32 %v2317, %v2326
    %v2329 = vmul.f32 %v2319, %v2327
    %v2330 = vpack.c.bf16 %v2281, %v2280
    %v2331 = vpack.c.bf16 %v2329, %v2328
    %2332 = vst [vmem:[#allocation3] sm:$0xff] %v2330
    %s2333 = scalar_lea.vmem [#allocation3], 240
    %2334 = vst [vmem:[%s2333 + $0x8] sm:$0xff] %v2331
    %s2335 = scalar_lea.vmem [#allocation2], 64
    %v2336 = vld [vmem:[%s2335] sm:$0xff]
    %v2337 = vld [vmem:[%s2335 + $0x8] sm:$0xff]
    %v2338 = vld [vmem:[%s2335 + $0x10] sm:$0xff]
    %v2339 = vld [vmem:[%s2335 + $0x18] sm:$0xff]
    %v2340 = vunpack.c.l.bf16 %v2336
    %v2341 = vunpack.c.l.bf16 %v2337
    %v2342 = vunpack.c.l.bf16 %v2338
    %v2343 = vunpack.c.l.bf16 %v2339
    %v2344 = vunpack.c.h.bf16 %v2336
    %v2345 = vunpack.c.h.bf16 %v2337
    %v2346 = vunpack.c.h.bf16 %v2338
    %v2347 = vunpack.c.h.bf16 %v2339
    %2348 = vmatprep.subr.bf16.mxu0 %v1810
    %2349 = vmatpush1.bf16.msra.mxu0 %v1809
    %2350 = vmatprep.subr.bf16.mxu0 %v1814
    %2351 = vmatpush1.bf16.msra.mxu0 %v1813
    %2352 = vmatprep.subr.bf16.mxu0 %v1818
    %2353 = vmatpush1.bf16.msra.mxu0 %v1817
    %2354 = vmatprep.subr.bf16.mxu0 %v1822
    %2355 = vmatpush1.bf16.msra.mxu0 %v1821
    %2356 = vmatprep.subr.bf16.mxu0 %v1826
    %2357 = vmatpush1.bf16.msra.mxu0 %v1825
    %2358 = vmatprep.subr.bf16.mxu0 %v1830
    %2359 = vmatpush1.bf16.msra.mxu0 %v1829
    %2360 = vmatprep.subr.bf16.mxu0 %v1834
    %2361 = vmatpush1.bf16.msra.mxu0 %v1833
    %2362 = vmatprep.subr.bf16.mxu0 %v1838
    %2363 = vmatpush1.bf16.msra.mxu0 %v1837
    %2364 = vmatprep.subr.bf16.mxu0 0
    %2365 = vmatpush1.bf16.msra.mxu0 0
    %2366 = vmatprep.subr.bf16.mxu0 0
    %2367 = vmatpush1.bf16.msra.mxu0 0
    %2368 = vmatprep.subr.bf16.mxu0 0
    %2369 = vmatpush1.bf16.msra.mxu0 0
    %2370 = vmatprep.subr.bf16.mxu0 0
    %2371 = vmatpush1.bf16.msra.mxu0 0
    %2372 = vmatprep.subr.bf16.mxu0 0
    %2373 = vmatpush1.bf16.msra.mxu0 0
    %2374 = vmatprep.subr.bf16.mxu0 0
    %2375 = vmatpush1.bf16.msra.mxu0 0
    %2376 = vmatprep.subr.bf16.mxu0 0
    %2377 = vmatpush1.bf16.msra.mxu0 0
    %2378 = vmatprep.subr.bf16.mxu0 0
    %2379 = vmatpush1.bf16.msra.mxu0 0
    %2380 = vmatprep.mubr.bf16.mxu0 0
    %2381 = vmatmul.mubr.bf16.gmra.mrb[0].mxu0 %v2330
    %v2382 = vpop.f32.mrb[0].mxu0
    %v2383 = vadd.f32 0.0, %v2382
    %v2384 = vpop.f32.mrb[0].mxu0
    %v2385 = vadd.f32 0.0, %v2384
    %v2386 = vpop.f32.mrb[0].mxu0
    %v2387 = vadd.f32 0.0, %v2386
    %v2388 = vpop.f32.mrb[0].mxu0
    %v2389 = vadd.f32 0.0, %v2388
    %2390 = vdwg.mxu0
    %2391 = vmatprep.subr.bf16.mxu0 %v1812
    %2392 = vmatpush1.bf16.msra.mxu0 %v1811
    %2393 = vmatprep.subr.bf16.mxu0 %v1816
    %2394 = vmatpush1.bf16.msra.mxu0 %v1815
    %2395 = vmatprep.subr.bf16.mxu0 %v1820
    %2396 = vmatpush1.bf16.msra.mxu0 %v1819
    %2397 = vmatprep.subr.bf16.mxu0 %v1824
    %2398 = vmatpush1.bf16.msra.mxu0 %v1823
    %2399 = vmatprep.subr.bf16.mxu0 %v1828
    %2400 = vmatpush1.bf16.msra.mxu0 %v1827
    %2401 = vmatprep.subr.bf16.mxu0 %v1832
    %2402 = vmatpush1.bf16.msra.mxu0 %v1831
    %2403 = vmatprep.subr.bf16.mxu0 %v1836
    %2404 = vmatpush1.bf16.msra.mxu0 %v1835
    %2405 = vmatprep.subr.bf16.mxu0 %v1840
    %2406 = vmatpush1.bf16.msra.mxu0 %v1839
    %2407 = vmatprep.subr.bf16.mxu0 0
    %2408 = vmatpush1.bf16.msra.mxu0 0
    %2409 = vmatprep.subr.bf16.mxu0 0
    %2410 = vmatpush1.bf16.msra.mxu0 0
    %2411 = vmatprep.subr.bf16.mxu0 0
    %2412 = vmatpush1.bf16.msra.mxu0 0
    %2413 = vmatprep.subr.bf16.mxu0 0
    %2414 = vmatpush1.bf16.msra.mxu0 0
    %2415 = vmatprep.subr.bf16.mxu0 0
    %2416 = vmatpush1.bf16.msra.mxu0 0
    %2417 = vmatprep.subr.bf16.mxu0 0
    %2418 = vmatpush1.bf16.msra.mxu0 0
    %2419 = vmatprep.subr.bf16.mxu0 0
    %2420 = vmatpush1.bf16.msra.mxu0 0
    %2421 = vmatprep.subr.bf16.mxu0 0
    %2422 = vmatpush1.bf16.msra.mxu0 0
    %2423 = vmatprep.mubr.bf16.mxu0 0
    %2424 = vmatmul.mubr.bf16.gmra.mrb[0].mxu0 %v2330
    %v2425 = vpop.f32.mrb[0].mxu0
    %v2426 = vadd.f32 0.0, %v2425
    %v2427 = vpop.f32.mrb[0].mxu0
    %v2428 = vadd.f32 0.0, %v2427
    %v2429 = vpop.f32.mrb[0].mxu0
    %v2430 = vadd.f32 0.0, %v2429
    %v2431 = vpop.f32.mrb[0].mxu0
    %v2432 = vadd.f32 0.0, %v2431
    %2433 = vdwg.mxu0
    %v2434 = vadd.f32 %v2340, %v2383
    %v2435 = vadd.f32 %v2341, %v2385
    %v2436 = vadd.f32 %v2342, %v2426
    %v2437 = vadd.f32 %v2343, %v2428
    %v2438 = vadd.f32 %v2344, %v2387
    %v2439 = vadd.f32 %v2345, %v2389
    %v2440 = vadd.f32 %v2346, %v2430
    %v2441 = vadd.f32 %v2347, %v2432
    %s2442 = scalar_lea.vmem [#allocation2], 896
    %v2443 = vld [vmem:[%s2442 + $0x20] sm:$0xff]
    %v2444 = vld [vmem:[%s2442 + $0x28] sm:$0xff]
    %v2445 = vld [vmem:[%s2442 + $0x30] sm:$0xff]
    %v2446 = vld [vmem:[%s2442 + $0x38] sm:$0xff]
    %v2447 = vunpack.c.l.bf16 %v2443
    %v2448 = vunpack.c.l.bf16 %v2444
    %v2449 = vunpack.c.l.bf16 %v2445
    %v2450 = vunpack.c.l.bf16 %v2446
    %v2451 = vunpack.c.h.bf16 %v2443
    %v2452 = vunpack.c.h.bf16 %v2444
    %v2453 = vunpack.c.h.bf16 %v2445
    %v2454 = vunpack.c.h.bf16 %v2446
    %2455 = vmatprep.subr.bf16.mxu0 %v2077
    %2456 = vmatpush1.bf16.msra.mxu0 %v2076
    %2457 = vmatprep.subr.bf16.mxu0 %v2081
    %2458 = vmatpush1.bf16.msra.mxu0 %v2080
    %2459 = vmatprep.subr.bf16.mxu0 %v2085
    %2460 = vmatpush1.bf16.msra.mxu0 %v2084
    %2461 = vmatprep.subr.bf16.mxu0 %v2089
    %2462 = vmatpush1.bf16.msra.mxu0 %v2088
    %2463 = vmatprep.subr.bf16.mxu0 %v2093
    %2464 = vmatpush1.bf16.msra.mxu0 %v2092
    %2465 = vmatprep.subr.bf16.mxu0 %v2097
    %2466 = vmatpush1.bf16.msra.mxu0 %v2096
    %2467 = vmatprep.subr.bf16.mxu0 %v2101
    %2468 = vmatpush1.bf16.msra.mxu0 %v2100
    %2469 = vmatprep.subr.bf16.mxu0 %v2105
    %2470 = vmatpush1.bf16.msra.mxu0 %v2104
    %2471 = vmatprep.subr.bf16.mxu0 0
    %2472 = vmatpush1.bf16.msra.mxu0 0
    %2473 = vmatprep.subr.bf16.mxu0 0
    %2474 = vmatpush1.bf16.msra.mxu0 0
    %2475 = vmatprep.subr.bf16.mxu0 0
    %2476 = vmatpush1.bf16.msra.mxu0 0
    %2477 = vmatprep.subr.bf16.mxu0 0
    %2478 = vmatpush1.bf16.msra.mxu0 0
    %2479 = vmatprep.subr.bf16.mxu0 0
    %2480 = vmatpush1.bf16.msra.mxu0 0
    %2481 = vmatprep.subr.bf16.mxu0 0
    %2482 = vmatpush1.bf16.msra.mxu0 0
    %2483 = vmatprep.subr.bf16.mxu0 0
    %2484 = vmatpush1.bf16.msra.mxu0 0
    %2485 = vmatprep.subr.bf16.mxu0 0
    %2486 = vmatpush1.bf16.msra.mxu0 0
    %2487 = vmatprep.mubr.bf16.mxu0 0
    %2488 = vmatmul.mubr.bf16.gmra.mrb[0].mxu0 %v2331
    %v2489 = vpop.f32.mrb[0].mxu0
    %v2490 = vadd.f32 0.0, %v2489
    %v2491 = vpop.f32.mrb[0].mxu0
    %v2492 = vadd.f32 0.0, %v2491
    %v2493 = vpop.f32.mrb[0].mxu0
    %v2494 = vadd.f32 0.0, %v2493
    %v2495 = vpop.f32.mrb[0].mxu0
    %v2496 = vadd.f32 0.0, %v2495
    %2497 = vdwg.mxu0
    %2498 = vmatprep.subr.bf16.mxu0 %v2079
    %2499 = vmatpush1.bf16.msra.mxu0 %v2078
    %2500 = vmatprep.subr.bf16.mxu0 %v2083
    %2501 = vmatpush1.bf16.msra.mxu0 %v2082
    %2502 = vmatprep.subr.bf16.mxu0 %v2087
    %2503 = vmatpush1.bf16.msra.mxu0 %v2086
    %2504 = vmatprep.subr.bf16.mxu0 %v2091
    %2505 = vmatpush1.bf16.msra.mxu0 %v2090
    %2506 = vmatprep.subr.bf16.mxu0 %v2095
    %2507 = vmatpush1.bf16.msra.mxu0 %v2094
    %2508 = vmatprep.subr.bf16.mxu0 %v2099
    %2509 = vmatpush1.bf16.msra.mxu0 %v2098
    %2510 = vmatprep.subr.bf16.mxu0 %v2103
    %2511 = vmatpush1.bf16.msra.mxu0 %v2102
    %2512 = vmatprep.subr.bf16.mxu0 %v2107
    %2513 = vmatpush1.bf16.msra.mxu0 %v2106
    %2514 = vmatprep.subr.bf16.mxu0 0
    %2515 = vmatpush1.bf16.msra.mxu0 0
    %2516 = vmatprep.subr.bf16.mxu0 0
    %2517 = vmatpush1.bf16.msra.mxu0 0
    %2518 = vmatprep.subr.bf16.mxu0 0
    %2519 = vmatpush1.bf16.msra.mxu0 0
    %2520 = vmatprep.subr.bf16.mxu0 0
    %2521 = vmatpush1.bf16.msra.mxu0 0
    %2522 = vmatprep.subr.bf16.mxu0 0
    %2523 = vmatpush1.bf16.msra.mxu0 0
    %2524 = vmatprep.subr.bf16.mxu0 0
    %2525 = vmatpush1.bf16.msra.mxu0 0
    %2526 = vmatprep.subr.bf16.mxu0 0
    %2527 = vmatpush1.bf16.msra.mxu0 0
    %2528 = vmatprep.subr.bf16.mxu0 0
    %2529 = vmatpush1.bf16.msra.mxu0 0
    %2530 = vmatprep.mubr.bf16.mxu0 0
    %2531 = vmatmul.mubr.bf16.gmra.mrb[0].mxu0 %v2331
    %v2532 = vpop.f32.mrb[0].mxu0
    %v2533 = vadd.f32 0.0, %v2532
    %v2534 = vpop.f32.mrb[0].mxu0
    %v2535 = vadd.f32 0.0, %v2534
    %v2536 = vpop.f32.mrb[0].mxu0
    %v2537 = vadd.f32 0.0, %v2536
    %v2538 = vpop.f32.mrb[0].mxu0
    %v2539 = vadd.f32 0.0, %v2538
    %2540 = vdwg.mxu0
    %v2541 = vadd.f32 %v2447, %v2490
    %v2542 = vadd.f32 %v2448, %v2492
    %v2543 = vadd.f32 %v2449, %v2533
    %v2544 = vadd.f32 %v2450, %v2535
    %v2545 = vadd.f32 %v2451, %v2494
    %v2546 = vadd.f32 %v2452, %v2496
    %v2547 = vadd.f32 %v2453, %v2537
    %v2548 = vadd.f32 %v2454, %v2539
    %v2549 = vxor.u32 %v2434, 2147483648
    %v2550 = vxor.u32 %v2438, 2147483648
    %v2551 = vmul.f32 %v2549, 1.442695
    %v2552 = vpow.pop %v2551
    %v2553 = vmul.f32 %v2550, 1.442695
    %v2554 = vpow.pop %v2553
    %v2555 = vadd.f32 %v2552, 1.0
    %v2556 = vadd.f32 %v2554, 1.0
    %v2557 = vrcp.pop %v2555
    %v2558 = vmul.f32 1.0, %v2557
    %v2559 = vrcp.pop %v2556
    %v2560 = vmul.f32 1.0, %v2559
    %v2561 = vxor.u32 %v2435, 2147483648
    %v2562 = vxor.u32 %v2439, 2147483648
    %v2563 = vmul.f32 %v2561, 1.442695
    %v2564 = vpow.pop %v2563
    %v2565 = vmul.f32 %v2562, 1.442695
    %v2566 = vpow.pop %v2565
    %v2567 = vadd.f32 %v2564, 1.0
    %v2568 = vadd.f32 %v2566, 1.0
    %v2569 = vrcp.pop %v2567
    %v2570 = vmul.f32 1.0, %v2569
    %v2571 = vrcp.pop %v2568
    %v2572 = vmul.f32 1.0, %v2571
    %v2573 = vtanh.pop %v2436
    %v2574 = vtanh.pop %v2440
    %v2575 = vxor.u32 %v2437, 2147483648
    %v2576 = vxor.u32 %v2441, 2147483648
    %v2577 = vmul.f32 %v2575, 1.442695
    %v2578 = vpow.pop %v2577
    %v2579 = vmul.f32 %v2576, 1.442695
    %v2580 = vpow.pop %v2579
    %v2581 = vadd.f32 %v2578, 1.0
    %v2582 = vadd.f32 %v2580, 1.0
    %v2583 = vrcp.pop %v2581
    %v2584 = vmul.f32 1.0, %v2583
    %v2585 = vrcp.pop %v2582
    %v2586 = vmul.f32 1.0, %v2585
    %v2587 = vmul.f32 %v2570, %v2276
    %v2588 = vmul.f32 %v2572, %v2277
    %v2589 = vmul.f32 %v2558, %v2573
    %v2590 = vmul.f32 %v2560, %v2574
    %v2591 = vadd.f32 %v2587, %v2589
    %v2592 = vadd.f32 %v2588, %v2590
    %v2593 = vtanh.pop %v2591
    %v2594 = vtanh.pop %v2592
    %v2595 = vmul.f32 %v2584, %v2593
    %v2596 = vmul.f32 %v2586, %v2594
    %v2597 = vxor.u32 %v2541, 2147483648
    %v2598 = vxor.u32 %v2545, 2147483648
    %v2599 = vmul.f32 %v2597, 1.442695
    %v2600 = vpow.pop %v2599
    %v2601 = vmul.f32 %v2598, 1.442695
    %v2602 = vpow.pop %v2601
    %v2603 = vadd.f32 %v2600, 1.0
    %v2604 = vadd.f32 %v2602, 1.0
    %v2605 = vrcp.pop %v2603
    %v2606 = vmul.f32 1.0, %v2605
    %v2607 = vrcp.pop %v2604
    %v2608 = vmul.f32 1.0, %v2607
    %v2609 = vxor.u32 %v2542, 2147483648
    %v2610 = vxor.u32 %v2546, 2147483648
    %v2611 = vmul.f32 %v2609, 1.442695
    %v2612 = vpow.pop %v2611
    %v2613 = vmul.f32 %v2610, 1.442695
    %v2614 = vpow.pop %v2613
    %v2615 = vadd.f32 %v2612, 1.0
    %v2616 = vadd.f32 %v2614, 1.0
    %v2617 = vrcp.pop %v2615
    %v2618 = vmul.f32 1.0, %v2617
    %v2619 = vrcp.pop %v2616
    %v2620 = vmul.f32 1.0, %v2619
    %v2621 = vtanh.pop %v2543
    %v2622 = vtanh.pop %v2547
    %v2623 = vxor.u32 %v2544, 2147483648
    %v2624 = vxor.u32 %v2548, 2147483648
    %v2625 = vmul.f32 %v2623, 1.442695
    %v2626 = vpow.pop %v2625
    %v2627 = vmul.f32 %v2624, 1.442695
    %v2628 = vpow.pop %v2627
    %v2629 = vadd.f32 %v2626, 1.0
    %v2630 = vadd.f32 %v2628, 1.0
    %v2631 = vrcp.pop %v2629
    %v2632 = vmul.f32 1.0, %v2631
    %v2633 = vrcp.pop %v2630
    %v2634 = vmul.f32 1.0, %v2633
    %v2635 = vmul.f32 %v2618, %v2324
    %v2636 = vmul.f32 %v2620, %v2325
    %v2637 = vmul.f32 %v2606, %v2621
    %v2638 = vmul.f32 %v2608, %v2622
    %v2639 = vadd.f32 %v2635, %v2637
    %v2640 = vadd.f32 %v2636, %v2638
    %v2641 = vtanh.pop %v2639
    %v2642 = vtanh.pop %v2640
    %v2643 = vmul.f32 %v2632, %v2641
    %v2644 = vmul.f32 %v2634, %v2642
    %v2645 = vpack.c.bf16 %v2596, %v2595
    %v2646 = vpack.c.bf16 %v2644, %v2643
    %s2647 = scalar_lea.vmem [#allocation3], 16
    %2648 = vst [vmem:[%s2647] sm:$0xff] %v2645
    %s2649 = scalar_lea.vmem [#allocation3], 224
    %2650 = vst [vmem:[%s2649 + $0x8] sm:$0xff] %v2646
    %s2651 = scalar_lea.vmem [#allocation2], 128
    %v2652 = vld [vmem:[%s2651] sm:$0xff]
    %v2653 = vld [vmem:[%s2651 + $0x8] sm:$0xff]
    %v2654 = vld [vmem:[%s2651 + $0x10] sm:$0xff]
    %v2655 = vld [vmem:[%s2651 + $0x18] sm:$0xff]
    %v2656 = vunpack.c.l.bf16 %v2652
    %v2657 = vunpack.c.l.bf16 %v2653
    %v2658 = vunpack.c.l.bf16 %v2654
    %v2659 = vunpack.c.l.bf16 %v2655
    %v2660 = vunpack.c.h.bf16 %v2652
    %v2661 = vunpack.c.h.bf16 %v2653
    %v2662 = vunpack.c.h.bf16 %v2654
    %v2663 = vunpack.c.h.bf16 %v2655
    %2664 = vmatprep.subr.bf16.mxu0 %v1810
    %2665 = vmatpush1.bf16.msra.mxu0 %v1809
    %2666 = vmatprep.subr.bf16.mxu0 %v1814
    %2667 = vmatpush1.bf16.msra.mxu0 %v1813
    %2668 = vmatprep.subr.bf16.mxu0 %v1818
    %2669 = vmatpush1.bf16.msra.mxu0 %v1817
    %2670 = vmatprep.subr.bf16.mxu0 %v1822
    %2671 = vmatpush1.bf16.msra.mxu0 %v1821
    %2672 = vmatprep.subr.bf16.mxu0 %v1826
    %2673 = vmatpush1.bf16.msra.mxu0 %v1825
    %2674 = vmatprep.subr.bf16.mxu0 %v1830
    %2675 = vmatpush1.bf16.msra.mxu0 %v1829
    %2676 = vmatprep.subr.bf16.mxu0 %v1834
    %2677 = vmatpush1.bf16.msra.mxu0 %v1833
    %2678 = vmatprep.subr.bf16.mxu0 %v1838
    %2679 = vmatpush1.bf16.msra.mxu0 %v1837
    %2680 = vmatprep.subr.bf16.mxu0 0
    %2681 = vmatpush1.bf16.msra.mxu0 0
    %2682 = vmatprep.subr.bf16.mxu0 0
    %2683 = vmatpush1.bf16.msra.mxu0 0
    %2684 = vmatprep.subr.bf16.mxu0 0
    %2685 = vmatpush1.bf16.msra.mxu0 0
    %2686 = vmatprep.subr.bf16.mxu0 0
    %2687 = vmatpush1.bf16.msra.mxu0 0
    %2688 = vmatprep.subr.bf16.mxu0 0
    %2689 = vmatpush1.bf16.msra.mxu0 0
    %2690 = vmatprep.subr.bf16.mxu0 0
    %2691 = vmatpush1.bf16.msra.mxu0 0
    %2692 = vmatprep.subr.bf16.mxu0 0
    %2693 = vmatpush1.bf16.msra.mxu0 0
    %2694 = vmatprep.subr.bf16.mxu0 0
    %2695 = vmatpush1.bf16.msra.mxu0 0
    %2696 = vmatprep.mubr.bf16.mxu0 0
    %2697 = vmatmul.mubr.bf16.gmra.mrb[0].mxu0 %v2645
    %v2698 = vpop.f32.mrb[0].mxu0
    %v2699 = vadd.f32 0.0, %v2698
    %v2700 = vpop.f32.mrb[0].mxu0
    %v2701 = vadd.f32 0.0, %v2700
    %v2702 = vpop.f32.mrb[0].mxu0
    %v2703 = vadd.f32 0.0, %v2702
    %v2704 = vpop.f32.mrb[0].mxu0
    %v2705 = vadd.f32 0.0, %v2704
    %2706 = vdwg.mxu0
    %2707 = vmatprep.subr.bf16.mxu0 %v1812
    %2708 = vmatpush1.bf16.msra.mxu0 %v1811
    %2709 = vmatprep.subr.bf16.mxu0 %v1816
    %2710 = vmatpush1.bf16.msra.mxu0 %v1815
    %2711 = vmatprep.subr.bf16.mxu0 %v1820
    %2712 = vmatpush1.bf16.msra.mxu0 %v1819
    %2713 = vmatprep.subr.bf16.mxu0 %v1824
    %2714 = vmatpush1.bf16.msra.mxu0 %v1823
    %2715 = vmatprep.subr.bf16.mxu0 %v1828
    %2716 = vmatpush1.bf16.msra.mxu0 %v1827
    %2717 = vmatprep.subr.bf16.mxu0 %v1832
    %2718 = vmatpush1.bf16.msra.mxu0 %v1831
    %2719 = vmatprep.subr.bf16.mxu0 %v1836
    %2720 = vmatpush1.bf16.msra.mxu0 %v1835
    %2721 = vmatprep.subr.bf16.mxu0 %v1840
    %2722 = vmatpush1.bf16.msra.mxu0 %v1839
    %2723 = vmatprep.subr.bf16.mxu0 0
    %2724 = vmatpush1.bf16.msra.mxu0 0
    %2725 = vmatprep.subr.bf16.mxu0 0
    %2726 = vmatpush1.bf16.msra.mxu0 0
    %2727 = vmatprep.subr.bf16.mxu0 0
    %2728 = vmatpush1.bf16.msra.mxu0 0
    %2729 = vmatprep.subr.bf16.mxu0 0
    %2730 = vmatpush1.bf16.msra.mxu0 0
    %2731 = vmatprep.subr.bf16.mxu0 0
    %2732 = vmatpush1.bf16.msra.mxu0 0
    %2733 = vmatprep.subr.bf16.mxu0 0
    %2734 = vmatpush1.bf16.msra.mxu0 0
    %2735 = vmatprep.subr.bf16.mxu0 0
    %2736 = vmatpush1.bf16.msra.mxu0 0
    %2737 = vmatprep.subr.bf16.mxu0 0
    %2738 = vmatpush1.bf16.msra.mxu0 0
    %2739 = vmatprep.mubr.bf16.mxu0 0
    %2740 = vmatmul.mubr.bf16.gmra.mrb[0].mxu0 %v2645
    %v2741 = vpop.f32.mrb[0].mxu0
    %v2742 = vadd.f32 0.0, %v2741
    %v2743 = vpop.f32.mrb[0].mxu0
    %v2744 = vadd.f32 0.0, %v2743
    %v2745 = vpop.f32.mrb[0].mxu0
    %v2746 = vadd.f32 0.0, %v2745
    %v2747 = vpop.f32.mrb[0].mxu0
    %v2748 = vadd.f32 0.0, %v2747
    %2749 = vdwg.mxu0
    %v2750 = vadd.f32 %v2656, %v2699
    %v2751 = vadd.f32 %v2657, %v2701
    %v2752 = vadd.f32 %v2658, %v2742
    %v2753 = vadd.f32 %v2659, %v2744
    %v2754 = vadd.f32 %v2660, %v2703
    %v2755 = vadd.f32 %v2661, %v2705
    %v2756 = vadd.f32 %v2662, %v2746
    %v2757 = vadd.f32 %v2663, %v2748
    %s2758 = scalar_lea.vmem [#allocation2], 832
    %v2759 = vld [vmem:[%s2758 + $0x20] sm:$0xff]
    %v2760 = vld [vmem:[%s2758 + $0x28] sm:$0xff]
    %v2761 = vld [vmem:[%s2758 + $0x30] sm:$0xff]
    %v2762 = vld [vmem:[%s2758 + $0x38] sm:$0xff]
    %v2763 = vunpack.c.l.bf16 %v2759
    %v2764 = vunpack.c.l.bf16 %v2760
    %v2765 = vunpack.c.l.bf16 %v2761
    %v2766 = vunpack.c.l.bf16 %v2762
    %v2767 = vunpack.c.h.bf16 %v2759
    %v2768 = vunpack.c.h.bf16 %v2760
    %v2769 = vunpack.c.h.bf16 %v2761
    %v2770 = vunpack.c.h.bf16 %v2762
    %2771 = vmatprep.subr.bf16.mxu0 %v2077
    %2772 = vmatpush1.bf16.msra.mxu0 %v2076
    %2773 = vmatprep.subr.bf16.mxu0 %v2081
    %2774 = vmatpush1.bf16.msra.mxu0 %v2080
    %2775 = vmatprep.subr.bf16.mxu0 %v2085
    %2776 = vmatpush1.bf16.msra.mxu0 %v2084
    %2777 = vmatprep.subr.bf16.mxu0 %v2089
    %2778 = vmatpush1.bf16.msra.mxu0 %v2088
    %2779 = vmatprep.subr.bf16.mxu0 %v2093
    %2780 = vmatpush1.bf16.msra.mxu0 %v2092
    %2781 = vmatprep.subr.bf16.mxu0 %v2097
    %2782 = vmatpush1.bf16.msra.mxu0 %v2096
    %2783 = vmatprep.subr.bf16.mxu0 %v2101
    %2784 = vmatpush1.bf16.msra.mxu0 %v2100
    %2785 = vmatprep.subr.bf16.mxu0 %v2105
    %2786 = vmatpush1.bf16.msra.mxu0 %v2104
    %2787 = vmatprep.subr.bf16.mxu0 0
    %2788 = vmatpush1.bf16.msra.mxu0 0
    %2789 = vmatprep.subr.bf16.mxu0 0
    %2790 = vmatpush1.bf16.msra.mxu0 0
    %2791 = vmatprep.subr.bf16.mxu0 0
    %2792 = vmatpush1.bf16.msra.mxu0 0
    %2793 = vmatprep.subr.bf16.mxu0 0
    %2794 = vmatpush1.bf16.msra.mxu0 0
    %2795 = vmatprep.subr.bf16.mxu0 0
    %2796 = vmatpush1.bf16.msra.mxu0 0
    %2797 = vmatprep.subr.bf16.mxu0 0
    %2798 = vmatpush1.bf16.msra.mxu0 0
    %2799 = vmatprep.subr.bf16.mxu0 0
    %2800 = vmatpush1.bf16.msra.mxu0 0
    %2801 = vmatprep.subr.bf16.mxu0 0
    %2802 = vmatpush1.bf16.msra.mxu0 0
    %2803 = vmatprep.mubr.bf16.mxu0 0
    %2804 = vmatmul.mubr.bf16.gmra.mrb[0].mxu0 %v2646
    %v2805 = vpop.f32.mrb[0].mxu0
    %v2806 = vadd.f32 0.0, %v2805
    %v2807 = vpop.f32.mrb[0].mxu0
    %v2808 = vadd.f32 0.0, %v2807
    %v2809 = vpop.f32.mrb[0].mxu0
    %v2810 = vadd.f32 0.0, %v2809
    %v2811 = vpop.f32.mrb[0].mxu0
    %v2812 = vadd.f32 0.0, %v2811
    %2813 = vdwg.mxu0
    %2814 = vmatprep.subr.bf16.mxu0 %v2079
    %2815 = vmatpush1.bf16.msra.mxu0 %v2078
    %2816 = vmatprep.subr.bf16.mxu0 %v2083
    %2817 = vmatpush1.bf16.msra.mxu0 %v2082
    %2818 = vmatprep.subr.bf16.mxu0 %v2087
    %2819 = vmatpush1.bf16.msra.mxu0 %v2086
    %2820 = vmatprep.subr.bf16.mxu0 %v2091
    %2821 = vmatpush1.bf16.msra.mxu0 %v2090
    %2822 = vmatprep.subr.bf16.mxu0 %v2095
    %2823 = vmatpush1.bf16.msra.mxu0 %v2094
    %2824 = vmatprep.subr.bf16.mxu0 %v2099
    %2825 = vmatpush1.bf16.msra.mxu0 %v2098
    %2826 = vmatprep.subr.bf16.mxu0 %v2103
    %2827 = vmatpush1.bf16.msra.mxu0 %v2102
    %2828 = vmatprep.subr.bf16.mxu0 %v2107
    %2829 = vmatpush1.bf16.msra.mxu0 %v2106
    %2830 = vmatprep.subr.bf16.mxu0 0
    %2831 = vmatpush1.bf16.msra.mxu0 0
    %2832 = vmatprep.subr.bf16.mxu0 0
    %2833 = vmatpush1.bf16.msra.mxu0 0
    %2834 = vmatprep.subr.bf16.mxu0 0
    %2835 = vmatpush1.bf16.msra.mxu0 0
    %2836 = vmatprep.subr.bf16.mxu0 0
    %2837 = vmatpush1.bf16.msra.mxu0 0
    %2838 = vmatprep.subr.bf16.mxu0 0
    %2839 = vmatpush1.bf16.msra.mxu0 0
    %2840 = vmatprep.subr.bf16.mxu0 0
    %2841 = vmatpush1.bf16.msra.mxu0 0
    %2842 = vmatprep.subr.bf16.mxu0 0
    %2843 = vmatpush1.bf16.msra.mxu0 0
    %2844 = vmatprep.subr.bf16.mxu0 0
    %2845 = vmatpush1.bf16.msra.mxu0 0
    %2846 = vmatprep.mubr.bf16.mxu0 0
    %2847 = vmatmul.mubr.bf16.gmra.mrb[0].mxu0 %v2646
    %v2848 = vpop.f32.mrb[0].mxu0
    %v2849 = vadd.f32 0.0, %v2848
    %v2850 = vpop.f32.mrb[0].mxu0
    %v2851 = vadd.f32 0.0, %v2850
    %v2852 = vpop.f32.mrb[0].mxu0
    %v2853 = vadd.f32 0.0, %v2852
    %v2854 = vpop.f32.mrb[0].mxu0
    %v2855 = vadd.f32 0.0, %v2854
    %2856 = vdwg.mxu0
    %v2857 = vadd.f32 %v2763, %v2806
    %v2858 = vadd.f32 %v2764, %v2808
    %v2859 = vadd.f32 %v2765, %v2849
    %v2860 = vadd.f32 %v2766, %v2851
    %v2861 = vadd.f32 %v2767, %v2810
    %v2862 = vadd.f32 %v2768, %v2812
    %v2863 = vadd.f32 %v2769, %v2853
    %v2864 = vadd.f32 %v2770, %v2855
    %v2865 = vxor.u32 %v2750, 2147483648
    %v2866 = vxor.u32 %v2754, 2147483648
    %v2867 = vmul.f32 %v2865, 1.442695
    %v2868 = vpow.pop %v2867
    %v2869 = vmul.f32 %v2866, 1.442695
    %v2870 = vpow.pop %v2869
    %v2871 = vadd.f32 %v2868, 1.0
    %v2872 = vadd.f32 %v2870, 1.0
    %v2873 = vrcp.pop %v2871
    %v2874 = vmul.f32 1.0, %v2873
    %v2875 = vrcp.pop %v2872
    %v2876 = vmul.f32 1.0, %v2875
    %v2877 = vxor.u32 %v2751, 2147483648
    %v2878 = vxor.u32 %v2755, 2147483648
    %v2879 = vmul.f32 %v2877, 1.442695
    %v2880 = vpow.pop %v2879
    %v2881 = vmul.f32 %v2878, 1.442695
    %v2882 = vpow.pop %v2881
    %v2883 = vadd.f32 %v2880, 1.0
    %v2884 = vadd.f32 %v2882, 1.0
    %v2885 = vrcp.pop %v2883
    %v2886 = vmul.f32 1.0, %v2885
    %v2887 = vrcp.pop %v2884
    %v2888 = vmul.f32 1.0, %v2887
    %v2889 = vtanh.pop %v2752
    %v2890 = vtanh.pop %v2756
    %v2891 = vxor.u32 %v2753, 2147483648
    %v2892 = vxor.u32 %v2757, 2147483648
    %v2893 = vmul.f32 %v2891, 1.442695
    %v2894 = vpow.pop %v2893
    %v2895 = vmul.f32 %v2892, 1.442695
    %v2896 = vpow.pop %v2895
    %v2897 = vadd.f32 %v2894, 1.0
    %v2898 = vadd.f32 %v2896, 1.0
    %v2899 = vrcp.pop %v2897
    %v2900 = vmul.f32 1.0, %v2899
    %v2901 = vrcp.pop %v2898
    %v2902 = vmul.f32 1.0, %v2901
    %v2903 = vmul.f32 %v2886, %v2591
    %v2904 = vmul.f32 %v2888, %v2592
    %v2905 = vmul.f32 %v2874, %v2889
    %v2906 = vmul.f32 %v2876, %v2890
    %v2907 = vadd.f32 %v2903, %v2905
    %v2908 = vadd.f32 %v2904, %v2906
    %v2909 = vtanh.pop %v2907
    %v2910 = vtanh.pop %v2908
    %v2911 = vmul.f32 %v2900, %v2909
    %v2912 = vmul.f32 %v2902, %v2910
    %v2913 = vxor.u32 %v2857, 2147483648
    %v2914 = vxor.u32 %v2861, 2147483648
    %v2915 = vmul.f32 %v2913, 1.442695
    %v2916 = vpow.pop %v2915
    %v2917 = vmul.f32 %v2914, 1.442695
    %v2918 = vpow.pop %v2917
    %v2919 = vadd.f32 %v2916, 1.0
    %v2920 = vadd.f32 %v2918, 1.0
    %v2921 = vrcp.pop %v2919
    %v2922 = vmul.f32 1.0, %v2921
    %v2923 = vrcp.pop %v2920
    %v2924 = vmul.f32 1.0, %v2923
    %v2925 = vxor.u32 %v2858, 2147483648
    %v2926 = vxor.u32 %v2862, 2147483648
    %v2927 = vmul.f32 %v2925, 1.442695
    %v2928 = vpow.pop %v2927
    %v2929 = vmul.f32 %v2926, 1.442695
    %v2930 = vpow.pop %v2929
    %v2931 = vadd.f32 %v2928, 1.0
    %v2932 = vadd.f32 %v2930, 1.0
    %v2933 = vrcp.pop %v2931
    %v2934 = vmul.f32 1.0, %v2933
    %v2935 = vrcp.pop %v2932
    %v2936 = vmul.f32 1.0, %v2935
    %v2937 = vtanh.pop %v2859
    %v2938 = vtanh.pop %v2863
    %v2939 = vxor.u32 %v2860, 2147483648
    %v2940 = vxor.u32 %v2864, 2147483648
    %v2941 = vmul.f32 %v2939, 1.442695
    %v2942 = vpow.pop %v2941
    %v2943 = vmul.f32 %v2940, 1.442695
    %v2944 = vpow.pop %v2943
    %v2945 = vadd.f32 %v2942, 1.0
    %v2946 = vadd.f32 %v2944, 1.0
    %v2947 = vrcp.pop %v2945
    %v2948 = vmul.f32 1.0, %v2947
    %v2949 = vrcp.pop %v2946
    %v2950 = vmul.f32 1.0, %v2949
    %v2951 = vmul.f32 %v2934, %v2639
    %v2952 = vmul.f32 %v2936, %v2640
    %v2953 = vmul.f32 %v2922, %v2937
    %v2954 = vmul.f32 %v2924, %v2938
    %v2955 = vadd.f32 %v2951, %v2953
    %v2956 = vadd.f32 %v2952, %v2954
    %v2957 = vtanh.pop %v2955
    %v2958 = vtanh.pop %v2956
    %v2959 = vmul.f32 %v2948, %v2957
    %v2960 = vmul.f32 %v2950, %v2958
    %v2961 = vpack.c.bf16 %v2912, %v2911
    %v2962 = vpack.c.bf16 %v2960, %v2959
    %s2963 = scalar_lea.vmem [#allocation3], 32
    %2964 = vst [vmem:[%s2963] sm:$0xff] %v2961
    %s2965 = scalar_lea.vmem [#allocation3], 208
    %2966 = vst [vmem:[%s2965 + $0x8] sm:$0xff] %v2962
    %s2967 = scalar_lea.vmem [#allocation2], 192
    %v2968 = vld [vmem:[%s2967] sm:$0xff]
    %v2969 = vld [vmem:[%s2967 + $0x8] sm:$0xff]
    %v2970 = vld [vmem:[%s2967 + $0x10] sm:$0xff]
    %v2971 = vld [vmem:[%s2967 + $0x18] sm:$0xff]
    %v2972 = vunpack.c.l.bf16 %v2968
    %v2973 = vunpack.c.l.bf16 %v2969
    %v2974 = vunpack.c.l.bf16 %v2970
    %v2975 = vunpack.c.l.bf16 %v2971
    %v2976 = vunpack.c.h.bf16 %v2968
    %v2977 = vunpack.c.h.bf16 %v2969
    %v2978 = vunpack.c.h.bf16 %v2970
    %v2979 = vunpack.c.h.bf16 %v2971
    %2980 = vmatprep.subr.bf16.mxu0 %v1810
    %2981 = vmatpush1.bf16.msra.mxu0 %v1809
    %2982 = vmatprep.subr.bf16.mxu0 %v1814
    %2983 = vmatpush1.bf16.msra.mxu0 %v1813
    %2984 = vmatprep.subr.bf16.mxu0 %v1818
    %2985 = vmatpush1.bf16.msra.mxu0 %v1817
    %2986 = vmatprep.subr.bf16.mxu0 %v1822
    %2987 = vmatpush1.bf16.msra.mxu0 %v1821
    %2988 = vmatprep.subr.bf16.mxu0 %v1826
    %2989 = vmatpush1.bf16.msra.mxu0 %v1825
    %2990 = vmatprep.subr.bf16.mxu0 %v1830
    %2991 = vmatpush1.bf16.msra.mxu0 %v1829
    %2992 = vmatprep.subr.bf16.mxu0 %v1834
    %2993 = vmatpush1.bf16.msra.mxu0 %v1833
    %2994 = vmatprep.subr.bf16.mxu0 %v1838
    %2995 = vmatpush1.bf16.msra.mxu0 %v1837
    %2996 = vmatprep.subr.bf16.mxu0 0
    %2997 = vmatpush1.bf16.msra.mxu0 0
    %2998 = vmatprep.subr.bf16.mxu0 0
    %2999 = vmatpush1.bf16.msra.mxu0 0
    %3000 = vmatprep.subr.bf16.mxu0 0
    %3001 = vmatpush1.bf16.msra.mxu0 0
    %3002 = vmatprep.subr.bf16.mxu0 0
    %3003 = vmatpush1.bf16.msra.mxu0 0
    %3004 = vmatprep.subr.bf16.mxu0 0
    %3005 = vmatpush1.bf16.msra.mxu0 0
    %3006 = vmatprep.subr.bf16.mxu0 0
    %3007 = vmatpush1.bf16.msra.mxu0 0
    %3008 = vmatprep.subr.bf16.mxu0 0
    %3009 = vmatpush1.bf16.msra.mxu0 0
    %3010 = vmatprep.subr.bf16.mxu0 0
    %3011 = vmatpush1.bf16.msra.mxu0 0
    %3012 = vmatprep.mubr.bf16.mxu0 0
    %3013 = vmatmul.mubr.bf16.gmra.mrb[0].mxu0 %v2961
    %v3014 = vpop.f32.mrb[0].mxu0
    %v3015 = vadd.f32 0.0, %v3014
    %v3016 = vpop.f32.mrb[0].mxu0
    %v3017 = vadd.f32 0.0, %v3016
    %v3018 = vpop.f32.mrb[0].mxu0
    %v3019 = vadd.f32 0.0, %v3018
    %v3020 = vpop.f32.mrb[0].mxu0
    %v3021 = vadd.f32 0.0, %v3020
    %3022 = vdwg.mxu0
    %3023 = vmatprep.subr.bf16.mxu0 %v1812
    %3024 = vmatpush1.bf16.msra.mxu0 %v1811
    %3025 = vmatprep.subr.bf16.mxu0 %v1816
    %3026 = vmatpush1.bf16.msra.mxu0 %v1815
    %3027 = vmatprep.subr.bf16.mxu0 %v1820
    %3028 = vmatpush1.bf16.msra.mxu0 %v1819
    %3029 = vmatprep.subr.bf16.mxu0 %v1824
    %3030 = vmatpush1.bf16.msra.mxu0 %v1823
    %3031 = vmatprep.subr.bf16.mxu0 %v1828
    %3032 = vmatpush1.bf16.msra.mxu0 %v1827
    %3033 = vmatprep.subr.bf16.mxu0 %v1832
    %3034 = vmatpush1.bf16.msra.mxu0 %v1831
    %3035 = vmatprep.subr.bf16.mxu0 %v1836
    %3036 = vmatpush1.bf16.msra.mxu0 %v1835
    %3037 = vmatprep.subr.bf16.mxu0 %v1840
    %3038 = vmatpush1.bf16.msra.mxu0 %v1839
    %3039 = vmatprep.subr.bf16.mxu0 0
    %3040 = vmatpush1.bf16.msra.mxu0 0
    %3041 = vmatprep.subr.bf16.mxu0 0
    %3042 = vmatpush1.bf16.msra.mxu0 0
    %3043 = vmatprep.subr.bf16.mxu0 0
    %3044 = vmatpush1.bf16.msra.mxu0 0
    %3045 = vmatprep.subr.bf16.mxu0 0
    %3046 = vmatpush1.bf16.msra.mxu0 0
    %3047 = vmatprep.subr.bf16.mxu0 0
    %3048 = vmatpush1.bf16.msra.mxu0 0
    %3049 = vmatprep.subr.bf16.mxu0 0
    %3050 = vmatpush1.bf16.msra.mxu0 0
    %3051 = vmatprep.subr.bf16.mxu0 0
    %3052 = vmatpush1.bf16.msra.mxu0 0
    %3053 = vmatprep.subr.bf16.mxu0 0
    %3054 = vmatpush1.bf16.msra.mxu0 0
    %3055 = vmatprep.mubr.bf16.mxu0 0
    %3056 = vmatmul.mubr.bf16.gmra.mrb[0].mxu0 %v2961
    %v3057 = vpop.f32.mrb[0].mxu0
    %v3058 = vadd.f32 0.0, %v3057
    %v3059 = vpop.f32.mrb[0].mxu0
    %v3060 = vadd.f32 0.0, %v3059
    %v3061 = vpop.f32.mrb[0].mxu0
    %v3062 = vadd.f32 0.0, %v3061
    %v3063 = vpop.f32.mrb[0].mxu0
    %v3064 = vadd.f32 0.0, %v3063
    %3065 = vdwg.mxu0
    %v3066 = vadd.f32 %v2972, %v3015
    %v3067 = vadd.f32 %v2973, %v3017
    %v3068 = vadd.f32 %v2974, %v3058
    %v3069 = vadd.f32 %v2975, %v3060
    %v3070 = vadd.f32 %v2976, %v3019
    %v3071 = vadd.f32 %v2977, %v3021
    %v3072 = vadd.f32 %v2978, %v3062
    %v3073 = vadd.f32 %v2979, %v3064
    %s3074 = scalar_lea.vmem [#allocation2], 768
    %v3075 = vld [vmem:[%s3074 + $0x20] sm:$0xff]
    %v3076 = vld [vmem:[%s3074 + $0x28] sm:$0xff]
    %v3077 = vld [vmem:[%s3074 + $0x30] sm:$0xff]
    %v3078 = vld [vmem:[%s3074 + $0x38] sm:$0xff]
    %v3079 = vunpack.c.l.bf16 %v3075
    %v3080 = vunpack.c.l.bf16 %v3076
    %v3081 = vunpack.c.l.bf16 %v3077
    %v3082 = vunpack.c.l.bf16 %v3078
    %v3083 = vunpack.c.h.bf16 %v3075
    %v3084 = vunpack.c.h.bf16 %v3076
    %v3085 = vunpack.c.h.bf16 %v3077
    %v3086 = vunpack.c.h.bf16 %v3078
    %3087 = vmatprep.subr.bf16.mxu0 %v2077
    %3088 = vmatpush1.bf16.msra.mxu0 %v2076
    %3089 = vmatprep.subr.bf16.mxu0 %v2081
    %3090 = vmatpush1.bf16.msra.mxu0 %v2080
    %3091 = vmatprep.subr.bf16.mxu0 %v2085
    %3092 = vmatpush1.bf16.msra.mxu0 %v2084
    %3093 = vmatprep.subr.bf16.mxu0 %v2089
    %3094 = vmatpush1.bf16.msra.mxu0 %v2088
    %3095 = vmatprep.subr.bf16.mxu0 %v2093
    %3096 = vmatpush1.bf16.msra.mxu0 %v2092
    %3097 = vmatprep.subr.bf16.mxu0 %v2097
    %3098 = vmatpush1.bf16.msra.mxu0 %v2096
    %3099 = vmatprep.subr.bf16.mxu0 %v2101
    %3100 = vmatpush1.bf16.msra.mxu0 %v2100
    %3101 = vmatprep.subr.bf16.mxu0 %v2105
    %3102 = vmatpush1.bf16.msra.mxu0 %v2104
    %3103 = vmatprep.subr.bf16.mxu0 0
    %3104 = vmatpush1.bf16.msra.mxu0 0
    %3105 = vmatprep.subr.bf16.mxu0 0
    %3106 = vmatpush1.bf16.msra.mxu0 0
    %3107 = vmatprep.subr.bf16.mxu0 0
    %3108 = vmatpush1.bf16.msra.mxu0 0
    %3109 = vmatprep.subr.bf16.mxu0 0
    %3110 = vmatpush1.bf16.msra.mxu0 0
    %3111 = vmatprep.subr.bf16.mxu0 0
    %3112 = vmatpush1.bf16.msra.mxu0 0
    %3113 = vmatprep.subr.bf16.mxu0 0
    %3114 = vmatpush1.bf16.msra.mxu0 0
    %3115 = vmatprep.subr.bf16.mxu0 0
    %3116 = vmatpush1.bf16.msra.mxu0 0
    %3117 = vmatprep.subr.bf16.mxu0 0
    %3118 = vmatpush1.bf16.msra.mxu0 0
    %3119 = vmatprep.mubr.bf16.mxu0 0
    %3120 = vmatmul.mubr.bf16.gmra.mrb[0].mxu0 %v2962
    %v3121 = vpop.f32.mrb[0].mxu0
    %v3122 = vadd.f32 0.0, %v3121
    %v3123 = vpop.f32.mrb[0].mxu0
    %v3124 = vadd.f32 0.0, %v3123
    %v3125 = vpop.f32.mrb[0].mxu0
    %v3126 = vadd.f32 0.0, %v3125
    %v3127 = vpop.f32.mrb[0].mxu0
    %v3128 = vadd.f32 0.0, %v3127
    %3129 = vdwg.mxu0
    %3130 = vmatprep.subr.bf16.mxu0 %v2079
    %3131 = vmatpush1.bf16.msra.mxu0 %v2078
    %3132 = vmatprep.subr.bf16.mxu0 %v2083
    %3133 = vmatpush1.bf16.msra.mxu0 %v2082
    %3134 = vmatprep.subr.bf16.mxu0 %v2087
    %3135 = vmatpush1.bf16.msra.mxu0 %v2086
    %3136 = vmatprep.subr.bf16.mxu0 %v2091
    %3137 = vmatpush1.bf16.msra.mxu0 %v2090
    %3138 = vmatprep.subr.bf16.mxu0 %v2095
    %3139 = vmatpush1.bf16.msra.mxu0 %v2094
    %3140 = vmatprep.subr.bf16.mxu0 %v2099
    %3141 = vmatpush1.bf16.msra.mxu0 %v2098
    %3142 = vmatprep.subr.bf16.mxu0 %v2103
    %3143 = vmatpush1.bf16.msra.mxu0 %v2102
    %3144 = vmatprep.subr.bf16.mxu0 %v2107
    %3145 = vmatpush1.bf16.msra.mxu0 %v2106
    %3146 = vmatprep.subr.bf16.mxu0 0
    %3147 = vmatpush1.bf16.msra.mxu0 0
    %3148 = vmatprep.subr.bf16.mxu0 0
    %3149 = vmatpush1.bf16.msra.mxu0 0
    %3150 = vmatprep.subr.bf16.mxu0 0
    %3151 = vmatpush1.bf16.msra.mxu0 0
    %3152 = vmatprep.subr.bf16.mxu0 0
    %3153 = vmatpush1.bf16.msra.mxu0 0
    %3154 = vmatprep.subr.bf16.mxu0 0
    %3155 = vmatpush1.bf16.msra.mxu0 0
    %3156 = vmatprep.subr.bf16.mxu0 0
    %3157 = vmatpush1.bf16.msra.mxu0 0
    %3158 = vmatprep.subr.bf16.mxu0 0
    %3159 = vmatpush1.bf16.msra.mxu0 0
    %3160 = vmatprep.subr.bf16.mxu0 0
    %3161 = vmatpush1.bf16.msra.mxu0 0
    %3162 = vmatprep.mubr.bf16.mxu0 0
    %3163 = vmatmul.mubr.bf16.gmra.mrb[0].mxu0 %v2962
    %v3164 = vpop.f32.mrb[0].mxu0
    %v3165 = vadd.f32 0.0, %v3164
    %v3166 = vpop.f32.mrb[0].mxu0
    %v3167 = vadd.f32 0.0, %v3166
    %v3168 = vpop.f32.mrb[0].mxu0
    %v3169 = vadd.f32 0.0, %v3168
    %v3170 = vpop.f32.mrb[0].mxu0
    %v3171 = vadd.f32 0.0, %v3170
    %3172 = vdwg.mxu0
    %v3173 = vadd.f32 %v3079, %v3122
    %v3174 = vadd.f32 %v3080, %v3124
    %v3175 = vadd.f32 %v3081, %v3165
    %v3176 = vadd.f32 %v3082, %v3167
    %v3177 = vadd.f32 %v3083, %v3126
    %v3178 = vadd.f32 %v3084, %v3128
    %v3179 = vadd.f32 %v3085, %v3169
    %v3180 = vadd.f32 %v3086, %v3171
    %v3181 = vxor.u32 %v3066, 2147483648
    %v3182 = vxor.u32 %v3070, 2147483648
    %v3183 = vmul.f32 %v3181, 1.442695
    %v3184 = vpow.pop %v3183
    %v3185 = vmul.f32 %v3182, 1.442695
    %v3186 = vpow.pop %v3185
    %v3187 = vadd.f32 %v3184, 1.0
    %v3188 = vadd.f32 %v3186, 1.0
    %v3189 = vrcp.pop %v3187
    %v3190 = vmul.f32 1.0, %v3189
    %v3191 = vrcp.pop %v3188
    %v3192 = vmul.f32 1.0, %v3191
    %v3193 = vxor.u32 %v3067, 2147483648
    %v3194 = vxor.u32 %v3071, 2147483648
    %v3195 = vmul.f32 %v3193, 1.442695
    %v3196 = vpow.pop %v3195
    %v3197 = vmul.f32 %v3194, 1.442695
    %v3198 = vpow.pop %v3197
    %v3199 = vadd.f32 %v3196, 1.0
    %v3200 = vadd.f32 %v3198, 1.0
    %v3201 = vrcp.pop %v3199
    %v3202 = vmul.f32 1.0, %v3201
    %v3203 = vrcp.pop %v3200
    %v3204 = vmul.f32 1.0, %v3203
    %v3205 = vtanh.pop %v3068
    %v3206 = vtanh.pop %v3072
    %v3207 = vxor.u32 %v3069, 2147483648
    %v3208 = vxor.u32 %v3073, 2147483648
    %v3209 = vmul.f32 %v3207, 1.442695
    %v3210 = vpow.pop %v3209
    %v3211 = vmul.f32 %v3208, 1.442695
    %v3212 = vpow.pop %v3211
    %v3213 = vadd.f32 %v3210, 1.0
    %v3214 = vadd.f32 %v3212, 1.0
    %v3215 = vrcp.pop %v3213
    %v3216 = vmul.f32 1.0, %v3215
    %v3217 = vrcp.pop %v3214
    %v3218 = vmul.f32 1.0, %v3217
    %v3219 = vmul.f32 %v3202, %v2907
    %v3220 = vmul.f32 %v3204, %v2908
    %v3221 = vmul.f32 %v3190, %v3205
    %v3222 = vmul.f32 %v3192, %v3206
    %v3223 = vadd.f32 %v3219, %v3221
    %v3224 = vadd.f32 %v3220, %v3222
    %v3225 = vtanh.pop %v3223
    %v3226 = vtanh.pop %v3224
    %v3227 = vmul.f32 %v3216, %v3225
    %v3228 = vmul.f32 %v3218, %v3226
    %v3229 = vxor.u32 %v3173, 2147483648
    %v3230 = vxor.u32 %v3177, 2147483648
    %v3231 = vmul.f32 %v3229, 1.442695
    %v3232 = vpow.pop %v3231
    %v3233 = vmul.f32 %v3230, 1.442695
    %v3234 = vpow.pop %v3233
    %v3235 = vadd.f32 %v3232, 1.0
    %v3236 = vadd.f32 %v3234, 1.0
    %v3237 = vrcp.pop %v3235
    %v3238 = vmul.f32 1.0, %v3237
    %v3239 = vrcp.pop %v3236
    %v3240 = vmul.f32 1.0, %v3239
    %v3241 = vxor.u32 %v3174, 2147483648
    %v3242 = vxor.u32 %v3178, 2147483648
    %v3243 = vmul.f32 %v3241, 1.442695
    %v3244 = vpow.pop %v3243
    %v3245 = vmul.f32 %v3242, 1.442695
    %v3246 = vpow.pop %v3245
    %v3247 = vadd.f32 %v3244, 1.0
    %v3248 = vadd.f32 %v3246, 1.0
    %v3249 = vrcp.pop %v3247
    %v3250 = vmul.f32 1.0, %v3249
    %v3251 = vrcp.pop %v3248
    %v3252 = vmul.f32 1.0, %v3251
    %v3253 = vtanh.pop %v3175
    %v3254 = vtanh.pop %v3179
    %v3255 = vxor.u32 %v3176, 2147483648
    %v3256 = vxor.u32 %v3180, 2147483648
    %v3257 = vmul.f32 %v3255, 1.442695
    %v3258 = vpow.pop %v3257
    %v3259 = vmul.f32 %v3256, 1.442695
    %v3260 = vpow.pop %v3259
    %v3261 = vadd.f32 %v3258, 1.0
    %v3262 = vadd.f32 %v3260, 1.0
    %v3263 = vrcp.pop %v3261
    %v3264 = vmul.f32 1.0, %v3263
    %v3265 = vrcp.pop %v3262
    %v3266 = vmul.f32 1.0, %v3265
    %v3267 = vmul.f32 %v3250, %v2955
    %v3268 = vmul.f32 %v3252, %v2956
    %v3269 = vmul.f32 %v3238, %v3253
    %v3270 = vmul.f32 %v3240, %v3254
    %v3271 = vadd.f32 %v3267, %v3269
    %v3272 = vadd.f32 %v3268, %v3270
    %v3273 = vtanh.pop %v3271
    %v3274 = vtanh.pop %v3272
    %v3275 = vmul.f32 %v3264, %v3273
    %v3276 = vmul.f32 %v3266, %v3274
    %v3277 = vpack.c.bf16 %v3228, %v3227
    %v3278 = vpack.c.bf16 %v3276, %v3275
    %s3279 = scalar_lea.vmem [#allocation3], 48
    %3280 = vst [vmem:[%s3279] sm:$0xff] %v3277
    %s3281 = scalar_lea.vmem [#allocation3], 192
    %3282 = vst [vmem:[%s3281 + $0x8] sm:$0xff] %v3278
    %s3283 = scalar_lea.vmem [#allocation2], 256
    %v3284 = vld [vmem:[%s3283] sm:$0xff]
    %v3285 = vld [vmem:[%s3283 + $0x8] sm:$0xff]
    %v3286 = vld [vmem:[%s3283 + $0x10] sm:$0xff]
    %v3287 = vld [vmem:[%s3283 + $0x18] sm:$0xff]
    %v3288 = vunpack.c.l.bf16 %v3284
    %v3289 = vunpack.c.l.bf16 %v3285
    %v3290 = vunpack.c.l.bf16 %v3286
    %v3291 = vunpack.c.l.bf16 %v3287
    %v3292 = vunpack.c.h.bf16 %v3284
    %v3293 = vunpack.c.h.bf16 %v3285
    %v3294 = vunpack.c.h.bf16 %v3286
    %v3295 = vunpack.c.h.bf16 %v3287
    %3296 = vmatprep.subr.bf16.mxu0 %v1810
    %3297 = vmatpush1.bf16.msra.mxu0 %v1809
    %3298 = vmatprep.subr.bf16.mxu0 %v1814
    %3299 = vmatpush1.bf16.msra.mxu0 %v1813
    %3300 = vmatprep.subr.bf16.mxu0 %v1818
    %3301 = vmatpush1.bf16.msra.mxu0 %v1817
    %3302 = vmatprep.subr.bf16.mxu0 %v1822
    %3303 = vmatpush1.bf16.msra.mxu0 %v1821
    %3304 = vmatprep.subr.bf16.mxu0 %v1826
    %3305 = vmatpush1.bf16.msra.mxu0 %v1825
    %3306 = vmatprep.subr.bf16.mxu0 %v1830
    %3307 = vmatpush1.bf16.msra.mxu0 %v1829
    %3308 = vmatprep.subr.bf16.mxu0 %v1834
    %3309 = vmatpush1.bf16.msra.mxu0 %v1833
    %3310 = vmatprep.subr.bf16.mxu0 %v1838
    %3311 = vmatpush1.bf16.msra.mxu0 %v1837
    %3312 = vmatprep.subr.bf16.mxu0 0
    %3313 = vmatpush1.bf16.msra.mxu0 0
    %3314 = vmatprep.subr.bf16.mxu0 0
    %3315 = vmatpush1.bf16.msra.mxu0 0
    %3316 = vmatprep.subr.bf16.mxu0 0
    %3317 = vmatpush1.bf16.msra.mxu0 0
    %3318 = vmatprep.subr.bf16.mxu0 0
    %3319 = vmatpush1.bf16.msra.mxu0 0
    %3320 = vmatprep.subr.bf16.mxu0 0
    %3321 = vmatpush1.bf16.msra.mxu0 0
    %3322 = vmatprep.subr.bf16.mxu0 0
    %3323 = vmatpush1.bf16.msra.mxu0 0
    %3324 = vmatprep.subr.bf16.mxu0 0
    %3325 = vmatpush1.bf16.msra.mxu0 0
    %3326 = vmatprep.subr.bf16.mxu0 0
    %3327 = vmatpush1.bf16.msra.mxu0 0
    %3328 = vmatprep.mubr.bf16.mxu0 0
    %3329 = vmatmul.mubr.bf16.gmra.mrb[0].mxu0 %v3277
    %v3330 = vpop.f32.mrb[0].mxu0
    %v3331 = vadd.f32 0.0, %v3330
    %v3332 = vpop.f32.mrb[0].mxu0
    %v3333 = vadd.f32 0.0, %v3332
    %v3334 = vpop.f32.mrb[0].mxu0
    %v3335 = vadd.f32 0.0, %v3334
    %v3336 = vpop.f32.mrb[0].mxu0
    %v3337 = vadd.f32 0.0, %v3336
    %3338 = vdwg.mxu0
    %3339 = vmatprep.subr.bf16.mxu0 %v1812
    %3340 = vmatpush1.bf16.msra.mxu0 %v1811
    %3341 = vmatprep.subr.bf16.mxu0 %v1816
    %3342 = vmatpush1.bf16.msra.mxu0 %v1815
    %3343 = vmatprep.subr.bf16.mxu0 %v1820
    %3344 = vmatpush1.bf16.msra.mxu0 %v1819
    %3345 = vmatprep.subr.bf16.mxu0 %v1824
    %3346 = vmatpush1.bf16.msra.mxu0 %v1823
    %3347 = vmatprep.subr.bf16.mxu0 %v1828
    %3348 = vmatpush1.bf16.msra.mxu0 %v1827
    %3349 = vmatprep.subr.bf16.mxu0 %v1832
    %3350 = vmatpush1.bf16.msra.mxu0 %v1831
    %3351 = vmatprep.subr.bf16.mxu0 %v1836
    %3352 = vmatpush1.bf16.msra.mxu0 %v1835
    %3353 = vmatprep.subr.bf16.mxu0 %v1840
    %3354 = vmatpush1.bf16.msra.mxu0 %v1839
    %3355 = vmatprep.subr.bf16.mxu0 0
    %3356 = vmatpush1.bf16.msra.mxu0 0
    %3357 = vmatprep.subr.bf16.mxu0 0
    %3358 = vmatpush1.bf16.msra.mxu0 0
    %3359 = vmatprep.subr.bf16.mxu0 0
    %3360 = vmatpush1.bf16.msra.mxu0 0
    %3361 = vmatprep.subr.bf16.mxu0 0
    %3362 = vmatpush1.bf16.msra.mxu0 0
    %3363 = vmatprep.subr.bf16.mxu0 0
    %3364 = vmatpush1.bf16.msra.mxu0 0
    %3365 = vmatprep.subr.bf16.mxu0 0
    %3366 = vmatpush1.bf16.msra.mxu0 0
    %3367 = vmatprep.subr.bf16.mxu0 0
    %3368 = vmatpush1.bf16.msra.mxu0 0
    %3369 = vmatprep.subr.bf16.mxu0 0
    %3370 = vmatpush1.bf16.msra.mxu0 0
    %3371 = vmatprep.mubr.bf16.mxu0 0
    %3372 = vmatmul.mubr.bf16.gmra.mrb[0].mxu0 %v3277
    %v3373 = vpop.f32.mrb[0].mxu0
    %v3374 = vadd.f32 0.0, %v3373
    %v3375 = vpop.f32.mrb[0].mxu0
    %v3376 = vadd.f32 0.0, %v3375
    %v3377 = vpop.f32.mrb[0].mxu0
    %v3378 = vadd.f32 0.0, %v3377
    %v3379 = vpop.f32.mrb[0].mxu0
    %v3380 = vadd.f32 0.0, %v3379
    %3381 = vdwg.mxu0
    %v3382 = vadd.f32 %v3288, %v3331
    %v3383 = vadd.f32 %v3289, %v3333
    %v3384 = vadd.f32 %v3290, %v3374
    %v3385 = vadd.f32 %v3291, %v3376
    %v3386 = vadd.f32 %v3292, %v3335
    %v3387 = vadd.f32 %v3293, %v3337
    %v3388 = vadd.f32 %v3294, %v3378
    %v3389 = vadd.f32 %v3295, %v3380
    %s3390 = scalar_lea.vmem [#allocation2], 704
    %v3391 = vld [vmem:[%s3390 + $0x20] sm:$0xff]
    %v3392 = vld [vmem:[%s3390 + $0x28] sm:$0xff]
    %v3393 = vld [vmem:[%s3390 + $0x30] sm:$0xff]
    %v3394 = vld [vmem:[%s3390 + $0x38] sm:$0xff]
    %v3395 = vunpack.c.l.bf16 %v3391
    %v3396 = vunpack.c.l.bf16 %v3392
    %v3397 = vunpack.c.l.bf16 %v3393
    %v3398 = vunpack.c.l.bf16 %v3394
    %v3399 = vunpack.c.h.bf16 %v3391
    %v3400 = vunpack.c.h.bf16 %v3392
    %v3401 = vunpack.c.h.bf16 %v3393
    %v3402 = vunpack.c.h.bf16 %v3394
    %3403 = vmatprep.subr.bf16.mxu0 %v2077
    %3404 = vmatpush1.bf16.msra.mxu0 %v2076
    %3405 = vmatprep.subr.bf16.mxu0 %v2081
    %3406 = vmatpush1.bf16.msra.mxu0 %v2080
    %3407 = vmatprep.subr.bf16.mxu0 %v2085
    %3408 = vmatpush1.bf16.msra.mxu0 %v2084
    %3409 = vmatprep.subr.bf16.mxu0 %v2089
    %3410 = vmatpush1.bf16.msra.mxu0 %v2088
    %3411 = vmatprep.subr.bf16.mxu0 %v2093
    %3412 = vmatpush1.bf16.msra.mxu0 %v2092
    %3413 = vmatprep.subr.bf16.mxu0 %v2097
    %3414 = vmatpush1.bf16.msra.mxu0 %v2096
    %3415 = vmatprep.subr.bf16.mxu0 %v2101
    %3416 = vmatpush1.bf16.msra.mxu0 %v2100
    %3417 = vmatprep.subr.bf16.mxu0 %v2105
    %3418 = vmatpush1.bf16.msra.mxu0 %v2104
    %3419 = vmatprep.subr.bf16.mxu0 0
    %3420 = vmatpush1.bf16.msra.mxu0 0
    %3421 = vmatprep.subr.bf16.mxu0 0
    %3422 = vmatpush1.bf16.msra.mxu0 0
    %3423 = vmatprep.subr.bf16.mxu0 0
    %3424 = vmatpush1.bf16.msra.mxu0 0
    %3425 = vmatprep.subr.bf16.mxu0 0
    %3426 = vmatpush1.bf16.msra.mxu0 0
    %3427 = vmatprep.subr.bf16.mxu0 0
    %3428 = vmatpush1.bf16.msra.mxu0 0
    %3429 = vmatprep.subr.bf16.mxu0 0
    %3430 = vmatpush1.bf16.msra.mxu0 0
    %3431 = vmatprep.subr.bf16.mxu0 0
    %3432 = vmatpush1.bf16.msra.mxu0 0
    %3433 = vmatprep.subr.bf16.mxu0 0
    %3434 = vmatpush1.bf16.msra.mxu0 0
    %3435 = vmatprep.mubr.bf16.mxu0 0
    %3436 = vmatmul.mubr.bf16.gmra.mrb[0].mxu0 %v3278
    %v3437 = vpop.f32.mrb[0].mxu0
    %v3438 = vadd.f32 0.0, %v3437
    %v3439 = vpop.f32.mrb[0].mxu0
    %v3440 = vadd.f32 0.0, %v3439
    %v3441 = vpop.f32.mrb[0].mxu0
    %v3442 = vadd.f32 0.0, %v3441
    %v3443 = vpop.f32.mrb[0].mxu0
    %v3444 = vadd.f32 0.0, %v3443
    %3445 = vdwg.mxu0
    %3446 = vmatprep.subr.bf16.mxu0 %v2079
    %3447 = vmatpush1.bf16.msra.mxu0 %v2078
    %3448 = vmatprep.subr.bf16.mxu0 %v2083
    %3449 = vmatpush1.bf16.msra.mxu0 %v2082
    %3450 = vmatprep.subr.bf16.mxu0 %v2087
    %3451 = vmatpush1.bf16.msra.mxu0 %v2086
    %3452 = vmatprep.subr.bf16.mxu0 %v2091
    %3453 = vmatpush1.bf16.msra.mxu0 %v2090
    %3454 = vmatprep.subr.bf16.mxu0 %v2095
    %3455 = vmatpush1.bf16.msra.mxu0 %v2094
    %3456 = vmatprep.subr.bf16.mxu0 %v2099
    %3457 = vmatpush1.bf16.msra.mxu0 %v2098
    %3458 = vmatprep.subr.bf16.mxu0 %v2103
    %3459 = vmatpush1.bf16.msra.mxu0 %v2102
    %3460 = vmatprep.subr.bf16.mxu0 %v2107
    %3461 = vmatpush1.bf16.msra.mxu0 %v2106
    %3462 = vmatprep.subr.bf16.mxu0 0
    %3463 = vmatpush1.bf16.msra.mxu0 0
    %3464 = vmatprep.subr.bf16.mxu0 0
    %3465 = vmatpush1.bf16.msra.mxu0 0
    %3466 = vmatprep.subr.bf16.mxu0 0
    %3467 = vmatpush1.bf16.msra.mxu0 0
    %3468 = vmatprep.subr.bf16.mxu0 0
    %3469 = vmatpush1.bf16.msra.mxu0 0
    %3470 = vmatprep.subr.bf16.mxu0 0
    %3471 = vmatpush1.bf16.msra.mxu0 0
    %3472 = vmatprep.subr.bf16.mxu0 0
    %3473 = vmatpush1.bf16.msra.mxu0 0
    %3474 = vmatprep.subr.bf16.mxu0 0
    %3475 = vmatpush1.bf16.msra.mxu0 0
    %3476 = vmatprep.subr.bf16.mxu0 0
    %3477 = vmatpush1.bf16.msra.mxu0 0
    %3478 = vmatprep.mubr.bf16.mxu0 0
    %3479 = vmatmul.mubr.bf16.gmra.mrb[0].mxu0 %v3278
    %v3480 = vpop.f32.mrb[0].mxu0
    %v3481 = vadd.f32 0.0, %v3480
    %v3482 = vpop.f32.mrb[0].mxu0
    %v3483 = vadd.f32 0.0, %v3482
    %v3484 = vpop.f32.mrb[0].mxu0
    %v3485 = vadd.f32 0.0, %v3484
    %v3486 = vpop.f32.mrb[0].mxu0
    %v3487 = vadd.f32 0.0, %v3486
    %3488 = vdwg.mxu0
    %v3489 = vadd.f32 %v3395, %v3438
    %v3490 = vadd.f32 %v3396, %v3440
    %v3491 = vadd.f32 %v3397, %v3481
    %v3492 = vadd.f32 %v3398, %v3483
    %v3493 = vadd.f32 %v3399, %v3442
    %v3494 = vadd.f32 %v3400, %v3444
    %v3495 = vadd.f32 %v3401, %v3485
    %v3496 = vadd.f32 %v3402, %v3487
    %v3497 = vxor.u32 %v3382, 2147483648
    %v3498 = vxor.u32 %v3386, 2147483648
    %v3499 = vmul.f32 %v3497, 1.442695
    %v3500 = vpow.pop %v3499
    %v3501 = vmul.f32 %v3498, 1.442695
    %v3502 = vpow.pop %v3501
    %v3503 = vadd.f32 %v3500, 1.0
    %v3504 = vadd.f32 %v3502, 1.0
    %v3505 = vrcp.pop %v3503
    %v3506 = vmul.f32 1.0, %v3505
    %v3507 = vrcp.pop %v3504
    %v3508 = vmul.f32 1.0, %v3507
    %v3509 = vxor.u32 %v3383, 2147483648
    %v3510 = vxor.u32 %v3387, 2147483648
    %v3511 = vmul.f32 %v3509, 1.442695
    %v3512 = vpow.pop %v3511
    %v3513 = vmul.f32 %v3510, 1.442695
    %v3514 = vpow.pop %v3513
    %v3515 = vadd.f32 %v3512, 1.0
    %v3516 = vadd.f32 %v3514, 1.0
    %v3517 = vrcp.pop %v3515
    %v3518 = vmul.f32 1.0, %v3517
    %v3519 = vrcp.pop %v3516
    %v3520 = vmul.f32 1.0, %v3519
    %v3521 = vtanh.pop %v3384
    %v3522 = vtanh.pop %v3388
    %v3523 = vxor.u32 %v3385, 2147483648
    %v3524 = vxor.u32 %v3389, 2147483648
    %v3525 = vmul.f32 %v3523, 1.442695
    %v3526 = vpow.pop %v3525
    %v3527 = vmul.f32 %v3524, 1.442695
    %v3528 = vpow.pop %v3527
    %v3529 = vadd.f32 %v3526, 1.0
    %v3530 = vadd.f32 %v3528, 1.0
    %v3531 = vrcp.pop %v3529
    %v3532 = vmul.f32 1.0, %v3531
    %v3533 = vrcp.pop %v3530
    %v3534 = vmul.f32 1.0, %v3533
    %v3535 = vmul.f32 %v3518, %v3223
    %v3536 = vmul.f32 %v3520, %v3224
    %v3537 = vmul.f32 %v3506, %v3521
    %v3538 = vmul.f32 %v3508, %v3522
    %v3539 = vadd.f32 %v3535, %v3537
    %v3540 = vadd.f32 %v3536, %v3538
    %v3541 = vtanh.pop %v3539
    %v3542 = vtanh.pop %v3540
    %v3543 = vmul.f32 %v3532, %v3541
    %v3544 = vmul.f32 %v3534, %v3542
    %v3545 = vxor.u32 %v3489, 2147483648
    %v3546 = vxor.u32 %v3493, 2147483648
    %v3547 = vmul.f32 %v3545, 1.442695
    %v3548 = vpow.pop %v3547
    %v3549 = vmul.f32 %v3546, 1.442695
    %v3550 = vpow.pop %v3549
    %v3551 = vadd.f32 %v3548, 1.0
    %v3552 = vadd.f32 %v3550, 1.0
    %v3553 = vrcp.pop %v3551
    %v3554 = vmul.f32 1.0, %v3553
    %v3555 = vrcp.pop %v3552
    %v3556 = vmul.f32 1.0, %v3555
    %v3557 = vxor.u32 %v3490, 2147483648
    %v3558 = vxor.u32 %v3494, 2147483648
    %v3559 = vmul.f32 %v3557, 1.442695
    %v3560 = vpow.pop %v3559
    %v3561 = vmul.f32 %v3558, 1.442695
    %v3562 = vpow.pop %v3561
    %v3563 = vadd.f32 %v3560, 1.0
    %v3564 = vadd.f32 %v3562, 1.0
    %v3565 = vrcp.pop %v3563
    %v3566 = vmul.f32 1.0, %v3565
    %v3567 = vrcp.pop %v3564
    %v3568 = vmul.f32 1.0, %v3567
    %v3569 = vtanh.pop %v3491
    %v3570 = vtanh.pop %v3495
    %v3571 = vxor.u32 %v3492, 2147483648
    %v3572 = vxor.u32 %v3496, 2147483648
    %v3573 = vmul.f32 %v3571, 1.442695
    %v3574 = vpow.pop %v3573
    %v3575 = vmul.f32 %v3572, 1.442695
    %v3576 = vpow.pop %v3575
    %v3577 = vadd.f32 %v3574, 1.0
    %v3578 = vadd.f32 %v3576, 1.0
    %v3579 = vrcp.pop %v3577
    %v3580 = vmul.f32 1.0, %v3579
    %v3581 = vrcp.pop %v3578
    %v3582 = vmul.f32 1.0, %v3581
    %v3583 = vmul.f32 %v3566, %v3271
    %v3584 = vmul.f32 %v3568, %v3272
    %v3585 = vmul.f32 %v3554, %v3569
    %v3586 = vmul.f32 %v3556, %v3570
    %v3587 = vadd.f32 %v3583, %v3585
    %v3588 = vadd.f32 %v3584, %v3586
    %v3589 = vtanh.pop %v3587
    %v3590 = vtanh.pop %v3588
    %v3591 = vmul.f32 %v3580, %v3589
    %v3592 = vmul.f32 %v3582, %v3590
    %v3593 = vpack.c.bf16 %v3544, %v3543
    %v3594 = vpack.c.bf16 %v3592, %v3591
    %s3595 = scalar_lea.vmem [#allocation3], 64
    %3596 = vst [vmem:[%s3595] sm:$0xff] %v3593
    %s3597 = scalar_lea.vmem [#allocation3], 176
    %3598 = vst [vmem:[%s3597 + $0x8] sm:$0xff] %v3594
    %s3599 = scalar_lea.vmem [#allocation2], 320
    %v3600 = vld [vmem:[%s3599] sm:$0xff]
    %v3601 = vld [vmem:[%s3599 + $0x8] sm:$0xff]
    %v3602 = vld [vmem:[%s3599 + $0x10] sm:$0xff]
    %v3603 = vld [vmem:[%s3599 + $0x18] sm:$0xff]
    %v3604 = vunpack.c.l.bf16 %v3600
    %v3605 = vunpack.c.l.bf16 %v3601
    %v3606 = vunpack.c.l.bf16 %v3602
    %v3607 = vunpack.c.l.bf16 %v3603
    %v3608 = vunpack.c.h.bf16 %v3600
    %v3609 = vunpack.c.h.bf16 %v3601
    %v3610 = vunpack.c.h.bf16 %v3602
    %v3611 = vunpack.c.h.bf16 %v3603
    %3612 = vmatprep.subr.bf16.mxu0 %v1810
    %3613 = vmatpush1.bf16.msra.mxu0 %v1809
    %3614 = vmatprep.subr.bf16.mxu0 %v1814
    %3615 = vmatpush1.bf16.msra.mxu0 %v1813
    %3616 = vmatprep.subr.bf16.mxu0 %v1818
    %3617 = vmatpush1.bf16.msra.mxu0 %v1817
    %3618 = vmatprep.subr.bf16.mxu0 %v1822
    %3619 = vmatpush1.bf16.msra.mxu0 %v1821
    %3620 = vmatprep.subr.bf16.mxu0 %v1826
    %3621 = vmatpush1.bf16.msra.mxu0 %v1825
    %3622 = vmatprep.subr.bf16.mxu0 %v1830
    %3623 = vmatpush1.bf16.msra.mxu0 %v1829
    %3624 = vmatprep.subr.bf16.mxu0 %v1834
    %3625 = vmatpush1.bf16.msra.mxu0 %v1833
    %3626 = vmatprep.subr.bf16.mxu0 %v1838
    %3627 = vmatpush1.bf16.msra.mxu0 %v1837
    %3628 = vmatprep.subr.bf16.mxu0 0
    %3629 = vmatpush1.bf16.msra.mxu0 0
    %3630 = vmatprep.subr.bf16.mxu0 0
    %3631 = vmatpush1.bf16.msra.mxu0 0
    %3632 = vmatprep.subr.bf16.mxu0 0
    %3633 = vmatpush1.bf16.msra.mxu0 0
    %3634 = vmatprep.subr.bf16.mxu0 0
    %3635 = vmatpush1.bf16.msra.mxu0 0
    %3636 = vmatprep.subr.bf16.mxu0 0
    %3637 = vmatpush1.bf16.msra.mxu0 0
    %3638 = vmatprep.subr.bf16.mxu0 0
    %3639 = vmatpush1.bf16.msra.mxu0 0
    %3640 = vmatprep.subr.bf16.mxu0 0
    %3641 = vmatpush1.bf16.msra.mxu0 0
    %3642 = vmatprep.subr.bf16.mxu0 0
    %3643 = vmatpush1.bf16.msra.mxu0 0
    %3644 = vmatprep.mubr.bf16.mxu0 0
    %3645 = vmatmul.mubr.bf16.gmra.mrb[0].mxu0 %v3593
    %v3646 = vpop.f32.mrb[0].mxu0
    %v3647 = vadd.f32 0.0, %v3646
    %v3648 = vpop.f32.mrb[0].mxu0
    %v3649 = vadd.f32 0.0, %v3648
    %v3650 = vpop.f32.mrb[0].mxu0
    %v3651 = vadd.f32 0.0, %v3650
    %v3652 = vpop.f32.mrb[0].mxu0
    %v3653 = vadd.f32 0.0, %v3652
    %3654 = vdwg.mxu0
    %3655 = vmatprep.subr.bf16.mxu0 %v1812
    %3656 = vmatpush1.bf16.msra.mxu0 %v1811
    %3657 = vmatprep.subr.bf16.mxu0 %v1816
    %3658 = vmatpush1.bf16.msra.mxu0 %v1815
    %3659 = vmatprep.subr.bf16.mxu0 %v1820
    %3660 = vmatpush1.bf16.msra.mxu0 %v1819
    %3661 = vmatprep.subr.bf16.mxu0 %v1824
    %3662 = vmatpush1.bf16.msra.mxu0 %v1823
    %3663 = vmatprep.subr.bf16.mxu0 %v1828
    %3664 = vmatpush1.bf16.msra.mxu0 %v1827
    %3665 = vmatprep.subr.bf16.mxu0 %v1832
    %3666 = vmatpush1.bf16.msra.mxu0 %v1831
    %3667 = vmatprep.subr.bf16.mxu0 %v1836
    %3668 = vmatpush1.bf16.msra.mxu0 %v1835
    %3669 = vmatprep.subr.bf16.mxu0 %v1840
    %3670 = vmatpush1.bf16.msra.mxu0 %v1839
    %3671 = vmatprep.subr.bf16.mxu0 0
    %3672 = vmatpush1.bf16.msra.mxu0 0
    %3673 = vmatprep.subr.bf16.mxu0 0
    %3674 = vmatpush1.bf16.msra.mxu0 0
    %3675 = vmatprep.subr.bf16.mxu0 0
    %3676 = vmatpush1.bf16.msra.mxu0 0
    %3677 = vmatprep.subr.bf16.mxu0 0
    %3678 = vmatpush1.bf16.msra.mxu0 0
    %3679 = vmatprep.subr.bf16.mxu0 0
    %3680 = vmatpush1.bf16.msra.mxu0 0
    %3681 = vmatprep.subr.bf16.mxu0 0
    %3682 = vmatpush1.bf16.msra.mxu0 0
    %3683 = vmatprep.subr.bf16.mxu0 0
    %3684 = vmatpush1.bf16.msra.mxu0 0
    %3685 = vmatprep.subr.bf16.mxu0 0
    %3686 = vmatpush1.bf16.msra.mxu0 0
    %3687 = vmatprep.mubr.bf16.mxu0 0
    %3688 = vmatmul.mubr.bf16.gmra.mrb[0].mxu0 %v3593
    %v3689 = vpop.f32.mrb[0].mxu0
    %v3690 = vadd.f32 0.0, %v3689
    %v3691 = vpop.f32.mrb[0].mxu0
    %v3692 = vadd.f32 0.0, %v3691
    %v3693 = vpop.f32.mrb[0].mxu0
    %v3694 = vadd.f32 0.0, %v3693
    %v3695 = vpop.f32.mrb[0].mxu0
    %v3696 = vadd.f32 0.0, %v3695
    %3697 = vdwg.mxu0
    %v3698 = vadd.f32 %v3604, %v3647
    %v3699 = vadd.f32 %v3605, %v3649
    %v3700 = vadd.f32 %v3606, %v3690
    %v3701 = vadd.f32 %v3607, %v3692
    %v3702 = vadd.f32 %v3608, %v3651
    %v3703 = vadd.f32 %v3609, %v3653
    %v3704 = vadd.f32 %v3610, %v3694
    %v3705 = vadd.f32 %v3611, %v3696
    %s3706 = scalar_lea.vmem [#allocation2], 640
    %v3707 = vld [vmem:[%s3706 + $0x20] sm:$0xff]
    %v3708 = vld [vmem:[%s3706 + $0x28] sm:$0xff]
    %v3709 = vld [vmem:[%s3706 + $0x30] sm:$0xff]
    %v3710 = vld [vmem:[%s3706 + $0x38] sm:$0xff]
    %v3711 = vunpack.c.l.bf16 %v3707
    %v3712 = vunpack.c.l.bf16 %v3708
    %v3713 = vunpack.c.l.bf16 %v3709
    %v3714 = vunpack.c.l.bf16 %v3710
    %v3715 = vunpack.c.h.bf16 %v3707
    %v3716 = vunpack.c.h.bf16 %v3708
    %v3717 = vunpack.c.h.bf16 %v3709
    %v3718 = vunpack.c.h.bf16 %v3710
    %3719 = vmatprep.subr.bf16.mxu0 %v2077
    %3720 = vmatpush1.bf16.msra.mxu0 %v2076
    %3721 = vmatprep.subr.bf16.mxu0 %v2081
    %3722 = vmatpush1.bf16.msra.mxu0 %v2080
    %3723 = vmatprep.subr.bf16.mxu0 %v2085
    %3724 = vmatpush1.bf16.msra.mxu0 %v2084
    %3725 = vmatprep.subr.bf16.mxu0 %v2089
    %3726 = vmatpush1.bf16.msra.mxu0 %v2088
    %3727 = vmatprep.subr.bf16.mxu0 %v2093
    %3728 = vmatpush1.bf16.msra.mxu0 %v2092
    %3729 = vmatprep.subr.bf16.mxu0 %v2097
    %3730 = vmatpush1.bf16.msra.mxu0 %v2096
    %3731 = vmatprep.subr.bf16.mxu0 %v2101
    %3732 = vmatpush1.bf16.msra.mxu0 %v2100
    %3733 = vmatprep.subr.bf16.mxu0 %v2105
    %3734 = vmatpush1.bf16.msra.mxu0 %v2104
    %3735 = vmatprep.subr.bf16.mxu0 0
    %3736 = vmatpush1.bf16.msra.mxu0 0
    %3737 = vmatprep.subr.bf16.mxu0 0
    %3738 = vmatpush1.bf16.msra.mxu0 0
    %3739 = vmatprep.subr.bf16.mxu0 0
    %3740 = vmatpush1.bf16.msra.mxu0 0
    %3741 = vmatprep.subr.bf16.mxu0 0
    %3742 = vmatpush1.bf16.msra.mxu0 0
    %3743 = vmatprep.subr.bf16.mxu0 0
    %3744 = vmatpush1.bf16.msra.mxu0 0
    %3745 = vmatprep.subr.bf16.mxu0 0
    %3746 = vmatpush1.bf16.msra.mxu0 0
    %3747 = vmatprep.subr.bf16.mxu0 0
    %3748 = vmatpush1.bf16.msra.mxu0 0
    %3749 = vmatprep.subr.bf16.mxu0 0
    %3750 = vmatpush1.bf16.msra.mxu0 0
    %3751 = vmatprep.mubr.bf16.mxu0 0
    %3752 = vmatmul.mubr.bf16.gmra.mrb[0].mxu0 %v3594
    %v3753 = vpop.f32.mrb[0].mxu0
    %v3754 = vadd.f32 0.0, %v3753
    %v3755 = vpop.f32.mrb[0].mxu0
    %v3756 = vadd.f32 0.0, %v3755
    %v3757 = vpop.f32.mrb[0].mxu0
    %v3758 = vadd.f32 0.0, %v3757
    %v3759 = vpop.f32.mrb[0].mxu0
    %v3760 = vadd.f32 0.0, %v3759
    %3761 = vdwg.mxu0
    %3762 = vmatprep.subr.bf16.mxu0 %v2079
    %3763 = vmatpush1.bf16.msra.mxu0 %v2078
    %3764 = vmatprep.subr.bf16.mxu0 %v2083
    %3765 = vmatpush1.bf16.msra.mxu0 %v2082
    %3766 = vmatprep.subr.bf16.mxu0 %v2087
    %3767 = vmatpush1.bf16.msra.mxu0 %v2086
    %3768 = vmatprep.subr.bf16.mxu0 %v2091
    %3769 = vmatpush1.bf16.msra.mxu0 %v2090
    %3770 = vmatprep.subr.bf16.mxu0 %v2095
    %3771 = vmatpush1.bf16.msra.mxu0 %v2094
    %3772 = vmatprep.subr.bf16.mxu0 %v2099
    %3773 = vmatpush1.bf16.msra.mxu0 %v2098
    %3774 = vmatprep.subr.bf16.mxu0 %v2103
    %3775 = vmatpush1.bf16.msra.mxu0 %v2102
    %3776 = vmatprep.subr.bf16.mxu0 %v2107
    %3777 = vmatpush1.bf16.msra.mxu0 %v2106
    %3778 = vmatprep.subr.bf16.mxu0 0
    %3779 = vmatpush1.bf16.msra.mxu0 0
    %3780 = vmatprep.subr.bf16.mxu0 0
    %3781 = vmatpush1.bf16.msra.mxu0 0
    %3782 = vmatprep.subr.bf16.mxu0 0
    %3783 = vmatpush1.bf16.msra.mxu0 0
    %3784 = vmatprep.subr.bf16.mxu0 0
    %3785 = vmatpush1.bf16.msra.mxu0 0
    %3786 = vmatprep.subr.bf16.mxu0 0
    %3787 = vmatpush1.bf16.msra.mxu0 0
    %3788 = vmatprep.subr.bf16.mxu0 0
    %3789 = vmatpush1.bf16.msra.mxu0 0
    %3790 = vmatprep.subr.bf16.mxu0 0
    %3791 = vmatpush1.bf16.msra.mxu0 0
    %3792 = vmatprep.subr.bf16.mxu0 0
    %3793 = vmatpush1.bf16.msra.mxu0 0
    %3794 = vmatprep.mubr.bf16.mxu0 0
    %3795 = vmatmul.mubr.bf16.gmra.mrb[0].mxu0 %v3594
    %v3796 = vpop.f32.mrb[0].mxu0
    %v3797 = vadd.f32 0.0, %v3796
    %v3798 = vpop.f32.mrb[0].mxu0
    %v3799 = vadd.f32 0.0, %v3798
    %v3800 = vpop.f32.mrb[0].mxu0
    %v3801 = vadd.f32 0.0, %v3800
    %v3802 = vpop.f32.mrb[0].mxu0
    %v3803 = vadd.f32 0.0, %v3802
    %3804 = vdwg.mxu0
    %v3805 = vadd.f32 %v3711, %v3754
    %v3806 = vadd.f32 %v3712, %v3756
    %v3807 = vadd.f32 %v3713, %v3797
    %v3808 = vadd.f32 %v3714, %v3799
    %v3809 = vadd.f32 %v3715, %v3758
    %v3810 = vadd.f32 %v3716, %v3760
    %v3811 = vadd.f32 %v3717, %v3801
    %v3812 = vadd.f32 %v3718, %v3803
    %v3813 = vxor.u32 %v3698, 2147483648
    %v3814 = vxor.u32 %v3702, 2147483648
    %v3815 = vmul.f32 %v3813, 1.442695
    %v3816 = vpow.pop %v3815
    %v3817 = vmul.f32 %v3814, 1.442695
    %v3818 = vpow.pop %v3817
    %v3819 = vadd.f32 %v3816, 1.0
    %v3820 = vadd.f32 %v3818, 1.0
    %v3821 = vrcp.pop %v3819
    %v3822 = vmul.f32 1.0, %v3821
    %v3823 = vrcp.pop %v3820
    %v3824 = vmul.f32 1.0, %v3823
    %v3825 = vxor.u32 %v3699, 2147483648
    %v3826 = vxor.u32 %v3703, 2147483648
    %v3827 = vmul.f32 %v3825, 1.442695
    %v3828 = vpow.pop %v3827
    %v3829 = vmul.f32 %v3826, 1.442695
    %v3830 = vpow.pop %v3829
    %v3831 = vadd.f32 %v3828, 1.0
    %v3832 = vadd.f32 %v3830, 1.0
    %v3833 = vrcp.pop %v3831
    %v3834 = vmul.f32 1.0, %v3833
    %v3835 = vrcp.pop %v3832
    %v3836 = vmul.f32 1.0, %v3835
    %v3837 = vtanh.pop %v3700
    %v3838 = vtanh.pop %v3704
    %v3839 = vxor.u32 %v3701, 2147483648
    %v3840 = vxor.u32 %v3705, 2147483648
    %v3841 = vmul.f32 %v3839, 1.442695
    %v3842 = vpow.pop %v3841
    %v3843 = vmul.f32 %v3840, 1.442695
    %v3844 = vpow.pop %v3843
    %v3845 = vadd.f32 %v3842, 1.0
    %v3846 = vadd.f32 %v3844, 1.0
    %v3847 = vrcp.pop %v3845
    %v3848 = vmul.f32 1.0, %v3847
    %v3849 = vrcp.pop %v3846
    %v3850 = vmul.f32 1.0, %v3849
    %v3851 = vmul.f32 %v3834, %v3539
    %v3852 = vmul.f32 %v3836, %v3540
    %v3853 = vmul.f32 %v3822, %v3837
    %v3854 = vmul.f32 %v3824, %v3838
    %v3855 = vadd.f32 %v3851, %v3853
    %v3856 = vadd.f32 %v3852, %v3854
    %v3857 = vtanh.pop %v3855
    %v3858 = vtanh.pop %v3856
    %v3859 = vmul.f32 %v3848, %v3857
    %v3860 = vmul.f32 %v3850, %v3858
    %v3861 = vxor.u32 %v3805, 2147483648
    %v3862 = vxor.u32 %v3809, 2147483648
    %v3863 = vmul.f32 %v3861, 1.442695
    %v3864 = vpow.pop %v3863
    %v3865 = vmul.f32 %v3862, 1.442695
    %v3866 = vpow.pop %v3865
    %v3867 = vadd.f32 %v3864, 1.0
    %v3868 = vadd.f32 %v3866, 1.0
    %v3869 = vrcp.pop %v3867
    %v3870 = vmul.f32 1.0, %v3869
    %v3871 = vrcp.pop %v3868
    %v3872 = vmul.f32 1.0, %v3871
    %v3873 = vxor.u32 %v3806, 2147483648
    %v3874 = vxor.u32 %v3810, 2147483648
    %v3875 = vmul.f32 %v3873, 1.442695
    %v3876 = vpow.pop %v3875
    %v3877 = vmul.f32 %v3874, 1.442695
    %v3878 = vpow.pop %v3877
    %v3879 = vadd.f32 %v3876, 1.0
    %v3880 = vadd.f32 %v3878, 1.0
    %v3881 = vrcp.pop %v3879
    %v3882 = vmul.f32 1.0, %v3881
    %v3883 = vrcp.pop %v3880
    %v3884 = vmul.f32 1.0, %v3883
    %v3885 = vtanh.pop %v3807
    %v3886 = vtanh.pop %v3811
    %v3887 = vxor.u32 %v3808, 2147483648
    %v3888 = vxor.u32 %v3812, 2147483648
    %v3889 = vmul.f32 %v3887, 1.442695
    %v3890 = vpow.pop %v3889
    %v3891 = vmul.f32 %v3888, 1.442695
    %v3892 = vpow.pop %v3891
    %v3893 = vadd.f32 %v3890, 1.0
    %v3894 = vadd.f32 %v3892, 1.0
    %v3895 = vrcp.pop %v3893
    %v3896 = vmul.f32 1.0, %v3895
    %v3897 = vrcp.pop %v3894
    %v3898 = vmul.f32 1.0, %v3897
    %v3899 = vmul.f32 %v3882, %v3587
    %v3900 = vmul.f32 %v3884, %v3588
    %v3901 = vmul.f32 %v3870, %v3885
    %v3902 = vmul.f32 %v3872, %v3886
    %v3903 = vadd.f32 %v3899, %v3901
    %v3904 = vadd.f32 %v3900, %v3902
    %v3905 = vtanh.pop %v3903
    %v3906 = vtanh.pop %v3904
    %v3907 = vmul.f32 %v3896, %v3905
    %v3908 = vmul.f32 %v3898, %v3906
    %v3909 = vpack.c.bf16 %v3860, %v3859
    %v3910 = vpack.c.bf16 %v3908, %v3907
    %s3911 = scalar_lea.vmem [#allocation3], 80
    %3912 = vst [vmem:[%s3911] sm:$0xff] %v3909
    %s3913 = scalar_lea.vmem [#allocation3], 160
    %3914 = vst [vmem:[%s3913 + $0x8] sm:$0xff] %v3910
    %s3915 = scalar_lea.vmem [#allocation2], 384
    %v3916 = vld [vmem:[%s3915] sm:$0xff]
    %v3917 = vld [vmem:[%s3915 + $0x8] sm:$0xff]
    %v3918 = vld [vmem:[%s3915 + $0x10] sm:$0xff]
    %v3919 = vld [vmem:[%s3915 + $0x18] sm:$0xff]
    %v3920 = vunpack.c.l.bf16 %v3916
    %v3921 = vunpack.c.l.bf16 %v3917
    %v3922 = vunpack.c.l.bf16 %v3918
    %v3923 = vunpack.c.l.bf16 %v3919
    %v3924 = vunpack.c.h.bf16 %v3916
    %v3925 = vunpack.c.h.bf16 %v3917
    %v3926 = vunpack.c.h.bf16 %v3918
    %v3927 = vunpack.c.h.bf16 %v3919
    %3928 = vmatprep.subr.bf16.mxu0 %v1810
    %3929 = vmatpush1.bf16.msra.mxu0 %v1809
    %3930 = vmatprep.subr.bf16.mxu0 %v1814
    %3931 = vmatpush1.bf16.msra.mxu0 %v1813
    %3932 = vmatprep.subr.bf16.mxu0 %v1818
    %3933 = vmatpush1.bf16.msra.mxu0 %v1817
    %3934 = vmatprep.subr.bf16.mxu0 %v1822
    %3935 = vmatpush1.bf16.msra.mxu0 %v1821
    %3936 = vmatprep.subr.bf16.mxu0 %v1826
    %3937 = vmatpush1.bf16.msra.mxu0 %v1825
    %3938 = vmatprep.subr.bf16.mxu0 %v1830
    %3939 = vmatpush1.bf16.msra.mxu0 %v1829
    %3940 = vmatprep.subr.bf16.mxu0 %v1834
    %3941 = vmatpush1.bf16.msra.mxu0 %v1833
    %3942 = vmatprep.subr.bf16.mxu0 %v1838
    %3943 = vmatpush1.bf16.msra.mxu0 %v1837
    %3944 = vmatprep.subr.bf16.mxu0 0
    %3945 = vmatpush1.bf16.msra.mxu0 0
    %3946 = vmatprep.subr.bf16.mxu0 0
    %3947 = vmatpush1.bf16.msra.mxu0 0
    %3948 = vmatprep.subr.bf16.mxu0 0
    %3949 = vmatpush1.bf16.msra.mxu0 0
    %3950 = vmatprep.subr.bf16.mxu0 0
    %3951 = vmatpush1.bf16.msra.mxu0 0
    %3952 = vmatprep.subr.bf16.mxu0 0
    %3953 = vmatpush1.bf16.msra.mxu0 0
    %3954 = vmatprep.subr.bf16.mxu0 0
    %3955 = vmatpush1.bf16.msra.mxu0 0
    %3956 = vmatprep.subr.bf16.mxu0 0
    %3957 = vmatpush1.bf16.msra.mxu0 0
    %3958 = vmatprep.subr.bf16.mxu0 0
    %3959 = vmatpush1.bf16.msra.mxu0 0
    %3960 = vmatprep.mubr.bf16.mxu0 0
    %3961 = vmatmul.mubr.bf16.gmra.mrb[0].mxu0 %v3909
    %v3962 = vpop.f32.mrb[0].mxu0
    %v3963 = vadd.f32 0.0, %v3962
    %v3964 = vpop.f32.mrb[0].mxu0
    %v3965 = vadd.f32 0.0, %v3964
    %v3966 = vpop.f32.mrb[0].mxu0
    %v3967 = vadd.f32 0.0, %v3966
    %v3968 = vpop.f32.mrb[0].mxu0
    %v3969 = vadd.f32 0.0, %v3968
    %3970 = vdwg.mxu0
    %3971 = vmatprep.subr.bf16.mxu0 %v1812
    %3972 = vmatpush1.bf16.msra.mxu0 %v1811
    %3973 = vmatprep.subr.bf16.mxu0 %v1816
    %3974 = vmatpush1.bf16.msra.mxu0 %v1815
    %3975 = vmatprep.subr.bf16.mxu0 %v1820
    %3976 = vmatpush1.bf16.msra.mxu0 %v1819
    %3977 = vmatprep.subr.bf16.mxu0 %v1824
    %3978 = vmatpush1.bf16.msra.mxu0 %v1823
    %3979 = vmatprep.subr.bf16.mxu0 %v1828
    %3980 = vmatpush1.bf16.msra.mxu0 %v1827
    %3981 = vmatprep.subr.bf16.mxu0 %v1832
    %3982 = vmatpush1.bf16.msra.mxu0 %v1831
    %3983 = vmatprep.subr.bf16.mxu0 %v1836
    %3984 = vmatpush1.bf16.msra.mxu0 %v1835
    %3985 = vmatprep.subr.bf16.mxu0 %v1840
    %3986 = vmatpush1.bf16.msra.mxu0 %v1839
    %3987 = vmatprep.subr.bf16.mxu0 0
    %3988 = vmatpush1.bf16.msra.mxu0 0
    %3989 = vmatprep.subr.bf16.mxu0 0
    %3990 = vmatpush1.bf16.msra.mxu0 0
    %3991 = vmatprep.subr.bf16.mxu0 0
    %3992 = vmatpush1.bf16.msra.mxu0 0
    %3993 = vmatprep.subr.bf16.mxu0 0
    %3994 = vmatpush1.bf16.msra.mxu0 0
    %3995 = vmatprep.subr.bf16.mxu0 0
    %3996 = vmatpush1.bf16.msra.mxu0 0
    %3997 = vmatprep.subr.bf16.mxu0 0
    %3998 = vmatpush1.bf16.msra.mxu0 0
    %3999 = vmatprep.subr.bf16.mxu0 0
    %4000 = vmatpush1.bf16.msra.mxu0 0
    %4001 = vmatprep.subr.bf16.mxu0 0
    %4002 = vmatpush1.bf16.msra.mxu0 0
    %4003 = vmatprep.mubr.bf16.mxu0 0
    %4004 = vmatmul.mubr.bf16.gmra.mrb[0].mxu0 %v3909
    %v4005 = vpop.f32.mrb[0].mxu0
    %v4006 = vadd.f32 0.0, %v4005
    %v4007 = vpop.f32.mrb[0].mxu0
    %v4008 = vadd.f32 0.0, %v4007
    %v4009 = vpop.f32.mrb[0].mxu0
    %v4010 = vadd.f32 0.0, %v4009
    %v4011 = vpop.f32.mrb[0].mxu0
    %v4012 = vadd.f32 0.0, %v4011
    %4013 = vdwg.mxu0
    %v4014 = vadd.f32 %v3920, %v3963
    %v4015 = vadd.f32 %v3921, %v3965
    %v4016 = vadd.f32 %v3922, %v4006
    %v4017 = vadd.f32 %v3923, %v4008
    %v4018 = vadd.f32 %v3924, %v3967
    %v4019 = vadd.f32 %v3925, %v3969
    %v4020 = vadd.f32 %v3926, %v4010
    %v4021 = vadd.f32 %v3927, %v4012
    %s4022 = scalar_lea.vmem [#allocation2], 576
    %v4023 = vld [vmem:[%s4022 + $0x20] sm:$0xff]
    %v4024 = vld [vmem:[%s4022 + $0x28] sm:$0xff]
    %v4025 = vld [vmem:[%s4022 + $0x30] sm:$0xff]
    %v4026 = vld [vmem:[%s4022 + $0x38] sm:$0xff]
    %v4027 = vunpack.c.l.bf16 %v4023
    %v4028 = vunpack.c.l.bf16 %v4024
    %v4029 = vunpack.c.l.bf16 %v4025
    %v4030 = vunpack.c.l.bf16 %v4026
    %v4031 = vunpack.c.h.bf16 %v4023
    %v4032 = vunpack.c.h.bf16 %v4024
    %v4033 = vunpack.c.h.bf16 %v4025
    %v4034 = vunpack.c.h.bf16 %v4026
    %4035 = vmatprep.subr.bf16.mxu0 %v2077
    %4036 = vmatpush1.bf16.msra.mxu0 %v2076
    %4037 = vmatprep.subr.bf16.mxu0 %v2081
    %4038 = vmatpush1.bf16.msra.mxu0 %v2080
    %4039 = vmatprep.subr.bf16.mxu0 %v2085
    %4040 = vmatpush1.bf16.msra.mxu0 %v2084
    %4041 = vmatprep.subr.bf16.mxu0 %v2089
    %4042 = vmatpush1.bf16.msra.mxu0 %v2088
    %4043 = vmatprep.subr.bf16.mxu0 %v2093
    %4044 = vmatpush1.bf16.msra.mxu0 %v2092
    %4045 = vmatprep.subr.bf16.mxu0 %v2097
    %4046 = vmatpush1.bf16.msra.mxu0 %v2096
    %4047 = vmatprep.subr.bf16.mxu0 %v2101
    %4048 = vmatpush1.bf16.msra.mxu0 %v2100
    %4049 = vmatprep.subr.bf16.mxu0 %v2105
    %4050 = vmatpush1.bf16.msra.mxu0 %v2104
    %4051 = vmatprep.subr.bf16.mxu0 0
    %4052 = vmatpush1.bf16.msra.mxu0 0
    %4053 = vmatprep.subr.bf16.mxu0 0
    %4054 = vmatpush1.bf16.msra.mxu0 0
    %4055 = vmatprep.subr.bf16.mxu0 0
    %4056 = vmatpush1.bf16.msra.mxu0 0
    %4057 = vmatprep.subr.bf16.mxu0 0
    %4058 = vmatpush1.bf16.msra.mxu0 0
    %4059 = vmatprep.subr.bf16.mxu0 0
    %4060 = vmatpush1.bf16.msra.mxu0 0
    %4061 = vmatprep.subr.bf16.mxu0 0
    %4062 = vmatpush1.bf16.msra.mxu0 0
    %4063 = vmatprep.subr.bf16.mxu0 0
    %4064 = vmatpush1.bf16.msra.mxu0 0
    %4065 = vmatprep.subr.bf16.mxu0 0
    %4066 = vmatpush1.bf16.msra.mxu0 0
    %4067 = vmatprep.mubr.bf16.mxu0 0
    %4068 = vmatmul.mubr.bf16.gmra.mrb[0].mxu0 %v3910
    %v4069 = vpop.f32.mrb[0].mxu0
    %v4070 = vadd.f32 0.0, %v4069
    %v4071 = vpop.f32.mrb[0].mxu0
    %v4072 = vadd.f32 0.0, %v4071
    %v4073 = vpop.f32.mrb[0].mxu0
    %v4074 = vadd.f32 0.0, %v4073
    %v4075 = vpop.f32.mrb[0].mxu0
    %v4076 = vadd.f32 0.0, %v4075
    %4077 = vdwg.mxu0
    %4078 = vmatprep.subr.bf16.mxu0 %v2079
    %4079 = vmatpush1.bf16.msra.mxu0 %v2078
    %4080 = vmatprep.subr.bf16.mxu0 %v2083
    %4081 = vmatpush1.bf16.msra.mxu0 %v2082
    %4082 = vmatprep.subr.bf16.mxu0 %v2087
    %4083 = vmatpush1.bf16.msra.mxu0 %v2086
    %4084 = vmatprep.subr.bf16.mxu0 %v2091
    %4085 = vmatpush1.bf16.msra.mxu0 %v2090
    %4086 = vmatprep.subr.bf16.mxu0 %v2095
    %4087 = vmatpush1.bf16.msra.mxu0 %v2094
    %4088 = vmatprep.subr.bf16.mxu0 %v2099
    %4089 = vmatpush1.bf16.msra.mxu0 %v2098
    %4090 = vmatprep.subr.bf16.mxu0 %v2103
    %4091 = vmatpush1.bf16.msra.mxu0 %v2102
    %4092 = vmatprep.subr.bf16.mxu0 %v2107
    %4093 = vmatpush1.bf16.msra.mxu0 %v2106
    %4094 = vmatprep.subr.bf16.mxu0 0
    %4095 = vmatpush1.bf16.msra.mxu0 0
    %4096 = vmatprep.subr.bf16.mxu0 0
    %4097 = vmatpush1.bf16.msra.mxu0 0
    %4098 = vmatprep.subr.bf16.mxu0 0
    %4099 = vmatpush1.bf16.msra.mxu0 0
    %4100 = vmatprep.subr.bf16.mxu0 0
    %4101 = vmatpush1.bf16.msra.mxu0 0
    %4102 = vmatprep.subr.bf16.mxu0 0
    %4103 = vmatpush1.bf16.msra.mxu0 0
    %4104 = vmatprep.subr.bf16.mxu0 0
    %4105 = vmatpush1.bf16.msra.mxu0 0
    %4106 = vmatprep.subr.bf16.mxu0 0
    %4107 = vmatpush1.bf16.msra.mxu0 0
    %4108 = vmatprep.subr.bf16.mxu0 0
    %4109 = vmatpush1.bf16.msra.mxu0 0
    %4110 = vmatprep.mubr.bf16.mxu0 0
    %4111 = vmatmul.mubr.bf16.gmra.mrb[0].mxu0 %v3910
    %v4112 = vpop.f32.mrb[0].mxu0
    %v4113 = vadd.f32 0.0, %v4112
    %v4114 = vpop.f32.mrb[0].mxu0
    %v4115 = vadd.f32 0.0, %v4114
    %v4116 = vpop.f32.mrb[0].mxu0
    %v4117 = vadd.f32 0.0, %v4116
    %v4118 = vpop.f32.mrb[0].mxu0
    %v4119 = vadd.f32 0.0, %v4118
    %4120 = vdwg.mxu0
    %v4121 = vadd.f32 %v4027, %v4070
    %v4122 = vadd.f32 %v4028, %v4072
    %v4123 = vadd.f32 %v4029, %v4113
    %v4124 = vadd.f32 %v4030, %v4115
    %v4125 = vadd.f32 %v4031, %v4074
    %v4126 = vadd.f32 %v4032, %v4076
    %v4127 = vadd.f32 %v4033, %v4117
    %v4128 = vadd.f32 %v4034, %v4119
    %v4129 = vxor.u32 %v4014, 2147483648
    %v4130 = vxor.u32 %v4018, 2147483648
    %v4131 = vmul.f32 %v4129, 1.442695
    %v4132 = vpow.pop %v4131
    %v4133 = vmul.f32 %v4130, 1.442695
    %v4134 = vpow.pop %v4133
    %v4135 = vadd.f32 %v4132, 1.0
    %v4136 = vadd.f32 %v4134, 1.0
    %v4137 = vrcp.pop %v4135
    %v4138 = vmul.f32 1.0, %v4137
    %v4139 = vrcp.pop %v4136
    %v4140 = vmul.f32 1.0, %v4139
    %v4141 = vxor.u32 %v4015, 2147483648
    %v4142 = vxor.u32 %v4019, 2147483648
    %v4143 = vmul.f32 %v4141, 1.442695
    %v4144 = vpow.pop %v4143
    %v4145 = vmul.f32 %v4142, 1.442695
    %v4146 = vpow.pop %v4145
    %v4147 = vadd.f32 %v4144, 1.0
    %v4148 = vadd.f32 %v4146, 1.0
    %v4149 = vrcp.pop %v4147
    %v4150 = vmul.f32 1.0, %v4149
    %v4151 = vrcp.pop %v4148
    %v4152 = vmul.f32 1.0, %v4151
    %v4153 = vtanh.pop %v4016
    %v4154 = vtanh.pop %v4020
    %v4155 = vxor.u32 %v4017, 2147483648
    %v4156 = vxor.u32 %v4021, 2147483648
    %v4157 = vmul.f32 %v4155, 1.442695
    %v4158 = vpow.pop %v4157
    %v4159 = vmul.f32 %v4156, 1.442695
    %v4160 = vpow.pop %v4159
    %v4161 = vadd.f32 %v4158, 1.0
    %v4162 = vadd.f32 %v4160, 1.0
    %v4163 = vrcp.pop %v4161
    %v4164 = vmul.f32 1.0, %v4163
    %v4165 = vrcp.pop %v4162
    %v4166 = vmul.f32 1.0, %v4165
    %v4167 = vmul.f32 %v4150, %v3855
    %v4168 = vmul.f32 %v4152, %v3856
    %v4169 = vmul.f32 %v4138, %v4153
    %v4170 = vmul.f32 %v4140, %v4154
    %v4171 = vadd.f32 %v4167, %v4169
    %v4172 = vadd.f32 %v4168, %v4170
    %v4173 = vtanh.pop %v4171
    %v4174 = vtanh.pop %v4172
    %v4175 = vmul.f32 %v4164, %v4173
    %v4176 = vmul.f32 %v4166, %v4174
    %v4177 = vxor.u32 %v4121, 2147483648
    %v4178 = vxor.u32 %v4125, 2147483648
    %v4179 = vmul.f32 %v4177, 1.442695
    %v4180 = vpow.pop %v4179
    %v4181 = vmul.f32 %v4178, 1.442695
    %v4182 = vpow.pop %v4181
    %v4183 = vadd.f32 %v4180, 1.0
    %v4184 = vadd.f32 %v4182, 1.0
    %v4185 = vrcp.pop %v4183
    %v4186 = vmul.f32 1.0, %v4185
    %v4187 = vrcp.pop %v4184
    %v4188 = vmul.f32 1.0, %v4187
    %v4189 = vxor.u32 %v4122, 2147483648
    %v4190 = vxor.u32 %v4126, 2147483648
    %v4191 = vmul.f32 %v4189, 1.442695
    %v4192 = vpow.pop %v4191
    %v4193 = vmul.f32 %v4190, 1.442695
    %v4194 = vpow.pop %v4193
    %v4195 = vadd.f32 %v4192, 1.0
    %v4196 = vadd.f32 %v4194, 1.0
    %v4197 = vrcp.pop %v4195
    %v4198 = vmul.f32 1.0, %v4197
    %v4199 = vrcp.pop %v4196
    %v4200 = vmul.f32 1.0, %v4199
    %v4201 = vtanh.pop %v4123
    %v4202 = vtanh.pop %v4127
    %v4203 = vxor.u32 %v4124, 2147483648
    %v4204 = vxor.u32 %v4128, 2147483648
    %v4205 = vmul.f32 %v4203, 1.442695
    %v4206 = vpow.pop %v4205
    %v4207 = vmul.f32 %v4204, 1.442695
    %v4208 = vpow.pop %v4207
    %v4209 = vadd.f32 %v4206, 1.0
    %v4210 = vadd.f32 %v4208, 1.0
    %v4211 = vrcp.pop %v4209
    %v4212 = vmul.f32 1.0, %v4211
    %v4213 = vrcp.pop %v4210
    %v4214 = vmul.f32 1.0, %v4213
    %v4215 = vmul.f32 %v4198, %v3903
    %v4216 = vmul.f32 %v4200, %v3904
    %v4217 = vmul.f32 %v4186, %v4201
    %v4218 = vmul.f32 %v4188, %v4202
    %v4219 = vadd.f32 %v4215, %v4217
    %v4220 = vadd.f32 %v4216, %v4218
    %v4221 = vtanh.pop %v4219
    %v4222 = vtanh.pop %v4220
    %v4223 = vmul.f32 %v4212, %v4221
    %v4224 = vmul.f32 %v4214, %v4222
    %v4225 = vpack.c.bf16 %v4176, %v4175
    %v4226 = vpack.c.bf16 %v4224, %v4223
    %s4227 = scalar_lea.vmem [#allocation3], 96
    %4228 = vst [vmem:[%s4227] sm:$0xff] %v4225
    %s4229 = scalar_lea.vmem [#allocation3], 144
    %4230 = vst [vmem:[%s4229 + $0x8] sm:$0xff] %v4226
    %s4231 = scalar_lea.vmem [#allocation2], 448
    %v4232 = vld [vmem:[%s4231] sm:$0xff]
    %v4233 = vld [vmem:[%s4231 + $0x8] sm:$0xff]
    %v4234 = vld [vmem:[%s4231 + $0x10] sm:$0xff]
    %v4235 = vld [vmem:[%s4231 + $0x18] sm:$0xff]
    %v4236 = vunpack.c.l.bf16 %v4232
    %v4237 = vunpack.c.l.bf16 %v4233
    %v4238 = vunpack.c.l.bf16 %v4234
    %v4239 = vunpack.c.l.bf16 %v4235
    %v4240 = vunpack.c.h.bf16 %v4232
    %v4241 = vunpack.c.h.bf16 %v4233
    %v4242 = vunpack.c.h.bf16 %v4234
    %v4243 = vunpack.c.h.bf16 %v4235
    %4244 = vmatprep.subr.bf16.mxu0 %v1810
    %4245 = vmatpush1.bf16.msra.mxu0 %v1809
    %4246 = vmatprep.subr.bf16.mxu0 %v1814
    %4247 = vmatpush1.bf16.msra.mxu0 %v1813
    %4248 = vmatprep.subr.bf16.mxu0 %v1818
    %4249 = vmatpush1.bf16.msra.mxu0 %v1817
    %4250 = vmatprep.subr.bf16.mxu0 %v1822
    %4251 = vmatpush1.bf16.msra.mxu0 %v1821
    %4252 = vmatprep.subr.bf16.mxu0 %v1826
    %4253 = vmatpush1.bf16.msra.mxu0 %v1825
    %4254 = vmatprep.subr.bf16.mxu0 %v1830
    %4255 = vmatpush1.bf16.msra.mxu0 %v1829
    %4256 = vmatprep.subr.bf16.mxu0 %v1834
    %4257 = vmatpush1.bf16.msra.mxu0 %v1833
    %4258 = vmatprep.subr.bf16.mxu0 %v1838
    %4259 = vmatpush1.bf16.msra.mxu0 %v1837
    %4260 = vmatprep.subr.bf16.mxu0 0
    %4261 = vmatpush1.bf16.msra.mxu0 0
    %4262 = vmatprep.subr.bf16.mxu0 0
    %4263 = vmatpush1.bf16.msra.mxu0 0
    %4264 = vmatprep.subr.bf16.mxu0 0
    %4265 = vmatpush1.bf16.msra.mxu0 0
    %4266 = vmatprep.subr.bf16.mxu0 0
    %4267 = vmatpush1.bf16.msra.mxu0 0
    %4268 = vmatprep.subr.bf16.mxu0 0
    %4269 = vmatpush1.bf16.msra.mxu0 0
    %4270 = vmatprep.subr.bf16.mxu0 0
    %4271 = vmatpush1.bf16.msra.mxu0 0
    %4272 = vmatprep.subr.bf16.mxu0 0
    %4273 = vmatpush1.bf16.msra.mxu0 0
    %4274 = vmatprep.subr.bf16.mxu0 0
    %4275 = vmatpush1.bf16.msra.mxu0 0
    %4276 = vmatprep.mubr.bf16.mxu0 0
    %4277 = vmatmul.mubr.bf16.gmra.mrb[0].mxu0 %v4225
    %v4278 = vpop.f32.mrb[0].mxu0
    %v4279 = vadd.f32 0.0, %v4278
    %v4280 = vpop.f32.mrb[0].mxu0
    %v4281 = vadd.f32 0.0, %v4280
    %v4282 = vpop.f32.mrb[0].mxu0
    %v4283 = vadd.f32 0.0, %v4282
    %v4284 = vpop.f32.mrb[0].mxu0
    %v4285 = vadd.f32 0.0, %v4284
    %4286 = vdwg.mxu0
    %4287 = vmatprep.subr.bf16.mxu0 %v1812
    %4288 = vmatpush1.bf16.msra.mxu0 %v1811
    %4289 = vmatprep.subr.bf16.mxu0 %v1816
    %4290 = vmatpush1.bf16.msra.mxu0 %v1815
    %4291 = vmatprep.subr.bf16.mxu0 %v1820
    %4292 = vmatpush1.bf16.msra.mxu0 %v1819
    %4293 = vmatprep.subr.bf16.mxu0 %v1824
    %4294 = vmatpush1.bf16.msra.mxu0 %v1823
    %4295 = vmatprep.subr.bf16.mxu0 %v1828
    %4296 = vmatpush1.bf16.msra.mxu0 %v1827
    %4297 = vmatprep.subr.bf16.mxu0 %v1832
    %4298 = vmatpush1.bf16.msra.mxu0 %v1831
    %4299 = vmatprep.subr.bf16.mxu0 %v1836
    %4300 = vmatpush1.bf16.msra.mxu0 %v1835
    %4301 = vmatprep.subr.bf16.mxu0 %v1840
    %4302 = vmatpush1.bf16.msra.mxu0 %v1839
    %4303 = vmatprep.subr.bf16.mxu0 0
    %4304 = vmatpush1.bf16.msra.mxu0 0
    %4305 = vmatprep.subr.bf16.mxu0 0
    %4306 = vmatpush1.bf16.msra.mxu0 0
    %4307 = vmatprep.subr.bf16.mxu0 0
    %4308 = vmatpush1.bf16.msra.mxu0 0
    %4309 = vmatprep.subr.bf16.mxu0 0
    %4310 = vmatpush1.bf16.msra.mxu0 0
    %4311 = vmatprep.subr.bf16.mxu0 0
    %4312 = vmatpush1.bf16.msra.mxu0 0
    %4313 = vmatprep.subr.bf16.mxu0 0
    %4314 = vmatpush1.bf16.msra.mxu0 0
    %4315 = vmatprep.subr.bf16.mxu0 0
    %4316 = vmatpush1.bf16.msra.mxu0 0
    %4317 = vmatprep.subr.bf16.mxu0 0
    %4318 = vmatpush1.bf16.msra.mxu0 0
    %4319 = vmatprep.mubr.bf16.mxu0 0
    %4320 = vmatmul.mubr.bf16.gmra.mrb[0].mxu0 %v4225
    %v4321 = vpop.f32.mrb[0].mxu0
    %v4322 = vadd.f32 0.0, %v4321
    %v4323 = vpop.f32.mrb[0].mxu0
    %v4324 = vadd.f32 0.0, %v4323
    %v4325 = vpop.f32.mrb[0].mxu0
    %v4326 = vadd.f32 0.0, %v4325
    %v4327 = vpop.f32.mrb[0].mxu0
    %v4328 = vadd.f32 0.0, %v4327
    %4329 = vdwg.mxu0
    %v4330 = vadd.f32 %v4236, %v4279
    %v4331 = vadd.f32 %v4237, %v4281
    %v4332 = vadd.f32 %v4238, %v4322
    %v4333 = vadd.f32 %v4239, %v4324
    %v4334 = vadd.f32 %v4240, %v4283
    %v4335 = vadd.f32 %v4241, %v4285
    %v4336 = vadd.f32 %v4242, %v4326
    %v4337 = vadd.f32 %v4243, %v4328
    %s4338 = scalar_lea.vmem [#allocation2], 512
    %v4339 = vld [vmem:[%s4338 + $0x20] sm:$0xff]
    %v4340 = vld [vmem:[%s4338 + $0x28] sm:$0xff]
    %v4341 = vld [vmem:[%s4338 + $0x30] sm:$0xff]
    %v4342 = vld [vmem:[%s4338 + $0x38] sm:$0xff]
    %v4343 = vunpack.c.l.bf16 %v4339
    %v4344 = vunpack.c.l.bf16 %v4340
    %v4345 = vunpack.c.l.bf16 %v4341
    %v4346 = vunpack.c.l.bf16 %v4342
    %v4347 = vunpack.c.h.bf16 %v4339
    %v4348 = vunpack.c.h.bf16 %v4340
    %v4349 = vunpack.c.h.bf16 %v4341
    %v4350 = vunpack.c.h.bf16 %v4342
    %4351 = vmatprep.subr.bf16.mxu0 %v2077
    %4352 = vmatpush1.bf16.msra.mxu0 %v2076
    %4353 = vmatprep.subr.bf16.mxu0 %v2081
    %4354 = vmatpush1.bf16.msra.mxu0 %v2080
    %4355 = vmatprep.subr.bf16.mxu0 %v2085
    %4356 = vmatpush1.bf16.msra.mxu0 %v2084
    %4357 = vmatprep.subr.bf16.mxu0 %v2089
    %4358 = vmatpush1.bf16.msra.mxu0 %v2088
    %4359 = vmatprep.subr.bf16.mxu0 %v2093
    %4360 = vmatpush1.bf16.msra.mxu0 %v2092
    %4361 = vmatprep.subr.bf16.mxu0 %v2097
    %4362 = vmatpush1.bf16.msra.mxu0 %v2096
    %4363 = vmatprep.subr.bf16.mxu0 %v2101
    %4364 = vmatpush1.bf16.msra.mxu0 %v2100
    %4365 = vmatprep.subr.bf16.mxu0 %v2105
    %4366 = vmatpush1.bf16.msra.mxu0 %v2104
    %4367 = vmatprep.subr.bf16.mxu0 0
    %4368 = vmatpush1.bf16.msra.mxu0 0
    %4369 = vmatprep.subr.bf16.mxu0 0
    %4370 = vmatpush1.bf16.msra.mxu0 0
    %4371 = vmatprep.subr.bf16.mxu0 0
    %4372 = vmatpush1.bf16.msra.mxu0 0
    %4373 = vmatprep.subr.bf16.mxu0 0
    %4374 = vmatpush1.bf16.msra.mxu0 0
    %4375 = vmatprep.subr.bf16.mxu0 0
    %4376 = vmatpush1.bf16.msra.mxu0 0
    %4377 = vmatprep.subr.bf16.mxu0 0
    %4378 = vmatpush1.bf16.msra.mxu0 0
    %4379 = vmatprep.subr.bf16.mxu0 0
    %4380 = vmatpush1.bf16.msra.mxu0 0
    %4381 = vmatprep.subr.bf16.mxu0 0
    %4382 = vmatpush1.bf16.msra.mxu0 0
    %4383 = vmatprep.mubr.bf16.mxu0 0
    %4384 = vmatmul.mubr.bf16.gmra.mrb[0].mxu0 %v4226
    %v4385 = vpop.f32.mrb[0].mxu0
    %v4386 = vadd.f32 0.0, %v4385
    %v4387 = vpop.f32.mrb[0].mxu0
    %v4388 = vadd.f32 0.0, %v4387
    %v4389 = vpop.f32.mrb[0].mxu0
    %v4390 = vadd.f32 0.0, %v4389
    %v4391 = vpop.f32.mrb[0].mxu0
    %v4392 = vadd.f32 0.0, %v4391
    %4393 = vdwg.mxu0
    %4394 = vmatprep.subr.bf16.mxu0 %v2079
    %4395 = vmatpush1.bf16.msra.mxu0 %v2078
    %4396 = vmatprep.subr.bf16.mxu0 %v2083
    %4397 = vmatpush1.bf16.msra.mxu0 %v2082
    %4398 = vmatprep.subr.bf16.mxu0 %v2087
    %4399 = vmatpush1.bf16.msra.mxu0 %v2086
    %4400 = vmatprep.subr.bf16.mxu0 %v2091
    %4401 = vmatpush1.bf16.msra.mxu0 %v2090
    %4402 = vmatprep.subr.bf16.mxu0 %v2095
    %4403 = vmatpush1.bf16.msra.mxu0 %v2094
    %4404 = vmatprep.subr.bf16.mxu0 %v2099
    %4405 = vmatpush1.bf16.msra.mxu0 %v2098
    %4406 = vmatprep.subr.bf16.mxu0 %v2103
    %4407 = vmatpush1.bf16.msra.mxu0 %v2102
    %4408 = vmatprep.subr.bf16.mxu0 %v2107
    %4409 = vmatpush1.bf16.msra.mxu0 %v2106
    %4410 = vmatprep.subr.bf16.mxu0 0
    %4411 = vmatpush1.bf16.msra.mxu0 0
    %4412 = vmatprep.subr.bf16.mxu0 0
    %4413 = vmatpush1.bf16.msra.mxu0 0
    %4414 = vmatprep.subr.bf16.mxu0 0
    %4415 = vmatpush1.bf16.msra.mxu0 0
    %4416 = vmatprep.subr.bf16.mxu0 0
    %4417 = vmatpush1.bf16.msra.mxu0 0
    %4418 = vmatprep.subr.bf16.mxu0 0
    %4419 = vmatpush1.bf16.msra.mxu0 0
    %4420 = vmatprep.subr.bf16.mxu0 0
    %4421 = vmatpush1.bf16.msra.mxu0 0
    %4422 = vmatprep.subr.bf16.mxu0 0
    %4423 = vmatpush1.bf16.msra.mxu0 0
    %4424 = vmatprep.subr.bf16.mxu0 0
    %4425 = vmatpush1.bf16.msra.mxu0 0
    %4426 = vmatprep.mubr.bf16.mxu0 0
    %4427 = vmatmul.mubr.bf16.gmra.mrb[0].mxu0 %v4226
    %v4428 = vpop.f32.mrb[0].mxu0
    %v4429 = vadd.f32 0.0, %v4428
    %v4430 = vpop.f32.mrb[0].mxu0
    %v4431 = vadd.f32 0.0, %v4430
    %v4432 = vpop.f32.mrb[0].mxu0
    %v4433 = vadd.f32 0.0, %v4432
    %v4434 = vpop.f32.mrb[0].mxu0
    %v4435 = vadd.f32 0.0, %v4434
    %4436 = vdwg.mxu0
    %v4437 = vadd.f32 %v4343, %v4386
    %v4438 = vadd.f32 %v4344, %v4388
    %v4439 = vadd.f32 %v4345, %v4429
    %v4440 = vadd.f32 %v4346, %v4431
    %v4441 = vadd.f32 %v4347, %v4390
    %v4442 = vadd.f32 %v4348, %v4392
    %v4443 = vadd.f32 %v4349, %v4433
    %v4444 = vadd.f32 %v4350, %v4435
    %v4445 = vxor.u32 %v4330, 2147483648
    %v4446 = vxor.u32 %v4334, 2147483648
    %v4447 = vmul.f32 %v4445, 1.442695
    %v4448 = vpow.pop %v4447
    %v4449 = vmul.f32 %v4446, 1.442695
    %v4450 = vpow.pop %v4449
    %v4451 = vadd.f32 %v4448, 1.0
    %v4452 = vadd.f32 %v4450, 1.0
    %v4453 = vrcp.pop %v4451
    %v4454 = vmul.f32 1.0, %v4453
    %v4455 = vrcp.pop %v4452
    %v4456 = vmul.f32 1.0, %v4455
    %v4457 = vxor.u32 %v4331, 2147483648
    %v4458 = vxor.u32 %v4335, 2147483648
    %v4459 = vmul.f32 %v4457, 1.442695
    %v4460 = vpow.pop %v4459
    %v4461 = vmul.f32 %v4458, 1.442695
    %v4462 = vpow.pop %v4461
    %v4463 = vadd.f32 %v4460, 1.0
    %v4464 = vadd.f32 %v4462, 1.0
    %v4465 = vrcp.pop %v4463
    %v4466 = vmul.f32 1.0, %v4465
    %v4467 = vrcp.pop %v4464
    %v4468 = vmul.f32 1.0, %v4467
    %v4469 = vtanh.pop %v4332
    %v4470 = vtanh.pop %v4336
    %v4471 = vxor.u32 %v4333, 2147483648
    %v4472 = vxor.u32 %v4337, 2147483648
    %v4473 = vmul.f32 %v4471, 1.442695
    %v4474 = vpow.pop %v4473
    %v4475 = vmul.f32 %v4472, 1.442695
    %v4476 = vpow.pop %v4475
    %v4477 = vadd.f32 %v4474, 1.0
    %v4478 = vadd.f32 %v4476, 1.0
    %v4479 = vrcp.pop %v4477
    %v4480 = vmul.f32 1.0, %v4479
    %v4481 = vrcp.pop %v4478
    %v4482 = vmul.f32 1.0, %v4481
    %v4483 = vmul.f32 %v4466, %v4171
    %v4484 = vmul.f32 %v4468, %v4172
    %v4485 = vmul.f32 %v4454, %v4469
    %v4486 = vmul.f32 %v4456, %v4470
    %v4487 = vadd.f32 %v4483, %v4485
    %v4488 = vadd.f32 %v4484, %v4486
    %v4489 = vtanh.pop %v4487
    %v4490 = vtanh.pop %v4488
    %v4491 = vmul.f32 %v4480, %v4489
    %v4492 = vmul.f32 %v4482, %v4490
    %v4493 = vxor.u32 %v4437, 2147483648
    %v4494 = vxor.u32 %v4441, 2147483648
    %v4495 = vmul.f32 %v4493, 1.442695
    %v4496 = vpow.pop %v4495
    %v4497 = vmul.f32 %v4494, 1.442695
    %v4498 = vpow.pop %v4497
    %v4499 = vadd.f32 %v4496, 1.0
    %v4500 = vadd.f32 %v4498, 1.0
    %v4501 = vrcp.pop %v4499
    %v4502 = vmul.f32 1.0, %v4501
    %v4503 = vrcp.pop %v4500
    %v4504 = vmul.f32 1.0, %v4503
    %v4505 = vxor.u32 %v4438, 2147483648
    %v4506 = vxor.u32 %v4442, 2147483648
    %v4507 = vmul.f32 %v4505, 1.442695
    %v4508 = vpow.pop %v4507
    %v4509 = vmul.f32 %v4506, 1.442695
    %v4510 = vpow.pop %v4509
    %v4511 = vadd.f32 %v4508, 1.0
    %v4512 = vadd.f32 %v4510, 1.0
    %v4513 = vrcp.pop %v4511
    %v4514 = vmul.f32 1.0, %v4513
    %v4515 = vrcp.pop %v4512
    %v4516 = vmul.f32 1.0, %v4515
    %v4517 = vtanh.pop %v4439
    %v4518 = vtanh.pop %v4443
    %v4519 = vxor.u32 %v4440, 2147483648
    %v4520 = vxor.u32 %v4444, 2147483648
    %v4521 = vmul.f32 %v4519, 1.442695
    %v4522 = vpow.pop %v4521
    %v4523 = vmul.f32 %v4520, 1.442695
    %v4524 = vpow.pop %v4523
    %v4525 = vadd.f32 %v4522, 1.0
    %v4526 = vadd.f32 %v4524, 1.0
    %v4527 = vrcp.pop %v4525
    %v4528 = vmul.f32 1.0, %v4527
    %v4529 = vrcp.pop %v4526
    %v4530 = vmul.f32 1.0, %v4529
    %v4531 = vmul.f32 %v4514, %v4219
    %v4532 = vmul.f32 %v4516, %v4220
    %v4533 = vmul.f32 %v4502, %v4517
    %v4534 = vmul.f32 %v4504, %v4518
    %v4535 = vadd.f32 %v4531, %v4533
    %v4536 = vadd.f32 %v4532, %v4534
    %v4537 = vtanh.pop %v4535
    %v4538 = vtanh.pop %v4536
    %v4539 = vmul.f32 %v4528, %v4537
    %v4540 = vmul.f32 %v4530, %v4538
    %v4541 = vpack.c.bf16 %v4492, %v4491
    %v4542 = vpack.c.bf16 %v4540, %v4539
    %s4543 = scalar_lea.vmem [#allocation3], 112
    %4544 = vst [vmem:[%s4543] sm:$0xff] %v4541
    %s4545 = scalar_lea.vmem [#allocation3], 128
    %4546 = vst [vmem:[%s4545 + $0x8] sm:$0xff] %v4542
    %v4547 = vld [vmem:[%s4338] sm:$0xff]
    %v4548 = vld [vmem:[%s4338 + $0x8] sm:$0xff]
    %v4549 = vld [vmem:[%s4338 + $0x10] sm:$0xff]
    %v4550 = vld [vmem:[%s4338 + $0x18] sm:$0xff]
    %v4551 = vunpack.c.l.bf16 %v4547
    %v4552 = vunpack.c.l.bf16 %v4548
    %v4553 = vunpack.c.l.bf16 %v4549
    %v4554 = vunpack.c.l.bf16 %v4550
    %v4555 = vunpack.c.h.bf16 %v4547
    %v4556 = vunpack.c.h.bf16 %v4548
    %v4557 = vunpack.c.h.bf16 %v4549
    %v4558 = vunpack.c.h.bf16 %v4550
    %4559 = vmatprep.subr.bf16.mxu0 %v1810
    %4560 = vmatpush1.bf16.msra.mxu0 %v1809
    %4561 = vmatprep.subr.bf16.mxu0 %v1814
    %4562 = vmatpush1.bf16.msra.mxu0 %v1813
    %4563 = vmatprep.subr.bf16.mxu0 %v1818
    %4564 = vmatpush1.bf16.msra.mxu0 %v1817
    %4565 = vmatprep.subr.bf16.mxu0 %v1822
    %4566 = vmatpush1.bf16.msra.mxu0 %v1821
    %4567 = vmatprep.subr.bf16.mxu0 %v1826
    %4568 = vmatpush1.bf16.msra.mxu0 %v1825
    %4569 = vmatprep.subr.bf16.mxu0 %v1830
    %4570 = vmatpush1.bf16.msra.mxu0 %v1829
    %4571 = vmatprep.subr.bf16.mxu0 %v1834
    %4572 = vmatpush1.bf16.msra.mxu0 %v1833
    %4573 = vmatprep.subr.bf16.mxu0 %v1838
    %4574 = vmatpush1.bf16.msra.mxu0 %v1837
    %4575 = vmatprep.subr.bf16.mxu0 0
    %4576 = vmatpush1.bf16.msra.mxu0 0
    %4577 = vmatprep.subr.bf16.mxu0 0
    %4578 = vmatpush1.bf16.msra.mxu0 0
    %4579 = vmatprep.subr.bf16.mxu0 0
    %4580 = vmatpush1.bf16.msra.mxu0 0
    %4581 = vmatprep.subr.bf16.mxu0 0
    %4582 = vmatpush1.bf16.msra.mxu0 0
    %4583 = vmatprep.subr.bf16.mxu0 0
    %4584 = vmatpush1.bf16.msra.mxu0 0
    %4585 = vmatprep.subr.bf16.mxu0 0
    %4586 = vmatpush1.bf16.msra.mxu0 0
    %4587 = vmatprep.subr.bf16.mxu0 0
    %4588 = vmatpush1.bf16.msra.mxu0 0
    %4589 = vmatprep.subr.bf16.mxu0 0
    %4590 = vmatpush1.bf16.msra.mxu0 0
    %4591 = vmatprep.mubr.bf16.mxu0 0
    %4592 = vmatmul.mubr.bf16.gmra.mrb[0].mxu0 %v4541
    %v4593 = vpop.f32.mrb[0].mxu0
    %v4594 = vadd.f32 0.0, %v4593
    %v4595 = vpop.f32.mrb[0].mxu0
    %v4596 = vadd.f32 0.0, %v4595
    %v4597 = vpop.f32.mrb[0].mxu0
    %v4598 = vadd.f32 0.0, %v4597
    %v4599 = vpop.f32.mrb[0].mxu0
    %v4600 = vadd.f32 0.0, %v4599
    %4601 = vdwg.mxu0
    %4602 = vmatprep.subr.bf16.mxu0 %v1812
    %4603 = vmatpush1.bf16.msra.mxu0 %v1811
    %4604 = vmatprep.subr.bf16.mxu0 %v1816
    %4605 = vmatpush1.bf16.msra.mxu0 %v1815
    %4606 = vmatprep.subr.bf16.mxu0 %v1820
    %4607 = vmatpush1.bf16.msra.mxu0 %v1819
    %4608 = vmatprep.subr.bf16.mxu0 %v1824
    %4609 = vmatpush1.bf16.msra.mxu0 %v1823
    %4610 = vmatprep.subr.bf16.mxu0 %v1828
    %4611 = vmatpush1.bf16.msra.mxu0 %v1827
    %4612 = vmatprep.subr.bf16.mxu0 %v1832
    %4613 = vmatpush1.bf16.msra.mxu0 %v1831
    %4614 = vmatprep.subr.bf16.mxu0 %v1836
    %4615 = vmatpush1.bf16.msra.mxu0 %v1835
    %4616 = vmatprep.subr.bf16.mxu0 %v1840
    %4617 = vmatpush1.bf16.msra.mxu0 %v1839
    %4618 = vmatprep.subr.bf16.mxu0 0
    %4619 = vmatpush1.bf16.msra.mxu0 0
    %4620 = vmatprep.subr.bf16.mxu0 0
    %4621 = vmatpush1.bf16.msra.mxu0 0
    %4622 = vmatprep.subr.bf16.mxu0 0
    %4623 = vmatpush1.bf16.msra.mxu0 0
    %4624 = vmatprep.subr.bf16.mxu0 0
    %4625 = vmatpush1.bf16.msra.mxu0 0
    %4626 = vmatprep.subr.bf16.mxu0 0
    %4627 = vmatpush1.bf16.msra.mxu0 0
    %4628 = vmatprep.subr.bf16.mxu0 0
    %4629 = vmatpush1.bf16.msra.mxu0 0
    %4630 = vmatprep.subr.bf16.mxu0 0
    %4631 = vmatpush1.bf16.msra.mxu0 0
    %4632 = vmatprep.subr.bf16.mxu0 0
    %4633 = vmatpush1.bf16.msra.mxu0 0
    %4634 = vmatprep.mubr.bf16.mxu0 0
    %4635 = vmatmul.mubr.bf16.gmra.mrb[0].mxu0 %v4541
    %v4636 = vpop.f32.mrb[0].mxu0
    %v4637 = vadd.f32 0.0, %v4636
    %v4638 = vpop.f32.mrb[0].mxu0
    %v4639 = vadd.f32 0.0, %v4638
    %v4640 = vpop.f32.mrb[0].mxu0
    %v4641 = vadd.f32 0.0, %v4640
    %v4642 = vpop.f32.mrb[0].mxu0
    %v4643 = vadd.f32 0.0, %v4642
    %4644 = vdwg.mxu0
    %v4645 = vadd.f32 %v4551, %v4594
    %v4646 = vadd.f32 %v4552, %v4596
    %v4647 = vadd.f32 %v4553, %v4637
    %v4648 = vadd.f32 %v4554, %v4639
    %v4649 = vadd.f32 %v4555, %v4598
    %v4650 = vadd.f32 %v4556, %v4600
    %v4651 = vadd.f32 %v4557, %v4641
    %v4652 = vadd.f32 %v4558, %v4643
    %v4653 = vld [vmem:[%s4231 + $0x20] sm:$0xff]
    %v4654 = vld [vmem:[%s4231 + $0x28] sm:$0xff]
    %v4655 = vld [vmem:[%s4231 + $0x30] sm:$0xff]
    %v4656 = vld [vmem:[%s4231 + $0x38] sm:$0xff]
    %v4657 = vunpack.c.l.bf16 %v4653
    %v4658 = vunpack.c.l.bf16 %v4654
    %v4659 = vunpack.c.l.bf16 %v4655
    %v4660 = vunpack.c.l.bf16 %v4656
    %v4661 = vunpack.c.h.bf16 %v4653
    %v4662 = vunpack.c.h.bf16 %v4654
    %v4663 = vunpack.c.h.bf16 %v4655
    %v4664 = vunpack.c.h.bf16 %v4656
    %4665 = vmatprep.subr.bf16.mxu0 %v2077
    %4666 = vmatpush1.bf16.msra.mxu0 %v2076
    %4667 = vmatprep.subr.bf16.mxu0 %v2081
    %4668 = vmatpush1.bf16.msra.mxu0 %v2080
    %4669 = vmatprep.subr.bf16.mxu0 %v2085
    %4670 = vmatpush1.bf16.msra.mxu0 %v2084
    %4671 = vmatprep.subr.bf16.mxu0 %v2089
    %4672 = vmatpush1.bf16.msra.mxu0 %v2088
    %4673 = vmatprep.subr.bf16.mxu0 %v2093
    %4674 = vmatpush1.bf16.msra.mxu0 %v2092
    %4675 = vmatprep.subr.bf16.mxu0 %v2097
    %4676 = vmatpush1.bf16.msra.mxu0 %v2096
    %4677 = vmatprep.subr.bf16.mxu0 %v2101
    %4678 = vmatpush1.bf16.msra.mxu0 %v2100
    %4679 = vmatprep.subr.bf16.mxu0 %v2105
    %4680 = vmatpush1.bf16.msra.mxu0 %v2104
    %4681 = vmatprep.subr.bf16.mxu0 0
    %4682 = vmatpush1.bf16.msra.mxu0 0
    %4683 = vmatprep.subr.bf16.mxu0 0
    %4684 = vmatpush1.bf16.msra.mxu0 0
    %4685 = vmatprep.subr.bf16.mxu0 0
    %4686 = vmatpush1.bf16.msra.mxu0 0
    %4687 = vmatprep.subr.bf16.mxu0 0
    %4688 = vmatpush1.bf16.msra.mxu0 0
    %4689 = vmatprep.subr.bf16.mxu0 0
    %4690 = vmatpush1.bf16.msra.mxu0 0
    %4691 = vmatprep.subr.bf16.mxu0 0
    %4692 = vmatpush1.bf16.msra.mxu0 0
    %4693 = vmatprep.subr.bf16.mxu0 0
    %4694 = vmatpush1.bf16.msra.mxu0 0
    %4695 = vmatprep.subr.bf16.mxu0 0
    %4696 = vmatpush1.bf16.msra.mxu0 0
    %4697 = vmatprep.mubr.bf16.mxu0 0
    %4698 = vmatmul.mubr.bf16.gmra.mrb[0].mxu0 %v4542
    %v4699 = vpop.f32.mrb[0].mxu0
    %v4700 = vadd.f32 0.0, %v4699
    %v4701 = vpop.f32.mrb[0].mxu0
    %v4702 = vadd.f32 0.0, %v4701
    %v4703 = vpop.f32.mrb[0].mxu0
    %v4704 = vadd.f32 0.0, %v4703
    %v4705 = vpop.f32.mrb[0].mxu0
    %v4706 = vadd.f32 0.0, %v4705
    %4707 = vdwg.mxu0
    %4708 = vmatprep.subr.bf16.mxu0 %v2079
    %4709 = vmatpush1.bf16.msra.mxu0 %v2078
    %4710 = vmatprep.subr.bf16.mxu0 %v2083
    %4711 = vmatpush1.bf16.msra.mxu0 %v2082
    %4712 = vmatprep.subr.bf16.mxu0 %v2087
    %4713 = vmatpush1.bf16.msra.mxu0 %v2086
    %4714 = vmatprep.subr.bf16.mxu0 %v2091
    %4715 = vmatpush1.bf16.msra.mxu0 %v2090
    %4716 = vmatprep.subr.bf16.mxu0 %v2095
    %4717 = vmatpush1.bf16.msra.mxu0 %v2094
    %4718 = vmatprep.subr.bf16.mxu0 %v2099
    %4719 = vmatpush1.bf16.msra.mxu0 %v2098
    %4720 = vmatprep.subr.bf16.mxu0 %v2103
    %4721 = vmatpush1.bf16.msra.mxu0 %v2102
    %4722 = vmatprep.subr.bf16.mxu0 %v2107
    %4723 = vmatpush1.bf16.msra.mxu0 %v2106
    %4724 = vmatprep.subr.bf16.mxu0 0
    %4725 = vmatpush1.bf16.msra.mxu0 0
    %4726 = vmatprep.subr.bf16.mxu0 0
    %4727 = vmatpush1.bf16.msra.mxu0 0
    %4728 = vmatprep.subr.bf16.mxu0 0
    %4729 = vmatpush1.bf16.msra.mxu0 0
    %4730 = vmatprep.subr.bf16.mxu0 0
    %4731 = vmatpush1.bf16.msra.mxu0 0
    %4732 = vmatprep.subr.bf16.mxu0 0
    %4733 = vmatpush1.bf16.msra.mxu0 0
    %4734 = vmatprep.subr.bf16.mxu0 0
    %4735 = vmatpush1.bf16.msra.mxu0 0
    %4736 = vmatprep.subr.bf16.mxu0 0
    %4737 = vmatpush1.bf16.msra.mxu0 0
    %4738 = vmatprep.subr.bf16.mxu0 0
    %4739 = vmatpush1.bf16.msra.mxu0 0
    %4740 = vmatprep.mubr.bf16.mxu0 0
    %4741 = vmatmul.mubr.bf16.gmra.mrb[0].mxu0 %v4542
    %v4742 = vpop.f32.mrb[0].mxu0
    %v4743 = vadd.f32 0.0, %v4742
    %v4744 = vpop.f32.mrb[0].mxu0
    %v4745 = vadd.f32 0.0, %v4744
    %v4746 = vpop.f32.mrb[0].mxu0
    %v4747 = vadd.f32 0.0, %v4746
    %v4748 = vpop.f32.mrb[0].mxu0
    %v4749 = vadd.f32 0.0, %v4748
    %4750 = vdwg.mxu0
    %v4751 = vadd.f32 %v4657, %v4700
    %v4752 = vadd.f32 %v4658, %v4702
    %v4753 = vadd.f32 %v4659, %v4743
    %v4754 = vadd.f32 %v4660, %v4745
    %v4755 = vadd.f32 %v4661, %v4704
    %v4756 = vadd.f32 %v4662, %v4706
    %v4757 = vadd.f32 %v4663, %v4747
    %v4758 = vadd.f32 %v4664, %v4749
    %v4759 = vxor.u32 %v4645, 2147483648
    %v4760 = vxor.u32 %v4649, 2147483648
    %v4761 = vmul.f32 %v4759, 1.442695
    %v4762 = vpow.pop %v4761
    %v4763 = vmul.f32 %v4760, 1.442695
    %v4764 = vpow.pop %v4763
    %v4765 = vadd.f32 %v4762, 1.0
    %v4766 = vadd.f32 %v4764, 1.0
    %v4767 = vrcp.pop %v4765
    %v4768 = vmul.f32 1.0, %v4767
    %v4769 = vrcp.pop %v4766
    %v4770 = vmul.f32 1.0, %v4769
    %v4771 = vxor.u32 %v4646, 2147483648
    %v4772 = vxor.u32 %v4650, 2147483648
    %v4773 = vmul.f32 %v4771, 1.442695
    %v4774 = vpow.pop %v4773
    %v4775 = vmul.f32 %v4772, 1.442695
    %v4776 = vpow.pop %v4775
    %v4777 = vadd.f32 %v4774, 1.0
    %v4778 = vadd.f32 %v4776, 1.0
    %v4779 = vrcp.pop %v4777
    %v4780 = vmul.f32 1.0, %v4779
    %v4781 = vrcp.pop %v4778
    %v4782 = vmul.f32 1.0, %v4781
    %v4783 = vtanh.pop %v4647
    %v4784 = vtanh.pop %v4651
    %v4785 = vxor.u32 %v4648, 2147483648
    %v4786 = vxor.u32 %v4652, 2147483648
    %v4787 = vmul.f32 %v4785, 1.442695
    %v4788 = vpow.pop %v4787
    %v4789 = vmul.f32 %v4786, 1.442695
    %v4790 = vpow.pop %v4789
    %v4791 = vadd.f32 %v4788, 1.0
    %v4792 = vadd.f32 %v4790, 1.0
    %v4793 = vrcp.pop %v4791
    %v4794 = vmul.f32 1.0, %v4793
    %v4795 = vrcp.pop %v4792
    %v4796 = vmul.f32 1.0, %v4795
    %v4797 = vmul.f32 %v4780, %v4487
    %v4798 = vmul.f32 %v4782, %v4488
    %v4799 = vmul.f32 %v4768, %v4783
    %v4800 = vmul.f32 %v4770, %v4784
    %v4801 = vadd.f32 %v4797, %v4799
    %v4802 = vadd.f32 %v4798, %v4800
    %v4803 = vtanh.pop %v4801
    %v4804 = vtanh.pop %v4802
    %v4805 = vmul.f32 %v4794, %v4803
    %v4806 = vmul.f32 %v4796, %v4804
    %v4807 = vxor.u32 %v4751, 2147483648
    %v4808 = vxor.u32 %v4755, 2147483648
    %v4809 = vmul.f32 %v4807, 1.442695
    %v4810 = vpow.pop %v4809
    %v4811 = vmul.f32 %v4808, 1.442695
    %v4812 = vpow.pop %v4811
    %v4813 = vadd.f32 %v4810, 1.0
    %v4814 = vadd.f32 %v4812, 1.0
    %v4815 = vrcp.pop %v4813
    %v4816 = vmul.f32 1.0, %v4815
    %v4817 = vrcp.pop %v4814
    %v4818 = vmul.f32 1.0, %v4817
    %v4819 = vxor.u32 %v4752, 2147483648
    %v4820 = vxor.u32 %v4756, 2147483648
    %v4821 = vmul.f32 %v4819, 1.442695
    %v4822 = vpow.pop %v4821
    %v4823 = vmul.f32 %v4820, 1.442695
    %v4824 = vpow.pop %v4823
    %v4825 = vadd.f32 %v4822, 1.0
    %v4826 = vadd.f32 %v4824, 1.0
    %v4827 = vrcp.pop %v4825
    %v4828 = vmul.f32 1.0, %v4827
    %v4829 = vrcp.pop %v4826
    %v4830 = vmul.f32 1.0, %v4829
    %v4831 = vtanh.pop %v4753
    %v4832 = vtanh.pop %v4757
    %v4833 = vxor.u32 %v4754, 2147483648
    %v4834 = vxor.u32 %v4758, 2147483648
    %v4835 = vmul.f32 %v4833, 1.442695
    %v4836 = vpow.pop %v4835
    %v4837 = vmul.f32 %v4834, 1.442695
    %v4838 = vpow.pop %v4837
    %v4839 = vadd.f32 %v4836, 1.0
    %v4840 = vadd.f32 %v4838, 1.0
    %v4841 = vrcp.pop %v4839
    %v4842 = vmul.f32 1.0, %v4841
    %v4843 = vrcp.pop %v4840
    %v4844 = vmul.f32 1.0, %v4843
    %v4845 = vmul.f32 %v4828, %v4535
    %v4846 = vmul.f32 %v4830, %v4536
    %v4847 = vmul.f32 %v4816, %v4831
    %v4848 = vmul.f32 %v4818, %v4832
    %v4849 = vadd.f32 %v4845, %v4847
    %v4850 = vadd.f32 %v4846, %v4848
    %v4851 = vtanh.pop %v4849
    %v4852 = vtanh.pop %v4850
    %v4853 = vmul.f32 %v4842, %v4851
    %v4854 = vmul.f32 %v4844, %v4852
    %v4855 = vpack.c.bf16 %v4806, %v4805
    %v4856 = vpack.c.bf16 %v4854, %v4853
    %4857 = vst [vmem:[%s4545] sm:$0xff] %v4855
    %4858 = vst [vmem:[%s4543 + $0x8] sm:$0xff] %v4856
    %v4859 = vld [vmem:[%s4022] sm:$0xff]
    %v4860 = vld [vmem:[%s4022 + $0x8] sm:$0xff]
    %v4861 = vld [vmem:[%s4022 + $0x10] sm:$0xff]
    %v4862 = vld [vmem:[%s4022 + $0x18] sm:$0xff]
    %v4863 = vunpack.c.l.bf16 %v4859
    %v4864 = vunpack.c.l.bf16 %v4860
    %v4865 = vunpack.c.l.bf16 %v4861
    %v4866 = vunpack.c.l.bf16 %v4862
    %v4867 = vunpack.c.h.bf16 %v4859
    %v4868 = vunpack.c.h.bf16 %v4860
    %v4869 = vunpack.c.h.bf16 %v4861
    %v4870 = vunpack.c.h.bf16 %v4862
    %4871 = vmatprep.subr.bf16.mxu0 %v1810
    %4872 = vmatpush1.bf16.msra.mxu0 %v1809
    %4873 = vmatprep.subr.bf16.mxu0 %v1814
    %4874 = vmatpush1.bf16.msra.mxu0 %v1813
    %4875 = vmatprep.subr.bf16.mxu0 %v1818
    %4876 = vmatpush1.bf16.msra.mxu0 %v1817
    %4877 = vmatprep.subr.bf16.mxu0 %v1822
    %4878 = vmatpush1.bf16.msra.mxu0 %v1821
    %4879 = vmatprep.subr.bf16.mxu0 %v1826
    %4880 = vmatpush1.bf16.msra.mxu0 %v1825
    %4881 = vmatprep.subr.bf16.mxu0 %v1830
    %4882 = vmatpush1.bf16.msra.mxu0 %v1829
    %4883 = vmatprep.subr.bf16.mxu0 %v1834
    %4884 = vmatpush1.bf16.msra.mxu0 %v1833
    %4885 = vmatprep.subr.bf16.mxu0 %v1838
    %4886 = vmatpush1.bf16.msra.mxu0 %v1837
    %4887 = vmatprep.subr.bf16.mxu0 0
    %4888 = vmatpush1.bf16.msra.mxu0 0
    %4889 = vmatprep.subr.bf16.mxu0 0
    %4890 = vmatpush1.bf16.msra.mxu0 0
    %4891 = vmatprep.subr.bf16.mxu0 0
    %4892 = vmatpush1.bf16.msra.mxu0 0
    %4893 = vmatprep.subr.bf16.mxu0 0
    %4894 = vmatpush1.bf16.msra.mxu0 0
    %4895 = vmatprep.subr.bf16.mxu0 0
    %4896 = vmatpush1.bf16.msra.mxu0 0
    %4897 = vmatprep.subr.bf16.mxu0 0
    %4898 = vmatpush1.bf16.msra.mxu0 0
    %4899 = vmatprep.subr.bf16.mxu0 0
    %4900 = vmatpush1.bf16.msra.mxu0 0
    %4901 = vmatprep.subr.bf16.mxu0 0
    %4902 = vmatpush1.bf16.msra.mxu0 0
    %4903 = vmatprep.mubr.bf16.mxu0 0
    %4904 = vmatmul.mubr.bf16.gmra.mrb[0].mxu0 %v4855
    %v4905 = vpop.f32.mrb[0].mxu0
    %v4906 = vadd.f32 0.0, %v4905
    %v4907 = vpop.f32.mrb[0].mxu0
    %v4908 = vadd.f32 0.0, %v4907
    %v4909 = vpop.f32.mrb[0].mxu0
    %v4910 = vadd.f32 0.0, %v4909
    %v4911 = vpop.f32.mrb[0].mxu0
    %v4912 = vadd.f32 0.0, %v4911
    %4913 = vdwg.mxu0
    %4914 = vmatprep.subr.bf16.mxu0 %v1812
    %4915 = vmatpush1.bf16.msra.mxu0 %v1811
    %4916 = vmatprep.subr.bf16.mxu0 %v1816
    %4917 = vmatpush1.bf16.msra.mxu0 %v1815
    %4918 = vmatprep.subr.bf16.mxu0 %v1820
    %4919 = vmatpush1.bf16.msra.mxu0 %v1819
    %4920 = vmatprep.subr.bf16.mxu0 %v1824
    %4921 = vmatpush1.bf16.msra.mxu0 %v1823
    %4922 = vmatprep.subr.bf16.mxu0 %v1828
    %4923 = vmatpush1.bf16.msra.mxu0 %v1827
    %4924 = vmatprep.subr.bf16.mxu0 %v1832
    %4925 = vmatpush1.bf16.msra.mxu0 %v1831
    %4926 = vmatprep.subr.bf16.mxu0 %v1836
    %4927 = vmatpush1.bf16.msra.mxu0 %v1835
    %4928 = vmatprep.subr.bf16.mxu0 %v1840
    %4929 = vmatpush1.bf16.msra.mxu0 %v1839
    %4930 = vmatprep.subr.bf16.mxu0 0
    %4931 = vmatpush1.bf16.msra.mxu0 0
    %4932 = vmatprep.subr.bf16.mxu0 0
    %4933 = vmatpush1.bf16.msra.mxu0 0
    %4934 = vmatprep.subr.bf16.mxu0 0
    %4935 = vmatpush1.bf16.msra.mxu0 0
    %4936 = vmatprep.subr.bf16.mxu0 0
    %4937 = vmatpush1.bf16.msra.mxu0 0
    %4938 = vmatprep.subr.bf16.mxu0 0
    %4939 = vmatpush1.bf16.msra.mxu0 0
    %4940 = vmatprep.subr.bf16.mxu0 0
    %4941 = vmatpush1.bf16.msra.mxu0 0
    %4942 = vmatprep.subr.bf16.mxu0 0
    %4943 = vmatpush1.bf16.msra.mxu0 0
    %4944 = vmatprep.subr.bf16.mxu0 0
    %4945 = vmatpush1.bf16.msra.mxu0 0
    %4946 = vmatprep.mubr.bf16.mxu0 0
    %4947 = vmatmul.mubr.bf16.gmra.mrb[0].mxu0 %v4855
    %v4948 = vpop.f32.mrb[0].mxu0
    %v4949 = vadd.f32 0.0, %v4948
    %v4950 = vpop.f32.mrb[0].mxu0
    %v4951 = vadd.f32 0.0, %v4950
    %v4952 = vpop.f32.mrb[0].mxu0
    %v4953 = vadd.f32 0.0, %v4952
    %v4954 = vpop.f32.mrb[0].mxu0
    %v4955 = vadd.f32 0.0, %v4954
    %4956 = vdwg.mxu0
    %v4957 = vadd.f32 %v4863, %v4906
    %v4958 = vadd.f32 %v4864, %v4908
    %v4959 = vadd.f32 %v4865, %v4949
    %v4960 = vadd.f32 %v4866, %v4951
    %v4961 = vadd.f32 %v4867, %v4910
    %v4962 = vadd.f32 %v4868, %v4912
    %v4963 = vadd.f32 %v4869, %v4953
    %v4964 = vadd.f32 %v4870, %v4955
    %v4965 = vld [vmem:[%s3915 + $0x20] sm:$0xff]
    %v4966 = vld [vmem:[%s3915 + $0x28] sm:$0xff]
    %v4967 = vld [vmem:[%s3915 + $0x30] sm:$0xff]
    %v4968 = vld [vmem:[%s3915 + $0x38] sm:$0xff]
    %v4969 = vunpack.c.l.bf16 %v4965
    %v4970 = vunpack.c.l.bf16 %v4966
    %v4971 = vunpack.c.l.bf16 %v4967
    %v4972 = vunpack.c.l.bf16 %v4968
    %v4973 = vunpack.c.h.bf16 %v4965
    %v4974 = vunpack.c.h.bf16 %v4966
    %v4975 = vunpack.c.h.bf16 %v4967
    %v4976 = vunpack.c.h.bf16 %v4968
    %4977 = vmatprep.subr.bf16.mxu0 %v2077
    %4978 = vmatpush1.bf16.msra.mxu0 %v2076
    %4979 = vmatprep.subr.bf16.mxu0 %v2081
    %4980 = vmatpush1.bf16.msra.mxu0 %v2080
    %4981 = vmatprep.subr.bf16.mxu0 %v2085
    %4982 = vmatpush1.bf16.msra.mxu0 %v2084
    %4983 = vmatprep.subr.bf16.mxu0 %v2089
    %4984 = vmatpush1.bf16.msra.mxu0 %v2088
    %4985 = vmatprep.subr.bf16.mxu0 %v2093
    %4986 = vmatpush1.bf16.msra.mxu0 %v2092
    %4987 = vmatprep.subr.bf16.mxu0 %v2097
    %4988 = vmatpush1.bf16.msra.mxu0 %v2096
    %4989 = vmatprep.subr.bf16.mxu0 %v2101
    %4990 = vmatpush1.bf16.msra.mxu0 %v2100
    %4991 = vmatprep.subr.bf16.mxu0 %v2105
    %4992 = vmatpush1.bf16.msra.mxu0 %v2104
    %4993 = vmatprep.subr.bf16.mxu0 0
    %4994 = vmatpush1.bf16.msra.mxu0 0
    %4995 = vmatprep.subr.bf16.mxu0 0
    %4996 = vmatpush1.bf16.msra.mxu0 0
    %4997 = vmatprep.subr.bf16.mxu0 0
    %4998 = vmatpush1.bf16.msra.mxu0 0
    %4999 = vmatprep.subr.bf16.mxu0 0
    %5000 = vmatpush1.bf16.msra.mxu0 0
    %5001 = vmatprep.subr.bf16.mxu0 0
    %5002 = vmatpush1.bf16.msra.mxu0 0
    %5003 = vmatprep.subr.bf16.mxu0 0
    %5004 = vmatpush1.bf16.msra.mxu0 0
    %5005 = vmatprep.subr.bf16.mxu0 0
    %5006 = vmatpush1.bf16.msra.mxu0 0
    %5007 = vmatprep.subr.bf16.mxu0 0
    %5008 = vmatpush1.bf16.msra.mxu0 0
    %5009 = vmatprep.mubr.bf16.mxu0 0
    %5010 = vmatmul.mubr.bf16.gmra.mrb[0].mxu0 %v4856
    %v5011 = vpop.f32.mrb[0].mxu0
    %v5012 = vadd.f32 0.0, %v5011
    %v5013 = vpop.f32.mrb[0].mxu0
    %v5014 = vadd.f32 0.0, %v5013
    %v5015 = vpop.f32.mrb[0].mxu0
    %v5016 = vadd.f32 0.0, %v5015
    %v5017 = vpop.f32.mrb[0].mxu0
    %v5018 = vadd.f32 0.0, %v5017
    %5019 = vdwg.mxu0
    %5020 = vmatprep.subr.bf16.mxu0 %v2079
    %5021 = vmatpush1.bf16.msra.mxu0 %v2078
    %5022 = vmatprep.subr.bf16.mxu0 %v2083
    %5023 = vmatpush1.bf16.msra.mxu0 %v2082
    %5024 = vmatprep.subr.bf16.mxu0 %v2087
    %5025 = vmatpush1.bf16.msra.mxu0 %v2086
    %5026 = vmatprep.subr.bf16.mxu0 %v2091
    %5027 = vmatpush1.bf16.msra.mxu0 %v2090
    %5028 = vmatprep.subr.bf16.mxu0 %v2095
    %5029 = vmatpush1.bf16.msra.mxu0 %v2094
    %5030 = vmatprep.subr.bf16.mxu0 %v2099
    %5031 = vmatpush1.bf16.msra.mxu0 %v2098
    %5032 = vmatprep.subr.bf16.mxu0 %v2103
    %5033 = vmatpush1.bf16.msra.mxu0 %v2102
    %5034 = vmatprep.subr.bf16.mxu0 %v2107
    %5035 = vmatpush1.bf16.msra.mxu0 %v2106
    %5036 = vmatprep.subr.bf16.mxu0 0
    %5037 = vmatpush1.bf16.msra.mxu0 0
    %5038 = vmatprep.subr.bf16.mxu0 0
    %5039 = vmatpush1.bf16.msra.mxu0 0
    %5040 = vmatprep.subr.bf16.mxu0 0
    %5041 = vmatpush1.bf16.msra.mxu0 0
    %5042 = vmatprep.subr.bf16.mxu0 0
    %5043 = vmatpush1.bf16.msra.mxu0 0
    %5044 = vmatprep.subr.bf16.mxu0 0
    %5045 = vmatpush1.bf16.msra.mxu0 0
    %5046 = vmatprep.subr.bf16.mxu0 0
    %5047 = vmatpush1.bf16.msra.mxu0 0
    %5048 = vmatprep.subr.bf16.mxu0 0
    %5049 = vmatpush1.bf16.msra.mxu0 0
    %5050 = vmatprep.subr.bf16.mxu0 0
    %5051 = vmatpush1.bf16.msra.mxu0 0
    %5052 = vmatprep.mubr.bf16.mxu0 0
    %5053 = vmatmul.mubr.bf16.gmra.mrb[0].mxu0 %v4856
    %v5054 = vpop.f32.mrb[0].mxu0
    %v5055 = vadd.f32 0.0, %v5054
    %v5056 = vpop.f32.mrb[0].mxu0
    %v5057 = vadd.f32 0.0, %v5056
    %v5058 = vpop.f32.mrb[0].mxu0
    %v5059 = vadd.f32 0.0, %v5058
    %v5060 = vpop.f32.mrb[0].mxu0
    %v5061 = vadd.f32 0.0, %v5060
    %5062 = vdwg.mxu0
    %v5063 = vadd.f32 %v4969, %v5012
    %v5064 = vadd.f32 %v4970, %v5014
    %v5065 = vadd.f32 %v4971, %v5055
    %v5066 = vadd.f32 %v4972, %v5057
    %v5067 = vadd.f32 %v4973, %v5016
    %v5068 = vadd.f32 %v4974, %v5018
    %v5069 = vadd.f32 %v4975, %v5059
    %v5070 = vadd.f32 %v4976, %v5061
    %v5071 = vxor.u32 %v4957, 2147483648
    %v5072 = vxor.u32 %v4961, 2147483648
    %v5073 = vmul.f32 %v5071, 1.442695
    %v5074 = vpow.pop %v5073
    %v5075 = vmul.f32 %v5072, 1.442695
    %v5076 = vpow.pop %v5075
    %v5077 = vadd.f32 %v5074, 1.0
    %v5078 = vadd.f32 %v5076, 1.0
    %v5079 = vrcp.pop %v5077
    %v5080 = vmul.f32 1.0, %v5079
    %v5081 = vrcp.pop %v5078
    %v5082 = vmul.f32 1.0, %v5081
    %v5083 = vxor.u32 %v4958, 2147483648
    %v5084 = vxor.u32 %v4962, 2147483648
    %v5085 = vmul.f32 %v5083, 1.442695
    %v5086 = vpow.pop %v5085
    %v5087 = vmul.f32 %v5084, 1.442695
    %v5088 = vpow.pop %v5087
    %v5089 = vadd.f32 %v5086, 1.0
    %v5090 = vadd.f32 %v5088, 1.0
    %v5091 = vrcp.pop %v5089
    %v5092 = vmul.f32 1.0, %v5091
    %v5093 = vrcp.pop %v5090
    %v5094 = vmul.f32 1.0, %v5093
    %v5095 = vtanh.pop %v4959
    %v5096 = vtanh.pop %v4963
    %v5097 = vxor.u32 %v4960, 2147483648
    %v5098 = vxor.u32 %v4964, 2147483648
    %v5099 = vmul.f32 %v5097, 1.442695
    %v5100 = vpow.pop %v5099
    %v5101 = vmul.f32 %v5098, 1.442695
    %v5102 = vpow.pop %v5101
    %v5103 = vadd.f32 %v5100, 1.0
    %v5104 = vadd.f32 %v5102, 1.0
    %v5105 = vrcp.pop %v5103
    %v5106 = vmul.f32 1.0, %v5105
    %v5107 = vrcp.pop %v5104
    %v5108 = vmul.f32 1.0, %v5107
    %v5109 = vmul.f32 %v5092, %v4801
    %v5110 = vmul.f32 %v5094, %v4802
    %v5111 = vmul.f32 %v5080, %v5095
    %v5112 = vmul.f32 %v5082, %v5096
    %v5113 = vadd.f32 %v5109, %v5111
    %v5114 = vadd.f32 %v5110, %v5112
    %v5115 = vtanh.pop %v5113
    %v5116 = vtanh.pop %v5114
    %v5117 = vmul.f32 %v5106, %v5115
    %v5118 = vmul.f32 %v5108, %v5116
    %v5119 = vxor.u32 %v5063, 2147483648
    %v5120 = vxor.u32 %v5067, 2147483648
    %v5121 = vmul.f32 %v5119, 1.442695
    %v5122 = vpow.pop %v5121
    %v5123 = vmul.f32 %v5120, 1.442695
    %v5124 = vpow.pop %v5123
    %v5125 = vadd.f32 %v5122, 1.0
    %v5126 = vadd.f32 %v5124, 1.0
    %v5127 = vrcp.pop %v5125
    %v5128 = vmul.f32 1.0, %v5127
    %v5129 = vrcp.pop %v5126
    %v5130 = vmul.f32 1.0, %v5129
    %v5131 = vxor.u32 %v5064, 2147483648
    %v5132 = vxor.u32 %v5068, 2147483648
    %v5133 = vmul.f32 %v5131, 1.442695
    %v5134 = vpow.pop %v5133
    %v5135 = vmul.f32 %v5132, 1.442695
    %v5136 = vpow.pop %v5135
    %v5137 = vadd.f32 %v5134, 1.0
    %v5138 = vadd.f32 %v5136, 1.0
    %v5139 = vrcp.pop %v5137
    %v5140 = vmul.f32 1.0, %v5139
    %v5141 = vrcp.pop %v5138
    %v5142 = vmul.f32 1.0, %v5141
    %v5143 = vtanh.pop %v5065
    %v5144 = vtanh.pop %v5069
    %v5145 = vxor.u32 %v5066, 2147483648
    %v5146 = vxor.u32 %v5070, 2147483648
    %v5147 = vmul.f32 %v5145, 1.442695
    %v5148 = vpow.pop %v5147
    %v5149 = vmul.f32 %v5146, 1.442695
    %v5150 = vpow.pop %v5149
    %v5151 = vadd.f32 %v5148, 1.0
    %v5152 = vadd.f32 %v5150, 1.0
    %v5153 = vrcp.pop %v5151
    %v5154 = vmul.f32 1.0, %v5153
    %v5155 = vrcp.pop %v5152
    %v5156 = vmul.f32 1.0, %v5155
    %v5157 = vmul.f32 %v5140, %v4849
    %v5158 = vmul.f32 %v5142, %v4850
    %v5159 = vmul.f32 %v5128, %v5143
    %v5160 = vmul.f32 %v5130, %v5144
    %v5161 = vadd.f32 %v5157, %v5159
    %v5162 = vadd.f32 %v5158, %v5160
    %v5163 = vtanh.pop %v5161
    %v5164 = vtanh.pop %v5162
    %v5165 = vmul.f32 %v5154, %v5163
    %v5166 = vmul.f32 %v5156, %v5164
    %v5167 = vpack.c.bf16 %v5118, %v5117
    %v5168 = vpack.c.bf16 %v5166, %v5165
    %5169 = vst [vmem:[%s4229] sm:$0xff] %v5167
    %5170 = vst [vmem:[%s4227 + $0x8] sm:$0xff] %v5168
    %v5171 = vld [vmem:[%s3706] sm:$0xff]
    %v5172 = vld [vmem:[%s3706 + $0x8] sm:$0xff]
    %v5173 = vld [vmem:[%s3706 + $0x10] sm:$0xff]
    %v5174 = vld [vmem:[%s3706 + $0x18] sm:$0xff]
    %v5175 = vunpack.c.l.bf16 %v5171
    %v5176 = vunpack.c.l.bf16 %v5172
    %v5177 = vunpack.c.l.bf16 %v5173
    %v5178 = vunpack.c.l.bf16 %v5174
    %v5179 = vunpack.c.h.bf16 %v5171
    %v5180 = vunpack.c.h.bf16 %v5172
    %v5181 = vunpack.c.h.bf16 %v5173
    %v5182 = vunpack.c.h.bf16 %v5174
    %5183 = vmatprep.subr.bf16.mxu0 %v1810
    %5184 = vmatpush1.bf16.msra.mxu0 %v1809
    %5185 = vmatprep.subr.bf16.mxu0 %v1814
    %5186 = vmatpush1.bf16.msra.mxu0 %v1813
    %5187 = vmatprep.subr.bf16.mxu0 %v1818
    %5188 = vmatpush1.bf16.msra.mxu0 %v1817
    %5189 = vmatprep.subr.bf16.mxu0 %v1822
    %5190 = vmatpush1.bf16.msra.mxu0 %v1821
    %5191 = vmatprep.subr.bf16.mxu0 %v1826
    %5192 = vmatpush1.bf16.msra.mxu0 %v1825
    %5193 = vmatprep.subr.bf16.mxu0 %v1830
    %5194 = vmatpush1.bf16.msra.mxu0 %v1829
    %5195 = vmatprep.subr.bf16.mxu0 %v1834
    %5196 = vmatpush1.bf16.msra.mxu0 %v1833
    %5197 = vmatprep.subr.bf16.mxu0 %v1838
    %5198 = vmatpush1.bf16.msra.mxu0 %v1837
    %5199 = vmatprep.subr.bf16.mxu0 0
    %5200 = vmatpush1.bf16.msra.mxu0 0
    %5201 = vmatprep.subr.bf16.mxu0 0
    %5202 = vmatpush1.bf16.msra.mxu0 0
    %5203 = vmatprep.subr.bf16.mxu0 0
    %5204 = vmatpush1.bf16.msra.mxu0 0
    %5205 = vmatprep.subr.bf16.mxu0 0
    %5206 = vmatpush1.bf16.msra.mxu0 0
    %5207 = vmatprep.subr.bf16.mxu0 0
    %5208 = vmatpush1.bf16.msra.mxu0 0
    %5209 = vmatprep.subr.bf16.mxu0 0
    %5210 = vmatpush1.bf16.msra.mxu0 0
    %5211 = vmatprep.subr.bf16.mxu0 0
    %5212 = vmatpush1.bf16.msra.mxu0 0
    %5213 = vmatprep.subr.bf16.mxu0 0
    %5214 = vmatpush1.bf16.msra.mxu0 0
    %5215 = vmatprep.mubr.bf16.mxu0 0
    %5216 = vmatmul.mubr.bf16.gmra.mrb[0].mxu0 %v5167
    %v5217 = vpop.f32.mrb[0].mxu0
    %v5218 = vadd.f32 0.0, %v5217
    %v5219 = vpop.f32.mrb[0].mxu0
    %v5220 = vadd.f32 0.0, %v5219
    %v5221 = vpop.f32.mrb[0].mxu0
    %v5222 = vadd.f32 0.0, %v5221
    %v5223 = vpop.f32.mrb[0].mxu0
    %v5224 = vadd.f32 0.0, %v5223
    %5225 = vdwg.mxu0
    %5226 = vmatprep.subr.bf16.mxu0 %v1812
    %5227 = vmatpush1.bf16.msra.mxu0 %v1811
    %5228 = vmatprep.subr.bf16.mxu0 %v1816
    %5229 = vmatpush1.bf16.msra.mxu0 %v1815
    %5230 = vmatprep.subr.bf16.mxu0 %v1820
    %5231 = vmatpush1.bf16.msra.mxu0 %v1819
    %5232 = vmatprep.subr.bf16.mxu0 %v1824
    %5233 = vmatpush1.bf16.msra.mxu0 %v1823
    %5234 = vmatprep.subr.bf16.mxu0 %v1828
    %5235 = vmatpush1.bf16.msra.mxu0 %v1827
    %5236 = vmatprep.subr.bf16.mxu0 %v1832
    %5237 = vmatpush1.bf16.msra.mxu0 %v1831
    %5238 = vmatprep.subr.bf16.mxu0 %v1836
    %5239 = vmatpush1.bf16.msra.mxu0 %v1835
    %5240 = vmatprep.subr.bf16.mxu0 %v1840
    %5241 = vmatpush1.bf16.msra.mxu0 %v1839
    %5242 = vmatprep.subr.bf16.mxu0 0
    %5243 = vmatpush1.bf16.msra.mxu0 0
    %5244 = vmatprep.subr.bf16.mxu0 0
    %5245 = vmatpush1.bf16.msra.mxu0 0
    %5246 = vmatprep.subr.bf16.mxu0 0
    %5247 = vmatpush1.bf16.msra.mxu0 0
    %5248 = vmatprep.subr.bf16.mxu0 0
    %5249 = vmatpush1.bf16.msra.mxu0 0
    %5250 = vmatprep.subr.bf16.mxu0 0
    %5251 = vmatpush1.bf16.msra.mxu0 0
    %5252 = vmatprep.subr.bf16.mxu0 0
    %5253 = vmatpush1.bf16.msra.mxu0 0
    %5254 = vmatprep.subr.bf16.mxu0 0
    %5255 = vmatpush1.bf16.msra.mxu0 0
    %5256 = vmatprep.subr.bf16.mxu0 0
    %5257 = vmatpush1.bf16.msra.mxu0 0
    %5258 = vmatprep.mubr.bf16.mxu0 0
    %5259 = vmatmul.mubr.bf16.gmra.mrb[0].mxu0 %v5167
    %v5260 = vpop.f32.mrb[0].mxu0
    %v5261 = vadd.f32 0.0, %v5260
    %v5262 = vpop.f32.mrb[0].mxu0
    %v5263 = vadd.f32 0.0, %v5262
    %v5264 = vpop.f32.mrb[0].mxu0
    %v5265 = vadd.f32 0.0, %v5264
    %v5266 = vpop.f32.mrb[0].mxu0
    %v5267 = vadd.f32 0.0, %v5266
    %5268 = vdwg.mxu0
    %v5269 = vadd.f32 %v5175, %v5218
    %v5270 = vadd.f32 %v5176, %v5220
    %v5271 = vadd.f32 %v5177, %v5261
    %v5272 = vadd.f32 %v5178, %v5263
    %v5273 = vadd.f32 %v5179, %v5222
    %v5274 = vadd.f32 %v5180, %v5224
    %v5275 = vadd.f32 %v5181, %v5265
    %v5276 = vadd.f32 %v5182, %v5267
    %v5277 = vld [vmem:[%s3599 + $0x20] sm:$0xff]
    %v5278 = vld [vmem:[%s3599 + $0x28] sm:$0xff]
    %v5279 = vld [vmem:[%s3599 + $0x30] sm:$0xff]
    %v5280 = vld [vmem:[%s3599 + $0x38] sm:$0xff]
    %v5281 = vunpack.c.l.bf16 %v5277
    %v5282 = vunpack.c.l.bf16 %v5278
    %v5283 = vunpack.c.l.bf16 %v5279
    %v5284 = vunpack.c.l.bf16 %v5280
    %v5285 = vunpack.c.h.bf16 %v5277
    %v5286 = vunpack.c.h.bf16 %v5278
    %v5287 = vunpack.c.h.bf16 %v5279
    %v5288 = vunpack.c.h.bf16 %v5280
    %5289 = vmatprep.subr.bf16.mxu0 %v2077
    %5290 = vmatpush1.bf16.msra.mxu0 %v2076
    %5291 = vmatprep.subr.bf16.mxu0 %v2081
    %5292 = vmatpush1.bf16.msra.mxu0 %v2080
    %5293 = vmatprep.subr.bf16.mxu0 %v2085
    %5294 = vmatpush1.bf16.msra.mxu0 %v2084
    %5295 = vmatprep.subr.bf16.mxu0 %v2089
    %5296 = vmatpush1.bf16.msra.mxu0 %v2088
    %5297 = vmatprep.subr.bf16.mxu0 %v2093
    %5298 = vmatpush1.bf16.msra.mxu0 %v2092
    %5299 = vmatprep.subr.bf16.mxu0 %v2097
    %5300 = vmatpush1.bf16.msra.mxu0 %v2096
    %5301 = vmatprep.subr.bf16.mxu0 %v2101
    %5302 = vmatpush1.bf16.msra.mxu0 %v2100
    %5303 = vmatprep.subr.bf16.mxu0 %v2105
    %5304 = vmatpush1.bf16.msra.mxu0 %v2104
    %5305 = vmatprep.subr.bf16.mxu0 0
    %5306 = vmatpush1.bf16.msra.mxu0 0
    %5307 = vmatprep.subr.bf16.mxu0 0
    %5308 = vmatpush1.bf16.msra.mxu0 0
    %5309 = vmatprep.subr.bf16.mxu0 0
    %5310 = vmatpush1.bf16.msra.mxu0 0
    %5311 = vmatprep.subr.bf16.mxu0 0
    %5312 = vmatpush1.bf16.msra.mxu0 0
    %5313 = vmatprep.subr.bf16.mxu0 0
    %5314 = vmatpush1.bf16.msra.mxu0 0
    %5315 = vmatprep.subr.bf16.mxu0 0
    %5316 = vmatpush1.bf16.msra.mxu0 0
    %5317 = vmatprep.subr.bf16.mxu0 0
    %5318 = vmatpush1.bf16.msra.mxu0 0
    %5319 = vmatprep.subr.bf16.mxu0 0
    %5320 = vmatpush1.bf16.msra.mxu0 0
    %5321 = vmatprep.mubr.bf16.mxu0 0
    %5322 = vmatmul.mubr.bf16.gmra.mrb[0].mxu0 %v5168
    %v5323 = vpop.f32.mrb[0].mxu0
    %v5324 = vadd.f32 0.0, %v5323
    %v5325 = vpop.f32.mrb[0].mxu0
    %v5326 = vadd.f32 0.0, %v5325
    %v5327 = vpop.f32.mrb[0].mxu0
    %v5328 = vadd.f32 0.0, %v5327
    %v5329 = vpop.f32.mrb[0].mxu0
    %v5330 = vadd.f32 0.0, %v5329
    %5331 = vdwg.mxu0
    %5332 = vmatprep.subr.bf16.mxu0 %v2079
    %5333 = vmatpush1.bf16.msra.mxu0 %v2078
    %5334 = vmatprep.subr.bf16.mxu0 %v2083
    %5335 = vmatpush1.bf16.msra.mxu0 %v2082
    %5336 = vmatprep.subr.bf16.mxu0 %v2087
    %5337 = vmatpush1.bf16.msra.mxu0 %v2086
    %5338 = vmatprep.subr.bf16.mxu0 %v2091
    %5339 = vmatpush1.bf16.msra.mxu0 %v2090
    %5340 = vmatprep.subr.bf16.mxu0 %v2095
    %5341 = vmatpush1.bf16.msra.mxu0 %v2094
    %5342 = vmatprep.subr.bf16.mxu0 %v2099
    %5343 = vmatpush1.bf16.msra.mxu0 %v2098
    %5344 = vmatprep.subr.bf16.mxu0 %v2103
    %5345 = vmatpush1.bf16.msra.mxu0 %v2102
    %5346 = vmatprep.subr.bf16.mxu0 %v2107
    %5347 = vmatpush1.bf16.msra.mxu0 %v2106
    %5348 = vmatprep.subr.bf16.mxu0 0
    %5349 = vmatpush1.bf16.msra.mxu0 0
    %5350 = vmatprep.subr.bf16.mxu0 0
    %5351 = vmatpush1.bf16.msra.mxu0 0
    %5352 = vmatprep.subr.bf16.mxu0 0
    %5353 = vmatpush1.bf16.msra.mxu0 0
    %5354 = vmatprep.subr.bf16.mxu0 0
    %5355 = vmatpush1.bf16.msra.mxu0 0
    %5356 = vmatprep.subr.bf16.mxu0 0
    %5357 = vmatpush1.bf16.msra.mxu0 0
    %5358 = vmatprep.subr.bf16.mxu0 0
    %5359 = vmatpush1.bf16.msra.mxu0 0
    %5360 = vmatprep.subr.bf16.mxu0 0
    %5361 = vmatpush1.bf16.msra.mxu0 0
    %5362 = vmatprep.subr.bf16.mxu0 0
    %5363 = vmatpush1.bf16.msra.mxu0 0
    %5364 = vmatprep.mubr.bf16.mxu0 0
    %5365 = vmatmul.mubr.bf16.gmra.mrb[0].mxu0 %v5168
    %v5366 = vpop.f32.mrb[0].mxu0
    %v5367 = vadd.f32 0.0, %v5366
    %v5368 = vpop.f32.mrb[0].mxu0
    %v5369 = vadd.f32 0.0, %v5368
    %v5370 = vpop.f32.mrb[0].mxu0
    %v5371 = vadd.f32 0.0, %v5370
    %v5372 = vpop.f32.mrb[0].mxu0
    %v5373 = vadd.f32 0.0, %v5372
    %5374 = vdwg.mxu0
    %v5375 = vadd.f32 %v5281, %v5324
    %v5376 = vadd.f32 %v5282, %v5326
    %v5377 = vadd.f32 %v5283, %v5367
    %v5378 = vadd.f32 %v5284, %v5369
    %v5379 = vadd.f32 %v5285, %v5328
    %v5380 = vadd.f32 %v5286, %v5330
    %v5381 = vadd.f32 %v5287, %v5371
    %v5382 = vadd.f32 %v5288, %v5373
    %v5383 = vxor.u32 %v5269, 2147483648
    %v5384 = vxor.u32 %v5273, 2147483648
    %v5385 = vmul.f32 %v5383, 1.442695
    %v5386 = vpow.pop %v5385
    %v5387 = vmul.f32 %v5384, 1.442695
    %v5388 = vpow.pop %v5387
    %v5389 = vadd.f32 %v5386, 1.0
    %v5390 = vadd.f32 %v5388, 1.0
    %v5391 = vrcp.pop %v5389
    %v5392 = vmul.f32 1.0, %v5391
    %v5393 = vrcp.pop %v5390
    %v5394 = vmul.f32 1.0, %v5393
    %v5395 = vxor.u32 %v5270, 2147483648
    %v5396 = vxor.u32 %v5274, 2147483648
    %v5397 = vmul.f32 %v5395, 1.442695
    %v5398 = vpow.pop %v5397
    %v5399 = vmul.f32 %v5396, 1.442695
    %v5400 = vpow.pop %v5399
    %v5401 = vadd.f32 %v5398, 1.0
    %v5402 = vadd.f32 %v5400, 1.0
    %v5403 = vrcp.pop %v5401
    %v5404 = vmul.f32 1.0, %v5403
    %v5405 = vrcp.pop %v5402
    %v5406 = vmul.f32 1.0, %v5405
    %v5407 = vtanh.pop %v5271
    %v5408 = vtanh.pop %v5275
    %v5409 = vxor.u32 %v5272, 2147483648
    %v5410 = vxor.u32 %v5276, 2147483648
    %v5411 = vmul.f32 %v5409, 1.442695
    %v5412 = vpow.pop %v5411
    %v5413 = vmul.f32 %v5410, 1.442695
    %v5414 = vpow.pop %v5413
    %v5415 = vadd.f32 %v5412, 1.0
    %v5416 = vadd.f32 %v5414, 1.0
    %v5417 = vrcp.pop %v5415
    %v5418 = vmul.f32 1.0, %v5417
    %v5419 = vrcp.pop %v5416
    %v5420 = vmul.f32 1.0, %v5419
    %v5421 = vmul.f32 %v5404, %v5113
    %v5422 = vmul.f32 %v5406, %v5114
    %v5423 = vmul.f32 %v5392, %v5407
    %v5424 = vmul.f32 %v5394, %v5408
    %v5425 = vadd.f32 %v5421, %v5423
    %v5426 = vadd.f32 %v5422, %v5424
    %v5427 = vtanh.pop %v5425
    %v5428 = vtanh.pop %v5426
    %v5429 = vmul.f32 %v5418, %v5427
    %v5430 = vmul.f32 %v5420, %v5428
    %v5431 = vxor.u32 %v5375, 2147483648
    %v5432 = vxor.u32 %v5379, 2147483648
    %v5433 = vmul.f32 %v5431, 1.442695
    %v5434 = vpow.pop %v5433
    %v5435 = vmul.f32 %v5432, 1.442695
    %v5436 = vpow.pop %v5435
    %v5437 = vadd.f32 %v5434, 1.0
    %v5438 = vadd.f32 %v5436, 1.0
    %v5439 = vrcp.pop %v5437
    %v5440 = vmul.f32 1.0, %v5439
    %v5441 = vrcp.pop %v5438
    %v5442 = vmul.f32 1.0, %v5441
    %v5443 = vxor.u32 %v5376, 2147483648
    %v5444 = vxor.u32 %v5380, 2147483648
    %v5445 = vmul.f32 %v5443, 1.442695
    %v5446 = vpow.pop %v5445
    %v5447 = vmul.f32 %v5444, 1.442695
    %v5448 = vpow.pop %v5447
    %v5449 = vadd.f32 %v5446, 1.0
    %v5450 = vadd.f32 %v5448, 1.0
    %v5451 = vrcp.pop %v5449
    %v5452 = vmul.f32 1.0, %v5451
    %v5453 = vrcp.pop %v5450
    %v5454 = vmul.f32 1.0, %v5453
    %v5455 = vtanh.pop %v5377
    %v5456 = vtanh.pop %v5381
    %v5457 = vxor.u32 %v5378, 2147483648
    %v5458 = vxor.u32 %v5382, 2147483648
    %v5459 = vmul.f32 %v5457, 1.442695
    %v5460 = vpow.pop %v5459
    %v5461 = vmul.f32 %v5458, 1.442695
    %v5462 = vpow.pop %v5461
    %v5463 = vadd.f32 %v5460, 1.0
    %v5464 = vadd.f32 %v5462, 1.0
    %v5465 = vrcp.pop %v5463
    %v5466 = vmul.f32 1.0, %v5465
    %v5467 = vrcp.pop %v5464
    %v5468 = vmul.f32 1.0, %v5467
    %v5469 = vmul.f32 %v5452, %v5161
    %v5470 = vmul.f32 %v5454, %v5162
    %v5471 = vmul.f32 %v5440, %v5455
    %v5472 = vmul.f32 %v5442, %v5456
    %v5473 = vadd.f32 %v5469, %v5471
    %v5474 = vadd.f32 %v5470, %v5472
    %v5475 = vtanh.pop %v5473
    %v5476 = vtanh.pop %v5474
    %v5477 = vmul.f32 %v5466, %v5475
    %v5478 = vmul.f32 %v5468, %v5476
    %v5479 = vpack.c.bf16 %v5430, %v5429
    %v5480 = vpack.c.bf16 %v5478, %v5477
    %5481 = vst [vmem:[%s3913] sm:$0xff] %v5479
    %5482 = vst [vmem:[%s3911 + $0x8] sm:$0xff] %v5480
    %v5483 = vld [vmem:[%s3390] sm:$0xff]
    %v5484 = vld [vmem:[%s3390 + $0x8] sm:$0xff]
    %v5485 = vld [vmem:[%s3390 + $0x10] sm:$0xff]
    %v5486 = vld [vmem:[%s3390 + $0x18] sm:$0xff]
    %v5487 = vunpack.c.l.bf16 %v5483
    %v5488 = vunpack.c.l.bf16 %v5484
    %v5489 = vunpack.c.l.bf16 %v5485
    %v5490 = vunpack.c.l.bf16 %v5486
    %v5491 = vunpack.c.h.bf16 %v5483
    %v5492 = vunpack.c.h.bf16 %v5484
    %v5493 = vunpack.c.h.bf16 %v5485
    %v5494 = vunpack.c.h.bf16 %v5486
    %5495 = vmatprep.subr.bf16.mxu0 %v1810
    %5496 = vmatpush1.bf16.msra.mxu0 %v1809
    %5497 = vmatprep.subr.bf16.mxu0 %v1814
    %5498 = vmatpush1.bf16.msra.mxu0 %v1813
    %5499 = vmatprep.subr.bf16.mxu0 %v1818
    %5500 = vmatpush1.bf16.msra.mxu0 %v1817
    %5501 = vmatprep.subr.bf16.mxu0 %v1822
    %5502 = vmatpush1.bf16.msra.mxu0 %v1821
    %5503 = vmatprep.subr.bf16.mxu0 %v1826
    %5504 = vmatpush1.bf16.msra.mxu0 %v1825
    %5505 = vmatprep.subr.bf16.mxu0 %v1830
    %5506 = vmatpush1.bf16.msra.mxu0 %v1829
    %5507 = vmatprep.subr.bf16.mxu0 %v1834
    %5508 = vmatpush1.bf16.msra.mxu0 %v1833
    %5509 = vmatprep.subr.bf16.mxu0 %v1838
    %5510 = vmatpush1.bf16.msra.mxu0 %v1837
    %5511 = vmatprep.subr.bf16.mxu0 0
    %5512 = vmatpush1.bf16.msra.mxu0 0
    %5513 = vmatprep.subr.bf16.mxu0 0
    %5514 = vmatpush1.bf16.msra.mxu0 0
    %5515 = vmatprep.subr.bf16.mxu0 0
    %5516 = vmatpush1.bf16.msra.mxu0 0
    %5517 = vmatprep.subr.bf16.mxu0 0
    %5518 = vmatpush1.bf16.msra.mxu0 0
    %5519 = vmatprep.subr.bf16.mxu0 0
    %5520 = vmatpush1.bf16.msra.mxu0 0
    %5521 = vmatprep.subr.bf16.mxu0 0
    %5522 = vmatpush1.bf16.msra.mxu0 0
    %5523 = vmatprep.subr.bf16.mxu0 0
    %5524 = vmatpush1.bf16.msra.mxu0 0
    %5525 = vmatprep.subr.bf16.mxu0 0
    %5526 = vmatpush1.bf16.msra.mxu0 0
    %5527 = vmatprep.mubr.bf16.mxu0 0
    %5528 = vmatmul.mubr.bf16.gmra.mrb[0].mxu0 %v5479
    %v5529 = vpop.f32.mrb[0].mxu0
    %v5530 = vadd.f32 0.0, %v5529
    %v5531 = vpop.f32.mrb[0].mxu0
    %v5532 = vadd.f32 0.0, %v5531
    %v5533 = vpop.f32.mrb[0].mxu0
    %v5534 = vadd.f32 0.0, %v5533
    %v5535 = vpop.f32.mrb[0].mxu0
    %v5536 = vadd.f32 0.0, %v5535
    %5537 = vdwg.mxu0
    %5538 = vmatprep.subr.bf16.mxu0 %v1812
    %5539 = vmatpush1.bf16.msra.mxu0 %v1811
    %5540 = vmatprep.subr.bf16.mxu0 %v1816
    %5541 = vmatpush1.bf16.msra.mxu0 %v1815
    %5542 = vmatprep.subr.bf16.mxu0 %v1820
    %5543 = vmatpush1.bf16.msra.mxu0 %v1819
    %5544 = vmatprep.subr.bf16.mxu0 %v1824
    %5545 = vmatpush1.bf16.msra.mxu0 %v1823
    %5546 = vmatprep.subr.bf16.mxu0 %v1828
    %5547 = vmatpush1.bf16.msra.mxu0 %v1827
    %5548 = vmatprep.subr.bf16.mxu0 %v1832
    %5549 = vmatpush1.bf16.msra.mxu0 %v1831
    %5550 = vmatprep.subr.bf16.mxu0 %v1836
    %5551 = vmatpush1.bf16.msra.mxu0 %v1835
    %5552 = vmatprep.subr.bf16.mxu0 %v1840
    %5553 = vmatpush1.bf16.msra.mxu0 %v1839
    %5554 = vmatprep.subr.bf16.mxu0 0
    %5555 = vmatpush1.bf16.msra.mxu0 0
    %5556 = vmatprep.subr.bf16.mxu0 0
    %5557 = vmatpush1.bf16.msra.mxu0 0
    %5558 = vmatprep.subr.bf16.mxu0 0
    %5559 = vmatpush1.bf16.msra.mxu0 0
    %5560 = vmatprep.subr.bf16.mxu0 0
    %5561 = vmatpush1.bf16.msra.mxu0 0
    %5562 = vmatprep.subr.bf16.mxu0 0
    %5563 = vmatpush1.bf16.msra.mxu0 0
    %5564 = vmatprep.subr.bf16.mxu0 0
    %5565 = vmatpush1.bf16.msra.mxu0 0
    %5566 = vmatprep.subr.bf16.mxu0 0
    %5567 = vmatpush1.bf16.msra.mxu0 0
    %5568 = vmatprep.subr.bf16.mxu0 0
    %5569 = vmatpush1.bf16.msra.mxu0 0
    %5570 = vmatprep.mubr.bf16.mxu0 0
    %5571 = vmatmul.mubr.bf16.gmra.mrb[0].mxu0 %v5479
    %v5572 = vpop.f32.mrb[0].mxu0
    %v5573 = vadd.f32 0.0, %v5572
    %v5574 = vpop.f32.mrb[0].mxu0
    %v5575 = vadd.f32 0.0, %v5574
    %v5576 = vpop.f32.mrb[0].mxu0
    %v5577 = vadd.f32 0.0, %v5576
    %v5578 = vpop.f32.mrb[0].mxu0
    %v5579 = vadd.f32 0.0, %v5578
    %5580 = vdwg.mxu0
    %v5581 = vadd.f32 %v5487, %v5530
    %v5582 = vadd.f32 %v5488, %v5532
    %v5583 = vadd.f32 %v5489, %v5573
    %v5584 = vadd.f32 %v5490, %v5575
    %v5585 = vadd.f32 %v5491, %v5534
    %v5586 = vadd.f32 %v5492, %v5536
    %v5587 = vadd.f32 %v5493, %v5577
    %v5588 = vadd.f32 %v5494, %v5579
    %v5589 = vld [vmem:[%s3283 + $0x20] sm:$0xff]
    %v5590 = vld [vmem:[%s3283 + $0x28] sm:$0xff]
    %v5591 = vld [vmem:[%s3283 + $0x30] sm:$0xff]
    %v5592 = vld [vmem:[%s3283 + $0x38] sm:$0xff]
    %v5593 = vunpack.c.l.bf16 %v5589
    %v5594 = vunpack.c.l.bf16 %v5590
    %v5595 = vunpack.c.l.bf16 %v5591
    %v5596 = vunpack.c.l.bf16 %v5592
    %v5597 = vunpack.c.h.bf16 %v5589
    %v5598 = vunpack.c.h.bf16 %v5590
    %v5599 = vunpack.c.h.bf16 %v5591
    %v5600 = vunpack.c.h.bf16 %v5592
    %5601 = vmatprep.subr.bf16.mxu0 %v2077
    %5602 = vmatpush1.bf16.msra.mxu0 %v2076
    %5603 = vmatprep.subr.bf16.mxu0 %v2081
    %5604 = vmatpush1.bf16.msra.mxu0 %v2080
    %5605 = vmatprep.subr.bf16.mxu0 %v2085
    %5606 = vmatpush1.bf16.msra.mxu0 %v2084
    %5607 = vmatprep.subr.bf16.mxu0 %v2089
    %5608 = vmatpush1.bf16.msra.mxu0 %v2088
    %5609 = vmatprep.subr.bf16.mxu0 %v2093
    %5610 = vmatpush1.bf16.msra.mxu0 %v2092
    %5611 = vmatprep.subr.bf16.mxu0 %v2097
    %5612 = vmatpush1.bf16.msra.mxu0 %v2096
    %5613 = vmatprep.subr.bf16.mxu0 %v2101
    %5614 = vmatpush1.bf16.msra.mxu0 %v2100
    %5615 = vmatprep.subr.bf16.mxu0 %v2105
    %5616 = vmatpush1.bf16.msra.mxu0 %v2104
    %5617 = vmatprep.subr.bf16.mxu0 0
    %5618 = vmatpush1.bf16.msra.mxu0 0
    %5619 = vmatprep.subr.bf16.mxu0 0
    %5620 = vmatpush1.bf16.msra.mxu0 0
    %5621 = vmatprep.subr.bf16.mxu0 0
    %5622 = vmatpush1.bf16.msra.mxu0 0
    %5623 = vmatprep.subr.bf16.mxu0 0
    %5624 = vmatpush1.bf16.msra.mxu0 0
    %5625 = vmatprep.subr.bf16.mxu0 0
    %5626 = vmatpush1.bf16.msra.mxu0 0
    %5627 = vmatprep.subr.bf16.mxu0 0
    %5628 = vmatpush1.bf16.msra.mxu0 0
    %5629 = vmatprep.subr.bf16.mxu0 0
    %5630 = vmatpush1.bf16.msra.mxu0 0
    %5631 = vmatprep.subr.bf16.mxu0 0
    %5632 = vmatpush1.bf16.msra.mxu0 0
    %5633 = vmatprep.mubr.bf16.mxu0 0
    %5634 = vmatmul.mubr.bf16.gmra.mrb[0].mxu0 %v5480
    %v5635 = vpop.f32.mrb[0].mxu0
    %v5636 = vadd.f32 0.0, %v5635
    %v5637 = vpop.f32.mrb[0].mxu0
    %v5638 = vadd.f32 0.0, %v5637
    %v5639 = vpop.f32.mrb[0].mxu0
    %v5640 = vadd.f32 0.0, %v5639
    %v5641 = vpop.f32.mrb[0].mxu0
    %v5642 = vadd.f32 0.0, %v5641
    %5643 = vdwg.mxu0
    %5644 = vmatprep.subr.bf16.mxu0 %v2079
    %5645 = vmatpush1.bf16.msra.mxu0 %v2078
    %5646 = vmatprep.subr.bf16.mxu0 %v2083
    %5647 = vmatpush1.bf16.msra.mxu0 %v2082
    %5648 = vmatprep.subr.bf16.mxu0 %v2087
    %5649 = vmatpush1.bf16.msra.mxu0 %v2086
    %5650 = vmatprep.subr.bf16.mxu0 %v2091
    %5651 = vmatpush1.bf16.msra.mxu0 %v2090
    %5652 = vmatprep.subr.bf16.mxu0 %v2095
    %5653 = vmatpush1.bf16.msra.mxu0 %v2094
    %5654 = vmatprep.subr.bf16.mxu0 %v2099
    %5655 = vmatpush1.bf16.msra.mxu0 %v2098
    %5656 = vmatprep.subr.bf16.mxu0 %v2103
    %5657 = vmatpush1.bf16.msra.mxu0 %v2102
    %5658 = vmatprep.subr.bf16.mxu0 %v2107
    %5659 = vmatpush1.bf16.msra.mxu0 %v2106
    %5660 = vmatprep.subr.bf16.mxu0 0
    %5661 = vmatpush1.bf16.msra.mxu0 0
    %5662 = vmatprep.subr.bf16.mxu0 0
    %5663 = vmatpush1.bf16.msra.mxu0 0
    %5664 = vmatprep.subr.bf16.mxu0 0
    %5665 = vmatpush1.bf16.msra.mxu0 0
    %5666 = vmatprep.subr.bf16.mxu0 0
    %5667 = vmatpush1.bf16.msra.mxu0 0
    %5668 = vmatprep.subr.bf16.mxu0 0
    %5669 = vmatpush1.bf16.msra.mxu0 0
    %5670 = vmatprep.subr.bf16.mxu0 0
    %5671 = vmatpush1.bf16.msra.mxu0 0
    %5672 = vmatprep.subr.bf16.mxu0 0
    %5673 = vmatpush1.bf16.msra.mxu0 0
    %5674 = vmatprep.subr.bf16.mxu0 0
    %5675 = vmatpush1.bf16.msra.mxu0 0
    %5676 = vmatprep.mubr.bf16.mxu0 0
    %5677 = vmatmul.mubr.bf16.gmra.mrb[0].mxu0 %v5480
    %v5678 = vpop.f32.mrb[0].mxu0
    %v5679 = vadd.f32 0.0, %v5678
    %v5680 = vpop.f32.mrb[0].mxu0
    %v5681 = vadd.f32 0.0, %v5680
    %v5682 = vpop.f32.mrb[0].mxu0
    %v5683 = vadd.f32 0.0, %v5682
    %v5684 = vpop.f32.mrb[0].mxu0
    %v5685 = vadd.f32 0.0, %v5684
    %5686 = vdwg.mxu0
    %v5687 = vadd.f32 %v5593, %v5636
    %v5688 = vadd.f32 %v5594, %v5638
    %v5689 = vadd.f32 %v5595, %v5679
    %v5690 = vadd.f32 %v5596, %v5681
    %v5691 = vadd.f32 %v5597, %v5640
    %v5692 = vadd.f32 %v5598, %v5642
    %v5693 = vadd.f32 %v5599, %v5683
    %v5694 = vadd.f32 %v5600, %v5685
    %v5695 = vxor.u32 %v5581, 2147483648
    %v5696 = vxor.u32 %v5585, 2147483648
    %v5697 = vmul.f32 %v5695, 1.442695
    %v5698 = vpow.pop %v5697
    %v5699 = vmul.f32 %v5696, 1.442695
    %v5700 = vpow.pop %v5699
    %v5701 = vadd.f32 %v5698, 1.0
    %v5702 = vadd.f32 %v5700, 1.0
    %v5703 = vrcp.pop %v5701
    %v5704 = vmul.f32 1.0, %v5703
    %v5705 = vrcp.pop %v5702
    %v5706 = vmul.f32 1.0, %v5705
    %v5707 = vxor.u32 %v5582, 2147483648
    %v5708 = vxor.u32 %v5586, 2147483648
    %v5709 = vmul.f32 %v5707, 1.442695
    %v5710 = vpow.pop %v5709
    %v5711 = vmul.f32 %v5708, 1.442695
    %v5712 = vpow.pop %v5711
    %v5713 = vadd.f32 %v5710, 1.0
    %v5714 = vadd.f32 %v5712, 1.0
    %v5715 = vrcp.pop %v5713
    %v5716 = vmul.f32 1.0, %v5715
    %v5717 = vrcp.pop %v5714
    %v5718 = vmul.f32 1.0, %v5717
    %v5719 = vtanh.pop %v5583
    %v5720 = vtanh.pop %v5587
    %v5721 = vxor.u32 %v5584, 2147483648
    %v5722 = vxor.u32 %v5588, 2147483648
    %v5723 = vmul.f32 %v5721, 1.442695
    %v5724 = vpow.pop %v5723
    %v5725 = vmul.f32 %v5722, 1.442695
    %v5726 = vpow.pop %v5725
    %v5727 = vadd.f32 %v5724, 1.0
    %v5728 = vadd.f32 %v5726, 1.0
    %v5729 = vrcp.pop %v5727
    %v5730 = vmul.f32 1.0, %v5729
    %v5731 = vrcp.pop %v5728
    %v5732 = vmul.f32 1.0, %v5731
    %v5733 = vmul.f32 %v5716, %v5425
    %v5734 = vmul.f32 %v5718, %v5426
    %v5735 = vmul.f32 %v5704, %v5719
    %v5736 = vmul.f32 %v5706, %v5720
    %v5737 = vadd.f32 %v5733, %v5735
    %v5738 = vadd.f32 %v5734, %v5736
    %v5739 = vtanh.pop %v5737
    %v5740 = vtanh.pop %v5738
    %v5741 = vmul.f32 %v5730, %v5739
    %v5742 = vmul.f32 %v5732, %v5740
    %v5743 = vxor.u32 %v5687, 2147483648
    %v5744 = vxor.u32 %v5691, 2147483648
    %v5745 = vmul.f32 %v5743, 1.442695
    %v5746 = vpow.pop %v5745
    %v5747 = vmul.f32 %v5744, 1.442695
    %v5748 = vpow.pop %v5747
    %v5749 = vadd.f32 %v5746, 1.0
    %v5750 = vadd.f32 %v5748, 1.0
    %v5751 = vrcp.pop %v5749
    %v5752 = vmul.f32 1.0, %v5751
    %v5753 = vrcp.pop %v5750
    %v5754 = vmul.f32 1.0, %v5753
    %v5755 = vxor.u32 %v5688, 2147483648
    %v5756 = vxor.u32 %v5692, 2147483648
    %v5757 = vmul.f32 %v5755, 1.442695
    %v5758 = vpow.pop %v5757
    %v5759 = vmul.f32 %v5756, 1.442695
    %v5760 = vpow.pop %v5759
    %v5761 = vadd.f32 %v5758, 1.0
    %v5762 = vadd.f32 %v5760, 1.0
    %v5763 = vrcp.pop %v5761
    %v5764 = vmul.f32 1.0, %v5763
    %v5765 = vrcp.pop %v5762
    %v5766 = vmul.f32 1.0, %v5765
    %v5767 = vtanh.pop %v5689
    %v5768 = vtanh.pop %v5693
    %v5769 = vxor.u32 %v5690, 2147483648
    %v5770 = vxor.u32 %v5694, 2147483648
    %v5771 = vmul.f32 %v5769, 1.442695
    %v5772 = vpow.pop %v5771
    %v5773 = vmul.f32 %v5770, 1.442695
    %v5774 = vpow.pop %v5773
    %v5775 = vadd.f32 %v5772, 1.0
    %v5776 = vadd.f32 %v5774, 1.0
    %v5777 = vrcp.pop %v5775
    %v5778 = vmul.f32 1.0, %v5777
    %v5779 = vrcp.pop %v5776
    %v5780 = vmul.f32 1.0, %v5779
    %v5781 = vmul.f32 %v5764, %v5473
    %v5782 = vmul.f32 %v5766, %v5474
    %v5783 = vmul.f32 %v5752, %v5767
    %v5784 = vmul.f32 %v5754, %v5768
    %v5785 = vadd.f32 %v5781, %v5783
    %v5786 = vadd.f32 %v5782, %v5784
    %v5787 = vtanh.pop %v5785
    %v5788 = vtanh.pop %v5786
    %v5789 = vmul.f32 %v5778, %v5787
    %v5790 = vmul.f32 %v5780, %v5788
    %v5791 = vpack.c.bf16 %v5742, %v5741
    %v5792 = vpack.c.bf16 %v5790, %v5789
    %5793 = vst [vmem:[%s3597] sm:$0xff] %v5791
    %5794 = vst [vmem:[%s3595 + $0x8] sm:$0xff] %v5792
    %v5795 = vld [vmem:[%s3074] sm:$0xff]
    %v5796 = vld [vmem:[%s3074 + $0x8] sm:$0xff]
    %v5797 = vld [vmem:[%s3074 + $0x10] sm:$0xff]
    %v5798 = vld [vmem:[%s3074 + $0x18] sm:$0xff]
    %v5799 = vunpack.c.l.bf16 %v5795
    %v5800 = vunpack.c.l.bf16 %v5796
    %v5801 = vunpack.c.l.bf16 %v5797
    %v5802 = vunpack.c.l.bf16 %v5798
    %v5803 = vunpack.c.h.bf16 %v5795
    %v5804 = vunpack.c.h.bf16 %v5796
    %v5805 = vunpack.c.h.bf16 %v5797
    %v5806 = vunpack.c.h.bf16 %v5798
    %5807 = vmatprep.subr.bf16.mxu0 %v1810
    %5808 = vmatpush1.bf16.msra.mxu0 %v1809
    %5809 = vmatprep.subr.bf16.mxu0 %v1814
    %5810 = vmatpush1.bf16.msra.mxu0 %v1813
    %5811 = vmatprep.subr.bf16.mxu0 %v1818
    %5812 = vmatpush1.bf16.msra.mxu0 %v1817
    %5813 = vmatprep.subr.bf16.mxu0 %v1822
    %5814 = vmatpush1.bf16.msra.mxu0 %v1821
    %5815 = vmatprep.subr.bf16.mxu0 %v1826
    %5816 = vmatpush1.bf16.msra.mxu0 %v1825
    %5817 = vmatprep.subr.bf16.mxu0 %v1830
    %5818 = vmatpush1.bf16.msra.mxu0 %v1829
    %5819 = vmatprep.subr.bf16.mxu0 %v1834
    %5820 = vmatpush1.bf16.msra.mxu0 %v1833
    %5821 = vmatprep.subr.bf16.mxu0 %v1838
    %5822 = vmatpush1.bf16.msra.mxu0 %v1837
    %5823 = vmatprep.subr.bf16.mxu0 0
    %5824 = vmatpush1.bf16.msra.mxu0 0
    %5825 = vmatprep.subr.bf16.mxu0 0
    %5826 = vmatpush1.bf16.msra.mxu0 0
    %5827 = vmatprep.subr.bf16.mxu0 0
    %5828 = vmatpush1.bf16.msra.mxu0 0
    %5829 = vmatprep.subr.bf16.mxu0 0
    %5830 = vmatpush1.bf16.msra.mxu0 0
    %5831 = vmatprep.subr.bf16.mxu0 0
    %5832 = vmatpush1.bf16.msra.mxu0 0
    %5833 = vmatprep.subr.bf16.mxu0 0
    %5834 = vmatpush1.bf16.msra.mxu0 0
    %5835 = vmatprep.subr.bf16.mxu0 0
    %5836 = vmatpush1.bf16.msra.mxu0 0
    %5837 = vmatprep.subr.bf16.mxu0 0
    %5838 = vmatpush1.bf16.msra.mxu0 0
    %5839 = vmatprep.mubr.bf16.mxu0 0
    %5840 = vmatmul.mubr.bf16.gmra.mrb[0].mxu0 %v5791
    %v5841 = vpop.f32.mrb[0].mxu0
    %v5842 = vadd.f32 0.0, %v5841
    %v5843 = vpop.f32.mrb[0].mxu0
    %v5844 = vadd.f32 0.0, %v5843
    %v5845 = vpop.f32.mrb[0].mxu0
    %v5846 = vadd.f32 0.0, %v5845
    %v5847 = vpop.f32.mrb[0].mxu0
    %v5848 = vadd.f32 0.0, %v5847
    %5849 = vdwg.mxu0
    %5850 = vmatprep.subr.bf16.mxu0 %v1812
    %5851 = vmatpush1.bf16.msra.mxu0 %v1811
    %5852 = vmatprep.subr.bf16.mxu0 %v1816
    %5853 = vmatpush1.bf16.msra.mxu0 %v1815
    %5854 = vmatprep.subr.bf16.mxu0 %v1820
    %5855 = vmatpush1.bf16.msra.mxu0 %v1819
    %5856 = vmatprep.subr.bf16.mxu0 %v1824
    %5857 = vmatpush1.bf16.msra.mxu0 %v1823
    %5858 = vmatprep.subr.bf16.mxu0 %v1828
    %5859 = vmatpush1.bf16.msra.mxu0 %v1827
    %5860 = vmatprep.subr.bf16.mxu0 %v1832
    %5861 = vmatpush1.bf16.msra.mxu0 %v1831
    %5862 = vmatprep.subr.bf16.mxu0 %v1836
    %5863 = vmatpush1.bf16.msra.mxu0 %v1835
    %5864 = vmatprep.subr.bf16.mxu0 %v1840
    %5865 = vmatpush1.bf16.msra.mxu0 %v1839
    %5866 = vmatprep.subr.bf16.mxu0 0
    %5867 = vmatpush1.bf16.msra.mxu0 0
    %5868 = vmatprep.subr.bf16.mxu0 0
    %5869 = vmatpush1.bf16.msra.mxu0 0
    %5870 = vmatprep.subr.bf16.mxu0 0
    %5871 = vmatpush1.bf16.msra.mxu0 0
    %5872 = vmatprep.subr.bf16.mxu0 0
    %5873 = vmatpush1.bf16.msra.mxu0 0
    %5874 = vmatprep.subr.bf16.mxu0 0
    %5875 = vmatpush1.bf16.msra.mxu0 0
    %5876 = vmatprep.subr.bf16.mxu0 0
    %5877 = vmatpush1.bf16.msra.mxu0 0
    %5878 = vmatprep.subr.bf16.mxu0 0
    %5879 = vmatpush1.bf16.msra.mxu0 0
    %5880 = vmatprep.subr.bf16.mxu0 0
    %5881 = vmatpush1.bf16.msra.mxu0 0
    %5882 = vmatprep.mubr.bf16.mxu0 0
    %5883 = vmatmul.mubr.bf16.gmra.mrb[0].mxu0 %v5791
    %v5884 = vpop.f32.mrb[0].mxu0
    %v5885 = vadd.f32 0.0, %v5884
    %v5886 = vpop.f32.mrb[0].mxu0
    %v5887 = vadd.f32 0.0, %v5886
    %v5888 = vpop.f32.mrb[0].mxu0
    %v5889 = vadd.f32 0.0, %v5888
    %v5890 = vpop.f32.mrb[0].mxu0
    %v5891 = vadd.f32 0.0, %v5890
    %5892 = vdwg.mxu0
    %v5893 = vadd.f32 %v5799, %v5842
    %v5894 = vadd.f32 %v5800, %v5844
    %v5895 = vadd.f32 %v5801, %v5885
    %v5896 = vadd.f32 %v5802, %v5887
    %v5897 = vadd.f32 %v5803, %v5846
    %v5898 = vadd.f32 %v5804, %v5848
    %v5899 = vadd.f32 %v5805, %v5889
    %v5900 = vadd.f32 %v5806, %v5891
    %v5901 = vld [vmem:[%s2967 + $0x20] sm:$0xff]
    %v5902 = vld [vmem:[%s2967 + $0x28] sm:$0xff]
    %v5903 = vld [vmem:[%s2967 + $0x30] sm:$0xff]
    %v5904 = vld [vmem:[%s2967 + $0x38] sm:$0xff]
    %v5905 = vunpack.c.l.bf16 %v5901
    %v5906 = vunpack.c.l.bf16 %v5902
    %v5907 = vunpack.c.l.bf16 %v5903
    %v5908 = vunpack.c.l.bf16 %v5904
    %v5909 = vunpack.c.h.bf16 %v5901
    %v5910 = vunpack.c.h.bf16 %v5902
    %v5911 = vunpack.c.h.bf16 %v5903
    %v5912 = vunpack.c.h.bf16 %v5904
    %5913 = vmatprep.subr.bf16.mxu0 %v2077
    %5914 = vmatpush1.bf16.msra.mxu0 %v2076
    %5915 = vmatprep.subr.bf16.mxu0 %v2081
    %5916 = vmatpush1.bf16.msra.mxu0 %v2080
    %5917 = vmatprep.subr.bf16.mxu0 %v2085
    %5918 = vmatpush1.bf16.msra.mxu0 %v2084
    %5919 = vmatprep.subr.bf16.mxu0 %v2089
    %5920 = vmatpush1.bf16.msra.mxu0 %v2088
    %5921 = vmatprep.subr.bf16.mxu0 %v2093
    %5922 = vmatpush1.bf16.msra.mxu0 %v2092
    %5923 = vmatprep.subr.bf16.mxu0 %v2097
    %5924 = vmatpush1.bf16.msra.mxu0 %v2096
    %5925 = vmatprep.subr.bf16.mxu0 %v2101
    %5926 = vmatpush1.bf16.msra.mxu0 %v2100
    %5927 = vmatprep.subr.bf16.mxu0 %v2105
    %5928 = vmatpush1.bf16.msra.mxu0 %v2104
    %5929 = vmatprep.subr.bf16.mxu0 0
    %5930 = vmatpush1.bf16.msra.mxu0 0
    %5931 = vmatprep.subr.bf16.mxu0 0
    %5932 = vmatpush1.bf16.msra.mxu0 0
    %5933 = vmatprep.subr.bf16.mxu0 0
    %5934 = vmatpush1.bf16.msra.mxu0 0
    %5935 = vmatprep.subr.bf16.mxu0 0
    %5936 = vmatpush1.bf16.msra.mxu0 0
    %5937 = vmatprep.subr.bf16.mxu0 0
    %5938 = vmatpush1.bf16.msra.mxu0 0
    %5939 = vmatprep.subr.bf16.mxu0 0
    %5940 = vmatpush1.bf16.msra.mxu0 0
    %5941 = vmatprep.subr.bf16.mxu0 0
    %5942 = vmatpush1.bf16.msra.mxu0 0
    %5943 = vmatprep.subr.bf16.mxu0 0
    %5944 = vmatpush1.bf16.msra.mxu0 0
    %5945 = vmatprep.mubr.bf16.mxu0 0
    %5946 = vmatmul.mubr.bf16.gmra.mrb[0].mxu0 %v5792
    %v5947 = vpop.f32.mrb[0].mxu0
    %v5948 = vadd.f32 0.0, %v5947
    %v5949 = vpop.f32.mrb[0].mxu0
    %v5950 = vadd.f32 0.0, %v5949
    %v5951 = vpop.f32.mrb[0].mxu0
    %v5952 = vadd.f32 0.0, %v5951
    %v5953 = vpop.f32.mrb[0].mxu0
    %v5954 = vadd.f32 0.0, %v5953
    %5955 = vdwg.mxu0
    %5956 = vmatprep.subr.bf16.mxu0 %v2079
    %5957 = vmatpush1.bf16.msra.mxu0 %v2078
    %5958 = vmatprep.subr.bf16.mxu0 %v2083
    %5959 = vmatpush1.bf16.msra.mxu0 %v2082
    %5960 = vmatprep.subr.bf16.mxu0 %v2087
    %5961 = vmatpush1.bf16.msra.mxu0 %v2086
    %5962 = vmatprep.subr.bf16.mxu0 %v2091
    %5963 = vmatpush1.bf16.msra.mxu0 %v2090
    %5964 = vmatprep.subr.bf16.mxu0 %v2095
    %5965 = vmatpush1.bf16.msra.mxu0 %v2094
    %5966 = vmatprep.subr.bf16.mxu0 %v2099
    %5967 = vmatpush1.bf16.msra.mxu0 %v2098
    %5968 = vmatprep.subr.bf16.mxu0 %v2103
    %5969 = vmatpush1.bf16.msra.mxu0 %v2102
    %5970 = vmatprep.subr.bf16.mxu0 %v2107
    %5971 = vmatpush1.bf16.msra.mxu0 %v2106
    %5972 = vmatprep.subr.bf16.mxu0 0
    %5973 = vmatpush1.bf16.msra.mxu0 0
    %5974 = vmatprep.subr.bf16.mxu0 0
    %5975 = vmatpush1.bf16.msra.mxu0 0
    %5976 = vmatprep.subr.bf16.mxu0 0
    %5977 = vmatpush1.bf16.msra.mxu0 0
    %5978 = vmatprep.subr.bf16.mxu0 0
    %5979 = vmatpush1.bf16.msra.mxu0 0
    %5980 = vmatprep.subr.bf16.mxu0 0
    %5981 = vmatpush1.bf16.msra.mxu0 0
    %5982 = vmatprep.subr.bf16.mxu0 0
    %5983 = vmatpush1.bf16.msra.mxu0 0
    %5984 = vmatprep.subr.bf16.mxu0 0
    %5985 = vmatpush1.bf16.msra.mxu0 0
    %5986 = vmatprep.subr.bf16.mxu0 0
    %5987 = vmatpush1.bf16.msra.mxu0 0
    %5988 = vmatprep.mubr.bf16.mxu0 0
    %5989 = vmatmul.mubr.bf16.gmra.mrb[0].mxu0 %v5792
    %v5990 = vpop.f32.mrb[0].mxu0
    %v5991 = vadd.f32 0.0, %v5990
    %v5992 = vpop.f32.mrb[0].mxu0
    %v5993 = vadd.f32 0.0, %v5992
    %v5994 = vpop.f32.mrb[0].mxu0
    %v5995 = vadd.f32 0.0, %v5994
    %v5996 = vpop.f32.mrb[0].mxu0
    %v5997 = vadd.f32 0.0, %v5996
    %5998 = vdwg.mxu0
    %v5999 = vadd.f32 %v5905, %v5948
    %v6000 = vadd.f32 %v5906, %v5950
    %v6001 = vadd.f32 %v5907, %v5991
    %v6002 = vadd.f32 %v5908, %v5993
    %v6003 = vadd.f32 %v5909, %v5952
    %v6004 = vadd.f32 %v5910, %v5954
    %v6005 = vadd.f32 %v5911, %v5995
    %v6006 = vadd.f32 %v5912, %v5997
    %v6007 = vxor.u32 %v5893, 2147483648
    %v6008 = vxor.u32 %v5897, 2147483648
    %v6009 = vmul.f32 %v6007, 1.442695
    %v6010 = vpow.pop %v6009
    %v6011 = vmul.f32 %v6008, 1.442695
    %v6012 = vpow.pop %v6011
    %v6013 = vadd.f32 %v6010, 1.0
    %v6014 = vadd.f32 %v6012, 1.0
    %v6015 = vrcp.pop %v6013
    %v6016 = vmul.f32 1.0, %v6015
    %v6017 = vrcp.pop %v6014
    %v6018 = vmul.f32 1.0, %v6017
    %v6019 = vxor.u32 %v5894, 2147483648
    %v6020 = vxor.u32 %v5898, 2147483648
    %v6021 = vmul.f32 %v6019, 1.442695
    %v6022 = vpow.pop %v6021
    %v6023 = vmul.f32 %v6020, 1.442695
    %v6024 = vpow.pop %v6023
    %v6025 = vadd.f32 %v6022, 1.0
    %v6026 = vadd.f32 %v6024, 1.0
    %v6027 = vrcp.pop %v6025
    %v6028 = vmul.f32 1.0, %v6027
    %v6029 = vrcp.pop %v6026
    %v6030 = vmul.f32 1.0, %v6029
    %v6031 = vtanh.pop %v5895
    %v6032 = vtanh.pop %v5899
    %v6033 = vxor.u32 %v5896, 2147483648
    %v6034 = vxor.u32 %v5900, 2147483648
    %v6035 = vmul.f32 %v6033, 1.442695
    %v6036 = vpow.pop %v6035
    %v6037 = vmul.f32 %v6034, 1.442695
    %v6038 = vpow.pop %v6037
    %v6039 = vadd.f32 %v6036, 1.0
    %v6040 = vadd.f32 %v6038, 1.0
    %v6041 = vrcp.pop %v6039
    %v6042 = vmul.f32 1.0, %v6041
    %v6043 = vrcp.pop %v6040
    %v6044 = vmul.f32 1.0, %v6043
    %v6045 = vmul.f32 %v6028, %v5737
    %v6046 = vmul.f32 %v6030, %v5738
    %v6047 = vmul.f32 %v6016, %v6031
    %v6048 = vmul.f32 %v6018, %v6032
    %v6049 = vadd.f32 %v6045, %v6047
    %v6050 = vadd.f32 %v6046, %v6048
    %v6051 = vtanh.pop %v6049
    %v6052 = vtanh.pop %v6050
    %v6053 = vmul.f32 %v6042, %v6051
    %v6054 = vmul.f32 %v6044, %v6052
    %v6055 = vxor.u32 %v5999, 2147483648
    %v6056 = vxor.u32 %v6003, 2147483648
    %v6057 = vmul.f32 %v6055, 1.442695
    %v6058 = vpow.pop %v6057
    %v6059 = vmul.f32 %v6056, 1.442695
    %v6060 = vpow.pop %v6059
    %v6061 = vadd.f32 %v6058, 1.0
    %v6062 = vadd.f32 %v6060, 1.0
    %v6063 = vrcp.pop %v6061
    %v6064 = vmul.f32 1.0, %v6063
    %v6065 = vrcp.pop %v6062
    %v6066 = vmul.f32 1.0, %v6065
    %v6067 = vxor.u32 %v6000, 2147483648
    %v6068 = vxor.u32 %v6004, 2147483648
    %v6069 = vmul.f32 %v6067, 1.442695
    %v6070 = vpow.pop %v6069
    %v6071 = vmul.f32 %v6068, 1.442695
    %v6072 = vpow.pop %v6071
    %v6073 = vadd.f32 %v6070, 1.0
    %v6074 = vadd.f32 %v6072, 1.0
    %v6075 = vrcp.pop %v6073
    %v6076 = vmul.f32 1.0, %v6075
    %v6077 = vrcp.pop %v6074
    %v6078 = vmul.f32 1.0, %v6077
    %v6079 = vtanh.pop %v6001
    %v6080 = vtanh.pop %v6005
    %v6081 = vxor.u32 %v6002, 2147483648
    %v6082 = vxor.u32 %v6006, 2147483648
    %v6083 = vmul.f32 %v6081, 1.442695
    %v6084 = vpow.pop %v6083
    %v6085 = vmul.f32 %v6082, 1.442695
    %v6086 = vpow.pop %v6085
    %v6087 = vadd.f32 %v6084, 1.0
    %v6088 = vadd.f32 %v6086, 1.0
    %v6089 = vrcp.pop %v6087
    %v6090 = vmul.f32 1.0, %v6089
    %v6091 = vrcp.pop %v6088
    %v6092 = vmul.f32 1.0, %v6091
    %v6093 = vmul.f32 %v6076, %v5785
    %v6094 = vmul.f32 %v6078, %v5786
    %v6095 = vmul.f32 %v6064, %v6079
    %v6096 = vmul.f32 %v6066, %v6080
    %v6097 = vadd.f32 %v6093, %v6095
    %v6098 = vadd.f32 %v6094, %v6096
    %v6099 = vtanh.pop %v6097
    %v6100 = vtanh.pop %v6098
    %v6101 = vmul.f32 %v6090, %v6099
    %v6102 = vmul.f32 %v6092, %v6100
    %v6103 = vpack.c.bf16 %v6054, %v6053
    %v6104 = vpack.c.bf16 %v6102, %v6101
    %6105 = vst [vmem:[%s3281] sm:$0xff] %v6103
    %6106 = vst [vmem:[%s3279 + $0x8] sm:$0xff] %v6104
    %v6107 = vld [vmem:[%s2758] sm:$0xff]
    %v6108 = vld [vmem:[%s2758 + $0x8] sm:$0xff]
    %v6109 = vld [vmem:[%s2758 + $0x10] sm:$0xff]
    %v6110 = vld [vmem:[%s2758 + $0x18] sm:$0xff]
    %v6111 = vunpack.c.l.bf16 %v6107
    %v6112 = vunpack.c.l.bf16 %v6108
    %v6113 = vunpack.c.l.bf16 %v6109
    %v6114 = vunpack.c.l.bf16 %v6110
    %v6115 = vunpack.c.h.bf16 %v6107
    %v6116 = vunpack.c.h.bf16 %v6108
    %v6117 = vunpack.c.h.bf16 %v6109
    %v6118 = vunpack.c.h.bf16 %v6110
    %6119 = vmatprep.subr.bf16.mxu0 %v1810
    %6120 = vmatpush1.bf16.msra.mxu0 %v1809
    %6121 = vmatprep.subr.bf16.mxu0 %v1814
    %6122 = vmatpush1.bf16.msra.mxu0 %v1813
    %6123 = vmatprep.subr.bf16.mxu0 %v1818
    %6124 = vmatpush1.bf16.msra.mxu0 %v1817
    %6125 = vmatprep.subr.bf16.mxu0 %v1822
    %6126 = vmatpush1.bf16.msra.mxu0 %v1821
    %6127 = vmatprep.subr.bf16.mxu0 %v1826
    %6128 = vmatpush1.bf16.msra.mxu0 %v1825
    %6129 = vmatprep.subr.bf16.mxu0 %v1830
    %6130 = vmatpush1.bf16.msra.mxu0 %v1829
    %6131 = vmatprep.subr.bf16.mxu0 %v1834
    %6132 = vmatpush1.bf16.msra.mxu0 %v1833
    %6133 = vmatprep.subr.bf16.mxu0 %v1838
    %6134 = vmatpush1.bf16.msra.mxu0 %v1837
    %6135 = vmatprep.subr.bf16.mxu0 0
    %6136 = vmatpush1.bf16.msra.mxu0 0
    %6137 = vmatprep.subr.bf16.mxu0 0
    %6138 = vmatpush1.bf16.msra.mxu0 0
    %6139 = vmatprep.subr.bf16.mxu0 0
    %6140 = vmatpush1.bf16.msra.mxu0 0
    %6141 = vmatprep.subr.bf16.mxu0 0
    %6142 = vmatpush1.bf16.msra.mxu0 0
    %6143 = vmatprep.subr.bf16.mxu0 0
    %6144 = vmatpush1.bf16.msra.mxu0 0
    %6145 = vmatprep.subr.bf16.mxu0 0
    %6146 = vmatpush1.bf16.msra.mxu0 0
    %6147 = vmatprep.subr.bf16.mxu0 0
    %6148 = vmatpush1.bf16.msra.mxu0 0
    %6149 = vmatprep.subr.bf16.mxu0 0
    %6150 = vmatpush1.bf16.msra.mxu0 0
    %6151 = vmatprep.mubr.bf16.mxu0 0
    %6152 = vmatmul.mubr.bf16.gmra.mrb[0].mxu0 %v6103
    %v6153 = vpop.f32.mrb[0].mxu0
    %v6154 = vadd.f32 0.0, %v6153
    %v6155 = vpop.f32.mrb[0].mxu0
    %v6156 = vadd.f32 0.0, %v6155
    %v6157 = vpop.f32.mrb[0].mxu0
    %v6158 = vadd.f32 0.0, %v6157
    %v6159 = vpop.f32.mrb[0].mxu0
    %v6160 = vadd.f32 0.0, %v6159
    %6161 = vdwg.mxu0
    %6162 = vmatprep.subr.bf16.mxu0 %v1812
    %6163 = vmatpush1.bf16.msra.mxu0 %v1811
    %6164 = vmatprep.subr.bf16.mxu0 %v1816
    %6165 = vmatpush1.bf16.msra.mxu0 %v1815
    %6166 = vmatprep.subr.bf16.mxu0 %v1820
    %6167 = vmatpush1.bf16.msra.mxu0 %v1819
    %6168 = vmatprep.subr.bf16.mxu0 %v1824
    %6169 = vmatpush1.bf16.msra.mxu0 %v1823
    %6170 = vmatprep.subr.bf16.mxu0 %v1828
    %6171 = vmatpush1.bf16.msra.mxu0 %v1827
    %6172 = vmatprep.subr.bf16.mxu0 %v1832
    %6173 = vmatpush1.bf16.msra.mxu0 %v1831
    %6174 = vmatprep.subr.bf16.mxu0 %v1836
    %6175 = vmatpush1.bf16.msra.mxu0 %v1835
    %6176 = vmatprep.subr.bf16.mxu0 %v1840
    %6177 = vmatpush1.bf16.msra.mxu0 %v1839
    %6178 = vmatprep.subr.bf16.mxu0 0
    %6179 = vmatpush1.bf16.msra.mxu0 0
    %6180 = vmatprep.subr.bf16.mxu0 0
    %6181 = vmatpush1.bf16.msra.mxu0 0
    %6182 = vmatprep.subr.bf16.mxu0 0
    %6183 = vmatpush1.bf16.msra.mxu0 0
    %6184 = vmatprep.subr.bf16.mxu0 0
    %6185 = vmatpush1.bf16.msra.mxu0 0
    %6186 = vmatprep.subr.bf16.mxu0 0
    %6187 = vmatpush1.bf16.msra.mxu0 0
    %6188 = vmatprep.subr.bf16.mxu0 0
    %6189 = vmatpush1.bf16.msra.mxu0 0
    %6190 = vmatprep.subr.bf16.mxu0 0
    %6191 = vmatpush1.bf16.msra.mxu0 0
    %6192 = vmatprep.subr.bf16.mxu0 0
    %6193 = vmatpush1.bf16.msra.mxu0 0
    %6194 = vmatprep.mubr.bf16.mxu0 0
    %6195 = vmatmul.mubr.bf16.gmra.mrb[0].mxu0 %v6103
    %v6196 = vpop.f32.mrb[0].mxu0
    %v6197 = vadd.f32 0.0, %v6196
    %v6198 = vpop.f32.mrb[0].mxu0
    %v6199 = vadd.f32 0.0, %v6198
    %v6200 = vpop.f32.mrb[0].mxu0
    %v6201 = vadd.f32 0.0, %v6200
    %v6202 = vpop.f32.mrb[0].mxu0
    %v6203 = vadd.f32 0.0, %v6202
    %6204 = vdwg.mxu0
    %v6205 = vadd.f32 %v6111, %v6154
    %v6206 = vadd.f32 %v6112, %v6156
    %v6207 = vadd.f32 %v6113, %v6197
    %v6208 = vadd.f32 %v6114, %v6199
    %v6209 = vadd.f32 %v6115, %v6158
    %v6210 = vadd.f32 %v6116, %v6160
    %v6211 = vadd.f32 %v6117, %v6201
    %v6212 = vadd.f32 %v6118, %v6203
    %v6213 = vld [vmem:[%s2651 + $0x20] sm:$0xff]
    %v6214 = vld [vmem:[%s2651 + $0x28] sm:$0xff]
    %v6215 = vld [vmem:[%s2651 + $0x30] sm:$0xff]
    %v6216 = vld [vmem:[%s2651 + $0x38] sm:$0xff]
    %v6217 = vunpack.c.l.bf16 %v6213
    %v6218 = vunpack.c.l.bf16 %v6214
    %v6219 = vunpack.c.l.bf16 %v6215
    %v6220 = vunpack.c.l.bf16 %v6216
    %v6221 = vunpack.c.h.bf16 %v6213
    %v6222 = vunpack.c.h.bf16 %v6214
    %v6223 = vunpack.c.h.bf16 %v6215
    %v6224 = vunpack.c.h.bf16 %v6216
    %6225 = vmatprep.subr.bf16.mxu0 %v2077
    %6226 = vmatpush1.bf16.msra.mxu0 %v2076
    %6227 = vmatprep.subr.bf16.mxu0 %v2081
    %6228 = vmatpush1.bf16.msra.mxu0 %v2080
    %6229 = vmatprep.subr.bf16.mxu0 %v2085
    %6230 = vmatpush1.bf16.msra.mxu0 %v2084
    %6231 = vmatprep.subr.bf16.mxu0 %v2089
    %6232 = vmatpush1.bf16.msra.mxu0 %v2088
    %6233 = vmatprep.subr.bf16.mxu0 %v2093
    %6234 = vmatpush1.bf16.msra.mxu0 %v2092
    %6235 = vmatprep.subr.bf16.mxu0 %v2097
    %6236 = vmatpush1.bf16.msra.mxu0 %v2096
    %6237 = vmatprep.subr.bf16.mxu0 %v2101
    %6238 = vmatpush1.bf16.msra.mxu0 %v2100
    %6239 = vmatprep.subr.bf16.mxu0 %v2105
    %6240 = vmatpush1.bf16.msra.mxu0 %v2104
    %6241 = vmatprep.subr.bf16.mxu0 0
    %6242 = vmatpush1.bf16.msra.mxu0 0
    %6243 = vmatprep.subr.bf16.mxu0 0
    %6244 = vmatpush1.bf16.msra.mxu0 0
    %6245 = vmatprep.subr.bf16.mxu0 0
    %6246 = vmatpush1.bf16.msra.mxu0 0
    %6247 = vmatprep.subr.bf16.mxu0 0
    %6248 = vmatpush1.bf16.msra.mxu0 0
    %6249 = vmatprep.subr.bf16.mxu0 0
    %6250 = vmatpush1.bf16.msra.mxu0 0
    %6251 = vmatprep.subr.bf16.mxu0 0
    %6252 = vmatpush1.bf16.msra.mxu0 0
    %6253 = vmatprep.subr.bf16.mxu0 0
    %6254 = vmatpush1.bf16.msra.mxu0 0
    %6255 = vmatprep.subr.bf16.mxu0 0
    %6256 = vmatpush1.bf16.msra.mxu0 0
    %6257 = vmatprep.mubr.bf16.mxu0 0
    %6258 = vmatmul.mubr.bf16.gmra.mrb[0].mxu0 %v6104
    %v6259 = vpop.f32.mrb[0].mxu0
    %v6260 = vadd.f32 0.0, %v6259
    %v6261 = vpop.f32.mrb[0].mxu0
    %v6262 = vadd.f32 0.0, %v6261
    %v6263 = vpop.f32.mrb[0].mxu0
    %v6264 = vadd.f32 0.0, %v6263
    %v6265 = vpop.f32.mrb[0].mxu0
    %v6266 = vadd.f32 0.0, %v6265
    %6267 = vdwg.mxu0
    %6268 = vmatprep.subr.bf16.mxu0 %v2079
    %6269 = vmatpush1.bf16.msra.mxu0 %v2078
    %6270 = vmatprep.subr.bf16.mxu0 %v2083
    %6271 = vmatpush1.bf16.msra.mxu0 %v2082
    %6272 = vmatprep.subr.bf16.mxu0 %v2087
    %6273 = vmatpush1.bf16.msra.mxu0 %v2086
    %6274 = vmatprep.subr.bf16.mxu0 %v2091
    %6275 = vmatpush1.bf16.msra.mxu0 %v2090
    %6276 = vmatprep.subr.bf16.mxu0 %v2095
    %6277 = vmatpush1.bf16.msra.mxu0 %v2094
    %6278 = vmatprep.subr.bf16.mxu0 %v2099
    %6279 = vmatpush1.bf16.msra.mxu0 %v2098
    %6280 = vmatprep.subr.bf16.mxu0 %v2103
    %6281 = vmatpush1.bf16.msra.mxu0 %v2102
    %6282 = vmatprep.subr.bf16.mxu0 %v2107
    %6283 = vmatpush1.bf16.msra.mxu0 %v2106
    %6284 = vmatprep.subr.bf16.mxu0 0
    %6285 = vmatpush1.bf16.msra.mxu0 0
    %6286 = vmatprep.subr.bf16.mxu0 0
    %6287 = vmatpush1.bf16.msra.mxu0 0
    %6288 = vmatprep.subr.bf16.mxu0 0
    %6289 = vmatpush1.bf16.msra.mxu0 0
    %6290 = vmatprep.subr.bf16.mxu0 0
    %6291 = vmatpush1.bf16.msra.mxu0 0
    %6292 = vmatprep.subr.bf16.mxu0 0
    %6293 = vmatpush1.bf16.msra.mxu0 0
    %6294 = vmatprep.subr.bf16.mxu0 0
    %6295 = vmatpush1.bf16.msra.mxu0 0
    %6296 = vmatprep.subr.bf16.mxu0 0
    %6297 = vmatpush1.bf16.msra.mxu0 0
    %6298 = vmatprep.subr.bf16.mxu0 0
    %6299 = vmatpush1.bf16.msra.mxu0 0
    %6300 = vmatprep.mubr.bf16.mxu0 0
    %6301 = vmatmul.mubr.bf16.gmra.mrb[0].mxu0 %v6104
    %v6302 = vpop.f32.mrb[0].mxu0
    %v6303 = vadd.f32 0.0, %v6302
    %v6304 = vpop.f32.mrb[0].mxu0
    %v6305 = vadd.f32 0.0, %v6304
    %v6306 = vpop.f32.mrb[0].mxu0
    %v6307 = vadd.f32 0.0, %v6306
    %v6308 = vpop.f32.mrb[0].mxu0
    %v6309 = vadd.f32 0.0, %v6308
    %6310 = vdwg.mxu0
    %v6311 = vadd.f32 %v6217, %v6260
    %v6312 = vadd.f32 %v6218, %v6262
    %v6313 = vadd.f32 %v6219, %v6303
    %v6314 = vadd.f32 %v6220, %v6305
    %v6315 = vadd.f32 %v6221, %v6264
    %v6316 = vadd.f32 %v6222, %v6266
    %v6317 = vadd.f32 %v6223, %v6307
    %v6318 = vadd.f32 %v6224, %v6309
    %v6319 = vxor.u32 %v6205, 2147483648
    %v6320 = vxor.u32 %v6209, 2147483648
    %v6321 = vmul.f32 %v6319, 1.442695
    %v6322 = vpow.pop %v6321
    %v6323 = vmul.f32 %v6320, 1.442695
    %v6324 = vpow.pop %v6323
    %v6325 = vadd.f32 %v6322, 1.0
    %v6326 = vadd.f32 %v6324, 1.0
    %v6327 = vrcp.pop %v6325
    %v6328 = vmul.f32 1.0, %v6327
    %v6329 = vrcp.pop %v6326
    %v6330 = vmul.f32 1.0, %v6329
    %v6331 = vxor.u32 %v6206, 2147483648
    %v6332 = vxor.u32 %v6210, 2147483648
    %v6333 = vmul.f32 %v6331, 1.442695
    %v6334 = vpow.pop %v6333
    %v6335 = vmul.f32 %v6332, 1.442695
    %v6336 = vpow.pop %v6335
    %v6337 = vadd.f32 %v6334, 1.0
    %v6338 = vadd.f32 %v6336, 1.0
    %v6339 = vrcp.pop %v6337
    %v6340 = vmul.f32 1.0, %v6339
    %v6341 = vrcp.pop %v6338
    %v6342 = vmul.f32 1.0, %v6341
    %v6343 = vtanh.pop %v6207
    %v6344 = vtanh.pop %v6211
    %v6345 = vxor.u32 %v6208, 2147483648
    %v6346 = vxor.u32 %v6212, 2147483648
    %v6347 = vmul.f32 %v6345, 1.442695
    %v6348 = vpow.pop %v6347
    %v6349 = vmul.f32 %v6346, 1.442695
    %v6350 = vpow.pop %v6349
    %v6351 = vadd.f32 %v6348, 1.0
    %v6352 = vadd.f32 %v6350, 1.0
    %v6353 = vrcp.pop %v6351
    %v6354 = vmul.f32 1.0, %v6353
    %v6355 = vrcp.pop %v6352
    %v6356 = vmul.f32 1.0, %v6355
    %v6357 = vmul.f32 %v6340, %v6049
    %v6358 = vmul.f32 %v6342, %v6050
    %v6359 = vmul.f32 %v6328, %v6343
    %v6360 = vmul.f32 %v6330, %v6344
    %v6361 = vadd.f32 %v6357, %v6359
    %v6362 = vadd.f32 %v6358, %v6360
    %v6363 = vtanh.pop %v6361
    %v6364 = vtanh.pop %v6362
    %v6365 = vmul.f32 %v6354, %v6363
    %v6366 = vmul.f32 %v6356, %v6364
    %v6367 = vxor.u32 %v6311, 2147483648
    %v6368 = vxor.u32 %v6315, 2147483648
    %v6369 = vmul.f32 %v6367, 1.442695
    %v6370 = vpow.pop %v6369
    %v6371 = vmul.f32 %v6368, 1.442695
    %v6372 = vpow.pop %v6371
    %v6373 = vadd.f32 %v6370, 1.0
    %v6374 = vadd.f32 %v6372, 1.0
    %v6375 = vrcp.pop %v6373
    %v6376 = vmul.f32 1.0, %v6375
    %v6377 = vrcp.pop %v6374
    %v6378 = vmul.f32 1.0, %v6377
    %v6379 = vxor.u32 %v6312, 2147483648
    %v6380 = vxor.u32 %v6316, 2147483648
    %v6381 = vmul.f32 %v6379, 1.442695
    %v6382 = vpow.pop %v6381
    %v6383 = vmul.f32 %v6380, 1.442695
    %v6384 = vpow.pop %v6383
    %v6385 = vadd.f32 %v6382, 1.0
    %v6386 = vadd.f32 %v6384, 1.0
    %v6387 = vrcp.pop %v6385
    %v6388 = vmul.f32 1.0, %v6387
    %v6389 = vrcp.pop %v6386
    %v6390 = vmul.f32 1.0, %v6389
    %v6391 = vtanh.pop %v6313
    %v6392 = vtanh.pop %v6317
    %v6393 = vxor.u32 %v6314, 2147483648
    %v6394 = vxor.u32 %v6318, 2147483648
    %v6395 = vmul.f32 %v6393, 1.442695
    %v6396 = vpow.pop %v6395
    %v6397 = vmul.f32 %v6394, 1.442695
    %v6398 = vpow.pop %v6397
    %v6399 = vadd.f32 %v6396, 1.0
    %v6400 = vadd.f32 %v6398, 1.0
    %v6401 = vrcp.pop %v6399
    %v6402 = vmul.f32 1.0, %v6401
    %v6403 = vrcp.pop %v6400
    %v6404 = vmul.f32 1.0, %v6403
    %v6405 = vmul.f32 %v6388, %v6097
    %v6406 = vmul.f32 %v6390, %v6098
    %v6407 = vmul.f32 %v6376, %v6391
    %v6408 = vmul.f32 %v6378, %v6392
    %v6409 = vadd.f32 %v6405, %v6407
    %v6410 = vadd.f32 %v6406, %v6408
    %v6411 = vtanh.pop %v6409
    %v6412 = vtanh.pop %v6410
    %v6413 = vmul.f32 %v6402, %v6411
    %v6414 = vmul.f32 %v6404, %v6412
    %v6415 = vpack.c.bf16 %v6366, %v6365
    %v6416 = vpack.c.bf16 %v6414, %v6413
    %6417 = vst [vmem:[%s2965] sm:$0xff] %v6415
    %6418 = vst [vmem:[%s2963 + $0x8] sm:$0xff] %v6416
    %v6419 = vld [vmem:[%s2442] sm:$0xff]
    %v6420 = vld [vmem:[%s2442 + $0x8] sm:$0xff]
    %v6421 = vld [vmem:[%s2442 + $0x10] sm:$0xff]
    %v6422 = vld [vmem:[%s2442 + $0x18] sm:$0xff]
    %v6423 = vunpack.c.l.bf16 %v6419
    %v6424 = vunpack.c.l.bf16 %v6420
    %v6425 = vunpack.c.l.bf16 %v6421
    %v6426 = vunpack.c.l.bf16 %v6422
    %v6427 = vunpack.c.h.bf16 %v6419
    %v6428 = vunpack.c.h.bf16 %v6420
    %v6429 = vunpack.c.h.bf16 %v6421
    %v6430 = vunpack.c.h.bf16 %v6422
    %6431 = vmatprep.subr.bf16.mxu0 %v1810
    %6432 = vmatpush1.bf16.msra.mxu0 %v1809
    %6433 = vmatprep.subr.bf16.mxu0 %v1814
    %6434 = vmatpush1.bf16.msra.mxu0 %v1813
    %6435 = vmatprep.subr.bf16.mxu0 %v1818
    %6436 = vmatpush1.bf16.msra.mxu0 %v1817
    %6437 = vmatprep.subr.bf16.mxu0 %v1822
    %6438 = vmatpush1.bf16.msra.mxu0 %v1821
    %6439 = vmatprep.subr.bf16.mxu0 %v1826
    %6440 = vmatpush1.bf16.msra.mxu0 %v1825
    %6441 = vmatprep.subr.bf16.mxu0 %v1830
    %6442 = vmatpush1.bf16.msra.mxu0 %v1829
    %6443 = vmatprep.subr.bf16.mxu0 %v1834
    %6444 = vmatpush1.bf16.msra.mxu0 %v1833
    %6445 = vmatprep.subr.bf16.mxu0 %v1838
    %6446 = vmatpush1.bf16.msra.mxu0 %v1837
    %6447 = vmatprep.subr.bf16.mxu0 0
    %6448 = vmatpush1.bf16.msra.mxu0 0
    %6449 = vmatprep.subr.bf16.mxu0 0
    %6450 = vmatpush1.bf16.msra.mxu0 0
    %6451 = vmatprep.subr.bf16.mxu0 0
    %6452 = vmatpush1.bf16.msra.mxu0 0
    %6453 = vmatprep.subr.bf16.mxu0 0
    %6454 = vmatpush1.bf16.msra.mxu0 0
    %6455 = vmatprep.subr.bf16.mxu0 0
    %6456 = vmatpush1.bf16.msra.mxu0 0
    %6457 = vmatprep.subr.bf16.mxu0 0
    %6458 = vmatpush1.bf16.msra.mxu0 0
    %6459 = vmatprep.subr.bf16.mxu0 0
    %6460 = vmatpush1.bf16.msra.mxu0 0
    %6461 = vmatprep.subr.bf16.mxu0 0
    %6462 = vmatpush1.bf16.msra.mxu0 0
    %6463 = vmatprep.mubr.bf16.mxu0 0
    %6464 = vmatmul.mubr.bf16.gmra.mrb[0].mxu0 %v6415
    %v6465 = vpop.f32.mrb[0].mxu0
    %v6466 = vadd.f32 0.0, %v6465
    %v6467 = vpop.f32.mrb[0].mxu0
    %v6468 = vadd.f32 0.0, %v6467
    %v6469 = vpop.f32.mrb[0].mxu0
    %v6470 = vadd.f32 0.0, %v6469
    %v6471 = vpop.f32.mrb[0].mxu0
    %v6472 = vadd.f32 0.0, %v6471
    %6473 = vdwg.mxu0
    %6474 = vmatprep.subr.bf16.mxu0 %v1812
    %6475 = vmatpush1.bf16.msra.mxu0 %v1811
    %6476 = vmatprep.subr.bf16.mxu0 %v1816
    %6477 = vmatpush1.bf16.msra.mxu0 %v1815
    %6478 = vmatprep.subr.bf16.mxu0 %v1820
    %6479 = vmatpush1.bf16.msra.mxu0 %v1819
    %6480 = vmatprep.subr.bf16.mxu0 %v1824
    %6481 = vmatpush1.bf16.msra.mxu0 %v1823
    %6482 = vmatprep.subr.bf16.mxu0 %v1828
    %6483 = vmatpush1.bf16.msra.mxu0 %v1827
    %6484 = vmatprep.subr.bf16.mxu0 %v1832
    %6485 = vmatpush1.bf16.msra.mxu0 %v1831
    %6486 = vmatprep.subr.bf16.mxu0 %v1836
    %6487 = vmatpush1.bf16.msra.mxu0 %v1835
    %6488 = vmatprep.subr.bf16.mxu0 %v1840
    %6489 = vmatpush1.bf16.msra.mxu0 %v1839
    %6490 = vmatprep.subr.bf16.mxu0 0
    %6491 = vmatpush1.bf16.msra.mxu0 0
    %6492 = vmatprep.subr.bf16.mxu0 0
    %6493 = vmatpush1.bf16.msra.mxu0 0
    %6494 = vmatprep.subr.bf16.mxu0 0
    %6495 = vmatpush1.bf16.msra.mxu0 0
    %6496 = vmatprep.subr.bf16.mxu0 0
    %6497 = vmatpush1.bf16.msra.mxu0 0
    %6498 = vmatprep.subr.bf16.mxu0 0
    %6499 = vmatpush1.bf16.msra.mxu0 0
    %6500 = vmatprep.subr.bf16.mxu0 0
    %6501 = vmatpush1.bf16.msra.mxu0 0
    %6502 = vmatprep.subr.bf16.mxu0 0
    %6503 = vmatpush1.bf16.msra.mxu0 0
    %6504 = vmatprep.subr.bf16.mxu0 0
    %6505 = vmatpush1.bf16.msra.mxu0 0
    %6506 = vmatprep.mubr.bf16.mxu0 0
    %6507 = vmatmul.mubr.bf16.gmra.mrb[0].mxu0 %v6415
    %v6508 = vpop.f32.mrb[0].mxu0
    %v6509 = vadd.f32 0.0, %v6508
    %v6510 = vpop.f32.mrb[0].mxu0
    %v6511 = vadd.f32 0.0, %v6510
    %v6512 = vpop.f32.mrb[0].mxu0
    %v6513 = vadd.f32 0.0, %v6512
    %v6514 = vpop.f32.mrb[0].mxu0
    %v6515 = vadd.f32 0.0, %v6514
    %6516 = vdwg.mxu0
    %v6517 = vadd.f32 %v6423, %v6466
    %v6518 = vadd.f32 %v6424, %v6468
    %v6519 = vadd.f32 %v6425, %v6509
    %v6520 = vadd.f32 %v6426, %v6511
    %v6521 = vadd.f32 %v6427, %v6470
    %v6522 = vadd.f32 %v6428, %v6472
    %v6523 = vadd.f32 %v6429, %v6513
    %v6524 = vadd.f32 %v6430, %v6515
    %v6525 = vld [vmem:[%s2335 + $0x20] sm:$0xff]
    %v6526 = vld [vmem:[%s2335 + $0x28] sm:$0xff]
    %v6527 = vld [vmem:[%s2335 + $0x30] sm:$0xff]
    %v6528 = vld [vmem:[%s2335 + $0x38] sm:$0xff]
    %v6529 = vunpack.c.l.bf16 %v6525
    %v6530 = vunpack.c.l.bf16 %v6526
    %v6531 = vunpack.c.l.bf16 %v6527
    %v6532 = vunpack.c.l.bf16 %v6528
    %v6533 = vunpack.c.h.bf16 %v6525
    %v6534 = vunpack.c.h.bf16 %v6526
    %v6535 = vunpack.c.h.bf16 %v6527
    %v6536 = vunpack.c.h.bf16 %v6528
    %6537 = vmatprep.subr.bf16.mxu0 %v2077
    %6538 = vmatpush1.bf16.msra.mxu0 %v2076
    %6539 = vmatprep.subr.bf16.mxu0 %v2081
    %6540 = vmatpush1.bf16.msra.mxu0 %v2080
    %6541 = vmatprep.subr.bf16.mxu0 %v2085
    %6542 = vmatpush1.bf16.msra.mxu0 %v2084
    %6543 = vmatprep.subr.bf16.mxu0 %v2089
    %6544 = vmatpush1.bf16.msra.mxu0 %v2088
    %6545 = vmatprep.subr.bf16.mxu0 %v2093
    %6546 = vmatpush1.bf16.msra.mxu0 %v2092
    %6547 = vmatprep.subr.bf16.mxu0 %v2097
    %6548 = vmatpush1.bf16.msra.mxu0 %v2096
    %6549 = vmatprep.subr.bf16.mxu0 %v2101
    %6550 = vmatpush1.bf16.msra.mxu0 %v2100
    %6551 = vmatprep.subr.bf16.mxu0 %v2105
    %6552 = vmatpush1.bf16.msra.mxu0 %v2104
    %6553 = vmatprep.subr.bf16.mxu0 0
    %6554 = vmatpush1.bf16.msra.mxu0 0
    %6555 = vmatprep.subr.bf16.mxu0 0
    %6556 = vmatpush1.bf16.msra.mxu0 0
    %6557 = vmatprep.subr.bf16.mxu0 0
    %6558 = vmatpush1.bf16.msra.mxu0 0
    %6559 = vmatprep.subr.bf16.mxu0 0
    %6560 = vmatpush1.bf16.msra.mxu0 0
    %6561 = vmatprep.subr.bf16.mxu0 0
    %6562 = vmatpush1.bf16.msra.mxu0 0
    %6563 = vmatprep.subr.bf16.mxu0 0
    %6564 = vmatpush1.bf16.msra.mxu0 0
    %6565 = vmatprep.subr.bf16.mxu0 0
    %6566 = vmatpush1.bf16.msra.mxu0 0
    %6567 = vmatprep.subr.bf16.mxu0 0
    %6568 = vmatpush1.bf16.msra.mxu0 0
    %6569 = vmatprep.mubr.bf16.mxu0 0
    %6570 = vmatmul.mubr.bf16.gmra.mrb[0].mxu0 %v6416
    %v6571 = vpop.f32.mrb[0].mxu0
    %v6572 = vadd.f32 0.0, %v6571
    %v6573 = vpop.f32.mrb[0].mxu0
    %v6574 = vadd.f32 0.0, %v6573
    %v6575 = vpop.f32.mrb[0].mxu0
    %v6576 = vadd.f32 0.0, %v6575
    %v6577 = vpop.f32.mrb[0].mxu0
    %v6578 = vadd.f32 0.0, %v6577
    %6579 = vdwg.mxu0
    %6580 = vmatprep.subr.bf16.mxu0 %v2079
    %6581 = vmatpush1.bf16.msra.mxu0 %v2078
    %6582 = vmatprep.subr.bf16.mxu0 %v2083
    %6583 = vmatpush1.bf16.msra.mxu0 %v2082
    %6584 = vmatprep.subr.bf16.mxu0 %v2087
    %6585 = vmatpush1.bf16.msra.mxu0 %v2086
    %6586 = vmatprep.subr.bf16.mxu0 %v2091
    %6587 = vmatpush1.bf16.msra.mxu0 %v2090
    %6588 = vmatprep.subr.bf16.mxu0 %v2095
    %6589 = vmatpush1.bf16.msra.mxu0 %v2094
    %6590 = vmatprep.subr.bf16.mxu0 %v2099
    %6591 = vmatpush1.bf16.msra.mxu0 %v2098
    %6592 = vmatprep.subr.bf16.mxu0 %v2103
    %6593 = vmatpush1.bf16.msra.mxu0 %v2102
    %6594 = vmatprep.subr.bf16.mxu0 %v2107
    %6595 = vmatpush1.bf16.msra.mxu0 %v2106
    %6596 = vmatprep.subr.bf16.mxu0 0
    %6597 = vmatpush1.bf16.msra.mxu0 0
    %6598 = vmatprep.subr.bf16.mxu0 0
    %6599 = vmatpush1.bf16.msra.mxu0 0
    %6600 = vmatprep.subr.bf16.mxu0 0
    %6601 = vmatpush1.bf16.msra.mxu0 0
    %6602 = vmatprep.subr.bf16.mxu0 0
    %6603 = vmatpush1.bf16.msra.mxu0 0
    %6604 = vmatprep.subr.bf16.mxu0 0
    %6605 = vmatpush1.bf16.msra.mxu0 0
    %6606 = vmatprep.subr.bf16.mxu0 0
    %6607 = vmatpush1.bf16.msra.mxu0 0
    %6608 = vmatprep.subr.bf16.mxu0 0
    %6609 = vmatpush1.bf16.msra.mxu0 0
    %6610 = vmatprep.subr.bf16.mxu0 0
    %6611 = vmatpush1.bf16.msra.mxu0 0
    %6612 = vmatprep.mubr.bf16.mxu0 0
    %6613 = vmatmul.mubr.bf16.gmra.mrb[0].mxu0 %v6416
    %v6614 = vpop.f32.mrb[0].mxu0
    %v6615 = vadd.f32 0.0, %v6614
    %v6616 = vpop.f32.mrb[0].mxu0
    %v6617 = vadd.f32 0.0, %v6616
    %v6618 = vpop.f32.mrb[0].mxu0
    %v6619 = vadd.f32 0.0, %v6618
    %v6620 = vpop.f32.mrb[0].mxu0
    %v6621 = vadd.f32 0.0, %v6620
    %6622 = vdwg.mxu0
    %v6623 = vadd.f32 %v6529, %v6572
    %v6624 = vadd.f32 %v6530, %v6574
    %v6625 = vadd.f32 %v6531, %v6615
    %v6626 = vadd.f32 %v6532, %v6617
    %v6627 = vadd.f32 %v6533, %v6576
    %v6628 = vadd.f32 %v6534, %v6578
    %v6629 = vadd.f32 %v6535, %v6619
    %v6630 = vadd.f32 %v6536, %v6621
    %v6631 = vxor.u32 %v6517, 2147483648
    %v6632 = vxor.u32 %v6521, 2147483648
    %v6633 = vmul.f32 %v6631, 1.442695
    %v6634 = vpow.pop %v6633
    %v6635 = vmul.f32 %v6632, 1.442695
    %v6636 = vpow.pop %v6635
    %v6637 = vadd.f32 %v6634, 1.0
    %v6638 = vadd.f32 %v6636, 1.0
    %v6639 = vrcp.pop %v6637
    %v6640 = vmul.f32 1.0, %v6639
    %v6641 = vrcp.pop %v6638
    %v6642 = vmul.f32 1.0, %v6641
    %v6643 = vxor.u32 %v6518, 2147483648
    %v6644 = vxor.u32 %v6522, 2147483648
    %v6645 = vmul.f32 %v6643, 1.442695
    %v6646 = vpow.pop %v6645
    %v6647 = vmul.f32 %v6644, 1.442695
    %v6648 = vpow.pop %v6647
    %v6649 = vadd.f32 %v6646, 1.0
    %v6650 = vadd.f32 %v6648, 1.0
    %v6651 = vrcp.pop %v6649
    %v6652 = vmul.f32 1.0, %v6651
    %v6653 = vrcp.pop %v6650
    %v6654 = vmul.f32 1.0, %v6653
    %v6655 = vtanh.pop %v6519
    %v6656 = vtanh.pop %v6523
    %v6657 = vxor.u32 %v6520, 2147483648
    %v6658 = vxor.u32 %v6524, 2147483648
    %v6659 = vmul.f32 %v6657, 1.442695
    %v6660 = vpow.pop %v6659
    %v6661 = vmul.f32 %v6658, 1.442695
    %v6662 = vpow.pop %v6661
    %v6663 = vadd.f32 %v6660, 1.0
    %v6664 = vadd.f32 %v6662, 1.0
    %v6665 = vrcp.pop %v6663
    %v6666 = vmul.f32 1.0, %v6665
    %v6667 = vrcp.pop %v6664
    %v6668 = vmul.f32 1.0, %v6667
    %v6669 = vmul.f32 %v6652, %v6361
    %v6670 = vmul.f32 %v6654, %v6362
    %v6671 = vmul.f32 %v6640, %v6655
    %v6672 = vmul.f32 %v6642, %v6656
    %v6673 = vadd.f32 %v6669, %v6671
    %v6674 = vadd.f32 %v6670, %v6672
    %v6675 = vtanh.pop %v6673
    %v6676 = vtanh.pop %v6674
    %v6677 = vmul.f32 %v6666, %v6675
    %v6678 = vmul.f32 %v6668, %v6676
    %v6679 = vxor.u32 %v6623, 2147483648
    %v6680 = vxor.u32 %v6627, 2147483648
    %v6681 = vmul.f32 %v6679, 1.442695
    %v6682 = vpow.pop %v6681
    %v6683 = vmul.f32 %v6680, 1.442695
    %v6684 = vpow.pop %v6683
    %v6685 = vadd.f32 %v6682, 1.0
    %v6686 = vadd.f32 %v6684, 1.0
    %v6687 = vrcp.pop %v6685
    %v6688 = vmul.f32 1.0, %v6687
    %v6689 = vrcp.pop %v6686
    %v6690 = vmul.f32 1.0, %v6689
    %v6691 = vxor.u32 %v6624, 2147483648
    %v6692 = vxor.u32 %v6628, 2147483648
    %v6693 = vmul.f32 %v6691, 1.442695
    %v6694 = vpow.pop %v6693
    %v6695 = vmul.f32 %v6692, 1.442695
    %v6696 = vpow.pop %v6695
    %v6697 = vadd.f32 %v6694, 1.0
    %v6698 = vadd.f32 %v6696, 1.0
    %v6699 = vrcp.pop %v6697
    %v6700 = vmul.f32 1.0, %v6699
    %v6701 = vrcp.pop %v6698
    %v6702 = vmul.f32 1.0, %v6701
    %v6703 = vtanh.pop %v6625
    %v6704 = vtanh.pop %v6629
    %v6705 = vxor.u32 %v6626, 2147483648
    %v6706 = vxor.u32 %v6630, 2147483648
    %v6707 = vmul.f32 %v6705, 1.442695
    %v6708 = vpow.pop %v6707
    %v6709 = vmul.f32 %v6706, 1.442695
    %v6710 = vpow.pop %v6709
    %v6711 = vadd.f32 %v6708, 1.0
    %v6712 = vadd.f32 %v6710, 1.0
    %v6713 = vrcp.pop %v6711
    %v6714 = vmul.f32 1.0, %v6713
    %v6715 = vrcp.pop %v6712
    %v6716 = vmul.f32 1.0, %v6715
    %v6717 = vmul.f32 %v6700, %v6409
    %v6718 = vmul.f32 %v6702, %v6410
    %v6719 = vmul.f32 %v6688, %v6703
    %v6720 = vmul.f32 %v6690, %v6704
    %v6721 = vadd.f32 %v6717, %v6719
    %v6722 = vadd.f32 %v6718, %v6720
    %v6723 = vtanh.pop %v6721
    %v6724 = vtanh.pop %v6722
    %v6725 = vmul.f32 %v6714, %v6723
    %v6726 = vmul.f32 %v6716, %v6724
    %v6727 = vpack.c.bf16 %v6678, %v6677
    %v6728 = vpack.c.bf16 %v6726, %v6725
    %6729 = vst [vmem:[%s2649] sm:$0xff] %v6727
    %6730 = vst [vmem:[%s2647 + $0x8] sm:$0xff] %v6728
    %v6731 = vld [vmem:[%s1967] sm:$0xff]
    %v6732 = vld [vmem:[%s1967 + $0x8] sm:$0xff]
    %v6733 = vld [vmem:[%s1967 + $0x10] sm:$0xff]
    %v6734 = vld [vmem:[%s1967 + $0x18] sm:$0xff]
    %v6735 = vunpack.c.l.bf16 %v6731
    %v6736 = vunpack.c.l.bf16 %v6732
    %v6737 = vunpack.c.l.bf16 %v6733
    %v6738 = vunpack.c.l.bf16 %v6734
    %v6739 = vunpack.c.h.bf16 %v6731
    %v6740 = vunpack.c.h.bf16 %v6732
    %v6741 = vunpack.c.h.bf16 %v6733
    %v6742 = vunpack.c.h.bf16 %v6734
    %6743 = vmatprep.subr.bf16.mxu0 %v1810
    %6744 = vmatpush1.bf16.msra.mxu0 %v1809
    %6745 = vmatprep.subr.bf16.mxu0 %v1814
    %6746 = vmatpush1.bf16.msra.mxu0 %v1813
    %6747 = vmatprep.subr.bf16.mxu0 %v1818
    %6748 = vmatpush1.bf16.msra.mxu0 %v1817
    %6749 = vmatprep.subr.bf16.mxu0 %v1822
    %6750 = vmatpush1.bf16.msra.mxu0 %v1821
    %6751 = vmatprep.subr.bf16.mxu0 %v1826
    %6752 = vmatpush1.bf16.msra.mxu0 %v1825
    %6753 = vmatprep.subr.bf16.mxu0 %v1830
    %6754 = vmatpush1.bf16.msra.mxu0 %v1829
    %6755 = vmatprep.subr.bf16.mxu0 %v1834
    %6756 = vmatpush1.bf16.msra.mxu0 %v1833
    %6757 = vmatprep.subr.bf16.mxu0 %v1838
    %6758 = vmatpush1.bf16.msra.mxu0 %v1837
    %6759 = vmatprep.subr.bf16.mxu0 0
    %6760 = vmatpush1.bf16.msra.mxu0 0
    %6761 = vmatprep.subr.bf16.mxu0 0
    %6762 = vmatpush1.bf16.msra.mxu0 0
    %6763 = vmatprep.subr.bf16.mxu0 0
    %6764 = vmatpush1.bf16.msra.mxu0 0
    %6765 = vmatprep.subr.bf16.mxu0 0
    %6766 = vmatpush1.bf16.msra.mxu0 0
    %6767 = vmatprep.subr.bf16.mxu0 0
    %6768 = vmatpush1.bf16.msra.mxu0 0
    %6769 = vmatprep.subr.bf16.mxu0 0
    %6770 = vmatpush1.bf16.msra.mxu0 0
    %6771 = vmatprep.subr.bf16.mxu0 0
    %6772 = vmatpush1.bf16.msra.mxu0 0
    %6773 = vmatprep.subr.bf16.mxu0 0
    %6774 = vmatpush1.bf16.msra.mxu0 0
    %6775 = vmatprep.mubr.bf16.mxu0 0
    %6776 = vmatmul.mubr.bf16.gmra.mrb[0].mxu0 %v6727
    %v6777 = vpop.f32.mrb[0].mxu0
    %v6778 = vadd.f32 0.0, %v6777
    %v6779 = vpop.f32.mrb[0].mxu0
    %v6780 = vadd.f32 0.0, %v6779
    %v6781 = vpop.f32.mrb[0].mxu0
    %v6782 = vadd.f32 0.0, %v6781
    %v6783 = vpop.f32.mrb[0].mxu0
    %v6784 = vadd.f32 0.0, %v6783
    %6785 = vdwg.mxu0
    %6786 = vmatprep.subr.bf16.mxu0 %v1812
    %6787 = vmatpush1.bf16.msra.mxu0 %v1811
    %6788 = vmatprep.subr.bf16.mxu0 %v1816
    %6789 = vmatpush1.bf16.msra.mxu0 %v1815
    %6790 = vmatprep.subr.bf16.mxu0 %v1820
    %6791 = vmatpush1.bf16.msra.mxu0 %v1819
    %6792 = vmatprep.subr.bf16.mxu0 %v1824
    %6793 = vmatpush1.bf16.msra.mxu0 %v1823
    %6794 = vmatprep.subr.bf16.mxu0 %v1828
    %6795 = vmatpush1.bf16.msra.mxu0 %v1827
    %6796 = vmatprep.subr.bf16.mxu0 %v1832
    %6797 = vmatpush1.bf16.msra.mxu0 %v1831
    %6798 = vmatprep.subr.bf16.mxu0 %v1836
    %6799 = vmatpush1.bf16.msra.mxu0 %v1835
    %6800 = vmatprep.subr.bf16.mxu0 %v1840
    %6801 = vmatpush1.bf16.msra.mxu0 %v1839
    %6802 = vmatprep.subr.bf16.mxu0 0
    %6803 = vmatpush1.bf16.msra.mxu0 0
    %6804 = vmatprep.subr.bf16.mxu0 0
    %6805 = vmatpush1.bf16.msra.mxu0 0
    %6806 = vmatprep.subr.bf16.mxu0 0
    %6807 = vmatpush1.bf16.msra.mxu0 0
    %6808 = vmatprep.subr.bf16.mxu0 0
    %6809 = vmatpush1.bf16.msra.mxu0 0
    %6810 = vmatprep.subr.bf16.mxu0 0
    %6811 = vmatpush1.bf16.msra.mxu0 0
    %6812 = vmatprep.subr.bf16.mxu0 0
    %6813 = vmatpush1.bf16.msra.mxu0 0
    %6814 = vmatprep.subr.bf16.mxu0 0
    %6815 = vmatpush1.bf16.msra.mxu0 0
    %6816 = vmatprep.subr.bf16.mxu0 0
    %6817 = vmatpush1.bf16.msra.mxu0 0
    %6818 = vmatprep.mubr.bf16.mxu0 0
    %6819 = vmatmul.mubr.bf16.gmra.mrb[0].mxu0 %v6727
    %v6820 = vpop.f32.mrb[0].mxu0
    %v6821 = vadd.f32 0.0, %v6820
    %v6822 = vpop.f32.mrb[0].mxu0
    %v6823 = vadd.f32 0.0, %v6822
    %v6824 = vpop.f32.mrb[0].mxu0
    %v6825 = vadd.f32 0.0, %v6824
    %v6826 = vpop.f32.mrb[0].mxu0
    %v6827 = vadd.f32 0.0, %v6826
    %6828 = vdwg.mxu0
    %v6829 = vadd.f32 %v6735, %v6778
    %v6830 = vadd.f32 %v6736, %v6780
    %v6831 = vadd.f32 %v6737, %v6821
    %v6832 = vadd.f32 %v6738, %v6823
    %v6833 = vadd.f32 %v6739, %v6782
    %v6834 = vadd.f32 %v6740, %v6784
    %v6835 = vadd.f32 %v6741, %v6825
    %v6836 = vadd.f32 %v6742, %v6827
    %v6837 = vld [vmem:[#allocation2 + $0x20] sm:$0xff]
    %v6838 = vld [vmem:[#allocation2 + $0x28] sm:$0xff]
    %v6839 = vld [vmem:[#allocation2 + $0x30] sm:$0xff]
    %v6840 = vld [vmem:[#allocation2 + $0x38] sm:$0xff]
    %v6841 = vunpack.c.l.bf16 %v6837
    %v6842 = vunpack.c.l.bf16 %v6838
    %v6843 = vunpack.c.l.bf16 %v6839
    %v6844 = vunpack.c.l.bf16 %v6840
    %v6845 = vunpack.c.h.bf16 %v6837
    %v6846 = vunpack.c.h.bf16 %v6838
    %v6847 = vunpack.c.h.bf16 %v6839
    %v6848 = vunpack.c.h.bf16 %v6840
    %6849 = vmatprep.subr.bf16.mxu0 %v2077
    %6850 = vmatpush1.bf16.msra.mxu0 %v2076
    %6851 = vmatprep.subr.bf16.mxu0 %v2081
    %6852 = vmatpush1.bf16.msra.mxu0 %v2080
    %6853 = vmatprep.subr.bf16.mxu0 %v2085
    %6854 = vmatpush1.bf16.msra.mxu0 %v2084
    %6855 = vmatprep.subr.bf16.mxu0 %v2089
    %6856 = vmatpush1.bf16.msra.mxu0 %v2088
    %6857 = vmatprep.subr.bf16.mxu0 %v2093
    %6858 = vmatpush1.bf16.msra.mxu0 %v2092
    %6859 = vmatprep.subr.bf16.mxu0 %v2097
    %6860 = vmatpush1.bf16.msra.mxu0 %v2096
    %6861 = vmatprep.subr.bf16.mxu0 %v2101
    %6862 = vmatpush1.bf16.msra.mxu0 %v2100
    %6863 = vmatprep.subr.bf16.mxu0 %v2105
    %6864 = vmatpush1.bf16.msra.mxu0 %v2104
    %6865 = vmatprep.subr.bf16.mxu0 0
    %6866 = vmatpush1.bf16.msra.mxu0 0
    %6867 = vmatprep.subr.bf16.mxu0 0
    %6868 = vmatpush1.bf16.msra.mxu0 0
    %6869 = vmatprep.subr.bf16.mxu0 0
    %6870 = vmatpush1.bf16.msra.mxu0 0
    %6871 = vmatprep.subr.bf16.mxu0 0
    %6872 = vmatpush1.bf16.msra.mxu0 0
    %6873 = vmatprep.subr.bf16.mxu0 0
    %6874 = vmatpush1.bf16.msra.mxu0 0
    %6875 = vmatprep.subr.bf16.mxu0 0
    %6876 = vmatpush1.bf16.msra.mxu0 0
    %6877 = vmatprep.subr.bf16.mxu0 0
    %6878 = vmatpush1.bf16.msra.mxu0 0
    %6879 = vmatprep.subr.bf16.mxu0 0
    %6880 = vmatpush1.bf16.msra.mxu0 0
    %6881 = vmatprep.mubr.bf16.mxu0 0
    %6882 = vmatmul.mubr.bf16.gmra.mrb[0].mxu0 %v6728
    %v6883 = vpop.f32.mrb[0].mxu0
    %v6884 = vadd.f32 0.0, %v6883
    %v6885 = vpop.f32.mrb[0].mxu0
    %v6886 = vadd.f32 0.0, %v6885
    %v6887 = vpop.f32.mrb[0].mxu0
    %v6888 = vadd.f32 0.0, %v6887
    %v6889 = vpop.f32.mrb[0].mxu0
    %v6890 = vadd.f32 0.0, %v6889
    %6891 = vdwg.mxu0
    %6892 = vmatprep.subr.bf16.mxu0 %v2079
    %6893 = vmatpush1.bf16.msra.mxu0 %v2078
    %6894 = vmatprep.subr.bf16.mxu0 %v2083
    %6895 = vmatpush1.bf16.msra.mxu0 %v2082
    %6896 = vmatprep.subr.bf16.mxu0 %v2087
    %6897 = vmatpush1.bf16.msra.mxu0 %v2086
    %6898 = vmatprep.subr.bf16.mxu0 %v2091
    %6899 = vmatpush1.bf16.msra.mxu0 %v2090
    %6900 = vmatprep.subr.bf16.mxu0 %v2095
    %6901 = vmatpush1.bf16.msra.mxu0 %v2094
    %6902 = vmatprep.subr.bf16.mxu0 %v2099
    %6903 = vmatpush1.bf16.msra.mxu0 %v2098
    %6904 = vmatprep.subr.bf16.mxu0 %v2103
    %6905 = vmatpush1.bf16.msra.mxu0 %v2102
    %6906 = vmatprep.subr.bf16.mxu0 %v2107
    %6907 = vmatpush1.bf16.msra.mxu0 %v2106
    %6908 = vmatprep.subr.bf16.mxu0 0
    %6909 = vmatpush1.bf16.msra.mxu0 0
    %6910 = vmatprep.subr.bf16.mxu0 0
    %6911 = vmatpush1.bf16.msra.mxu0 0
    %6912 = vmatprep.subr.bf16.mxu0 0
    %6913 = vmatpush1.bf16.msra.mxu0 0
    %6914 = vmatprep.subr.bf16.mxu0 0
    %6915 = vmatpush1.bf16.msra.mxu0 0
    %6916 = vmatprep.subr.bf16.mxu0 0
    %6917 = vmatpush1.bf16.msra.mxu0 0
    %6918 = vmatprep.subr.bf16.mxu0 0
    %6919 = vmatpush1.bf16.msra.mxu0 0
    %6920 = vmatprep.subr.bf16.mxu0 0
    %6921 = vmatpush1.bf16.msra.mxu0 0
    %6922 = vmatprep.subr.bf16.mxu0 0
    %6923 = vmatpush1.bf16.msra.mxu0 0
    %6924 = vmatprep.mubr.bf16.mxu0 0
    %6925 = vmatmul.mubr.bf16.gmra.mrb[0].mxu0 %v6728
    %v6926 = vpop.f32.mrb[0].mxu0
    %v6927 = vadd.f32 0.0, %v6926
    %v6928 = vpop.f32.mrb[0].mxu0
    %v6929 = vadd.f32 0.0, %v6928
    %v6930 = vpop.f32.mrb[0].mxu0
    %v6931 = vadd.f32 0.0, %v6930
    %v6932 = vpop.f32.mrb[0].mxu0
    %v6933 = vadd.f32 0.0, %v6932
    %6934 = vdwg.mxu0
    %v6935 = vadd.f32 %v6841, %v6884
    %v6936 = vadd.f32 %v6842, %v6886
    %v6937 = vadd.f32 %v6843, %v6927
    %v6938 = vadd.f32 %v6844, %v6929
    %v6939 = vadd.f32 %v6845, %v6888
    %v6940 = vadd.f32 %v6846, %v6890
    %v6941 = vadd.f32 %v6847, %v6931
    %v6942 = vadd.f32 %v6848, %v6933
    %v6943 = vxor.u32 %v6829, 2147483648
    %v6944 = vxor.u32 %v6833, 2147483648
    %v6945 = vmul.f32 %v6943, 1.442695
    %v6946 = vpow.pop %v6945
    %v6947 = vmul.f32 %v6944, 1.442695
    %v6948 = vpow.pop %v6947
    %v6949 = vadd.f32 %v6946, 1.0
    %v6950 = vadd.f32 %v6948, 1.0
    %v6951 = vrcp.pop %v6949
    %v6952 = vmul.f32 1.0, %v6951
    %v6953 = vrcp.pop %v6950
    %v6954 = vmul.f32 1.0, %v6953
    %v6955 = vxor.u32 %v6830, 2147483648
    %v6956 = vxor.u32 %v6834, 2147483648
    %v6957 = vmul.f32 %v6955, 1.442695
    %v6958 = vpow.pop %v6957
    %v6959 = vmul.f32 %v6956, 1.442695
    %v6960 = vpow.pop %v6959
    %v6961 = vadd.f32 %v6958, 1.0
    %v6962 = vadd.f32 %v6960, 1.0
    %v6963 = vrcp.pop %v6961
    %v6964 = vmul.f32 1.0, %v6963
    %v6965 = vrcp.pop %v6962
    %v6966 = vmul.f32 1.0, %v6965
    %v6967 = vtanh.pop %v6831
    %v6968 = vtanh.pop %v6835
    %v6969 = vxor.u32 %v6832, 2147483648
    %v6970 = vxor.u32 %v6836, 2147483648
    %v6971 = vmul.f32 %v6969, 1.442695
    %v6972 = vpow.pop %v6971
    %v6973 = vmul.f32 %v6970, 1.442695
    %v6974 = vpow.pop %v6973
    %v6975 = vadd.f32 %v6972, 1.0
    %v6976 = vadd.f32 %v6974, 1.0
    %v6977 = vrcp.pop %v6975
    %v6978 = vmul.f32 1.0, %v6977
    %v6979 = vrcp.pop %v6976
    %v6980 = vmul.f32 1.0, %v6979
    %v6981 = vmul.f32 %v6964, %v6673
    %v6982 = vmul.f32 %v6966, %v6674
    %v6983 = vmul.f32 %v6952, %v6967
    %v6984 = vmul.f32 %v6954, %v6968
    %v6985 = vadd.f32 %v6981, %v6983
    %v6986 = vadd.f32 %v6982, %v6984
    %v6987 = vtanh.pop %v6985
    %v6988 = vtanh.pop %v6986
    %v6989 = vmul.f32 %v6978, %v6987
    %v6990 = vmul.f32 %v6980, %v6988
    %v6991 = vxor.u32 %v6935, 2147483648
    %v6992 = vxor.u32 %v6939, 2147483648
    %v6993 = vmul.f32 %v6991, 1.442695
    %v6994 = vpow.pop %v6993
    %v6995 = vmul.f32 %v6992, 1.442695
    %v6996 = vpow.pop %v6995
    %v6997 = vadd.f32 %v6994, 1.0
    %v6998 = vadd.f32 %v6996, 1.0
    %v6999 = vrcp.pop %v6997
    %v7000 = vmul.f32 1.0, %v6999
    %v7001 = vrcp.pop %v6998
    %v7002 = vmul.f32 1.0, %v7001
    %v7003 = vxor.u32 %v6936, 2147483648
    %v7004 = vxor.u32 %v6940, 2147483648
    %v7005 = vmul.f32 %v7003, 1.442695
    %v7006 = vpow.pop %v7005
    %v7007 = vmul.f32 %v7004, 1.442695
    %v7008 = vpow.pop %v7007
    %v7009 = vadd.f32 %v7006, 1.0
    %v7010 = vadd.f32 %v7008, 1.0
    %v7011 = vrcp.pop %v7009
    %v7012 = vmul.f32 1.0, %v7011
    %v7013 = vrcp.pop %v7010
    %v7014 = vmul.f32 1.0, %v7013
    %v7015 = vtanh.pop %v6937
    %v7016 = vtanh.pop %v6941
    %v7017 = vxor.u32 %v6938, 2147483648
    %v7018 = vxor.u32 %v6942, 2147483648
    %v7019 = vmul.f32 %v7017, 1.442695
    %v7020 = vpow.pop %v7019
    %v7021 = vmul.f32 %v7018, 1.442695
    %v7022 = vpow.pop %v7021
    %v7023 = vadd.f32 %v7020, 1.0
    %v7024 = vadd.f32 %v7022, 1.0
    %v7025 = vrcp.pop %v7023
    %v7026 = vmul.f32 1.0, %v7025
    %v7027 = vrcp.pop %v7024
    %v7028 = vmul.f32 1.0, %v7027
    %v7029 = vmul.f32 %v7012, %v6721
    %v7030 = vmul.f32 %v7014, %v6722
    %v7031 = vmul.f32 %v7000, %v7015
    %v7032 = vmul.f32 %v7002, %v7016
    %v7033 = vadd.f32 %v7029, %v7031
    %v7034 = vadd.f32 %v7030, %v7032
    %v7035 = vtanh.pop %v7033
    %v7036 = vtanh.pop %v7034
    %v7037 = vmul.f32 %v7026, %v7035
    %v7038 = vmul.f32 %v7028, %v7036
    %v7039 = vpack.c.bf16 %v6990, %v6989
    %v7040 = vpack.c.bf16 %v7038, %v7037
    %7041 = vst [vmem:[%s2333] sm:$0xff] %v7039
    %7042 = vst [vmem:[#allocation3 + $0x8] sm:$0xff] %v7040
    %v7043 = vld [vmem:[#allocation3] sm:$0xff]
    %v7044 = vld [vmem:[#allocation3 + $0x8] sm:$0xff]
    %v7045 = vld [vmem:[#allocation3 + $0x10] sm:$0xff]
    %v7046 = vld [vmem:[#allocation3 + $0x18] sm:$0xff]
    %v7047 = vld [vmem:[#allocation3 + $0x20] sm:$0xff]
    %v7048 = vld [vmem:[#allocation3 + $0x28] sm:$0xff]
    %v7049 = vld [vmem:[#allocation3 + $0x30] sm:$0xff]
    %v7050 = vld [vmem:[#allocation3 + $0x38] sm:$0xff]
    %v7051 = vld [vmem:[#allocation3 + $0x40] sm:$0xff]
    %v7052 = vld [vmem:[#allocation3 + $0x48] sm:$0xff]
    %v7053 = vld [vmem:[#allocation3 + $0x50] sm:$0xff]
    %v7054 = vld [vmem:[#allocation3 + $0x58] sm:$0xff]
    %v7055 = vld [vmem:[#allocation3 + $0x60] sm:$0xff]
    %v7056 = vld [vmem:[#allocation3 + $0x68] sm:$0xff]
    %v7057 = vld [vmem:[#allocation3 + $0x70] sm:$0xff]
    %v7058 = vld [vmem:[#allocation3 + $0x78] sm:$0xff]
    %v7059 = vld [vmem:[#allocation3 + $0x80] sm:$0xff]
    %v7060 = vld [vmem:[#allocation3 + $0x88] sm:$0xff]
    %v7061 = vld [vmem:[#allocation3 + $0x90] sm:$0xff]
    %v7062 = vld [vmem:[#allocation3 + $0x98] sm:$0xff]
    %v7063 = vld [vmem:[#allocation3 + $0xa0] sm:$0xff]
    %v7064 = vld [vmem:[#allocation3 + $0xa8] sm:$0xff]
    %v7065 = vld [vmem:[#allocation3 + $0xb0] sm:$0xff]
    %v7066 = vld [vmem:[#allocation3 + $0xb8] sm:$0xff]
    %v7067 = vld [vmem:[#allocation3 + $0xc0] sm:$0xff]
    %v7068 = vld [vmem:[#allocation3 + $0xc8] sm:$0xff]
    %v7069 = vld [vmem:[#allocation3 + $0xd0] sm:$0xff]
    %v7070 = vld [vmem:[#allocation3 + $0xd8] sm:$0xff]
    %v7071 = vld [vmem:[#allocation3 + $0xe0] sm:$0xff]
    %v7072 = vld [vmem:[#allocation3 + $0xe8] sm:$0xff]
    %v7073 = vld [vmem:[#allocation3 + $0xf0] sm:$0xff]
    %v7074 = vld [vmem:[#allocation3 + $0xf8] sm:$0xff]
    %v7075 = vld [vmem:[%s5] sm:$0xf]
    %v7076 = vld [vmem:[%s5 + $0x4] sm:$0xf]
    %v7077 = vld [vmem:[%s5 + $0x8] sm:$0xf]
    %v7078 = vld [vmem:[%s5 + $0xc] sm:$0xf]
    %v7079 = vld [vmem:[%s5 + $0x10] sm:$0xf]
    %v7080 = vld [vmem:[%s5 + $0x14] sm:$0xf]
    %v7081 = vld [vmem:[%s5 + $0x18] sm:$0xf]
    %v7082 = vld [vmem:[%s5 + $0x1c] sm:$0xf]
    %v7083 = vld [vmem:[%s5 + $0x20] sm:$0xf]
    %v7084 = vld [vmem:[%s5 + $0x24] sm:$0xf]
    %v7085 = vld [vmem:[%s5 + $0x28] sm:$0xf]
    %v7086 = vld [vmem:[%s5 + $0x2c] sm:$0xf]
    %v7087 = vld [vmem:[%s5 + $0x30] sm:$0xf]
    %v7088 = vld [vmem:[%s5 + $0x34] sm:$0xf]
    %v7089 = vld [vmem:[%s5 + $0x38] sm:$0xf]
    %v7090 = vld [vmem:[%s5 + $0x3c] sm:$0xf]
    %v7091 = vld [vmem:[%s5 + $0x40] sm:$0xf]
    %v7092 = vld [vmem:[%s5 + $0x44] sm:$0xf]
    %v7093 = vld [vmem:[%s5 + $0x48] sm:$0xf]
    %v7094 = vld [vmem:[%s5 + $0x4c] sm:$0xf]
    %v7095 = vld [vmem:[%s5 + $0x50] sm:$0xf]
    %v7096 = vld [vmem:[%s5 + $0x54] sm:$0xf]
    %v7097 = vld [vmem:[%s5 + $0x58] sm:$0xf]
    %v7098 = vld [vmem:[%s5 + $0x5c] sm:$0xf]
    %v7099 = vld [vmem:[%s5 + $0x60] sm:$0xf]
    %v7100 = vld [vmem:[%s5 + $0x64] sm:$0xf]
    %v7101 = vld [vmem:[%s5 + $0x68] sm:$0xf]
    %v7102 = vld [vmem:[%s5 + $0x6c] sm:$0xf]
    %v7103 = vld [vmem:[%s5 + $0x70] sm:$0xf]
    %v7104 = vld [vmem:[%s5 + $0x74] sm:$0xf]
    %v7105 = vld [vmem:[%s5 + $0x78] sm:$0xf]
    %v7106 = vld [vmem:[%s5 + $0x7c] sm:$0xf]
    %v7107 = vld [vmem:[%s6] sm:$0x1]
    %v7109 = vlaneseq
    %v7110 = vshrl.u32 %v7109, 7
    %v7111 = vsub.s32 0, %v7110
    %v7112 = vrot.slane %v7107, %v7111
    %v7146 = vunpack.c.l.b16 %v7075
    %v7147 = vunpack.c.l.b16 %v7076
    %v7148 = vunpack.c.l.b16 %v7077
    %v7149 = vunpack.c.l.b16 %v7078
    %v7150 = vunpack.c.l.b16 %v7079
    %v7151 = vunpack.c.l.b16 %v7080
    %v7152 = vunpack.c.l.b16 %v7081
    %v7153 = vunpack.c.l.b16 %v7082
    %v7154 = vunpack.c.l.b16 %v7083
    %v7155 = vunpack.c.l.b16 %v7084
    %v7156 = vunpack.c.l.b16 %v7085
    %v7157 = vunpack.c.l.b16 %v7086
    %v7158 = vunpack.c.l.b16 %v7087
    %v7159 = vunpack.c.l.b16 %v7088
    %v7160 = vunpack.c.l.b16 %v7089
    %v7161 = vunpack.c.l.b16 %v7090
    %v7162 = vunpack.c.l.b16 %v7091
    %v7163 = vunpack.c.l.b16 %v7092
    %v7164 = vunpack.c.l.b16 %v7093
    %v7165 = vunpack.c.l.b16 %v7094
    %v7166 = vunpack.c.l.b16 %v7095
    %v7167 = vunpack.c.l.b16 %v7096
    %v7168 = vunpack.c.l.b16 %v7097
    %v7169 = vunpack.c.l.b16 %v7098
    %v7170 = vunpack.c.l.b16 %v7099
    %v7171 = vunpack.c.l.b16 %v7100
    %v7172 = vunpack.c.l.b16 %v7101
    %v7173 = vunpack.c.l.b16 %v7102
    %v7174 = vunpack.c.l.b16 %v7103
    %v7175 = vunpack.c.l.b16 %v7104
    %v7176 = vunpack.c.l.b16 %v7105
    %v7177 = vunpack.c.l.b16 %v7106
    %v7178 = vpack.c.b16 %v7147, %v7146
    %v7179 = vpack.c.b16 %v7149, %v7148
    %v7180 = vpack.c.b16 %v7151, %v7150
    %v7181 = vpack.c.b16 %v7153, %v7152
    %v7182 = vpack.c.b16 %v7155, %v7154
    %v7183 = vpack.c.b16 %v7157, %v7156
    %v7184 = vpack.c.b16 %v7159, %v7158
    %v7185 = vpack.c.b16 %v7161, %v7160
    %v7186 = vpack.c.b16 %v7163, %v7162
    %v7187 = vpack.c.b16 %v7165, %v7164
    %v7188 = vpack.c.b16 %v7167, %v7166
    %v7189 = vpack.c.b16 %v7169, %v7168
    %v7190 = vpack.c.b16 %v7171, %v7170
    %v7191 = vpack.c.b16 %v7173, %v7172
    %v7192 = vpack.c.b16 %v7175, %v7174
    %v7193 = vpack.c.b16 %v7177, %v7176
    %7210 = vmatprep.subr.bf16.mxu0 0
    %7211 = vmatpush1.bf16.msra.mxu0 %v7178
    %7212 = vmatprep.subr.bf16.mxu0 0
    %7213 = vmatpush1.bf16.msra.mxu0 %v7179
    %7214 = vmatprep.subr.bf16.mxu0 0
    %7215 = vmatpush1.bf16.msra.mxu0 %v7180
    %7216 = vmatprep.subr.bf16.mxu0 0
    %7217 = vmatpush1.bf16.msra.mxu0 %v7181
    %7218 = vmatprep.subr.bf16.mxu0 0
    %7219 = vmatpush1.bf16.msra.mxu0 %v7182
    %7220 = vmatprep.subr.bf16.mxu0 0
    %7221 = vmatpush1.bf16.msra.mxu0 %v7183
    %7222 = vmatprep.subr.bf16.mxu0 0
    %7223 = vmatpush1.bf16.msra.mxu0 %v7184
    %7224 = vmatprep.subr.bf16.mxu0 0
    %7225 = vmatpush1.bf16.msra.mxu0 %v7185
    %7226 = vmatprep.subr.bf16.mxu0 0
    %7227 = vmatpush1.bf16.msra.mxu0 %v7186
    %7228 = vmatprep.subr.bf16.mxu0 0
    %7229 = vmatpush1.bf16.msra.mxu0 %v7187
    %7230 = vmatprep.subr.bf16.mxu0 0
    %7231 = vmatpush1.bf16.msra.mxu0 %v7188
    %7232 = vmatprep.subr.bf16.mxu0 0
    %7233 = vmatpush1.bf16.msra.mxu0 %v7189
    %7234 = vmatprep.subr.bf16.mxu0 0
    %7235 = vmatpush1.bf16.msra.mxu0 %v7190
    %7236 = vmatprep.subr.bf16.mxu0 0
    %7237 = vmatpush1.bf16.msra.mxu0 %v7191
    %7238 = vmatprep.subr.bf16.mxu0 0
    %7239 = vmatpush1.bf16.msra.mxu0 %v7192
    %7240 = vmatprep.subr.bf16.mxu0 0
    %7241 = vmatpush1.bf16.msra.mxu0 %v7193
    %7242 = vmatprep.mubr.bf16.mxu0 %v7044
    %7243 = vmatmul.mubr.bf16.gmra.mrb[0].mxu0 %v7043
    %v7244 = vpop.f32.mrb[0].mxu0
    %v7245 = vadd.f32 %v7112, %v7244
    %v7246 = vpop.f32.mrb[0].mxu0
    %v7247 = vpop.f32.mrb[0].mxu0
    %v7248 = vadd.f32 %v7112, %v7247
    %v7249 = vpop.f32.mrb[0].mxu0
    %7250 = vmatprep.mubr.bf16.mxu0 %v7046
    %7251 = vmatmul.mubr.bf16.gmra.mrb[0].mxu0 %v7045
    %v7252 = vpop.f32.mrb[0].mxu0
    %v7253 = vadd.f32 %v7112, %v7252
    %v7254 = vpop.f32.mrb[0].mxu0
    %v7255 = vpop.f32.mrb[0].mxu0
    %v7256 = vadd.f32 %v7112, %v7255
    %v7257 = vpop.f32.mrb[0].mxu0
    %7258 = vmatprep.mubr.bf16.mxu0 %v7048
    %7259 = vmatmul.mubr.bf16.gmra.mrb[0].mxu0 %v7047
    %v7260 = vpop.f32.mrb[0].mxu0
    %v7261 = vadd.f32 %v7112, %v7260
    %v7262 = vpop.f32.mrb[0].mxu0
    %v7263 = vpop.f32.mrb[0].mxu0
    %v7264 = vadd.f32 %v7112, %v7263
    %v7265 = vpop.f32.mrb[0].mxu0
    %7266 = vmatprep.mubr.bf16.mxu0 %v7050
    %7267 = vmatmul.mubr.bf16.gmra.mrb[0].mxu0 %v7049
    %v7268 = vpop.f32.mrb[0].mxu0
    %v7269 = vadd.f32 %v7112, %v7268
    %v7270 = vpop.f32.mrb[0].mxu0
    %v7271 = vpop.f32.mrb[0].mxu0
    %v7272 = vadd.f32 %v7112, %v7271
    %v7273 = vpop.f32.mrb[0].mxu0
    %7274 = vmatprep.mubr.bf16.mxu0 %v7052
    %7275 = vmatmul.mubr.bf16.gmra.mrb[0].mxu0 %v7051
    %v7276 = vpop.f32.mrb[0].mxu0
    %v7277 = vadd.f32 %v7112, %v7276
    %v7278 = vpop.f32.mrb[0].mxu0
    %v7279 = vpop.f32.mrb[0].mxu0
    %v7280 = vadd.f32 %v7112, %v7279
    %v7281 = vpop.f32.mrb[0].mxu0
    %7282 = vmatprep.mubr.bf16.mxu0 %v7054
    %7283 = vmatmul.mubr.bf16.gmra.mrb[0].mxu0 %v7053
    %v7284 = vpop.f32.mrb[0].mxu0
    %v7285 = vadd.f32 %v7112, %v7284
    %v7286 = vpop.f32.mrb[0].mxu0
    %v7287 = vpop.f32.mrb[0].mxu0
    %v7288 = vadd.f32 %v7112, %v7287
    %v7289 = vpop.f32.mrb[0].mxu0
    %7290 = vmatprep.mubr.bf16.mxu0 %v7056
    %7291 = vmatmul.mubr.bf16.gmra.mrb[0].mxu0 %v7055
    %v7292 = vpop.f32.mrb[0].mxu0
    %v7293 = vadd.f32 %v7112, %v7292
    %v7294 = vpop.f32.mrb[0].mxu0
    %v7295 = vpop.f32.mrb[0].mxu0
    %v7296 = vadd.f32 %v7112, %v7295
    %v7297 = vpop.f32.mrb[0].mxu0
    %7298 = vmatprep.mubr.bf16.mxu0 %v7058
    %7299 = vmatmul.mubr.bf16.gmra.mrb[0].mxu0 %v7057
    %v7300 = vpop.f32.mrb[0].mxu0
    %v7301 = vadd.f32 %v7112, %v7300
    %v7302 = vpop.f32.mrb[0].mxu0
    %v7303 = vpop.f32.mrb[0].mxu0
    %v7304 = vadd.f32 %v7112, %v7303
    %v7305 = vpop.f32.mrb[0].mxu0
    %7306 = vmatprep.mubr.bf16.mxu0 %v7060
    %7307 = vmatmul.mubr.bf16.gmra.mrb[0].mxu0 %v7059
    %v7308 = vpop.f32.mrb[0].mxu0
    %v7309 = vadd.f32 %v7112, %v7308
    %v7310 = vpop.f32.mrb[0].mxu0
    %v7311 = vpop.f32.mrb[0].mxu0
    %v7312 = vadd.f32 %v7112, %v7311
    %v7313 = vpop.f32.mrb[0].mxu0
    %7314 = vmatprep.mubr.bf16.mxu0 %v7062
    %7315 = vmatmul.mubr.bf16.gmra.mrb[0].mxu0 %v7061
    %v7316 = vpop.f32.mrb[0].mxu0
    %v7317 = vadd.f32 %v7112, %v7316
    %v7318 = vpop.f32.mrb[0].mxu0
    %v7319 = vpop.f32.mrb[0].mxu0
    %v7320 = vadd.f32 %v7112, %v7319
    %v7321 = vpop.f32.mrb[0].mxu0
    %7322 = vmatprep.mubr.bf16.mxu0 %v7064
    %7323 = vmatmul.mubr.bf16.gmra.mrb[0].mxu0 %v7063
    %v7324 = vpop.f32.mrb[0].mxu0
    %v7325 = vadd.f32 %v7112, %v7324
    %v7326 = vpop.f32.mrb[0].mxu0
    %v7327 = vpop.f32.mrb[0].mxu0
    %v7328 = vadd.f32 %v7112, %v7327
    %v7329 = vpop.f32.mrb[0].mxu0
    %7330 = vmatprep.mubr.bf16.mxu0 %v7066
    %7331 = vmatmul.mubr.bf16.gmra.mrb[0].mxu0 %v7065
    %v7332 = vpop.f32.mrb[0].mxu0
    %v7333 = vadd.f32 %v7112, %v7332
    %v7334 = vpop.f32.mrb[0].mxu0
    %v7335 = vpop.f32.mrb[0].mxu0
    %v7336 = vadd.f32 %v7112, %v7335
    %v7337 = vpop.f32.mrb[0].mxu0
    %7338 = vmatprep.mubr.bf16.mxu0 %v7068
    %7339 = vmatmul.mubr.bf16.gmra.mrb[0].mxu0 %v7067
    %v7340 = vpop.f32.mrb[0].mxu0
    %v7341 = vadd.f32 %v7112, %v7340
    %v7342 = vpop.f32.mrb[0].mxu0
    %v7343 = vpop.f32.mrb[0].mxu0
    %v7344 = vadd.f32 %v7112, %v7343
    %v7345 = vpop.f32.mrb[0].mxu0
    %7346 = vmatprep.mubr.bf16.mxu0 %v7070
    %7347 = vmatmul.mubr.bf16.gmra.mrb[0].mxu0 %v7069
    %v7348 = vpop.f32.mrb[0].mxu0
    %v7349 = vadd.f32 %v7112, %v7348
    %v7350 = vpop.f32.mrb[0].mxu0
    %v7351 = vpop.f32.mrb[0].mxu0
    %v7352 = vadd.f32 %v7112, %v7351
    %v7353 = vpop.f32.mrb[0].mxu0
    %7354 = vmatprep.mubr.bf16.mxu0 %v7072
    %7355 = vmatmul.mubr.bf16.gmra.mrb[0].mxu0 %v7071
    %v7356 = vpop.f32.mrb[0].mxu0
    %v7357 = vadd.f32 %v7112, %v7356
    %v7358 = vpop.f32.mrb[0].mxu0
    %v7359 = vpop.f32.mrb[0].mxu0
    %v7360 = vadd.f32 %v7112, %v7359
    %v7361 = vpop.f32.mrb[0].mxu0
    %7362 = vmatprep.mubr.bf16.mxu0 %v7074
    %7363 = vmatmul.mubr.bf16.gmra.mrb[0].mxu0 %v7073
    %v7364 = vpop.f32.mrb[0].mxu0
    %v7365 = vadd.f32 %v7112, %v7364
    %v7366 = vpop.f32.mrb[0].mxu0
    %v7367 = vpop.f32.mrb[0].mxu0
    %v7368 = vadd.f32 %v7112, %v7367
    %v7369 = vpop.f32.mrb[0].mxu0
    %7370 = vdwg.mxu0
    %7371 = vst [vmem:[%s7] sm:$0xff] %v7245
    %7372 = vst [vmem:[%s7 + $0x8] sm:$0xff] %v7248
    %7373 = vst [vmem:[%s7 + $0x10] sm:$0xff] %v7253
    %7374 = vst [vmem:[%s7 + $0x18] sm:$0xff] %v7256
    %7375 = vst [vmem:[%s7 + $0x20] sm:$0xff] %v7261
    %7376 = vst [vmem:[%s7 + $0x28] sm:$0xff] %v7264
    %7377 = vst [vmem:[%s7 + $0x30] sm:$0xff] %v7269
    %7378 = vst [vmem:[%s7 + $0x38] sm:$0xff] %v7272
    %7379 = vst [vmem:[%s7 + $0x40] sm:$0xff] %v7277
    %7380 = vst [vmem:[%s7 + $0x48] sm:$0xff] %v7280
    %7381 = vst [vmem:[%s7 + $0x50] sm:$0xff] %v7285
    %7382 = vst [vmem:[%s7 + $0x58] sm:$0xff] %v7288
    %7383 = vst [vmem:[%s7 + $0x60] sm:$0xff] %v7293
    %7384 = vst [vmem:[%s7 + $0x68] sm:$0xff] %v7296
    %7385 = vst [vmem:[%s7 + $0x70] sm:$0xff] %v7301
    %7386 = vst [vmem:[%s7 + $0x78] sm:$0xff] %v7304
    %7387 = vst [vmem:[%s7 + $0x80] sm:$0xff] %v7309
    %7388 = vst [vmem:[%s7 + $0x88] sm:$0xff] %v7312
    %7389 = vst [vmem:[%s7 + $0x90] sm:$0xff] %v7317
    %7390 = vst [vmem:[%s7 + $0x98] sm:$0xff] %v7320
    %7391 = vst [vmem:[%s7 + $0xa0] sm:$0xff] %v7325
    %7392 = vst [vmem:[%s7 + $0xa8] sm:$0xff] %v7328
    %7393 = vst [vmem:[%s7 + $0xb0] sm:$0xff] %v7333
    %7394 = vst [vmem:[%s7 + $0xb8] sm:$0xff] %v7336
    %7395 = vst [vmem:[%s7 + $0xc0] sm:$0xff] %v7341
    %7396 = vst [vmem:[%s7 + $0xc8] sm:$0xff] %v7344
    %7397 = vst [vmem:[%s7 + $0xd0] sm:$0xff] %v7349
    %7398 = vst [vmem:[%s7 + $0xd8] sm:$0xff] %v7352
    %7399 = vst [vmem:[%s7 + $0xe0] sm:$0xff] %v7357
    %7400 = vst [vmem:[%s7 + $0xe8] sm:$0xff] %v7360
    %7401 = vst [vmem:[%s7 + $0xf0] sm:$0xff] %v7365
    %7402 = vst [vmem:[%s7 + $0xf8] sm:$0xff] %v7368
    // Predicated region
    $region38: #{single_rnn_forward.1} parent=1 // pred_check
      _
    $region39: #{single_rnn_forward.1} parent=1 // pred_check_branch
      %7404 = sbr.rel (0) target = $region41
    $region40: #{single_rnn_forward.1} parent=1 // pred_region
      _
    $region41: #{single_rnn_forward.1} parent=1 // pred_fallthru
      _
    // Predicated region
    $region42: #{single_rnn_forward.1} parent=1 // pred_check
      _
    $region43: #{single_rnn_forward.1} parent=1 // pred_check_branch
      %7406 = sbr.rel (0) target = $region45
    $region44: #{single_rnn_forward.1} parent=1 // pred_region
      _
    $region45: #{single_rnn_forward.1} parent=1 // pred_fallthru
      _
    %7407 = vsyncpa [#allocation5], 1
    %7408 = vsyncpa [#allocation7], 1

</llo_original>
